<compile_context>
chip_gen: v7x
topology: tpu7x:2x2x1
jax: 0.10.0
libtpu: 0.0.40
codegen_flags: <defaults>
</compile_context>

<pallas_src>
import functools

import jax
import jax.numpy as jnp
from jax.experimental import pallas as pl
from jax.experimental.pallas import tpu as pltpu


def _fused_block_kernel(x_ref, w1_ref, b1_ref, w2_ref, b2_ref, o_ref,
                        xp, hp, *, nb, H, W, C, Cp, compute_dtype):
    """Fused BasicBlock for `nb` batch images (NHWC, channels on the lanes).

    x_ref  : (nb, H, W, C)                 input block (real channel count)
    w1_ref : (9, Cp, Cp)  compute_dtype    conv1 weights, BN1 scale folded
    b1_ref : (1, Cp)      f32              folded BN1 bias (zero-padded)
    w2_ref : (9, Cp, Cp)  compute_dtype    conv2 weights, BN2 scale folded
    b2_ref : (1, Cp)      f32              folded BN2 bias (zero-padded)
    o_ref  : (nb, H, W, C)                 output block
    xp, hp : (nb, H+2, W+2, Cp) compute_dtype VMEM scratch (spatial halo pad)
    """
    cdt = compute_dtype
    M = nb * H * W

    # Zero ONLY the halo strips, unconditionally every grid step.  Scratch is
    # per-TensorCore, so this must not be gated on program_id==0 when the
    # batch axis is sharded across cores ("parallel").
    zrow = jnp.zeros((nb, 1, W + 2, Cp), cdt)
    zcol = jnp.zeros((nb, H + 2, 1, Cp), cdt)
    for ref in (xp, hp):
        ref[:, 0:1, :, :] = zrow
        ref[:, H + 1:H + 2, :, :] = zrow
        ref[:, :, 0:1, :] = zcol
        ref[:, :, W + 1:W + 2, :] = zcol

    # Load x once; keep an f32 copy in vregs for the residual add.
    x = x_ref[...].astype(jnp.float32)                     # (nb, H, W, C)
    x_pad = x.astype(cdt)
    if Cp > C:                                             # lane-pad channels
        x_pad = jnp.concatenate(
            [x_pad, jnp.zeros((nb, H, W, Cp - C), cdt)], axis=-1)
    xp[:, 1:H + 1, 1:W + 1, :] = x_pad                     # in-VMEM halo pad

    def conv3x3(src_ref, w_ref, b_ref):
        # 9 accumulated depth-Cp matmuls (no materialized im2col temporary).
        acc = jnp.zeros((M, Cp), jnp.float32)
        for kh in range(3):
            for kw in range(3):
                lhs = src_ref[:, kh:kh + H, kw:kw + W, :].reshape(M, Cp)
                acc = acc + jnp.dot(lhs, w_ref[kh * 3 + kw],
                                    preferred_element_type=jnp.float32)
        return acc + b_ref[...]                            # BN bias folded in

    # conv1 -> bn1 -> relu   (intermediate stays entirely in VMEM)
    h = jnp.maximum(conv3x3(xp, w1_ref, b1_ref), 0.0)
    hp[:, 1:H + 1, 1:W + 1, :] = h.astype(cdt).reshape(nb, H, W, Cp)

    # conv2 -> bn2 -> (+ identity) -> relu
    y = conv3x3(hp, w2_ref, b2_ref).reshape(nb, H, W, Cp)
    y = y[..., :C] + x
    o_ref[...] = jnp.maximum(y, 0.0).astype(o_ref.dtype)


def fold_bn(gamma, beta, mean, var, eps=1e-5):
    scale = gamma / jnp.sqrt(var + eps)
    bias = beta - mean * scale
    return scale, bias


def _vmem_limit_bytes():
    # ~100 MB on v5e/v6e (128 MiB physical), ~56 MB on v7x (64 MiB physical).
    try:
        cap = int(pltpu.get_tpu_info().vmem_capacity_bytes)
    except Exception:       # query unavailable -> conservative default
        cap = 64 * 1024 * 1024
    return min(100 * 1024 * 1024, (cap * 7) // 8)


def _pick_batch_block(N, H, W, target_m=256):
    """Smallest divisor of N with nb*H*W >= target_m (MXU M-occupancy)."""
    if H * W >= target_m:
        return 1
    want = -(-target_m // (H * W))
    for nb in range(want, N + 1):
        if N % nb == 0:
            return nb
    return N


def basic_block_forward_nhwc(x_nhwc, params, *, compute_dtype=jnp.bfloat16,
                             nb=None):
    """Fused BasicBlock forward, NHWC layout (stride=1, identity shortcut)."""
    N, H, W, C = x_nhwc.shape
    assert params["w1"].shape == (3, 3, C, C), "stride=1 / identity path only"
    assert params["w2"].shape == (3, 3, C, C), "in_channels must equal out_channels"
    Cp = ((C + 127) // 128) * 128                  # lane-dense channel padding
    if nb is None:
        nb = _pick_batch_block(N, H, W)
    assert N % nb == 0

    s1, b1 = fold_bn(params["bn1_gamma"], params["bn1_beta"],
                     params["bn1_mean"], params["bn1_var"])
    s2, b2 = fold_bn(params["bn2_gamma"], params["bn2_beta"],
                     params["bn2_mean"], params["bn2_var"])

    def prep(w_hwio, scale, bias):
        # Fold BN scale into output channels; pad channels; one (Cp, Cp)
        # weight matrix per 3x3 tap (kernel iterates kh*3+kw in this order).
        wf = w_hwio * scale[None, None, None, :]
        wp = jnp.zeros((3, 3, Cp, Cp), jnp.float32).at[:, :, :C, :C].set(wf)
        wp = wp.reshape(9, Cp, Cp).astype(compute_dtype)
        bp = jnp.zeros((1, Cp), jnp.float32).at[:, :C].set(bias[None, :])
        return wp, bp

    w1p, b1p = prep(params["w1"], s1, b1)
    w2p, b2p = prep(params["w2"], s2, b2)

    kernel = functools.partial(_fused_block_kernel, nb=nb, H=H, W=W, C=C,
                               Cp=Cp, compute_dtype=compute_dtype)
    const = dict(pipeline_mode=pl.Buffered(1))     # constants: single buffer
    return pl.pallas_call(
        kernel,
        out_shape=jax.ShapeDtypeStruct((N, H, W, C), x_nhwc.dtype),
        grid_spec=pltpu.PrefetchScalarGridSpec(
            num_scalar_prefetch=0,
            grid=(N // nb,),
            in_specs=[
                pl.BlockSpec((nb, H, W, C), lambda n: (n, 0, 0, 0)),
                pl.BlockSpec((9, Cp, Cp), lambda n: (0, 0, 0), **const),
                pl.BlockSpec((1, Cp), lambda n: (0, 0), **const),
                pl.BlockSpec((9, Cp, Cp), lambda n: (0, 0, 0), **const),
                pl.BlockSpec((1, Cp), lambda n: (0, 0), **const),
            ],
            out_specs=pl.BlockSpec((nb, H, W, C), lambda n: (n, 0, 0, 0)),
            scratch_shapes=[
                pltpu.VMEM((nb, H + 2, W + 2, Cp), compute_dtype),  # padded x
                pltpu.VMEM((nb, H + 2, W + 2, Cp), compute_dtype),  # padded h
            ],
        ),
        compiler_params=pltpu.CompilerParams(
            dimension_semantics=("parallel",),
            vmem_limit_bytes=_vmem_limit_bytes()),
    )(x_nhwc, w1p, b1p, w2p, b2p)


def basic_block_forward(x_nchw, params, *, compute_dtype=jnp.bfloat16, nb=None):
    """NCHW entry point matching the PyTorch module interface.

    In a full NHWC network these boundary transposes would be dropped; they
    exist only to match the module's NCHW contract.
    """
    x = jnp.transpose(x_nchw, (0, 2, 3, 1))            # NCHW -> NHWC
    out = basic_block_forward_nhwc(x, params, compute_dtype=compute_dtype,
                                   nb=nb)
    return jnp.transpose(out, (0, 3, 1, 2))            # NHWC -> NCHW


def _reference_forward(x_nchw, params):
    """Pure-JAX reference (lax.conv) for a correctness cross-check."""
    def conv(x, w_hwio):
        return jax.lax.conv_general_dilated(
            x, w_hwio, window_strides=(1, 1), padding=((1, 1), (1, 1)),
            dimension_numbers=("NCHW", "HWIO", "NCHW"))
    s1, b1 = fold_bn(params["bn1_gamma"], params["bn1_beta"],
                     params["bn1_mean"], params["bn1_var"])
    s2, b2 = fold_bn(params["bn2_gamma"], params["bn2_beta"],
                     params["bn2_mean"], params["bn2_var"])
    h = conv(x_nchw, params["w1"])
    h = jax.nn.relu(h * s1[None, :, None, None] + b1[None, :, None, None])
    o = conv(h, params["w2"])
    o = o * s2[None, :, None, None] + b2[None, :, None, None] + x_nchw
    return jax.nn.relu(o)


def make_params(key, cin, cout):
    ks = jax.random.split(key, 6)
    # conv weights stored directly as HWIO = (3,3,Cin,Cout)
    w1 = jax.random.normal(ks[0], (3, 3, cin, cout), jnp.float32) * 0.1
    w2 = jax.random.normal(ks[1], (3, 3, cout, cout), jnp.float32) * 0.1
    return {
        "w1": w1,
        "w2": w2,
        "bn1_gamma": 1.0 + 0.1 * jax.random.normal(ks[2], (cout,), jnp.float32),
        "bn1_beta": 0.1 * jax.random.normal(ks[3], (cout,), jnp.float32),
        "bn1_mean": 0.05 * jnp.arange(cout, dtype=jnp.float32),
        "bn1_var": jnp.ones((cout,), jnp.float32) * 0.9,
        "bn2_gamma": 1.0 + 0.1 * jax.random.normal(ks[4], (cout,), jnp.float32),
        "bn2_beta": 0.1 * jax.random.normal(ks[5], (cout,), jnp.float32),
        "bn2_mean": -0.03 * jnp.arange(cout, dtype=jnp.float32),
        "bn2_var": jnp.ones((cout,), jnp.float32) * 1.1,
    }


if __name__ == "__main__":
    key = jax.random.PRNGKey(0)
    kx, kp = jax.random.split(key)
    N, C, H, W = 2, 4, 16, 16                      # in_channels == out_channels
    x = jax.random.normal(kx, (N, C, H, W), jnp.float32)
    params = make_params(kp, C, C)

    ref = _reference_forward(x, params)

    # Default fast path: bf16 MXU compute, f32 accumulation.
    out_bf16 = jax.block_until_ready(basic_block_forward(x, params))
    assert out_bf16.shape == (N, C, H, W)
    assert jnp.allclose(out_bf16, ref, atol=5e-2, rtol=5e-2), \
        "bf16 kernel mismatch vs reference"

    # f32 fallback path (tolerance kept loose enough to absorb platform
    # default matmul-precision differences; real layout/halo/bias bugs would
    # produce O(0.1-1) errors).
    out_f32 = jax.block_until_ready(
        basic_block_forward(x, params, compute_dtype=jnp.float32))
    assert jnp.allclose(out_f32, ref, atol=5e-2, rtol=5e-2), \
        "f32 kernel mismatch vs reference"

    print("KERNEL_OK")
</pallas_src>

<mosaic_0001>
module attributes {stable_mosaic.version = 11 : i64} {
  func.func @_fused_block_kernel(%arg0: i32, %arg1: memref<1x16x16x4xf32, #tpu.memory_space<vmem>>, %arg2: memref<9x128x128xbf16, #tpu.memory_space<vmem>>, %arg3: memref<1x128xf32, #tpu.memory_space<vmem>>, %arg4: memref<9x128x128xbf16, #tpu.memory_space<vmem>>, %arg5: memref<1x128xf32, #tpu.memory_space<vmem>>, %arg6: memref<1x16x16x4xf32, #tpu.memory_space<vmem>>, %arg7: memref<1x18x18x128xbf16, #tpu.memory_space<vmem>>, %arg8: memref<1x18x18x128xbf16, #tpu.memory_space<vmem>>) attributes {dimension_semantics = [#tpu.dimension_semantics<parallel>], iteration_bounds = array<i64: 2>, scalar_prefetch = 0 : i64, scratch_operands = 2 : i64, tpu.core_type = #tpu.core_type<tc>, window_params = [{transform_indices = @transform_0, window_bounds = array<i64: 1, 16, 16, 4>}, {pipeline_mode = #tpu.pipeline_mode<synchronous>, transform_indices = @transform_1, window_bounds = array<i64: 9, 128, 128>}, {pipeline_mode = #tpu.pipeline_mode<synchronous>, transform_indices = @transform_2, window_bounds = array<i64: 1, 128>}, {pipeline_mode = #tpu.pipeline_mode<synchronous>, transform_indices = @transform_3, window_bounds = array<i64: 9, 128, 128>}, {pipeline_mode = #tpu.pipeline_mode<synchronous>, transform_indices = @transform_4, window_bounds = array<i64: 1, 128>}, {transform_indices = @transform_5, window_bounds = array<i64: 1, 16, 16, 4>}]} {
    %cst = arith.constant 0.000000e+00 : bf16
    %0 = vector.broadcast %cst : bf16 to vector<1x1x18x128xbf16>
    %cst_0 = arith.constant 0.000000e+00 : bf16
    %1 = vector.broadcast %cst_0 : bf16 to vector<1x18x1x128xbf16>
    %c0 = arith.constant 0 : index
    %c0_1 = arith.constant 0 : index
    %c0_2 = arith.constant 0 : index
    %c0_3 = arith.constant 0 : index
    %2 = vector.load %arg7[%c0, %c0_1, %c0_2, %c0_3] : memref<1x18x18x128xbf16, #tpu.memory_space<vmem>>, vector<1x1x18x128xbf16>
    tpu.vector_store %arg7[%c0, %c0_1, %c0_2, %c0_3], %0 {strides = array<i32>} : memref<1x18x18x128xbf16, #tpu.memory_space<vmem>>, vector<1x1x18x128xbf16>,
    %c0_4 = arith.constant 0 : index
    %c17 = arith.constant 17 : index
    %c0_5 = arith.constant 0 : index
    %c0_6 = arith.constant 0 : index
    %3 = vector.load %arg7[%c0_4, %c17, %c0_5, %c0_6] : memref<1x18x18x128xbf16, #tpu.memory_space<vmem>>, vector<1x1x18x128xbf16>
    tpu.vector_store %arg7[%c0_4, %c17, %c0_5, %c0_6], %0 {strides = array<i32>} : memref<1x18x18x128xbf16, #tpu.memory_space<vmem>>, vector<1x1x18x128xbf16>,
    %c0_7 = arith.constant 0 : index
    %c0_8 = arith.constant 0 : index
    %c0_9 = arith.constant 0 : index
    %c0_10 = arith.constant 0 : index
    %4 = vector.load %arg7[%c0_7, %c0_8, %c0_9, %c0_10] : memref<1x18x18x128xbf16, #tpu.memory_space<vmem>>, vector<1x18x1x128xbf16>
    tpu.vector_store %arg7[%c0_7, %c0_8, %c0_9, %c0_10], %1 {strides = array<i32>} : memref<1x18x18x128xbf16, #tpu.memory_space<vmem>>, vector<1x18x1x128xbf16>,
    %c0_11 = arith.constant 0 : index
    %c0_12 = arith.constant 0 : index
    %c17_13 = arith.constant 17 : index
    %c0_14 = arith.constant 0 : index
    %5 = vector.load %arg7[%c0_11, %c0_12, %c17_13, %c0_14] : memref<1x18x18x128xbf16, #tpu.memory_space<vmem>>, vector<1x18x1x128xbf16>
    tpu.vector_store %arg7[%c0_11, %c0_12, %c17_13, %c0_14], %1 {strides = array<i32>} : memref<1x18x18x128xbf16, #tpu.memory_space<vmem>>, vector<1x18x1x128xbf16>,
    %c0_15 = arith.constant 0 : index
    %c0_16 = arith.constant 0 : index
    %c0_17 = arith.constant 0 : index
    %c0_18 = arith.constant 0 : index
    %6 = vector.load %arg8[%c0_15, %c0_16, %c0_17, %c0_18] : memref<1x18x18x128xbf16, #tpu.memory_space<vmem>>, vector<1x1x18x128xbf16>
    tpu.vector_store %arg8[%c0_15, %c0_16, %c0_17, %c0_18], %0 {strides = array<i32>} : memref<1x18x18x128xbf16, #tpu.memory_space<vmem>>, vector<1x1x18x128xbf16>,
    %c0_19 = arith.constant 0 : index
    %c17_20 = arith.constant 17 : index
    %c0_21 = arith.constant 0 : index
    %c0_22 = arith.constant 0 : index
    %7 = vector.load %arg8[%c0_19, %c17_20, %c0_21, %c0_22] : memref<1x18x18x128xbf16, #tpu.memory_space<vmem>>, vector<1x1x18x128xbf16>
    tpu.vector_store %arg8[%c0_19, %c17_20, %c0_21, %c0_22], %0 {strides = array<i32>} : memref<1x18x18x128xbf16, #tpu.memory_space<vmem>>, vector<1x1x18x128xbf16>,
    %c0_23 = arith.constant 0 : index
    %c0_24 = arith.constant 0 : index
    %c0_25 = arith.constant 0 : index
    %c0_26 = arith.constant 0 : index
    %8 = vector.load %arg8[%c0_23, %c0_24, %c0_25, %c0_26] : memref<1x18x18x128xbf16, #tpu.memory_space<vmem>>, vector<1x18x1x128xbf16>
    tpu.vector_store %arg8[%c0_23, %c0_24, %c0_25, %c0_26], %1 {strides = array<i32>} : memref<1x18x18x128xbf16, #tpu.memory_space<vmem>>, vector<1x18x1x128xbf16>,
    %c0_27 = arith.constant 0 : index
    %c0_28 = arith.constant 0 : index
    %c17_29 = arith.constant 17 : index
    %c0_30 = arith.constant 0 : index
    %9 = vector.load %arg8[%c0_27, %c0_28, %c17_29, %c0_30] : memref<1x18x18x128xbf16, #tpu.memory_space<vmem>>, vector<1x18x1x128xbf16>
    tpu.vector_store %arg8[%c0_27, %c0_28, %c17_29, %c0_30], %1 {strides = array<i32>} : memref<1x18x18x128xbf16, #tpu.memory_space<vmem>>, vector<1x18x1x128xbf16>,
    %c0_31 = arith.constant 0 : index
    %c0_32 = arith.constant 0 : index
    %c0_33 = arith.constant 0 : index
    %c0_34 = arith.constant 0 : index
    %10 = vector.load %arg1[%c0_31, %c0_32, %c0_33, %c0_34] : memref<1x16x16x4xf32, #tpu.memory_space<vmem>>, vector<1x16x16x4xf32>
    %11 = arith.truncf %10 : vector<1x16x16x4xf32> to vector<1x16x16x4xbf16>
    %cst_35 = arith.constant 0.000000e+00 : bf16
    %12 = vector.broadcast %cst_35 : bf16 to vector<1x16x16x124xbf16>
    %13 = tpu.concatenate %11, %12 in 3 : vector<1x16x16x4xbf16>, vector<1x16x16x124xbf16> -> vector<1x16x16x128xbf16>
    %c0_36 = arith.constant 0 : index
    %c1 = arith.constant 1 : index
    %c1_37 = arith.constant 1 : index
    %c0_38 = arith.constant 0 : index
    %14 = vector.load %arg7[%c0_36, %c1, %c1_37, %c0_38] : memref<1x18x18x128xbf16, #tpu.memory_space<vmem>>, vector<1x16x16x128xbf16>
    tpu.vector_store %arg7[%c0_36, %c1, %c1_37, %c0_38], %13 {strides = array<i32>} : memref<1x18x18x128xbf16, #tpu.memory_space<vmem>>, vector<1x16x16x128xbf16>,
    %cst_39 = arith.constant 0.000000e+00 : f32
    %15 = vector.broadcast %cst_39 : f32 to vector<256x128xf32>
    %c0_40 = arith.constant 0 : index
    %c0_41 = arith.constant 0 : index
    %c0_42 = arith.constant 0 : index
    %c0_43 = arith.constant 0 : index
    %16 = vector.load %arg7[%c0_40, %c0_41, %c0_42, %c0_43] : memref<1x18x18x128xbf16, #tpu.memory_space<vmem>>, vector<1x16x16x128xbf16>
    %17 = vector.shape_cast %16 : vector<1x16x16x128xbf16> to vector<256x128xbf16>
    %c0_44 = arith.constant 0 : index
    %c0_45 = arith.constant 0 : index
    %c0_46 = arith.constant 0 : index
    %18 = vector.load %arg2[%c0_44, %c0_45, %c0_46] : memref<9x128x128xbf16, #tpu.memory_space<vmem>>, vector<1x128x128xbf16>
    %19 = vector.shape_cast %18 : vector<1x128x128xbf16> to vector<128x128xbf16>
    %cst_47 = arith.constant dense<0.000000e+00> : vector<256x128xf32>
    %20 = tpu.matmul %17, %19, %cst_47 {dimension_numbers = #tpu.dot_dimension_numbers<[1], [0], [0], [1], [0, 0, 1, 1], [], []>} : vector<256x128xbf16>, vector<128x128xbf16>, vector<256x128xf32> -> vector<256x128xf32>
    %21 = arith.addf %15, %20 : vector<256x128xf32>
    %c0_48 = arith.constant 0 : index
    %c0_49 = arith.constant 0 : index
    %c1_50 = arith.constant 1 : index
    %c0_51 = arith.constant 0 : index
    %22 = vector.load %arg7[%c0_48, %c0_49, %c1_50, %c0_51] : memref<1x18x18x128xbf16, #tpu.memory_space<vmem>>, vector<1x16x16x128xbf16>
    %23 = vector.shape_cast %22 : vector<1x16x16x128xbf16> to vector<256x128xbf16>
    %c1_52 = arith.constant 1 : index
    %c0_53 = arith.constant 0 : index
    %c0_54 = arith.constant 0 : index
    %24 = vector.load %arg2[%c1_52, %c0_53, %c0_54] : memref<9x128x128xbf16, #tpu.memory_space<vmem>>, vector<1x128x128xbf16>
    %25 = vector.shape_cast %24 : vector<1x128x128xbf16> to vector<128x128xbf16>
    %cst_55 = arith.constant dense<0.000000e+00> : vector<256x128xf32>
    %26 = tpu.matmul %23, %25, %cst_55 {dimension_numbers = #tpu.dot_dimension_numbers<[1], [0], [0], [1], [0, 0, 1, 1], [], []>} : vector<256x128xbf16>, vector<128x128xbf16>, vector<256x128xf32> -> vector<256x128xf32>
    %27 = arith.addf %21, %26 : vector<256x128xf32>
    %c0_56 = arith.constant 0 : index
    %c0_57 = arith.constant 0 : index
    %c2 = arith.constant 2 : index
    %c0_58 = arith.constant 0 : index
    %28 = vector.load %arg7[%c0_56, %c0_57, %c2, %c0_58] : memref<1x18x18x128xbf16, #tpu.memory_space<vmem>>, vector<1x16x16x128xbf16>
    %29 = vector.shape_cast %28 : vector<1x16x16x128xbf16> to vector<256x128xbf16>
    %c2_59 = arith.constant 2 : index
    %c0_60 = arith.constant 0 : index
    %c0_61 = arith.constant 0 : index
    %30 = vector.load %arg2[%c2_59, %c0_60, %c0_61] : memref<9x128x128xbf16, #tpu.memory_space<vmem>>, vector<1x128x128xbf16>
    %31 = vector.shape_cast %30 : vector<1x128x128xbf16> to vector<128x128xbf16>
    %cst_62 = arith.constant dense<0.000000e+00> : vector<256x128xf32>
    %32 = tpu.matmul %29, %31, %cst_62 {dimension_numbers = #tpu.dot_dimension_numbers<[1], [0], [0], [1], [0, 0, 1, 1], [], []>} : vector<256x128xbf16>, vector<128x128xbf16>, vector<256x128xf32> -> vector<256x128xf32>
    %33 = arith.addf %27, %32 : vector<256x128xf32>
    %c0_63 = arith.constant 0 : index
    %c1_64 = arith.constant 1 : index
    %c0_65 = arith.constant 0 : index
    %c0_66 = arith.constant 0 : index
    %34 = vector.load %arg7[%c0_63, %c1_64, %c0_65, %c0_66] : memref<1x18x18x128xbf16, #tpu.memory_space<vmem>>, vector<1x16x16x128xbf16>
    %35 = vector.shape_cast %34 : vector<1x16x16x128xbf16> to vector<256x128xbf16>
    %c3 = arith.constant 3 : index
    %c0_67 = arith.constant 0 : index
    %c0_68 = arith.constant 0 : index
    %36 = vector.load %arg2[%c3, %c0_67, %c0_68] : memref<9x128x128xbf16, #tpu.memory_space<vmem>>, vector<1x128x128xbf16>
    %37 = vector.shape_cast %36 : vector<1x128x128xbf16> to vector<128x128xbf16>
    %cst_69 = arith.constant dense<0.000000e+00> : vector<256x128xf32>
    %38 = tpu.matmul %35, %37, %cst_69 {dimension_numbers = #tpu.dot_dimension_numbers<[1], [0], [0], [1], [0, 0, 1, 1], [], []>} : vector<256x128xbf16>, vector<128x128xbf16>, vector<256x128xf32> -> vector<256x128xf32>
    %39 = arith.addf %33, %38 : vector<256x128xf32>
    %c0_70 = arith.constant 0 : index
    %c1_71 = arith.constant 1 : index
    %c1_72 = arith.constant 1 : index
    %c0_73 = arith.constant 0 : index
    %40 = vector.load %arg7[%c0_70, %c1_71, %c1_72, %c0_73] : memref<1x18x18x128xbf16, #tpu.memory_space<vmem>>, vector<1x16x16x128xbf16>
    %41 = vector.shape_cast %40 : vector<1x16x16x128xbf16> to vector<256x128xbf16>
    %c4 = arith.constant 4 : index
    %c0_74 = arith.constant 0 : index
    %c0_75 = arith.constant 0 : index
    %42 = vector.load %arg2[%c4, %c0_74, %c0_75] : memref<9x128x128xbf16, #tpu.memory_space<vmem>>, vector<1x128x128xbf16>
    %43 = vector.shape_cast %42 : vector<1x128x128xbf16> to vector<128x128xbf16>
    %cst_76 = arith.constant dense<0.000000e+00> : vector<256x128xf32>
    %44 = tpu.matmul %41, %43, %cst_76 {dimension_numbers = #tpu.dot_dimension_numbers<[1], [0], [0], [1], [0, 0, 1, 1], [], []>} : vector<256x128xbf16>, vector<128x128xbf16>, vector<256x128xf32> -> vector<256x128xf32>
    %45 = arith.addf %39, %44 : vector<256x128xf32>
    %c0_77 = arith.constant 0 : index
    %c1_78 = arith.constant 1 : index
    %c2_79 = arith.constant 2 : index
    %c0_80 = arith.constant 0 : index
    %46 = vector.load %arg7[%c0_77, %c1_78, %c2_79, %c0_80] : memref<1x18x18x128xbf16, #tpu.memory_space<vmem>>, vector<1x16x16x128xbf16>
    %47 = vector.shape_cast %46 : vector<1x16x16x128xbf16> to vector<256x128xbf16>
    %c5 = arith.constant 5 : index
    %c0_81 = arith.constant 0 : index
    %c0_82 = arith.constant 0 : index
    %48 = vector.load %arg2[%c5, %c0_81, %c0_82] : memref<9x128x128xbf16, #tpu.memory_space<vmem>>, vector<1x128x128xbf16>
    %49 = vector.shape_cast %48 : vector<1x128x128xbf16> to vector<128x128xbf16>
    %cst_83 = arith.constant dense<0.000000e+00> : vector<256x128xf32>
    %50 = tpu.matmul %47, %49, %cst_83 {dimension_numbers = #tpu.dot_dimension_numbers<[1], [0], [0], [1], [0, 0, 1, 1], [], []>} : vector<256x128xbf16>, vector<128x128xbf16>, vector<256x128xf32> -> vector<256x128xf32>
    %51 = arith.addf %45, %50 : vector<256x128xf32>
    %c0_84 = arith.constant 0 : index
    %c2_85 = arith.constant 2 : index
    %c0_86 = arith.constant 0 : index
    %c0_87 = arith.constant 0 : index
    %52 = vector.load %arg7[%c0_84, %c2_85, %c0_86, %c0_87] : memref<1x18x18x128xbf16, #tpu.memory_space<vmem>>, vector<1x16x16x128xbf16>
    %53 = vector.shape_cast %52 : vector<1x16x16x128xbf16> to vector<256x128xbf16>
    %c6 = arith.constant 6 : index
    %c0_88 = arith.constant 0 : index
    %c0_89 = arith.constant 0 : index
    %54 = vector.load %arg2[%c6, %c0_88, %c0_89] : memref<9x128x128xbf16, #tpu.memory_space<vmem>>, vector<1x128x128xbf16>
    %55 = vector.shape_cast %54 : vector<1x128x128xbf16> to vector<128x128xbf16>
    %cst_90 = arith.constant dense<0.000000e+00> : vector<256x128xf32>
    %56 = tpu.matmul %53, %55, %cst_90 {dimension_numbers = #tpu.dot_dimension_numbers<[1], [0], [0], [1], [0, 0, 1, 1], [], []>} : vector<256x128xbf16>, vector<128x128xbf16>, vector<256x128xf32> -> vector<256x128xf32>
    %57 = arith.addf %51, %56 : vector<256x128xf32>
    %c0_91 = arith.constant 0 : index
    %c2_92 = arith.constant 2 : index
    %c1_93 = arith.constant 1 : index
    %c0_94 = arith.constant 0 : index
    %58 = vector.load %arg7[%c0_91, %c2_92, %c1_93, %c0_94] : memref<1x18x18x128xbf16, #tpu.memory_space<vmem>>, vector<1x16x16x128xbf16>
    %59 = vector.shape_cast %58 : vector<1x16x16x128xbf16> to vector<256x128xbf16>
    %c7 = arith.constant 7 : index
    %c0_95 = arith.constant 0 : index
    %c0_96 = arith.constant 0 : index
    %60 = vector.load %arg2[%c7, %c0_95, %c0_96] : memref<9x128x128xbf16, #tpu.memory_space<vmem>>, vector<1x128x128xbf16>
    %61 = vector.shape_cast %60 : vector<1x128x128xbf16> to vector<128x128xbf16>
    %cst_97 = arith.constant dense<0.000000e+00> : vector<256x128xf32>
    %62 = tpu.matmul %59, %61, %cst_97 {dimension_numbers = #tpu.dot_dimension_numbers<[1], [0], [0], [1], [0, 0, 1, 1], [], []>} : vector<256x128xbf16>, vector<128x128xbf16>, vector<256x128xf32> -> vector<256x128xf32>
    %63 = arith.addf %57, %62 : vector<256x128xf32>
    %c0_98 = arith.constant 0 : index
    %c2_99 = arith.constant 2 : index
    %c2_100 = arith.constant 2 : index
    %c0_101 = arith.constant 0 : index
    %64 = vector.load %arg7[%c0_98, %c2_99, %c2_100, %c0_101] : memref<1x18x18x128xbf16, #tpu.memory_space<vmem>>, vector<1x16x16x128xbf16>
    %65 = vector.shape_cast %64 : vector<1x16x16x128xbf16> to vector<256x128xbf16>
    %c8 = arith.constant 8 : index
    %c0_102 = arith.constant 0 : index
    %c0_103 = arith.constant 0 : index
    %66 = vector.load %arg2[%c8, %c0_102, %c0_103] : memref<9x128x128xbf16, #tpu.memory_space<vmem>>, vector<1x128x128xbf16>
    %67 = vector.shape_cast %66 : vector<1x128x128xbf16> to vector<128x128xbf16>
    %cst_104 = arith.constant dense<0.000000e+00> : vector<256x128xf32>
    %68 = tpu.matmul %65, %67, %cst_104 {dimension_numbers = #tpu.dot_dimension_numbers<[1], [0], [0], [1], [0, 0, 1, 1], [], []>} : vector<256x128xbf16>, vector<128x128xbf16>, vector<256x128xf32> -> vector<256x128xf32>
    %69 = arith.addf %63, %68 : vector<256x128xf32>
    %c0_105 = arith.constant 0 : index
    %c0_106 = arith.constant 0 : index
    %70 = vector.load %arg3[%c0_105, %c0_106] : memref<1x128xf32, #tpu.memory_space<vmem>>, vector<1x128xf32>
    %71 = vector.broadcast %70 : vector<1x128xf32> to vector<256x128xf32>
    %72 = arith.addf %69, %71 : vector<256x128xf32>
    %cst_107 = arith.constant 0.000000e+00 : f32
    %73 = vector.broadcast %cst_107 : f32 to vector<256x128xf32>
    %74 = arith.maximumf %72, %73 : vector<256x128xf32>
    %75 = arith.truncf %74 : vector<256x128xf32> to vector<256x128xbf16>
    %76 = vector.shape_cast %75 : vector<256x128xbf16> to vector<1x16x16x128xbf16>
    %c0_108 = arith.constant 0 : index
    %c1_109 = arith.constant 1 : index
    %c1_110 = arith.constant 1 : index
    %c0_111 = arith.constant 0 : index
    %77 = vector.load %arg8[%c0_108, %c1_109, %c1_110, %c0_111] : memref<1x18x18x128xbf16, #tpu.memory_space<vmem>>, vector<1x16x16x128xbf16>
    tpu.vector_store %arg8[%c0_108, %c1_109, %c1_110, %c0_111], %76 {strides = array<i32>} : memref<1x18x18x128xbf16, #tpu.memory_space<vmem>>, vector<1x16x16x128xbf16>,
    %cst_112 = arith.constant 0.000000e+00 : f32
    %78 = vector.broadcast %cst_112 : f32 to vector<256x128xf32>
    %c0_113 = arith.constant 0 : index
    %c0_114 = arith.constant 0 : index
    %c0_115 = arith.constant 0 : index
    %c0_116 = arith.constant 0 : index
    %79 = vector.load %arg8[%c0_113, %c0_114, %c0_115, %c0_116] : memref<1x18x18x128xbf16, #tpu.memory_space<vmem>>, vector<1x16x16x128xbf16>
    %80 = vector.shape_cast %79 : vector<1x16x16x128xbf16> to vector<256x128xbf16>
    %c0_117 = arith.constant 0 : index
    %c0_118 = arith.constant 0 : index
    %c0_119 = arith.constant 0 : index
    %81 = vector.load %arg4[%c0_117, %c0_118, %c0_119] : memref<9x128x128xbf16, #tpu.memory_space<vmem>>, vector<1x128x128xbf16>
    %82 = vector.shape_cast %81 : vector<1x128x128xbf16> to vector<128x128xbf16>
    %cst_120 = arith.constant dense<0.000000e+00> : vector<256x128xf32>
    %83 = tpu.matmul %80, %82, %cst_120 {dimension_numbers = #tpu.dot_dimension_numbers<[1], [0], [0], [1], [0, 0, 1, 1], [], []>} : vector<256x128xbf16>, vector<128x128xbf16>, vector<256x128xf32> -> vector<256x128xf32>
    %84 = arith.addf %78, %83 : vector<256x128xf32>
    %c0_121 = arith.constant 0 : index
    %c0_122 = arith.constant 0 : index
    %c1_123 = arith.constant 1 : index
    %c0_124 = arith.constant 0 : index
    %85 = vector.load %arg8[%c0_121, %c0_122, %c1_123, %c0_124] : memref<1x18x18x128xbf16, #tpu.memory_space<vmem>>, vector<1x16x16x128xbf16>
    %86 = vector.shape_cast %85 : vector<1x16x16x128xbf16> to vector<256x128xbf16>
    %c1_125 = arith.constant 1 : index
    %c0_126 = arith.constant 0 : index
    %c0_127 = arith.constant 0 : index
    %87 = vector.load %arg4[%c1_125, %c0_126, %c0_127] : memref<9x128x128xbf16, #tpu.memory_space<vmem>>, vector<1x128x128xbf16>
    %88 = vector.shape_cast %87 : vector<1x128x128xbf16> to vector<128x128xbf16>
    %cst_128 = arith.constant dense<0.000000e+00> : vector<256x128xf32>
    %89 = tpu.matmul %86, %88, %cst_128 {dimension_numbers = #tpu.dot_dimension_numbers<[1], [0], [0], [1], [0, 0, 1, 1], [], []>} : vector<256x128xbf16>, vector<128x128xbf16>, vector<256x128xf32> -> vector<256x128xf32>
    %90 = arith.addf %84, %89 : vector<256x128xf32>
    %c0_129 = arith.constant 0 : index
    %c0_130 = arith.constant 0 : index
    %c2_131 = arith.constant 2 : index
    %c0_132 = arith.constant 0 : index
    %91 = vector.load %arg8[%c0_129, %c0_130, %c2_131, %c0_132] : memref<1x18x18x128xbf16, #tpu.memory_space<vmem>>, vector<1x16x16x128xbf16>
    %92 = vector.shape_cast %91 : vector<1x16x16x128xbf16> to vector<256x128xbf16>
    %c2_133 = arith.constant 2 : index
    %c0_134 = arith.constant 0 : index
    %c0_135 = arith.constant 0 : index
    %93 = vector.load %arg4[%c2_133, %c0_134, %c0_135] : memref<9x128x128xbf16, #tpu.memory_space<vmem>>, vector<1x128x128xbf16>
    %94 = vector.shape_cast %93 : vector<1x128x128xbf16> to vector<128x128xbf16>
    %cst_136 = arith.constant dense<0.000000e+00> : vector<256x128xf32>
    %95 = tpu.matmul %92, %94, %cst_136 {dimension_numbers = #tpu.dot_dimension_numbers<[1], [0], [0], [1], [0, 0, 1, 1], [], []>} : vector<256x128xbf16>, vector<128x128xbf16>, vector<256x128xf32> -> vector<256x128xf32>
    %96 = arith.addf %90, %95 : vector<256x128xf32>
    %c0_137 = arith.constant 0 : index
    %c1_138 = arith.constant 1 : index
    %c0_139 = arith.constant 0 : index
    %c0_140 = arith.constant 0 : index
    %97 = vector.load %arg8[%c0_137, %c1_138, %c0_139, %c0_140] : memref<1x18x18x128xbf16, #tpu.memory_space<vmem>>, vector<1x16x16x128xbf16>
    %98 = vector.shape_cast %97 : vector<1x16x16x128xbf16> to vector<256x128xbf16>
    %c3_141 = arith.constant 3 : index
    %c0_142 = arith.constant 0 : index
    %c0_143 = arith.constant 0 : index
    %99 = vector.load %arg4[%c3_141, %c0_142, %c0_143] : memref<9x128x128xbf16, #tpu.memory_space<vmem>>, vector<1x128x128xbf16>
    %100 = vector.shape_cast %99 : vector<1x128x128xbf16> to vector<128x128xbf16>
    %cst_144 = arith.constant dense<0.000000e+00> : vector<256x128xf32>
    %101 = tpu.matmul %98, %100, %cst_144 {dimension_numbers = #tpu.dot_dimension_numbers<[1], [0], [0], [1], [0, 0, 1, 1], [], []>} : vector<256x128xbf16>, vector<128x128xbf16>, vector<256x128xf32> -> vector<256x128xf32>
    %102 = arith.addf %96, %101 : vector<256x128xf32>
    %c0_145 = arith.constant 0 : index
    %c1_146 = arith.constant 1 : index
    %c1_147 = arith.constant 1 : index
    %c0_148 = arith.constant 0 : index
    %103 = vector.load %arg8[%c0_145, %c1_146, %c1_147, %c0_148] : memref<1x18x18x128xbf16, #tpu.memory_space<vmem>>, vector<1x16x16x128xbf16>
    %104 = vector.shape_cast %103 : vector<1x16x16x128xbf16> to vector<256x128xbf16>
    %c4_149 = arith.constant 4 : index
    %c0_150 = arith.constant 0 : index
    %c0_151 = arith.constant 0 : index
    %105 = vector.load %arg4[%c4_149, %c0_150, %c0_151] : memref<9x128x128xbf16, #tpu.memory_space<vmem>>, vector<1x128x128xbf16>
    %106 = vector.shape_cast %105 : vector<1x128x128xbf16> to vector<128x128xbf16>
    %cst_152 = arith.constant dense<0.000000e+00> : vector<256x128xf32>
    %107 = tpu.matmul %104, %106, %cst_152 {dimension_numbers = #tpu.dot_dimension_numbers<[1], [0], [0], [1], [0, 0, 1, 1], [], []>} : vector<256x128xbf16>, vector<128x128xbf16>, vector<256x128xf32> -> vector<256x128xf32>
    %108 = arith.addf %102, %107 : vector<256x128xf32>
    %c0_153 = arith.constant 0 : index
    %c1_154 = arith.constant 1 : index
    %c2_155 = arith.constant 2 : index
    %c0_156 = arith.constant 0 : index
    %109 = vector.load %arg8[%c0_153, %c1_154, %c2_155, %c0_156] : memref<1x18x18x128xbf16, #tpu.memory_space<vmem>>, vector<1x16x16x128xbf16>
    %110 = vector.shape_cast %109 : vector<1x16x16x128xbf16> to vector<256x128xbf16>
    %c5_157 = arith.constant 5 : index
    %c0_158 = arith.constant 0 : index
    %c0_159 = arith.constant 0 : index
    %111 = vector.load %arg4[%c5_157, %c0_158, %c0_159] : memref<9x128x128xbf16, #tpu.memory_space<vmem>>, vector<1x128x128xbf16>
    %112 = vector.shape_cast %111 : vector<1x128x128xbf16> to vector<128x128xbf16>
    %cst_160 = arith.constant dense<0.000000e+00> : vector<256x128xf32>
    %113 = tpu.matmul %110, %112, %cst_160 {dimension_numbers = #tpu.dot_dimension_numbers<[1], [0], [0], [1], [0, 0, 1, 1], [], []>} : vector<256x128xbf16>, vector<128x128xbf16>, vector<256x128xf32> -> vector<256x128xf32>
    %114 = arith.addf %108, %113 : vector<256x128xf32>
    %c0_161 = arith.constant 0 : index
    %c2_162 = arith.constant 2 : index
    %c0_163 = arith.constant 0 : index
    %c0_164 = arith.constant 0 : index
    %115 = vector.load %arg8[%c0_161, %c2_162, %c0_163, %c0_164] : memref<1x18x18x128xbf16, #tpu.memory_space<vmem>>, vector<1x16x16x128xbf16>
    %116 = vector.shape_cast %115 : vector<1x16x16x128xbf16> to vector<256x128xbf16>
    %c6_165 = arith.constant 6 : index
    %c0_166 = arith.constant 0 : index
    %c0_167 = arith.constant 0 : index
    %117 = vector.load %arg4[%c6_165, %c0_166, %c0_167] : memref<9x128x128xbf16, #tpu.memory_space<vmem>>, vector<1x128x128xbf16>
    %118 = vector.shape_cast %117 : vector<1x128x128xbf16> to vector<128x128xbf16>
    %cst_168 = arith.constant dense<0.000000e+00> : vector<256x128xf32>
    %119 = tpu.matmul %116, %118, %cst_168 {dimension_numbers = #tpu.dot_dimension_numbers<[1], [0], [0], [1], [0, 0, 1, 1], [], []>} : vector<256x128xbf16>, vector<128x128xbf16>, vector<256x128xf32> -> vector<256x128xf32>
    %120 = arith.addf %114, %119 : vector<256x128xf32>
    %c0_169 = arith.constant 0 : index
    %c2_170 = arith.constant 2 : index
    %c1_171 = arith.constant 1 : index
    %c0_172 = arith.constant 0 : index
    %121 = vector.load %arg8[%c0_169, %c2_170, %c1_171, %c0_172] : memref<1x18x18x128xbf16, #tpu.memory_space<vmem>>, vector<1x16x16x128xbf16>
    %122 = vector.shape_cast %121 : vector<1x16x16x128xbf16> to vector<256x128xbf16>
    %c7_173 = arith.constant 7 : index
    %c0_174 = arith.constant 0 : index
    %c0_175 = arith.constant 0 : index
    %123 = vector.load %arg4[%c7_173, %c0_174, %c0_175] : memref<9x128x128xbf16, #tpu.memory_space<vmem>>, vector<1x128x128xbf16>
    %124 = vector.shape_cast %123 : vector<1x128x128xbf16> to vector<128x128xbf16>
    %cst_176 = arith.constant dense<0.000000e+00> : vector<256x128xf32>
    %125 = tpu.matmul %122, %124, %cst_176 {dimension_numbers = #tpu.dot_dimension_numbers<[1], [0], [0], [1], [0, 0, 1, 1], [], []>} : vector<256x128xbf16>, vector<128x128xbf16>, vector<256x128xf32> -> vector<256x128xf32>
    %126 = arith.addf %120, %125 : vector<256x128xf32>
    %c0_177 = arith.constant 0 : index
    %c2_178 = arith.constant 2 : index
    %c2_179 = arith.constant 2 : index
    %c0_180 = arith.constant 0 : index
    %127 = vector.load %arg8[%c0_177, %c2_178, %c2_179, %c0_180] : memref<1x18x18x128xbf16, #tpu.memory_space<vmem>>, vector<1x16x16x128xbf16>
    %128 = vector.shape_cast %127 : vector<1x16x16x128xbf16> to vector<256x128xbf16>
    %c8_181 = arith.constant 8 : index
    %c0_182 = arith.constant 0 : index
    %c0_183 = arith.constant 0 : index
    %129 = vector.load %arg4[%c8_181, %c0_182, %c0_183] : memref<9x128x128xbf16, #tpu.memory_space<vmem>>, vector<1x128x128xbf16>
    %130 = vector.shape_cast %129 : vector<1x128x128xbf16> to vector<128x128xbf16>
    %cst_184 = arith.constant dense<0.000000e+00> : vector<256x128xf32>
    %131 = tpu.matmul %128, %130, %cst_184 {dimension_numbers = #tpu.dot_dimension_numbers<[1], [0], [0], [1], [0, 0, 1, 1], [], []>} : vector<256x128xbf16>, vector<128x128xbf16>, vector<256x128xf32> -> vector<256x128xf32>
    %132 = arith.addf %126, %131 : vector<256x128xf32>
    %c0_185 = arith.constant 0 : index
    %c0_186 = arith.constant 0 : index
    %133 = vector.load %arg5[%c0_185, %c0_186] : memref<1x128xf32, #tpu.memory_space<vmem>>, vector<1x128xf32>
    %134 = vector.broadcast %133 : vector<1x128xf32> to vector<256x128xf32>
    %135 = arith.addf %132, %134 : vector<256x128xf32>
    %136 = vector.shape_cast %135 : vector<256x128xf32> to vector<1x16x16x128xf32>
    %137 = vector.extract_strided_slice %136 {offsets = [0, 0, 0, 0], sizes = [1, 16, 16, 4], strides = [1, 1, 1, 1]} : vector<1x16x16x128xf32> to vector<1x16x16x4xf32>
    %138 = arith.addf %137, %10 : vector<1x16x16x4xf32>
    %cst_187 = arith.constant 0.000000e+00 : f32
    %139 = vector.broadcast %cst_187 : f32 to vector<1x16x16x4xf32>
    %140 = arith.maximumf %138, %139 : vector<1x16x16x4xf32>
    %c0_188 = arith.constant 0 : index
    %c0_189 = arith.constant 0 : index
    %c0_190 = arith.constant 0 : index
    %c0_191 = arith.constant 0 : index
    %141 = vector.load %arg6[%c0_188, %c0_189, %c0_190, %c0_191] : memref<1x16x16x4xf32, #tpu.memory_space<vmem>>, vector<1x16x16x4xf32>
    tpu.vector_store %arg6[%c0_188, %c0_189, %c0_190, %c0_191], %140 {strides = array<i32>} : memref<1x16x16x4xf32, #tpu.memory_space<vmem>>, vector<1x16x16x4xf32>,
    return
  }
  func.func @transform_0(%arg0: i32) -> (i32, i32, i32, i32) {
    %c0_i32 = arith.constant 0 : i32
    %c0_i32_0 = arith.constant 0 : i32
    %c0_i32_1 = arith.constant 0 : i32
    %c0_i32_2 = arith.constant 0 : i32
    return %arg0, %c0_i32, %c0_i32_0, %c0_i32_1 : i32, i32, i32, i32
  }
  func.func @transform_1(%arg0: i32) -> (i32, i32, i32) {
    %c0_i32 = arith.constant 0 : i32
    %c0_i32_0 = arith.constant 0 : i32
    %c0_i32_1 = arith.constant 0 : i32
    %c0_i32_2 = arith.constant 0 : i32
    return %c0_i32, %c0_i32_0, %c0_i32_1 : i32, i32, i32
  }
  func.func @transform_2(%arg0: i32) -> (i32, i32) {
    %c0_i32 = arith.constant 0 : i32
    %c0_i32_0 = arith.constant 0 : i32
    %c0_i32_1 = arith.constant 0 : i32
    return %c0_i32, %c0_i32_0 : i32, i32
  }
  func.func @transform_3(%arg0: i32) -> (i32, i32, i32) {
    %c0_i32 = arith.constant 0 : i32
    %c0_i32_0 = arith.constant 0 : i32
    %c0_i32_1 = arith.constant 0 : i32
    %c0_i32_2 = arith.constant 0 : i32
    return %c0_i32, %c0_i32_0, %c0_i32_1 : i32, i32, i32
  }
  func.func @transform_4(%arg0: i32) -> (i32, i32) {
    %c0_i32 = arith.constant 0 : i32
    %c0_i32_0 = arith.constant 0 : i32
    %c0_i32_1 = arith.constant 0 : i32
    return %c0_i32, %c0_i32_0 : i32, i32
  }
  func.func @transform_5(%arg0: i32) -> (i32, i32, i32, i32) {
    %c0_i32 = arith.constant 0 : i32
    %c0_i32_0 = arith.constant 0 : i32
    %c0_i32_1 = arith.constant 0 : i32
    %c0_i32_2 = arith.constant 0 : i32
    return %arg0, %c0_i32, %c0_i32_0, %c0_i32_1 : i32, i32, i32, i32
  }
}

</mosaic_0001>

<llo_original>
// kernel: tpu_custom_call.1
$region0: #{tpu_custom_call.1}
  #allocation0 [shape = 'u32[]', space=smem, size = 0x4, offset = 0x4, fixed_abs, tag = 'smem constant byte address 0x4 - core index']
  #allocation1 [shape = 'u32[144,128]{1,0:T(1,128)}', space=vmem, size = 0x12000, scoped, tag = 'internal scratch']
  #allocation2 [shape = 'bf16[1,18,18,128]{3,2,1,0:T(8,128)(2,1)}', space=vmem, size = 0x1b000, scoped, tag = 'scratch operand']
  #allocation3 [shape = 'bf16[1,18,18,128]{3,2,1,0:T(8,128)(2,1)}', space=vmem, size = 0x1b000, scoped, tag = 'scratch operand']
  %s0 = inlined_call_operand.vmem [shape: f32[2,16,16,4], index: 0, kind: input, shape index: {}]
  %s1 = inlined_call_operand.vmem [shape: bf16[9,128,128], index: 1, kind: input, shape index: {}]
  %s2 = inlined_call_operand.vmem [shape: f32[1,128], index: 2, kind: input, shape index: {}]
  %s3 = inlined_call_operand.hbm [shape: bf16[9,128,128], index: 3, kind: input, shape index: {}]
  %s4 = inlined_call_operand.vmem [shape: f32[1,128], index: 4, kind: input, shape index: {}]
  %s5 = inlined_call_operand.vmem [shape: f32[2,16,16,4], index: 5, kind: output, shape index: {}]
  %s6 = sld [smem:[#allocation0]]
  $region57: #{tpu_custom_call.1} parent=0
    _
  %s8 = ssub.s32 1, %s6
  %s9 = scalar_select 0, %s8, %s6
  $region1: #{tpu_custom_call.1} parent=0
    #allocation4 [shape = 'u8[294912]{0}', space=vmem, size = 0x48000, scoped, tag = 'input window, operand 3, single buffered']
    #allocation5 [shape = 's32[2]{0}', space=sflag, size = 0x8, scoped, tag = 'scoped memory for tpu_custom_call.1']
    %10 = vsyncpa [#allocation5], 0
    loop: start=0, step=1, limit=4
    $region2: #{tpu_custom_call.1} parent=1 // loop_pre_header
      _
    $region3: #{tpu_custom_call.1} parent=1 // loop_header
      %s12 = sphi 0, %s16
      %p13 = scmp.ge.s32.totalorder %s12, 4
      %s22 = sphi 0, %s24
      %s25 = sphi 0, %s22
      %s26 = sphi 0, %s25
      %s42 = sphi 0, %s26
      %s46 = sphi 0, %s46
      %s48 = sphi 0, %s46
      %s49 = sphi 0, %s48
      %s63 = sphi 0, %s49
      %s67 = sphi 0, %s67
      %s69 = sphi 0, %s67
      %s70 = sphi 0, %s69
      %s84 = sphi 0, %s70
      %s88 = sphi 0, %s88
      %s90 = sphi 0, %s88
      %s91 = sphi 0, %s90
      %s105 = sphi 0, %s91
      %s109 = sphi 0, %s109
      %s111 = sphi 0, %s109
      %s112 = sphi 0, %s111
      %s126 = sphi 0, %s112
      %s132 = sphi 0, %s134
      %s135 = sphi 0, %s132
      %s136 = sphi 0, %s135
      %s152 = sphi 0, %s136
    $region4: #{tpu_custom_call.1} parent=1 // loop_header_branch
      %15 = sbr.rel (%p13) target = $region8
    $region5: #{tpu_custom_call.1} parent=1 // loop_body
      %s17 = ssub.s32 %s12, 1
      %s18 = ssub.s32 %s12, 2
      %s19 = sadd.s32 %s12, 1
      %s20 = ssub.s32 %s12, %s19
      %p21 = scmp.eq.s32.totalorder %s20, 0
      %s23 = sadd.s32 %s22, 1
      %s24 = scalar_select %p21, %s22, %s23
      %p27 = pneg %p21
      %p28 = scmp.eq.s32.totalorder %s12, 1
      %p29 = por %p27, %p28
      %p30 = scmp.ne.s32.totalorder %s22, %s25
      %p31 = scmp.eq.s32.totalorder %s12, 0
      %p32 = por %p30, %p31
      %p33 = scmp.ne.s32.totalorder %s22, %s25
      %p34 = scmp.eq.s32.totalorder %s17, 1
      %p35 = por %p33, %p34
      %p36 = scmp.ne.s32.totalorder %s25, %s26
      %p37 = scmp.eq.s32.totalorder %s17, 0
      %p38 = por %p36, %p37
      %p39 = scmp.ne.s32.totalorder %s25, %s26
      %p40 = scmp.eq.s32.totalorder %s18, 1
      %p41 = por %p39, %p40
      %p43 = scmp.ne.s32.totalorder %s26, %s42
      %p44 = scmp.eq.s32.totalorder %s18, 0
      %p45 = por %p43, %p44
      %s47 = sadd.s32 %s46, 1
      %p50 = scmp.eq.s32.totalorder %s12, 1
      %p51 = scmp.ne.s32.totalorder %s46, %s48
      %p52 = scmp.eq.s32.totalorder %s12, 0
      %p53 = por %p51, %p52
      %p54 = scmp.ne.s32.totalorder %s46, %s48
      %p55 = scmp.eq.s32.totalorder %s17, 1
      %p56 = por %p54, %p55
      %p57 = scmp.ne.s32.totalorder %s48, %s49
      %p58 = scmp.eq.s32.totalorder %s17, 0
      %p59 = por %p57, %p58
      %p60 = scmp.ne.s32.totalorder %s48, %s49
      %p61 = scmp.eq.s32.totalorder %s18, 1
      %p62 = por %p60, %p61
      %p64 = scmp.ne.s32.totalorder %s49, %s63
      %p65 = scmp.eq.s32.totalorder %s18, 0
      %p66 = por %p64, %p65
      %s68 = sadd.s32 %s67, 1
      %p71 = scmp.eq.s32.totalorder %s12, 1
      %p72 = scmp.ne.s32.totalorder %s67, %s69
      %p73 = scmp.eq.s32.totalorder %s12, 0
      %p74 = por %p72, %p73
      %p75 = scmp.ne.s32.totalorder %s67, %s69
      %p76 = scmp.eq.s32.totalorder %s17, 1
      %p77 = por %p75, %p76
      %p78 = scmp.ne.s32.totalorder %s69, %s70
      %p79 = scmp.eq.s32.totalorder %s17, 0
      %p80 = por %p78, %p79
      %p81 = scmp.ne.s32.totalorder %s69, %s70
      %p82 = scmp.eq.s32.totalorder %s18, 1
      %p83 = por %p81, %p82
      %p85 = scmp.ne.s32.totalorder %s70, %s84
      %p86 = scmp.eq.s32.totalorder %s18, 0
      %p87 = por %p85, %p86
      %s89 = sadd.s32 %s88, 1
      %p92 = scmp.eq.s32.totalorder %s12, 1
      %p93 = scmp.ne.s32.totalorder %s88, %s90
      %p94 = scmp.eq.s32.totalorder %s12, 0
      %p95 = por %p93, %p94
      %p96 = scmp.ne.s32.totalorder %s88, %s90
      %p97 = scmp.eq.s32.totalorder %s17, 1
      %p98 = por %p96, %p97
      %p99 = scmp.ne.s32.totalorder %s90, %s91
      %p100 = scmp.eq.s32.totalorder %s17, 0
      %p101 = por %p99, %p100
      %p102 = scmp.ne.s32.totalorder %s90, %s91
      %p103 = scmp.eq.s32.totalorder %s18, 1
      %p104 = por %p102, %p103
      %p106 = scmp.ne.s32.totalorder %s91, %s105
      %p107 = scmp.eq.s32.totalorder %s18, 0
      %p108 = por %p106, %p107
      %s110 = sadd.s32 %s109, 1
      %p113 = scmp.eq.s32.totalorder %s12, 1
      %p114 = scmp.ne.s32.totalorder %s109, %s111
      %p115 = scmp.eq.s32.totalorder %s12, 0
      %p116 = por %p114, %p115
      %p117 = scmp.ne.s32.totalorder %s109, %s111
      %p118 = scmp.eq.s32.totalorder %s17, 1
      %p119 = por %p117, %p118
      %p120 = scmp.ne.s32.totalorder %s111, %s112
      %p121 = scmp.eq.s32.totalorder %s17, 0
      %p122 = por %p120, %p121
      %p123 = scmp.ne.s32.totalorder %s111, %s112
      %p124 = scmp.eq.s32.totalorder %s18, 1
      %p125 = por %p123, %p124
      %p127 = scmp.ne.s32.totalorder %s112, %s126
      %p128 = scmp.eq.s32.totalorder %s18, 0
      %p129 = por %p127, %p128
      %s130 = ssub.s32 %s12, %s19
      %p131 = scmp.eq.s32.totalorder %s130, 0
      %s133 = sadd.s32 %s132, 1
      %s134 = scalar_select %p131, %s132, %s133
      %p137 = pneg %p131
      %p138 = scmp.eq.s32.totalorder %s12, 1
      %p139 = por %p137, %p138
      %p140 = scmp.ne.s32.totalorder %s132, %s135
      %p141 = scmp.eq.s32.totalorder %s12, 0
      %p142 = por %p140, %p141
      %p143 = scmp.ne.s32.totalorder %s132, %s135
      %p144 = scmp.eq.s32.totalorder %s17, 1
      %p145 = por %p143, %p144
      %p146 = scmp.ne.s32.totalorder %s135, %s136
      %p147 = scmp.eq.s32.totalorder %s17, 0
      %p148 = por %p146, %p147
      %p149 = scmp.ne.s32.totalorder %s135, %s136
      %p150 = scmp.eq.s32.totalorder %s18, 1
      %p151 = por %p149, %p150
      %p153 = scmp.ne.s32.totalorder %s136, %s152
      %p154 = scmp.eq.s32.totalorder %s18, 0
      %p155 = por %p153, %p154
      %p156 = scmp.le.s32.totalorder 1, %s12
      %p157 = scmp.lt.s32.totalorder %s12, 3
      %p158 = pnand %p156, %p157
      %p159 = pneg %p158
      // Predicated region
      $region9: #{tpu_custom_call.1} parent=5 // pred_check
        _
      $region10: #{tpu_custom_call.1} parent=5 // pred_check_branch
        %161 = sbr.rel (%p158) target = $region12
      $region11: #{tpu_custom_call.1} parent=5 // pred_region
        %s162 = ssub.s32 %s12, 1
        // Predicated region
        $region13: #{tpu_custom_call.1} parent=11 // pred_check
          %p163 = pneg %p59
        $region14: #{tpu_custom_call.1} parent=11 // pred_check_branch
          %165 = sbr.rel (%p163) target = $region16
        $region15: #{tpu_custom_call.1} parent=11 // pred_region
          _
        $region16: #{tpu_custom_call.1} parent=11 // pred_fallthru
          _
        // Predicated region
        $region17: #{tpu_custom_call.1} parent=11 // pred_check
          %p166 = pneg %p80
        $region18: #{tpu_custom_call.1} parent=11 // pred_check_branch
          %168 = sbr.rel (%p166) target = $region20
        $region19: #{tpu_custom_call.1} parent=11 // pred_region
          _
        $region20: #{tpu_custom_call.1} parent=11 // pred_fallthru
          _
        // Predicated region
        $region21: #{tpu_custom_call.1} parent=11 // pred_check
          %p169 = pneg %p101
        $region22: #{tpu_custom_call.1} parent=11 // pred_check_branch
          %171 = sbr.rel (%p169) target = $region24
        $region23: #{tpu_custom_call.1} parent=11 // pred_region
          %s173 = ssub.s32 9216, 9216
          %174 = vsyncadd [#allocation5], %s173
          %s175 = sshll.u32 [#allocation4], 4
          %s176 = int_to_ptr.vmem [resolvable:$true] %s175
          %181 = dma.hbm_to_vmem [thread:$0]  %s3, 9216, %s176, [#allocation5], 64, 64, 4
        $region24: #{tpu_custom_call.1} parent=11 // pred_fallthru
          _
        // Predicated region
        $region25: #{tpu_custom_call.1} parent=11 // pred_check
          %p182 = pneg %p122
        $region26: #{tpu_custom_call.1} parent=11 // pred_check_branch
          %184 = sbr.rel (%p182) target = $region28
        $region27: #{tpu_custom_call.1} parent=11 // pred_region
          _
        $region28: #{tpu_custom_call.1} parent=11 // pred_fallthru
          _
      $region12: #{tpu_custom_call.1} parent=5 // pred_fallthru
        _
      %p185 = scmp.lt.s32.totalorder %s12, 2
      // Predicated region
      $region29: #{tpu_custom_call.1} parent=5 // pred_check
        %p186 = pneg %p185
      $region30: #{tpu_custom_call.1} parent=5 // pred_check_branch
        %188 = sbr.rel (%p186) target = $region32
      $region31: #{tpu_custom_call.1} parent=5 // pred_region
        // Predicated region
        $region33: #{tpu_custom_call.1} parent=31 // pred_check
          %p189 = pneg %p32
        $region34: #{tpu_custom_call.1} parent=31 // pred_check_branch
          %191 = sbr.rel (%p189) target = $region36
        $region35: #{tpu_custom_call.1} parent=31 // pred_region
          %p192 = scmp.lt.s32.totalorder %s12, 1
          %s193 = scalar_select %p192, %s12, 1
          %s194 = smul.addr %s193, 32
          %s195 = smul.addr %s194, 8
          %s196 = scalar_lea.vmem %s0, %s195
        $region36: #{tpu_custom_call.1} parent=31 // pred_fallthru
          _
      $region32: #{tpu_custom_call.1} parent=5 // pred_fallthru
        _
      %p197 = scmp.le.s32.totalorder 1, %s12
      %p198 = scmp.lt.s32.totalorder %s12, 3
      %p199 = pnand %p197, %p198
      %p200 = pneg %p199
      // Predicated region
      $region37: #{tpu_custom_call.1} parent=5 // pred_check
        _
      $region38: #{tpu_custom_call.1} parent=5 // pred_check_branch
        %202 = sbr.rel (%p199) target = $region40
      $region39: #{tpu_custom_call.1} parent=5 // pred_region
        %s203 = ssub.s32 %s12, 1
        // Predicated region
        $region41: #{tpu_custom_call.1} parent=39 // pred_check
          %p204 = pneg %p101
        $region42: #{tpu_custom_call.1} parent=39 // pred_check_branch
          %206 = sbr.rel (%p204) target = $region44
        $region43: #{tpu_custom_call.1} parent=39 // pred_region
          %207 = dma.done [#allocation5], 9216
        $region44: #{tpu_custom_call.1} parent=39 // pred_fallthru
          _
        %p208 = scmp.lt.s32.totalorder %s17, 1
        %s209 = scalar_select %p208, %s17, 1
        %s210 = smul.addr %s209, 32
        %s211 = smul.addr %s210, 8
        %s212 = scalar_lea.vmem %s0, %s211
        %p213 = pneg %p38
        %p214 = pneg %p35
        %p215 = pneg %p59
        %p216 = pneg %p56
        %p217 = pneg %p80
        %p218 = pneg %p77
        %p219 = pneg %p101
        %p220 = pneg %p98
        %p221 = pneg %p122
        %p222 = pneg %p119
        %p223 = pneg %p148
        %p224 = pneg %p145
        %p225 = scmp.lt.s32.totalorder %s17, 1
        %s226 = scalar_select %p225, %s17, 1
        %s227 = smul.addr %s226, 32
        %s228 = smul.addr %s227, 8
        %s229 = scalar_lea.vmem %s5, %s228
        %p230 = scmp.lt.s32.totalorder %s17, 1
        %s231 = scalar_select %p230, %s17, 1
        %s232 = smul.addr %s231, 32
        %s233 = smul.addr %s232, 8
        %s234 = scalar_lea.vmem %s0, %s233
        %p235 = scmp.lt.s32.totalorder %s17, 1
        %s236 = scalar_select %p235, %s17, 1
        %s237 = smul.addr %s236, 32
        %s238 = smul.addr %s237, 8
        %s239 = scalar_lea.vmem %s5, %s238
        %241 = vst [vmem:[#allocation2] sm:$0xf] 0
        %242 = vst [vmem:[#allocation2 + $0x4] sm:$0xf] 0
        %243 = vst [vmem:[#allocation2 + $0x8] sm:$0x1] 0
        %s244 = scalar_lea.vmem [#allocation2], 204
        %245 = vst [vmem:[%s244] sm:$0xf] 0
        %246 = vst [vmem:[%s244 + $0x4] sm:$0xf] 0
        %247 = vst [vmem:[%s244 + $0x8] sm:$0x1] 0
        %vm248 = vcmask 1040384
        %vm249 = vsmask.f32 256
        %vm250 = vmand %vm248, %vm249
        %v251 = vld [vmem:[#allocation2] sm:$0x1]
        %v252 = vsel %vm250, 0, %v251
        %253 = vst [vmem:[#allocation2] sm:$0x1] %v252
        %v254 = vld [vmem:[#allocation2 + $0xc] sm:$0x1]
        %v255 = vsel %vm250, 0, %v254
        %256 = vst [vmem:[#allocation2 + $0xc] sm:$0x1] %v255
        %v257 = vld [vmem:[#allocation2 + $0x18] sm:$0x1]
        %v258 = vsel %vm250, 0, %v257
        %259 = vst [vmem:[#allocation2 + $0x18] sm:$0x1] %v258
        %v260 = vld [vmem:[#allocation2 + $0x24] sm:$0x1]
        %v261 = vsel %vm250, 0, %v260
        %262 = vst [vmem:[#allocation2 + $0x24] sm:$0x1] %v261
        %v263 = vld [vmem:[#allocation2 + $0x30] sm:$0x1]
        %v264 = vsel %vm250, 0, %v263
        %265 = vst [vmem:[#allocation2 + $0x30] sm:$0x1] %v264
        %v266 = vld [vmem:[#allocation2 + $0x3c] sm:$0x1]
        %v267 = vsel %vm250, 0, %v266
        %268 = vst [vmem:[#allocation2 + $0x3c] sm:$0x1] %v267
        %v269 = vld [vmem:[#allocation2 + $0x48] sm:$0x1]
        %v270 = vsel %vm250, 0, %v269
        %271 = vst [vmem:[#allocation2 + $0x48] sm:$0x1] %v270
        %v272 = vld [vmem:[#allocation2 + $0x54] sm:$0x1]
        %v273 = vsel %vm250, 0, %v272
        %274 = vst [vmem:[#allocation2 + $0x54] sm:$0x1] %v273
        %v275 = vld [vmem:[#allocation2 + $0x60] sm:$0x1]
        %v276 = vsel %vm250, 0, %v275
        %277 = vst [vmem:[#allocation2 + $0x60] sm:$0x1] %v276
        %v278 = vld [vmem:[#allocation2 + $0x6c] sm:$0x1]
        %v279 = vsel %vm250, 0, %v278
        %280 = vst [vmem:[#allocation2 + $0x6c] sm:$0x1] %v279
        %v281 = vld [vmem:[#allocation2 + $0x78] sm:$0x1]
        %v282 = vsel %vm250, 0, %v281
        %283 = vst [vmem:[#allocation2 + $0x78] sm:$0x1] %v282
        %v284 = vld [vmem:[#allocation2 + $0x84] sm:$0x1]
        %v285 = vsel %vm250, 0, %v284
        %286 = vst [vmem:[#allocation2 + $0x84] sm:$0x1] %v285
        %v287 = vld [vmem:[#allocation2 + $0x90] sm:$0x1]
        %v288 = vsel %vm250, 0, %v287
        %289 = vst [vmem:[#allocation2 + $0x90] sm:$0x1] %v288
        %v290 = vld [vmem:[#allocation2 + $0x9c] sm:$0x1]
        %v291 = vsel %vm250, 0, %v290
        %292 = vst [vmem:[#allocation2 + $0x9c] sm:$0x1] %v291
        %v293 = vld [vmem:[#allocation2 + $0xa8] sm:$0x1]
        %v294 = vsel %vm250, 0, %v293
        %295 = vst [vmem:[#allocation2 + $0xa8] sm:$0x1] %v294
        %v296 = vld [vmem:[#allocation2 + $0xb4] sm:$0x1]
        %v297 = vsel %vm250, 0, %v296
        %298 = vst [vmem:[#allocation2 + $0xb4] sm:$0x1] %v297
        %v299 = vld [vmem:[#allocation2 + $0xc0] sm:$0x1]
        %v300 = vsel %vm250, 0, %v299
        %301 = vst [vmem:[#allocation2 + $0xc0] sm:$0x1] %v300
        %v302 = vld [vmem:[#allocation2 + $0xcc] sm:$0x1]
        %v303 = vsel %vm250, 0, %v302
        %304 = vst [vmem:[#allocation2 + $0xcc] sm:$0x1] %v303
        %vm305 = vsmask.f32 7938
        %vm306 = vmand %vm248, %vm305
        %v307 = vld [vmem:[#allocation2 + $0x8] sm:$0x1]
        %v308 = vsel %vm306, 0, %v307
        %309 = vst [vmem:[#allocation2 + $0x8] sm:$0x1] %v308
        %v310 = vld [vmem:[#allocation2 + $0x14] sm:$0x1]
        %v311 = vsel %vm306, 0, %v310
        %312 = vst [vmem:[#allocation2 + $0x14] sm:$0x1] %v311
        %v313 = vld [vmem:[#allocation2 + $0x20] sm:$0x1]
        %v314 = vsel %vm306, 0, %v313
        %315 = vst [vmem:[#allocation2 + $0x20] sm:$0x1] %v314
        %v316 = vld [vmem:[#allocation2 + $0x2c] sm:$0x1]
        %v317 = vsel %vm306, 0, %v316
        %318 = vst [vmem:[#allocation2 + $0x2c] sm:$0x1] %v317
        %v319 = vld [vmem:[#allocation2 + $0x38] sm:$0x1]
        %v320 = vsel %vm306, 0, %v319
        %321 = vst [vmem:[#allocation2 + $0x38] sm:$0x1] %v320
        %v322 = vld [vmem:[#allocation2 + $0x44] sm:$0x1]
        %v323 = vsel %vm306, 0, %v322
        %324 = vst [vmem:[#allocation2 + $0x44] sm:$0x1] %v323
        %v325 = vld [vmem:[#allocation2 + $0x50] sm:$0x1]
        %v326 = vsel %vm306, 0, %v325
        %327 = vst [vmem:[#allocation2 + $0x50] sm:$0x1] %v326
        %v328 = vld [vmem:[#allocation2 + $0x5c] sm:$0x1]
        %v329 = vsel %vm306, 0, %v328
        %330 = vst [vmem:[#allocation2 + $0x5c] sm:$0x1] %v329
        %v331 = vld [vmem:[#allocation2 + $0x68] sm:$0x1]
        %v332 = vsel %vm306, 0, %v331
        %333 = vst [vmem:[#allocation2 + $0x68] sm:$0x1] %v332
        %v334 = vld [vmem:[#allocation2 + $0x74] sm:$0x1]
        %v335 = vsel %vm306, 0, %v334
        %336 = vst [vmem:[#allocation2 + $0x74] sm:$0x1] %v335
        %v337 = vld [vmem:[#allocation2 + $0x80] sm:$0x1]
        %v338 = vsel %vm306, 0, %v337
        %339 = vst [vmem:[#allocation2 + $0x80] sm:$0x1] %v338
        %v340 = vld [vmem:[#allocation2 + $0x8c] sm:$0x1]
        %v341 = vsel %vm306, 0, %v340
        %342 = vst [vmem:[#allocation2 + $0x8c] sm:$0x1] %v341
        %v343 = vld [vmem:[#allocation2 + $0x98] sm:$0x1]
        %v344 = vsel %vm306, 0, %v343
        %345 = vst [vmem:[#allocation2 + $0x98] sm:$0x1] %v344
        %v346 = vld [vmem:[#allocation2 + $0xa4] sm:$0x1]
        %v347 = vsel %vm306, 0, %v346
        %348 = vst [vmem:[#allocation2 + $0xa4] sm:$0x1] %v347
        %v349 = vld [vmem:[#allocation2 + $0xb0] sm:$0x1]
        %v350 = vsel %vm306, 0, %v349
        %351 = vst [vmem:[#allocation2 + $0xb0] sm:$0x1] %v350
        %v352 = vld [vmem:[#allocation2 + $0xbc] sm:$0x1]
        %v353 = vsel %vm306, 0, %v352
        %354 = vst [vmem:[#allocation2 + $0xbc] sm:$0x1] %v353
        %v355 = vld [vmem:[#allocation2 + $0xc8] sm:$0x1]
        %v356 = vsel %vm306, 0, %v355
        %357 = vst [vmem:[#allocation2 + $0xc8] sm:$0x1] %v356
        %v358 = vld [vmem:[#allocation2 + $0xd4] sm:$0x1]
        %v359 = vsel %vm306, 0, %v358
        %360 = vst [vmem:[#allocation2 + $0xd4] sm:$0x1] %v359
        %361 = vst [vmem:[#allocation3] sm:$0xf] 0
        %362 = vst [vmem:[#allocation3 + $0x4] sm:$0xf] 0
        %363 = vst [vmem:[#allocation3 + $0x8] sm:$0x1] 0
        %s364 = scalar_lea.vmem [#allocation3], 204
        %365 = vst [vmem:[%s364] sm:$0xf] 0
        %366 = vst [vmem:[%s364 + $0x4] sm:$0xf] 0
        %367 = vst [vmem:[%s364 + $0x8] sm:$0x1] 0
        %v368 = vld [vmem:[#allocation3] sm:$0x1]
        %v369 = vsel %vm250, 0, %v368
        %370 = vst [vmem:[#allocation3] sm:$0x1] %v369
        %v371 = vld [vmem:[#allocation3 + $0xc] sm:$0x1]
        %v372 = vsel %vm250, 0, %v371
        %373 = vst [vmem:[#allocation3 + $0xc] sm:$0x1] %v372
        %v374 = vld [vmem:[#allocation3 + $0x18] sm:$0x1]
        %v375 = vsel %vm250, 0, %v374
        %376 = vst [vmem:[#allocation3 + $0x18] sm:$0x1] %v375
        %v377 = vld [vmem:[#allocation3 + $0x24] sm:$0x1]
        %v378 = vsel %vm250, 0, %v377
        %379 = vst [vmem:[#allocation3 + $0x24] sm:$0x1] %v378
        %v380 = vld [vmem:[#allocation3 + $0x30] sm:$0x1]
        %v381 = vsel %vm250, 0, %v380
        %382 = vst [vmem:[#allocation3 + $0x30] sm:$0x1] %v381
        %v383 = vld [vmem:[#allocation3 + $0x3c] sm:$0x1]
        %v384 = vsel %vm250, 0, %v383
        %385 = vst [vmem:[#allocation3 + $0x3c] sm:$0x1] %v384
        %v386 = vld [vmem:[#allocation3 + $0x48] sm:$0x1]
        %v387 = vsel %vm250, 0, %v386
        %388 = vst [vmem:[#allocation3 + $0x48] sm:$0x1] %v387
        %v389 = vld [vmem:[#allocation3 + $0x54] sm:$0x1]
        %v390 = vsel %vm250, 0, %v389
        %391 = vst [vmem:[#allocation3 + $0x54] sm:$0x1] %v390
        %v392 = vld [vmem:[#allocation3 + $0x60] sm:$0x1]
        %v393 = vsel %vm250, 0, %v392
        %394 = vst [vmem:[#allocation3 + $0x60] sm:$0x1] %v393
        %v395 = vld [vmem:[#allocation3 + $0x6c] sm:$0x1]
        %v396 = vsel %vm250, 0, %v395
        %397 = vst [vmem:[#allocation3 + $0x6c] sm:$0x1] %v396
        %v398 = vld [vmem:[#allocation3 + $0x78] sm:$0x1]
        %v399 = vsel %vm250, 0, %v398
        %400 = vst [vmem:[#allocation3 + $0x78] sm:$0x1] %v399
        %v401 = vld [vmem:[#allocation3 + $0x84] sm:$0x1]
        %v402 = vsel %vm250, 0, %v401
        %403 = vst [vmem:[#allocation3 + $0x84] sm:$0x1] %v402
        %v404 = vld [vmem:[#allocation3 + $0x90] sm:$0x1]
        %v405 = vsel %vm250, 0, %v404
        %406 = vst [vmem:[#allocation3 + $0x90] sm:$0x1] %v405
        %v407 = vld [vmem:[#allocation3 + $0x9c] sm:$0x1]
        %v408 = vsel %vm250, 0, %v407
        %409 = vst [vmem:[#allocation3 + $0x9c] sm:$0x1] %v408
        %v410 = vld [vmem:[#allocation3 + $0xa8] sm:$0x1]
        %v411 = vsel %vm250, 0, %v410
        %412 = vst [vmem:[#allocation3 + $0xa8] sm:$0x1] %v411
        %v413 = vld [vmem:[#allocation3 + $0xb4] sm:$0x1]
        %v414 = vsel %vm250, 0, %v413
        %415 = vst [vmem:[#allocation3 + $0xb4] sm:$0x1] %v414
        %v416 = vld [vmem:[#allocation3 + $0xc0] sm:$0x1]
        %v417 = vsel %vm250, 0, %v416
        %418 = vst [vmem:[#allocation3 + $0xc0] sm:$0x1] %v417
        %v419 = vld [vmem:[#allocation3 + $0xcc] sm:$0x1]
        %v420 = vsel %vm250, 0, %v419
        %421 = vst [vmem:[#allocation3 + $0xcc] sm:$0x1] %v420
        %v422 = vld [vmem:[#allocation3 + $0x8] sm:$0x1]
        %v423 = vsel %vm306, 0, %v422
        %424 = vst [vmem:[#allocation3 + $0x8] sm:$0x1] %v423
        %v425 = vld [vmem:[#allocation3 + $0x14] sm:$0x1]
        %v426 = vsel %vm306, 0, %v425
        %427 = vst [vmem:[#allocation3 + $0x14] sm:$0x1] %v426
        %v428 = vld [vmem:[#allocation3 + $0x20] sm:$0x1]
        %v429 = vsel %vm306, 0, %v428
        %430 = vst [vmem:[#allocation3 + $0x20] sm:$0x1] %v429
        %v431 = vld [vmem:[#allocation3 + $0x2c] sm:$0x1]
        %v432 = vsel %vm306, 0, %v431
        %433 = vst [vmem:[#allocation3 + $0x2c] sm:$0x1] %v432
        %v434 = vld [vmem:[#allocation3 + $0x38] sm:$0x1]
        %v435 = vsel %vm306, 0, %v434
        %436 = vst [vmem:[#allocation3 + $0x38] sm:$0x1] %v435
        %v437 = vld [vmem:[#allocation3 + $0x44] sm:$0x1]
        %v438 = vsel %vm306, 0, %v437
        %439 = vst [vmem:[#allocation3 + $0x44] sm:$0x1] %v438
        %v440 = vld [vmem:[#allocation3 + $0x50] sm:$0x1]
        %v441 = vsel %vm306, 0, %v440
        %442 = vst [vmem:[#allocation3 + $0x50] sm:$0x1] %v441
        %v443 = vld [vmem:[#allocation3 + $0x5c] sm:$0x1]
        %v444 = vsel %vm306, 0, %v443
        %445 = vst [vmem:[#allocation3 + $0x5c] sm:$0x1] %v444
        %v446 = vld [vmem:[#allocation3 + $0x68] sm:$0x1]
        %v447 = vsel %vm306, 0, %v446
        %448 = vst [vmem:[#allocation3 + $0x68] sm:$0x1] %v447
        %v449 = vld [vmem:[#allocation3 + $0x74] sm:$0x1]
        %v450 = vsel %vm306, 0, %v449
        %451 = vst [vmem:[#allocation3 + $0x74] sm:$0x1] %v450
        %v452 = vld [vmem:[#allocation3 + $0x80] sm:$0x1]
        %v453 = vsel %vm306, 0, %v452
        %454 = vst [vmem:[#allocation3 + $0x80] sm:$0x1] %v453
        %v455 = vld [vmem:[#allocation3 + $0x8c] sm:$0x1]
        %v456 = vsel %vm306, 0, %v455
        %457 = vst [vmem:[#allocation3 + $0x8c] sm:$0x1] %v456
        %v458 = vld [vmem:[#allocation3 + $0x98] sm:$0x1]
        %v459 = vsel %vm306, 0, %v458
        %460 = vst [vmem:[#allocation3 + $0x98] sm:$0x1] %v459
        %v461 = vld [vmem:[#allocation3 + $0xa4] sm:$0x1]
        %v462 = vsel %vm306, 0, %v461
        %463 = vst [vmem:[#allocation3 + $0xa4] sm:$0x1] %v462
        %v464 = vld [vmem:[#allocation3 + $0xb0] sm:$0x1]
        %v465 = vsel %vm306, 0, %v464
        %466 = vst [vmem:[#allocation3 + $0xb0] sm:$0x1] %v465
        %v467 = vld [vmem:[#allocation3 + $0xbc] sm:$0x1]
        %v468 = vsel %vm306, 0, %v467
        %469 = vst [vmem:[#allocation3 + $0xbc] sm:$0x1] %v468
        %v470 = vld [vmem:[#allocation3 + $0xc8] sm:$0x1]
        %v471 = vsel %vm306, 0, %v470
        %472 = vst [vmem:[#allocation3 + $0xc8] sm:$0x1] %v471
        %v473 = vld [vmem:[#allocation3 + $0xd4] sm:$0x1]
        %v474 = vsel %vm306, 0, %v473
        %475 = vst [vmem:[#allocation3 + $0xd4] sm:$0x1] %v474
        %v476 = vld [vmem:[%s234] sm:$0xff]
        %v477 = vld [vmem:[%s234 + $0x8] sm:$0xff]
        %v478 = vld [vmem:[%s234 + $0x10] sm:$0xff]
        %v479 = vld [vmem:[%s234 + $0x18] sm:$0xff]
        %v480 = vld [vmem:[%s234 + $0x20] sm:$0xff]
        %v481 = vld [vmem:[%s234 + $0x28] sm:$0xff]
        %v482 = vld [vmem:[%s234 + $0x30] sm:$0xff]
        %v483 = vld [vmem:[%s234 + $0x38] sm:$0xff]
        %v484 = vld [vmem:[%s234 + $0x40] sm:$0xff]
        %v485 = vld [vmem:[%s234 + $0x48] sm:$0xff]
        %v486 = vld [vmem:[%s234 + $0x50] sm:$0xff]
        %v487 = vld [vmem:[%s234 + $0x58] sm:$0xff]
        %v488 = vld [vmem:[%s234 + $0x60] sm:$0xff]
        %v489 = vld [vmem:[%s234 + $0x68] sm:$0xff]
        %v490 = vld [vmem:[%s234 + $0x70] sm:$0xff]
        %v491 = vld [vmem:[%s234 + $0x78] sm:$0xff]
        %v492 = vld [vmem:[%s234 + $0x80] sm:$0xff]
        %v493 = vld [vmem:[%s234 + $0x88] sm:$0xff]
        %v494 = vld [vmem:[%s234 + $0x90] sm:$0xff]
        %v495 = vld [vmem:[%s234 + $0x98] sm:$0xff]
        %v496 = vld [vmem:[%s234 + $0xa0] sm:$0xff]
        %v497 = vld [vmem:[%s234 + $0xa8] sm:$0xff]
        %v498 = vld [vmem:[%s234 + $0xb0] sm:$0xff]
        %v499 = vld [vmem:[%s234 + $0xb8] sm:$0xff]
        %v500 = vld [vmem:[%s234 + $0xc0] sm:$0xff]
        %v501 = vld [vmem:[%s234 + $0xc8] sm:$0xff]
        %v502 = vld [vmem:[%s234 + $0xd0] sm:$0xff]
        %v503 = vld [vmem:[%s234 + $0xd8] sm:$0xff]
        %v504 = vld [vmem:[%s234 + $0xe0] sm:$0xff]
        %v505 = vld [vmem:[%s234 + $0xe8] sm:$0xff]
        %v506 = vld [vmem:[%s234 + $0xf0] sm:$0xff]
        %v507 = vld [vmem:[%s234 + $0xf8] sm:$0xff]
        %v508 = vpack.c.bf16 %v477, %v476
        %v509 = vpack.c.bf16 %v479, %v478
        %v510 = vpack.c.bf16 %v481, %v480
        %v511 = vpack.c.bf16 %v483, %v482
        %v512 = vpack.c.bf16 %v485, %v484
        %v513 = vpack.c.bf16 %v487, %v486
        %v514 = vpack.c.bf16 %v489, %v488
        %v515 = vpack.c.bf16 %v491, %v490
        %v516 = vpack.c.bf16 %v493, %v492
        %v517 = vpack.c.bf16 %v495, %v494
        %v518 = vpack.c.bf16 %v497, %v496
        %v519 = vpack.c.bf16 %v499, %v498
        %v520 = vpack.c.bf16 %v501, %v500
        %v521 = vpack.c.bf16 %v503, %v502
        %v522 = vpack.c.bf16 %v505, %v504
        %v523 = vpack.c.bf16 %v507, %v506
        %vm524 = vcmask 31744
        %v527 = vsel %vm524, %v508, 0
        %v529 = vsel %vm524, %v509, 0
        %v531 = vsel %vm524, %v510, 0
        %v533 = vsel %vm524, %v511, 0
        %v535 = vsel %vm524, %v512, 0
        %v537 = vsel %vm524, %v513, 0
        %v539 = vsel %vm524, %v514, 0
        %v541 = vsel %vm524, %v515, 0
        %v543 = vsel %vm524, %v516, 0
        %v545 = vsel %vm524, %v517, 0
        %v547 = vsel %vm524, %v518, 0
        %v549 = vsel %vm524, %v519, 0
        %v551 = vsel %vm524, %v520, 0
        %v553 = vsel %vm524, %v521, 0
        %v555 = vsel %vm524, %v522, 0
        %v557 = vsel %vm524, %v523, 0
        %v574 = vunpack.c.l.b16 %v527
        %v575 = vunpack.c.h.b16 %v527
        %v576 = vunpack.c.l.b16 %v529
        %v577 = vunpack.c.h.b16 %v529
        %v578 = vunpack.c.l.b16 %v531
        %v579 = vunpack.c.h.b16 %v531
        %v580 = vunpack.c.l.b16 %v533
        %v581 = vunpack.c.h.b16 %v533
        %v582 = vunpack.c.l.b16 %v535
        %v583 = vunpack.c.h.b16 %v535
        %v584 = vunpack.c.l.b16 %v537
        %v585 = vunpack.c.h.b16 %v537
        %v586 = vunpack.c.l.b16 %v539
        %v587 = vunpack.c.h.b16 %v539
        %v588 = vunpack.c.l.b16 %v541
        %v589 = vunpack.c.h.b16 %v541
        %v590 = vunpack.c.l.b16 %v543
        %v591 = vunpack.c.h.b16 %v543
        %v592 = vunpack.c.l.b16 %v545
        %v593 = vunpack.c.h.b16 %v545
        %v594 = vunpack.c.l.b16 %v547
        %v595 = vunpack.c.h.b16 %v547
        %v596 = vunpack.c.l.b16 %v549
        %v597 = vunpack.c.h.b16 %v549
        %v598 = vunpack.c.l.b16 %v551
        %v599 = vunpack.c.h.b16 %v551
        %v600 = vunpack.c.l.b16 %v553
        %v601 = vunpack.c.h.b16 %v553
        %v602 = vunpack.c.l.b16 %v555
        %v603 = vunpack.c.h.b16 %v555
        %v604 = vunpack.c.l.b16 %v557
        %v605 = vunpack.c.h.b16 %v557
        %v606 = vpack.c.b16 %v574, %v574
        %v607 = vpack.c.b16 %v575, %v575
        %v608 = vpack.c.b16 %v576, %v576
        %v609 = vpack.c.b16 %v577, %v577
        %v610 = vpack.c.b16 %v578, %v578
        %v611 = vpack.c.b16 %v579, %v579
        %v612 = vpack.c.b16 %v580, %v580
        %v613 = vpack.c.b16 %v581, %v581
        %v614 = vpack.c.b16 %v582, %v582
        %v615 = vpack.c.b16 %v583, %v583
        %v616 = vpack.c.b16 %v584, %v584
        %v617 = vpack.c.b16 %v585, %v585
        %v618 = vpack.c.b16 %v586, %v586
        %v619 = vpack.c.b16 %v587, %v587
        %v620 = vpack.c.b16 %v588, %v588
        %v621 = vpack.c.b16 %v589, %v589
        %v622 = vpack.c.b16 %v590, %v590
        %v623 = vpack.c.b16 %v591, %v591
        %v624 = vpack.c.b16 %v592, %v592
        %v625 = vpack.c.b16 %v593, %v593
        %v626 = vpack.c.b16 %v594, %v594
        %v627 = vpack.c.b16 %v595, %v595
        %v628 = vpack.c.b16 %v596, %v596
        %v629 = vpack.c.b16 %v597, %v597
        %v630 = vpack.c.b16 %v598, %v598
        %v631 = vpack.c.b16 %v599, %v599
        %v632 = vpack.c.b16 %v600, %v600
        %v633 = vpack.c.b16 %v601, %v601
        %v634 = vpack.c.b16 %v602, %v602
        %v635 = vpack.c.b16 %v603, %v603
        %v636 = vpack.c.b16 %v604, %v604
        %v637 = vpack.c.b16 %v605, %v605
        %vm638 = vsmask.f32 4368
        %vm639 = vmor %vm249, %vm638
        %v641 = vshrl.u32 %v606, 16
        %v643 = vrot.slane %v641, 7
        %v644 = vshll.u32 %v606, 16
        %v646 = vor.u32 %v643, %v644
        %v647 = vrot.slane %v643, 4
        %v649 = vshrl.u32 %v607, 16
        %v651 = vrot.slane %v649, 7
        %v652 = vshll.u32 %v607, 16
        %v654 = vor.u32 %v651, %v652
        %v655 = vsel %vm639, %v647, %v654
        %v656 = vrot.slane %v651, 4
        %v658 = vshrl.u32 %v608, 16
        %v660 = vrot.slane %v658, 7
        %v661 = vshll.u32 %v608, 16
        %v663 = vor.u32 %v660, %v661
        %v664 = vrot.slane %v660, 4
        %v666 = vshrl.u32 %v609, 16
        %v668 = vrot.slane %v666, 7
        %v669 = vshll.u32 %v609, 16
        %v671 = vor.u32 %v668, %v669
        %v672 = vsel %vm639, %v664, %v671
        %v673 = vrot.slane %v668, 4
        %v675 = vshrl.u32 %v610, 16
        %v677 = vrot.slane %v675, 7
        %v678 = vshll.u32 %v610, 16
        %v680 = vor.u32 %v677, %v678
        %v681 = vrot.slane %v677, 4
        %v683 = vshrl.u32 %v611, 16
        %v685 = vrot.slane %v683, 7
        %v686 = vshll.u32 %v611, 16
        %v688 = vor.u32 %v685, %v686
        %v689 = vsel %vm639, %v681, %v688
        %v690 = vrot.slane %v685, 4
        %v692 = vshrl.u32 %v612, 16
        %v694 = vrot.slane %v692, 7
        %v695 = vshll.u32 %v612, 16
        %v697 = vor.u32 %v694, %v695
        %v698 = vrot.slane %v694, 4
        %v700 = vshrl.u32 %v613, 16
        %v702 = vrot.slane %v700, 7
        %v703 = vshll.u32 %v613, 16
        %v705 = vor.u32 %v702, %v703
        %v706 = vsel %vm639, %v698, %v705
        %v707 = vrot.slane %v702, 4
        %v709 = vshrl.u32 %v614, 16
        %v711 = vrot.slane %v709, 7
        %v712 = vshll.u32 %v614, 16
        %v714 = vor.u32 %v711, %v712
        %v715 = vrot.slane %v711, 4
        %v717 = vshrl.u32 %v615, 16
        %v719 = vrot.slane %v717, 7
        %v720 = vshll.u32 %v615, 16
        %v722 = vor.u32 %v719, %v720
        %v723 = vsel %vm639, %v715, %v722
        %v724 = vrot.slane %v719, 4
        %v726 = vshrl.u32 %v616, 16
        %v728 = vrot.slane %v726, 7
        %v729 = vshll.u32 %v616, 16
        %v731 = vor.u32 %v728, %v729
        %v732 = vrot.slane %v728, 4
        %v734 = vshrl.u32 %v617, 16
        %v736 = vrot.slane %v734, 7
        %v737 = vshll.u32 %v617, 16
        %v739 = vor.u32 %v736, %v737
        %v740 = vsel %vm639, %v732, %v739
        %v741 = vrot.slane %v736, 4
        %v743 = vshrl.u32 %v618, 16
        %v745 = vrot.slane %v743, 7
        %v746 = vshll.u32 %v618, 16
        %v748 = vor.u32 %v745, %v746
        %v749 = vrot.slane %v745, 4
        %v751 = vshrl.u32 %v619, 16
        %v753 = vrot.slane %v751, 7
        %v754 = vshll.u32 %v619, 16
        %v756 = vor.u32 %v753, %v754
        %v757 = vsel %vm639, %v749, %v756
        %v758 = vrot.slane %v753, 4
        %v760 = vshrl.u32 %v620, 16
        %v762 = vrot.slane %v760, 7
        %v763 = vshll.u32 %v620, 16
        %v765 = vor.u32 %v762, %v763
        %v766 = vrot.slane %v762, 4
        %v768 = vshrl.u32 %v621, 16
        %v770 = vrot.slane %v768, 7
        %v771 = vshll.u32 %v621, 16
        %v773 = vor.u32 %v770, %v771
        %v774 = vsel %vm639, %v766, %v773
        %v775 = vrot.slane %v770, 4
        %v777 = vshrl.u32 %v622, 16
        %v779 = vrot.slane %v777, 7
        %v780 = vshll.u32 %v622, 16
        %v782 = vor.u32 %v779, %v780
        %v783 = vrot.slane %v779, 4
        %v785 = vshrl.u32 %v623, 16
        %v787 = vrot.slane %v785, 7
        %v788 = vshll.u32 %v623, 16
        %v790 = vor.u32 %v787, %v788
        %v791 = vsel %vm639, %v783, %v790
        %v792 = vrot.slane %v787, 4
        %v794 = vshrl.u32 %v624, 16
        %v796 = vrot.slane %v794, 7
        %v797 = vshll.u32 %v624, 16
        %v799 = vor.u32 %v796, %v797
        %v800 = vrot.slane %v796, 4
        %v802 = vshrl.u32 %v625, 16
        %v804 = vrot.slane %v802, 7
        %v805 = vshll.u32 %v625, 16
        %v807 = vor.u32 %v804, %v805
        %v808 = vsel %vm639, %v800, %v807
        %v809 = vrot.slane %v804, 4
        %v811 = vshrl.u32 %v626, 16
        %v813 = vrot.slane %v811, 7
        %v814 = vshll.u32 %v626, 16
        %v816 = vor.u32 %v813, %v814
        %v817 = vrot.slane %v813, 4
        %v819 = vshrl.u32 %v627, 16
        %v821 = vrot.slane %v819, 7
        %v822 = vshll.u32 %v627, 16
        %v824 = vor.u32 %v821, %v822
        %v825 = vsel %vm639, %v817, %v824
        %v826 = vrot.slane %v821, 4
        %v828 = vshrl.u32 %v628, 16
        %v830 = vrot.slane %v828, 7
        %v831 = vshll.u32 %v628, 16
        %v833 = vor.u32 %v830, %v831
        %v834 = vrot.slane %v830, 4
        %v836 = vshrl.u32 %v629, 16
        %v838 = vrot.slane %v836, 7
        %v839 = vshll.u32 %v629, 16
        %v841 = vor.u32 %v838, %v839
        %v842 = vsel %vm639, %v834, %v841
        %v843 = vrot.slane %v838, 4
        %v845 = vshrl.u32 %v630, 16
        %v847 = vrot.slane %v845, 7
        %v848 = vshll.u32 %v630, 16
        %v850 = vor.u32 %v847, %v848
        %v851 = vrot.slane %v847, 4
        %v853 = vshrl.u32 %v631, 16
        %v855 = vrot.slane %v853, 7
        %v856 = vshll.u32 %v631, 16
        %v858 = vor.u32 %v855, %v856
        %v859 = vsel %vm639, %v851, %v858
        %v860 = vrot.slane %v855, 4
        %v862 = vshrl.u32 %v632, 16
        %v864 = vrot.slane %v862, 7
        %v865 = vshll.u32 %v632, 16
        %v867 = vor.u32 %v864, %v865
        %v868 = vrot.slane %v864, 4
        %v870 = vshrl.u32 %v633, 16
        %v872 = vrot.slane %v870, 7
        %v873 = vshll.u32 %v633, 16
        %v875 = vor.u32 %v872, %v873
        %v876 = vsel %vm639, %v868, %v875
        %v877 = vrot.slane %v872, 4
        %v879 = vshrl.u32 %v634, 16
        %v881 = vrot.slane %v879, 7
        %v882 = vshll.u32 %v634, 16
        %v884 = vor.u32 %v881, %v882
        %v885 = vrot.slane %v881, 4
        %v887 = vshrl.u32 %v635, 16
        %v889 = vrot.slane %v887, 7
        %v890 = vshll.u32 %v635, 16
        %v892 = vor.u32 %v889, %v890
        %v893 = vsel %vm639, %v885, %v892
        %v894 = vrot.slane %v889, 4
        %v896 = vshrl.u32 %v636, 16
        %v898 = vrot.slane %v896, 7
        %v899 = vshll.u32 %v636, 16
        %v901 = vor.u32 %v898, %v899
        %v902 = vrot.slane %v898, 4
        %v904 = vshrl.u32 %v637, 16
        %v906 = vrot.slane %v904, 7
        %v907 = vshll.u32 %v637, 16
        %v909 = vor.u32 %v906, %v907
        %v910 = vsel %vm639, %v902, %v909
        %v911 = vrot.slane %v906, 4
        %s960 = scalar_lea.vmem [#allocation2], 12
        %vm961 = vcmask 1043456
        %vm962 = vmand %vm961, %vm305
        %v963 = vld [vmem:[%s960] sm:$0xf]
        %v964 = vsel %vm962, %v646, %v963
        %965 = vst [vmem:[%s960] sm:$0xf] %v964
        %966 = vst [vmem:[%s960 + $0x4] sm:$0xf] %v655
        %v967 = vld [vmem:[%s960 + $0x8] sm:$0x1]
        %v968 = vsel %vm250, %v656, %v967
        %969 = vst [vmem:[%s960 + $0x8] sm:$0x1] %v968
        %v970 = vld [vmem:[%s960 + $0xc] sm:$0xf]
        %v971 = vsel %vm962, %v663, %v970
        %972 = vst [vmem:[%s960 + $0xc] sm:$0xf] %v971
        %973 = vst [vmem:[%s960 + $0x10] sm:$0xf] %v672
        %v974 = vld [vmem:[%s960 + $0x14] sm:$0x1]
        %v975 = vsel %vm250, %v673, %v974
        %976 = vst [vmem:[%s960 + $0x14] sm:$0x1] %v975
        %v977 = vld [vmem:[%s960 + $0x18] sm:$0xf]
        %v978 = vsel %vm962, %v680, %v977
        %979 = vst [vmem:[%s960 + $0x18] sm:$0xf] %v978
        %980 = vst [vmem:[%s960 + $0x1c] sm:$0xf] %v689
        %v981 = vld [vmem:[%s960 + $0x20] sm:$0x1]
        %v982 = vsel %vm250, %v690, %v981
        %983 = vst [vmem:[%s960 + $0x20] sm:$0x1] %v982
        %v984 = vld [vmem:[%s960 + $0x24] sm:$0xf]
        %v985 = vsel %vm962, %v697, %v984
        %986 = vst [vmem:[%s960 + $0x24] sm:$0xf] %v985
        %987 = vst [vmem:[%s960 + $0x28] sm:$0xf] %v706
        %v988 = vld [vmem:[%s960 + $0x2c] sm:$0x1]
        %v989 = vsel %vm250, %v707, %v988
        %990 = vst [vmem:[%s960 + $0x2c] sm:$0x1] %v989
        %v991 = vld [vmem:[%s960 + $0x30] sm:$0xf]
        %v992 = vsel %vm962, %v714, %v991
        %993 = vst [vmem:[%s960 + $0x30] sm:$0xf] %v992
        %994 = vst [vmem:[%s960 + $0x34] sm:$0xf] %v723
        %v995 = vld [vmem:[%s960 + $0x38] sm:$0x1]
        %v996 = vsel %vm250, %v724, %v995
        %997 = vst [vmem:[%s960 + $0x38] sm:$0x1] %v996
        %v998 = vld [vmem:[%s960 + $0x3c] sm:$0xf]
        %v999 = vsel %vm962, %v731, %v998
        %1000 = vst [vmem:[%s960 + $0x3c] sm:$0xf] %v999
        %1001 = vst [vmem:[%s960 + $0x40] sm:$0xf] %v740
        %v1002 = vld [vmem:[%s960 + $0x44] sm:$0x1]
        %v1003 = vsel %vm250, %v741, %v1002
        %1004 = vst [vmem:[%s960 + $0x44] sm:$0x1] %v1003
        %v1005 = vld [vmem:[%s960 + $0x48] sm:$0xf]
        %v1006 = vsel %vm962, %v748, %v1005
        %1007 = vst [vmem:[%s960 + $0x48] sm:$0xf] %v1006
        %1008 = vst [vmem:[%s960 + $0x4c] sm:$0xf] %v757
        %v1009 = vld [vmem:[%s960 + $0x50] sm:$0x1]
        %v1010 = vsel %vm250, %v758, %v1009
        %1011 = vst [vmem:[%s960 + $0x50] sm:$0x1] %v1010
        %v1012 = vld [vmem:[%s960 + $0x54] sm:$0xf]
        %v1013 = vsel %vm962, %v765, %v1012
        %1014 = vst [vmem:[%s960 + $0x54] sm:$0xf] %v1013
        %1015 = vst [vmem:[%s960 + $0x58] sm:$0xf] %v774
        %v1016 = vld [vmem:[%s960 + $0x5c] sm:$0x1]
        %v1017 = vsel %vm250, %v775, %v1016
        %1018 = vst [vmem:[%s960 + $0x5c] sm:$0x1] %v1017
        %v1019 = vld [vmem:[%s960 + $0x60] sm:$0xf]
        %v1020 = vsel %vm962, %v782, %v1019
        %1021 = vst [vmem:[%s960 + $0x60] sm:$0xf] %v1020
        %1022 = vst [vmem:[%s960 + $0x64] sm:$0xf] %v791
        %v1023 = vld [vmem:[%s960 + $0x68] sm:$0x1]
        %v1024 = vsel %vm250, %v792, %v1023
        %1025 = vst [vmem:[%s960 + $0x68] sm:$0x1] %v1024
        %v1026 = vld [vmem:[%s960 + $0x6c] sm:$0xf]
        %v1027 = vsel %vm962, %v799, %v1026
        %1028 = vst [vmem:[%s960 + $0x6c] sm:$0xf] %v1027
        %1029 = vst [vmem:[%s960 + $0x70] sm:$0xf] %v808
        %v1030 = vld [vmem:[%s960 + $0x74] sm:$0x1]
        %v1031 = vsel %vm250, %v809, %v1030
        %1032 = vst [vmem:[%s960 + $0x74] sm:$0x1] %v1031
        %v1033 = vld [vmem:[%s960 + $0x78] sm:$0xf]
        %v1034 = vsel %vm962, %v816, %v1033
        %1035 = vst [vmem:[%s960 + $0x78] sm:$0xf] %v1034
        %1036 = vst [vmem:[%s960 + $0x7c] sm:$0xf] %v825
        %v1037 = vld [vmem:[%s960 + $0x80] sm:$0x1]
        %v1038 = vsel %vm250, %v826, %v1037
        %1039 = vst [vmem:[%s960 + $0x80] sm:$0x1] %v1038
        %v1040 = vld [vmem:[%s960 + $0x84] sm:$0xf]
        %v1041 = vsel %vm962, %v833, %v1040
        %1042 = vst [vmem:[%s960 + $0x84] sm:$0xf] %v1041
        %1043 = vst [vmem:[%s960 + $0x88] sm:$0xf] %v842
        %v1044 = vld [vmem:[%s960 + $0x8c] sm:$0x1]
        %v1045 = vsel %vm250, %v843, %v1044
        %1046 = vst [vmem:[%s960 + $0x8c] sm:$0x1] %v1045
        %v1047 = vld [vmem:[%s960 + $0x90] sm:$0xf]
        %v1048 = vsel %vm962, %v850, %v1047
        %1049 = vst [vmem:[%s960 + $0x90] sm:$0xf] %v1048
        %1050 = vst [vmem:[%s960 + $0x94] sm:$0xf] %v859
        %v1051 = vld [vmem:[%s960 + $0x98] sm:$0x1]
        %v1052 = vsel %vm250, %v860, %v1051
        %1053 = vst [vmem:[%s960 + $0x98] sm:$0x1] %v1052
        %v1054 = vld [vmem:[%s960 + $0x9c] sm:$0xf]
        %v1055 = vsel %vm962, %v867, %v1054
        %1056 = vst [vmem:[%s960 + $0x9c] sm:$0xf] %v1055
        %1057 = vst [vmem:[%s960 + $0xa0] sm:$0xf] %v876
        %v1058 = vld [vmem:[%s960 + $0xa4] sm:$0x1]
        %v1059 = vsel %vm250, %v877, %v1058
        %1060 = vst [vmem:[%s960 + $0xa4] sm:$0x1] %v1059
        %v1061 = vld [vmem:[%s960 + $0xa8] sm:$0xf]
        %v1062 = vsel %vm962, %v884, %v1061
        %1063 = vst [vmem:[%s960 + $0xa8] sm:$0xf] %v1062
        %1064 = vst [vmem:[%s960 + $0xac] sm:$0xf] %v893
        %v1065 = vld [vmem:[%s960 + $0xb0] sm:$0x1]
        %v1066 = vsel %vm250, %v894, %v1065
        %1067 = vst [vmem:[%s960 + $0xb0] sm:$0x1] %v1066
        %v1068 = vld [vmem:[%s960 + $0xb4] sm:$0xf]
        %v1069 = vsel %vm962, %v901, %v1068
        %1070 = vst [vmem:[%s960 + $0xb4] sm:$0xf] %v1069
        %1071 = vst [vmem:[%s960 + $0xb8] sm:$0xf] %v910
        %v1072 = vld [vmem:[%s960 + $0xbc] sm:$0x1]
        %v1073 = vsel %vm250, %v911, %v1072
        %1074 = vst [vmem:[%s960 + $0xbc] sm:$0x1] %v1073
        %v1075 = vld [vmem:[#allocation2] sm:$0xf]
        %v1076 = vld [vmem:[#allocation2 + $0x4] sm:$0xf]
        %v1077 = vld [vmem:[#allocation2 + $0xc] sm:$0xf]
        %v1078 = vld [vmem:[#allocation2 + $0x10] sm:$0xf]
        %v1079 = vld [vmem:[#allocation2 + $0x18] sm:$0xf]
        %v1080 = vld [vmem:[#allocation2 + $0x1c] sm:$0xf]
        %v1081 = vld [vmem:[#allocation2 + $0x24] sm:$0xf]
        %v1082 = vld [vmem:[#allocation2 + $0x28] sm:$0xf]
        %v1083 = vld [vmem:[#allocation2 + $0x30] sm:$0xf]
        %v1084 = vld [vmem:[#allocation2 + $0x34] sm:$0xf]
        %v1085 = vld [vmem:[#allocation2 + $0x3c] sm:$0xf]
        %v1086 = vld [vmem:[#allocation2 + $0x40] sm:$0xf]
        %v1087 = vld [vmem:[#allocation2 + $0x48] sm:$0xf]
        %v1088 = vld [vmem:[#allocation2 + $0x4c] sm:$0xf]
        %v1089 = vld [vmem:[#allocation2 + $0x54] sm:$0xf]
        %v1090 = vld [vmem:[#allocation2 + $0x58] sm:$0xf]
        %v1091 = vld [vmem:[#allocation2 + $0x60] sm:$0xf]
        %v1092 = vld [vmem:[#allocation2 + $0x64] sm:$0xf]
        %v1093 = vld [vmem:[#allocation2 + $0x6c] sm:$0xf]
        %v1094 = vld [vmem:[#allocation2 + $0x70] sm:$0xf]
        %v1095 = vld [vmem:[#allocation2 + $0x78] sm:$0xf]
        %v1096 = vld [vmem:[#allocation2 + $0x7c] sm:$0xf]
        %v1097 = vld [vmem:[#allocation2 + $0x84] sm:$0xf]
        %v1098 = vld [vmem:[#allocation2 + $0x88] sm:$0xf]
        %v1099 = vld [vmem:[#allocation2 + $0x90] sm:$0xf]
        %v1100 = vld [vmem:[#allocation2 + $0x94] sm:$0xf]
        %v1101 = vld [vmem:[#allocation2 + $0x9c] sm:$0xf]
        %v1102 = vld [vmem:[#allocation2 + $0xa0] sm:$0xf]
        %v1103 = vld [vmem:[#allocation2 + $0xa8] sm:$0xf]
        %v1104 = vld [vmem:[#allocation2 + $0xac] sm:$0xf]
        %v1105 = vld [vmem:[#allocation2 + $0xb4] sm:$0xf]
        %v1106 = vld [vmem:[#allocation2 + $0xb8] sm:$0xf]
        %v1107 = vld [vmem:[%s1] sm:$0xf]
        %v1108 = vld [vmem:[%s1 + $0x4] sm:$0xf]
        %v1109 = vld [vmem:[%s1 + $0x8] sm:$0xf]
        %v1110 = vld [vmem:[%s1 + $0xc] sm:$0xf]
        %v1111 = vld [vmem:[%s1 + $0x10] sm:$0xf]
        %v1112 = vld [vmem:[%s1 + $0x14] sm:$0xf]
        %v1113 = vld [vmem:[%s1 + $0x18] sm:$0xf]
        %v1114 = vld [vmem:[%s1 + $0x1c] sm:$0xf]
        %v1115 = vld [vmem:[%s1 + $0x20] sm:$0xf]
        %v1116 = vld [vmem:[%s1 + $0x24] sm:$0xf]
        %v1117 = vld [vmem:[%s1 + $0x28] sm:$0xf]
        %v1118 = vld [vmem:[%s1 + $0x2c] sm:$0xf]
        %v1119 = vld [vmem:[%s1 + $0x30] sm:$0xf]
        %v1120 = vld [vmem:[%s1 + $0x34] sm:$0xf]
        %v1121 = vld [vmem:[%s1 + $0x38] sm:$0xf]
        %v1122 = vld [vmem:[%s1 + $0x3c] sm:$0xf]
        %v1123 = vld [vmem:[#allocation2 + $0x8] sm:$0x1]
        %v1124 = vld [vmem:[#allocation2 + $0x14] sm:$0x1]
        %v1125 = vld [vmem:[#allocation2 + $0x20] sm:$0x1]
        %v1126 = vld [vmem:[#allocation2 + $0x2c] sm:$0x1]
        %v1127 = vld [vmem:[#allocation2 + $0x38] sm:$0x1]
        %v1128 = vld [vmem:[#allocation2 + $0x44] sm:$0x1]
        %v1129 = vld [vmem:[#allocation2 + $0x50] sm:$0x1]
        %v1130 = vld [vmem:[#allocation2 + $0x5c] sm:$0x1]
        %v1131 = vld [vmem:[#allocation2 + $0x68] sm:$0x1]
        %v1132 = vld [vmem:[#allocation2 + $0x74] sm:$0x1]
        %v1133 = vld [vmem:[#allocation2 + $0x80] sm:$0x1]
        %v1134 = vld [vmem:[#allocation2 + $0x8c] sm:$0x1]
        %v1135 = vld [vmem:[#allocation2 + $0x98] sm:$0x1]
        %v1136 = vld [vmem:[#allocation2 + $0xa4] sm:$0x1]
        %v1137 = vld [vmem:[#allocation2 + $0xb0] sm:$0x1]
        %v1138 = vld [vmem:[#allocation2 + $0xbc] sm:$0x1]
        %vm1139 = vsmask.f32 3328
        %vm1140 = vsmask.f32 7440
        %vm1141 = vmor %vm1139, %vm1140
        %v1143 = vshrl.u32 %v1075, 16
        %v1145 = vrot.slane %v1143, 4
        %v1146 = vshll.u32 %v1075, 16
        %v1148 = vrot.slane %v1146, 5
        %v1149 = vor.u32 %v1145, %v1148
        %v1150 = vrot.slane %v1149, 4
        %v1152 = vshll.u32 %v1076, 16
        %v1154 = vrot.slane %v1152, 5
        %v1155 = vsel %vm1141, %v1150, %v1154
        %v1156 = vshrl.u32 %v1076, 16
        %v1158 = vrot.slane %v1156, 4
        %v1159 = vor.u32 %v1158, %v1154
        %v1160 = vrot.slane %v1159, 4
        %v1162 = vshll.u32 %v1123, 16
        %v1164 = vrot.slane %v1162, 5
        %v1165 = vsel %vm1141, %v1160, %v1164
        %v1167 = vshrl.u32 %v1077, 16
        %v1169 = vrot.slane %v1167, 4
        %v1170 = vshll.u32 %v1077, 16
        %v1172 = vrot.slane %v1170, 5
        %v1173 = vor.u32 %v1169, %v1172
        %v1174 = vrot.slane %v1173, 4
        %v1176 = vshll.u32 %v1078, 16
        %v1178 = vrot.slane %v1176, 5
        %v1179 = vsel %vm1141, %v1174, %v1178
        %v1180 = vshrl.u32 %v1078, 16
        %v1182 = vrot.slane %v1180, 4
        %v1183 = vor.u32 %v1182, %v1178
        %v1184 = vrot.slane %v1183, 4
        %v1186 = vshll.u32 %v1124, 16
        %v1188 = vrot.slane %v1186, 5
        %v1189 = vsel %vm1141, %v1184, %v1188
        %v1191 = vshrl.u32 %v1079, 16
        %v1193 = vrot.slane %v1191, 4
        %v1194 = vshll.u32 %v1079, 16
        %v1196 = vrot.slane %v1194, 5
        %v1197 = vor.u32 %v1193, %v1196
        %v1198 = vrot.slane %v1197, 4
        %v1200 = vshll.u32 %v1080, 16
        %v1202 = vrot.slane %v1200, 5
        %v1203 = vsel %vm1141, %v1198, %v1202
        %v1204 = vshrl.u32 %v1080, 16
        %v1206 = vrot.slane %v1204, 4
        %v1207 = vor.u32 %v1206, %v1202
        %v1208 = vrot.slane %v1207, 4
        %v1210 = vshll.u32 %v1125, 16
        %v1212 = vrot.slane %v1210, 5
        %v1213 = vsel %vm1141, %v1208, %v1212
        %v1215 = vshrl.u32 %v1081, 16
        %v1217 = vrot.slane %v1215, 4
        %v1218 = vshll.u32 %v1081, 16
        %v1220 = vrot.slane %v1218, 5
        %v1221 = vor.u32 %v1217, %v1220
        %v1222 = vrot.slane %v1221, 4
        %v1224 = vshll.u32 %v1082, 16
        %v1226 = vrot.slane %v1224, 5
        %v1227 = vsel %vm1141, %v1222, %v1226
        %v1228 = vshrl.u32 %v1082, 16
        %v1230 = vrot.slane %v1228, 4
        %v1231 = vor.u32 %v1230, %v1226
        %v1232 = vrot.slane %v1231, 4
        %v1234 = vshll.u32 %v1126, 16
        %v1236 = vrot.slane %v1234, 5
        %v1237 = vsel %vm1141, %v1232, %v1236
        %v1239 = vshrl.u32 %v1083, 16
        %v1241 = vrot.slane %v1239, 4
        %v1242 = vshll.u32 %v1083, 16
        %v1244 = vrot.slane %v1242, 5
        %v1245 = vor.u32 %v1241, %v1244
        %v1246 = vrot.slane %v1245, 4
        %v1248 = vshll.u32 %v1084, 16
        %v1250 = vrot.slane %v1248, 5
        %v1251 = vsel %vm1141, %v1246, %v1250
        %v1252 = vshrl.u32 %v1084, 16
        %v1254 = vrot.slane %v1252, 4
        %v1255 = vor.u32 %v1254, %v1250
        %v1256 = vrot.slane %v1255, 4
        %v1258 = vshll.u32 %v1127, 16
        %v1260 = vrot.slane %v1258, 5
        %v1261 = vsel %vm1141, %v1256, %v1260
        %v1263 = vshrl.u32 %v1085, 16
        %v1265 = vrot.slane %v1263, 4
        %v1266 = vshll.u32 %v1085, 16
        %v1268 = vrot.slane %v1266, 5
        %v1269 = vor.u32 %v1265, %v1268
        %v1270 = vrot.slane %v1269, 4
        %v1272 = vshll.u32 %v1086, 16
        %v1274 = vrot.slane %v1272, 5
        %v1275 = vsel %vm1141, %v1270, %v1274
        %v1276 = vshrl.u32 %v1086, 16
        %v1278 = vrot.slane %v1276, 4
        %v1279 = vor.u32 %v1278, %v1274
        %v1280 = vrot.slane %v1279, 4
        %v1282 = vshll.u32 %v1128, 16
        %v1284 = vrot.slane %v1282, 5
        %v1285 = vsel %vm1141, %v1280, %v1284
        %v1287 = vshrl.u32 %v1087, 16
        %v1289 = vrot.slane %v1287, 4
        %v1290 = vshll.u32 %v1087, 16
        %v1292 = vrot.slane %v1290, 5
        %v1293 = vor.u32 %v1289, %v1292
        %v1294 = vrot.slane %v1293, 4
        %v1296 = vshll.u32 %v1088, 16
        %v1298 = vrot.slane %v1296, 5
        %v1299 = vsel %vm1141, %v1294, %v1298
        %v1300 = vshrl.u32 %v1088, 16
        %v1302 = vrot.slane %v1300, 4
        %v1303 = vor.u32 %v1302, %v1298
        %v1304 = vrot.slane %v1303, 4
        %v1306 = vshll.u32 %v1129, 16
        %v1308 = vrot.slane %v1306, 5
        %v1309 = vsel %vm1141, %v1304, %v1308
        %v1311 = vshrl.u32 %v1089, 16
        %v1313 = vrot.slane %v1311, 4
        %v1314 = vshll.u32 %v1089, 16
        %v1316 = vrot.slane %v1314, 5
        %v1317 = vor.u32 %v1313, %v1316
        %v1318 = vrot.slane %v1317, 4
        %v1320 = vshll.u32 %v1090, 16
        %v1322 = vrot.slane %v1320, 5
        %v1323 = vsel %vm1141, %v1318, %v1322
        %v1324 = vshrl.u32 %v1090, 16
        %v1326 = vrot.slane %v1324, 4
        %v1327 = vor.u32 %v1326, %v1322
        %v1328 = vrot.slane %v1327, 4
        %v1330 = vshll.u32 %v1130, 16
        %v1332 = vrot.slane %v1330, 5
        %v1333 = vsel %vm1141, %v1328, %v1332
        %v1335 = vshrl.u32 %v1091, 16
        %v1337 = vrot.slane %v1335, 4
        %v1338 = vshll.u32 %v1091, 16
        %v1340 = vrot.slane %v1338, 5
        %v1341 = vor.u32 %v1337, %v1340
        %v1342 = vrot.slane %v1341, 4
        %v1344 = vshll.u32 %v1092, 16
        %v1346 = vrot.slane %v1344, 5
        %v1347 = vsel %vm1141, %v1342, %v1346
        %v1348 = vshrl.u32 %v1092, 16
        %v1350 = vrot.slane %v1348, 4
        %v1351 = vor.u32 %v1350, %v1346
        %v1352 = vrot.slane %v1351, 4
        %v1354 = vshll.u32 %v1131, 16
        %v1356 = vrot.slane %v1354, 5
        %v1357 = vsel %vm1141, %v1352, %v1356
        %v1359 = vshrl.u32 %v1093, 16
        %v1361 = vrot.slane %v1359, 4
        %v1362 = vshll.u32 %v1093, 16
        %v1364 = vrot.slane %v1362, 5
        %v1365 = vor.u32 %v1361, %v1364
        %v1366 = vrot.slane %v1365, 4
        %v1368 = vshll.u32 %v1094, 16
        %v1370 = vrot.slane %v1368, 5
        %v1371 = vsel %vm1141, %v1366, %v1370
        %v1372 = vshrl.u32 %v1094, 16
        %v1374 = vrot.slane %v1372, 4
        %v1375 = vor.u32 %v1374, %v1370
        %v1376 = vrot.slane %v1375, 4
        %v1378 = vshll.u32 %v1132, 16
        %v1380 = vrot.slane %v1378, 5
        %v1381 = vsel %vm1141, %v1376, %v1380
        %v1383 = vshrl.u32 %v1095, 16
        %v1385 = vrot.slane %v1383, 4
        %v1386 = vshll.u32 %v1095, 16
        %v1388 = vrot.slane %v1386, 5
        %v1389 = vor.u32 %v1385, %v1388
        %v1390 = vrot.slane %v1389, 4
        %v1392 = vshll.u32 %v1096, 16
        %v1394 = vrot.slane %v1392, 5
        %v1395 = vsel %vm1141, %v1390, %v1394
        %v1396 = vshrl.u32 %v1096, 16
        %v1398 = vrot.slane %v1396, 4
        %v1399 = vor.u32 %v1398, %v1394
        %v1400 = vrot.slane %v1399, 4
        %v1402 = vshll.u32 %v1133, 16
        %v1404 = vrot.slane %v1402, 5
        %v1405 = vsel %vm1141, %v1400, %v1404
        %v1407 = vshrl.u32 %v1097, 16
        %v1409 = vrot.slane %v1407, 4
        %v1410 = vshll.u32 %v1097, 16
        %v1412 = vrot.slane %v1410, 5
        %v1413 = vor.u32 %v1409, %v1412
        %v1414 = vrot.slane %v1413, 4
        %v1416 = vshll.u32 %v1098, 16
        %v1418 = vrot.slane %v1416, 5
        %v1419 = vsel %vm1141, %v1414, %v1418
        %v1420 = vshrl.u32 %v1098, 16
        %v1422 = vrot.slane %v1420, 4
        %v1423 = vor.u32 %v1422, %v1418
        %v1424 = vrot.slane %v1423, 4
        %v1426 = vshll.u32 %v1134, 16
        %v1428 = vrot.slane %v1426, 5
        %v1429 = vsel %vm1141, %v1424, %v1428
        %v1431 = vshrl.u32 %v1099, 16
        %v1433 = vrot.slane %v1431, 4
        %v1434 = vshll.u32 %v1099, 16
        %v1436 = vrot.slane %v1434, 5
        %v1437 = vor.u32 %v1433, %v1436
        %v1438 = vrot.slane %v1437, 4
        %v1440 = vshll.u32 %v1100, 16
        %v1442 = vrot.slane %v1440, 5
        %v1443 = vsel %vm1141, %v1438, %v1442
        %v1444 = vshrl.u32 %v1100, 16
        %v1446 = vrot.slane %v1444, 4
        %v1447 = vor.u32 %v1446, %v1442
        %v1448 = vrot.slane %v1447, 4
        %v1450 = vshll.u32 %v1135, 16
        %v1452 = vrot.slane %v1450, 5
        %v1453 = vsel %vm1141, %v1448, %v1452
        %v1455 = vshrl.u32 %v1101, 16
        %v1457 = vrot.slane %v1455, 4
        %v1458 = vshll.u32 %v1101, 16
        %v1460 = vrot.slane %v1458, 5
        %v1461 = vor.u32 %v1457, %v1460
        %v1462 = vrot.slane %v1461, 4
        %v1464 = vshll.u32 %v1102, 16
        %v1466 = vrot.slane %v1464, 5
        %v1467 = vsel %vm1141, %v1462, %v1466
        %v1468 = vshrl.u32 %v1102, 16
        %v1470 = vrot.slane %v1468, 4
        %v1471 = vor.u32 %v1470, %v1466
        %v1472 = vrot.slane %v1471, 4
        %v1474 = vshll.u32 %v1136, 16
        %v1476 = vrot.slane %v1474, 5
        %v1477 = vsel %vm1141, %v1472, %v1476
        %v1479 = vshrl.u32 %v1103, 16
        %v1481 = vrot.slane %v1479, 4
        %v1482 = vshll.u32 %v1103, 16
        %v1484 = vrot.slane %v1482, 5
        %v1485 = vor.u32 %v1481, %v1484
        %v1486 = vrot.slane %v1485, 4
        %v1488 = vshll.u32 %v1104, 16
        %v1490 = vrot.slane %v1488, 5
        %v1491 = vsel %vm1141, %v1486, %v1490
        %v1492 = vshrl.u32 %v1104, 16
        %v1494 = vrot.slane %v1492, 4
        %v1495 = vor.u32 %v1494, %v1490
        %v1496 = vrot.slane %v1495, 4
        %v1498 = vshll.u32 %v1137, 16
        %v1500 = vrot.slane %v1498, 5
        %v1501 = vsel %vm1141, %v1496, %v1500
        %v1503 = vshrl.u32 %v1105, 16
        %v1505 = vrot.slane %v1503, 4
        %v1506 = vshll.u32 %v1105, 16
        %v1508 = vrot.slane %v1506, 5
        %v1509 = vor.u32 %v1505, %v1508
        %v1510 = vrot.slane %v1509, 4
        %v1512 = vshll.u32 %v1106, 16
        %v1514 = vrot.slane %v1512, 5
        %v1515 = vsel %vm1141, %v1510, %v1514
        %v1516 = vshrl.u32 %v1106, 16
        %v1518 = vrot.slane %v1516, 4
        %v1519 = vor.u32 %v1518, %v1514
        %v1520 = vrot.slane %v1519, 4
        %v1522 = vshll.u32 %v1138, 16
        %v1524 = vrot.slane %v1522, 5
        %v1525 = vsel %vm1141, %v1520, %v1524
        %s1526 = scalar_lea.vmem %s1, 64
        %v1527 = vld [vmem:[%s1526] sm:$0xf]
        %v1528 = vld [vmem:[%s1526 + $0x4] sm:$0xf]
        %v1529 = vld [vmem:[%s1526 + $0x8] sm:$0xf]
        %v1530 = vld [vmem:[%s1526 + $0xc] sm:$0xf]
        %v1531 = vld [vmem:[%s1526 + $0x10] sm:$0xf]
        %v1532 = vld [vmem:[%s1526 + $0x14] sm:$0xf]
        %v1533 = vld [vmem:[%s1526 + $0x18] sm:$0xf]
        %v1534 = vld [vmem:[%s1526 + $0x1c] sm:$0xf]
        %v1535 = vld [vmem:[%s1526 + $0x20] sm:$0xf]
        %v1536 = vld [vmem:[%s1526 + $0x24] sm:$0xf]
        %v1537 = vld [vmem:[%s1526 + $0x28] sm:$0xf]
        %v1538 = vld [vmem:[%s1526 + $0x2c] sm:$0xf]
        %v1539 = vld [vmem:[%s1526 + $0x30] sm:$0xf]
        %v1540 = vld [vmem:[%s1526 + $0x34] sm:$0xf]
        %v1541 = vld [vmem:[%s1526 + $0x38] sm:$0xf]
        %v1542 = vld [vmem:[%s1526 + $0x3c] sm:$0xf]
        %v1543 = vunpack.c.l.b16 %v1155
        %v1544 = vunpack.c.l.b16 %v1165
        %v1545 = vunpack.c.l.b16 %v1179
        %v1546 = vunpack.c.l.b16 %v1189
        %v1547 = vunpack.c.l.b16 %v1203
        %v1548 = vunpack.c.l.b16 %v1213
        %v1549 = vunpack.c.l.b16 %v1227
        %v1550 = vunpack.c.l.b16 %v1237
        %v1551 = vunpack.c.l.b16 %v1251
        %v1552 = vunpack.c.l.b16 %v1261
        %v1553 = vunpack.c.l.b16 %v1275
        %v1554 = vunpack.c.l.b16 %v1285
        %v1555 = vunpack.c.l.b16 %v1299
        %v1556 = vunpack.c.l.b16 %v1309
        %v1557 = vunpack.c.l.b16 %v1323
        %v1558 = vunpack.c.l.b16 %v1333
        %v1559 = vunpack.c.l.b16 %v1347
        %v1560 = vunpack.c.l.b16 %v1357
        %v1561 = vunpack.c.l.b16 %v1371
        %v1562 = vunpack.c.l.b16 %v1381
        %v1563 = vunpack.c.l.b16 %v1395
        %v1564 = vunpack.c.l.b16 %v1405
        %v1565 = vunpack.c.l.b16 %v1419
        %v1566 = vunpack.c.l.b16 %v1429
        %v1567 = vunpack.c.l.b16 %v1443
        %v1568 = vunpack.c.l.b16 %v1453
        %v1569 = vunpack.c.l.b16 %v1467
        %v1570 = vunpack.c.l.b16 %v1477
        %v1571 = vunpack.c.l.b16 %v1491
        %v1572 = vunpack.c.l.b16 %v1501
        %v1573 = vunpack.c.l.b16 %v1515
        %v1574 = vunpack.c.l.b16 %v1525
        %v1575 = vpack.c.b16 %v1544, %v1543
        %v1576 = vpack.c.b16 %v1546, %v1545
        %v1577 = vpack.c.b16 %v1548, %v1547
        %v1578 = vpack.c.b16 %v1550, %v1549
        %v1579 = vpack.c.b16 %v1552, %v1551
        %v1580 = vpack.c.b16 %v1554, %v1553
        %v1581 = vpack.c.b16 %v1556, %v1555
        %v1582 = vpack.c.b16 %v1558, %v1557
        %v1583 = vpack.c.b16 %v1560, %v1559
        %v1584 = vpack.c.b16 %v1562, %v1561
        %v1585 = vpack.c.b16 %v1564, %v1563
        %v1586 = vpack.c.b16 %v1566, %v1565
        %v1587 = vpack.c.b16 %v1568, %v1567
        %v1588 = vpack.c.b16 %v1570, %v1569
        %v1589 = vpack.c.b16 %v1572, %v1571
        %v1590 = vpack.c.b16 %v1574, %v1573
        %v1623 = vunpack.c.l.b16 %v1527
        %v1624 = vunpack.c.l.b16 %v1528
        %v1625 = vunpack.c.l.b16 %v1529
        %v1626 = vunpack.c.l.b16 %v1530
        %v1627 = vunpack.c.l.b16 %v1531
        %v1628 = vunpack.c.l.b16 %v1532
        %v1629 = vunpack.c.l.b16 %v1533
        %v1630 = vunpack.c.l.b16 %v1534
        %v1631 = vunpack.c.l.b16 %v1535
        %v1632 = vunpack.c.l.b16 %v1536
        %v1633 = vunpack.c.l.b16 %v1537
        %v1634 = vunpack.c.l.b16 %v1538
        %v1635 = vunpack.c.l.b16 %v1539
        %v1636 = vunpack.c.l.b16 %v1540
        %v1637 = vunpack.c.l.b16 %v1541
        %v1638 = vunpack.c.l.b16 %v1542
        %v1639 = vpack.c.b16 %v1624, %v1623
        %v1640 = vpack.c.b16 %v1626, %v1625
        %v1641 = vpack.c.b16 %v1628, %v1627
        %v1642 = vpack.c.b16 %v1630, %v1629
        %v1643 = vpack.c.b16 %v1632, %v1631
        %v1644 = vpack.c.b16 %v1634, %v1633
        %v1645 = vpack.c.b16 %v1636, %v1635
        %v1646 = vpack.c.b16 %v1638, %v1637
        %1655 = vmatprep.subr.bf16.mxu0 0
        %1656 = vmatpush1.bf16.msra.mxu0 %v1639
        %1657 = vmatprep.subr.bf16.mxu0 0
        %1658 = vmatpush1.bf16.msra.mxu0 %v1640
        %1659 = vmatprep.subr.bf16.mxu0 0
        %1660 = vmatpush1.bf16.msra.mxu0 %v1641
        %1661 = vmatprep.subr.bf16.mxu0 0
        %1662 = vmatpush1.bf16.msra.mxu0 %v1642
        %1663 = vmatprep.subr.bf16.mxu0 0
        %1664 = vmatpush1.bf16.msra.mxu0 %v1643
        %1665 = vmatprep.subr.bf16.mxu0 0
        %1666 = vmatpush1.bf16.msra.mxu0 %v1644
        %1667 = vmatprep.subr.bf16.mxu0 0
        %1668 = vmatpush1.bf16.msra.mxu0 %v1645
        %1669 = vmatprep.subr.bf16.mxu0 0
        %1670 = vmatpush1.bf16.msra.mxu0 %v1646
        %1671 = vmatprep.subr.bf16.mxu0 0
        %1672 = vmatpush1.bf16.msra.mxu0 0
        %1673 = vmatprep.subr.bf16.mxu0 0
        %1674 = vmatpush1.bf16.msra.mxu0 0
        %1675 = vmatprep.subr.bf16.mxu0 0
        %1676 = vmatpush1.bf16.msra.mxu0 0
        %1677 = vmatprep.subr.bf16.mxu0 0
        %1678 = vmatpush1.bf16.msra.mxu0 0
        %1679 = vmatprep.subr.bf16.mxu0 0
        %1680 = vmatpush1.bf16.msra.mxu0 0
        %1681 = vmatprep.subr.bf16.mxu0 0
        %1682 = vmatpush1.bf16.msra.mxu0 0
        %1683 = vmatprep.subr.bf16.mxu0 0
        %1684 = vmatpush1.bf16.msra.mxu0 0
        %1685 = vmatprep.subr.bf16.mxu0 0
        %1686 = vmatpush1.bf16.msra.mxu0 0
        %1687 = vmatprep.mubr.bf16.mxu0 0
        %1688 = vmatmul.mubr.bf16.gmra.mrb[0].mxu0 %v1575
        %v1689 = vpop.f32.mrb[0].mxu0
        %v1690 = vadd.f32 0.0, %v1689
        %v1691 = vpop.f32.mrb[0].mxu0
        %v1692 = vpop.f32.mrb[0].mxu0
        %v1693 = vadd.f32 0.0, %v1692
        %v1694 = vpop.f32.mrb[0].mxu0
        %1695 = vmatprep.mubr.bf16.mxu0 0
        %1696 = vmatmul.mubr.bf16.gmra.mrb[0].mxu0 %v1576
        %v1697 = vpop.f32.mrb[0].mxu0
        %v1698 = vadd.f32 0.0, %v1697
        %v1699 = vpop.f32.mrb[0].mxu0
        %v1700 = vpop.f32.mrb[0].mxu0
        %v1701 = vadd.f32 0.0, %v1700
        %v1702 = vpop.f32.mrb[0].mxu0
        %1703 = vmatprep.mubr.bf16.mxu0 0
        %1704 = vmatmul.mubr.bf16.gmra.mrb[0].mxu0 %v1577
        %v1705 = vpop.f32.mrb[0].mxu0
        %v1706 = vadd.f32 0.0, %v1705
        %v1707 = vpop.f32.mrb[0].mxu0
        %v1708 = vpop.f32.mrb[0].mxu0
        %v1709 = vadd.f32 0.0, %v1708
        %v1710 = vpop.f32.mrb[0].mxu0
        %1711 = vmatprep.mubr.bf16.mxu0 0
        %1712 = vmatmul.mubr.bf16.gmra.mrb[0].mxu0 %v1578
        %v1713 = vpop.f32.mrb[0].mxu0
        %v1714 = vadd.f32 0.0, %v1713
        %v1715 = vpop.f32.mrb[0].mxu0
        %v1716 = vpop.f32.mrb[0].mxu0
        %v1717 = vadd.f32 0.0, %v1716
        %v1718 = vpop.f32.mrb[0].mxu0
        %1719 = vmatprep.mubr.bf16.mxu0 0
        %1720 = vmatmul.mubr.bf16.gmra.mrb[0].mxu0 %v1579
        %v1721 = vpop.f32.mrb[0].mxu0
        %v1722 = vadd.f32 0.0, %v1721
        %v1723 = vpop.f32.mrb[0].mxu0
        %v1724 = vpop.f32.mrb[0].mxu0
        %v1725 = vadd.f32 0.0, %v1724
        %v1726 = vpop.f32.mrb[0].mxu0
        %1727 = vmatprep.mubr.bf16.mxu0 0
        %1728 = vmatmul.mubr.bf16.gmra.mrb[0].mxu0 %v1580
        %v1729 = vpop.f32.mrb[0].mxu0
        %v1730 = vadd.f32 0.0, %v1729
        %v1731 = vpop.f32.mrb[0].mxu0
        %v1732 = vpop.f32.mrb[0].mxu0
        %v1733 = vadd.f32 0.0, %v1732
        %v1734 = vpop.f32.mrb[0].mxu0
        %1735 = vmatprep.mubr.bf16.mxu0 0
        %1736 = vmatmul.mubr.bf16.gmra.mrb[0].mxu0 %v1581
        %v1737 = vpop.f32.mrb[0].mxu0
        %v1738 = vadd.f32 0.0, %v1737
        %v1739 = vpop.f32.mrb[0].mxu0
        %v1740 = vpop.f32.mrb[0].mxu0
        %v1741 = vadd.f32 0.0, %v1740
        %v1742 = vpop.f32.mrb[0].mxu0
        %1743 = vmatprep.mubr.bf16.mxu0 0
        %1744 = vmatmul.mubr.bf16.gmra.mrb[0].mxu0 %v1582
        %v1745 = vpop.f32.mrb[0].mxu0
        %v1746 = vadd.f32 0.0, %v1745
        %v1747 = vpop.f32.mrb[0].mxu0
        %v1748 = vpop.f32.mrb[0].mxu0
        %v1749 = vadd.f32 0.0, %v1748
        %v1750 = vpop.f32.mrb[0].mxu0
        %1751 = vmatprep.mubr.bf16.mxu0 0
        %1752 = vmatmul.mubr.bf16.gmra.mrb[0].mxu0 %v1583
        %v1753 = vpop.f32.mrb[0].mxu0
        %v1754 = vadd.f32 0.0, %v1753
        %v1755 = vpop.f32.mrb[0].mxu0
        %v1756 = vpop.f32.mrb[0].mxu0
        %v1757 = vadd.f32 0.0, %v1756
        %v1758 = vpop.f32.mrb[0].mxu0
        %1759 = vmatprep.mubr.bf16.mxu0 0
        %1760 = vmatmul.mubr.bf16.gmra.mrb[0].mxu0 %v1584
        %v1761 = vpop.f32.mrb[0].mxu0
        %v1762 = vadd.f32 0.0, %v1761
        %v1763 = vpop.f32.mrb[0].mxu0
        %v1764 = vpop.f32.mrb[0].mxu0
        %v1765 = vadd.f32 0.0, %v1764
        %v1766 = vpop.f32.mrb[0].mxu0
        %1767 = vmatprep.mubr.bf16.mxu0 0
        %1768 = vmatmul.mubr.bf16.gmra.mrb[0].mxu0 %v1585
        %v1769 = vpop.f32.mrb[0].mxu0
        %v1770 = vadd.f32 0.0, %v1769
        %v1771 = vpop.f32.mrb[0].mxu0
        %v1772 = vpop.f32.mrb[0].mxu0
        %v1773 = vadd.f32 0.0, %v1772
        %v1774 = vpop.f32.mrb[0].mxu0
        %1775 = vmatprep.mubr.bf16.mxu0 0
        %1776 = vmatmul.mubr.bf16.gmra.mrb[0].mxu0 %v1586
        %v1777 = vpop.f32.mrb[0].mxu0
        %v1778 = vadd.f32 0.0, %v1777
        %v1779 = vpop.f32.mrb[0].mxu0
        %v1780 = vpop.f32.mrb[0].mxu0
        %v1781 = vadd.f32 0.0, %v1780
        %v1782 = vpop.f32.mrb[0].mxu0
        %1783 = vmatprep.mubr.bf16.mxu0 0
        %1784 = vmatmul.mubr.bf16.gmra.mrb[0].mxu0 %v1587
        %v1785 = vpop.f32.mrb[0].mxu0
        %v1786 = vadd.f32 0.0, %v1785
        %v1787 = vpop.f32.mrb[0].mxu0
        %v1788 = vpop.f32.mrb[0].mxu0
        %v1789 = vadd.f32 0.0, %v1788
        %v1790 = vpop.f32.mrb[0].mxu0
        %1791 = vmatprep.mubr.bf16.mxu0 0
        %1792 = vmatmul.mubr.bf16.gmra.mrb[0].mxu0 %v1588
        %v1793 = vpop.f32.mrb[0].mxu0
        %v1794 = vadd.f32 0.0, %v1793
        %v1795 = vpop.f32.mrb[0].mxu0
        %v1796 = vpop.f32.mrb[0].mxu0
        %v1797 = vadd.f32 0.0, %v1796
        %v1798 = vpop.f32.mrb[0].mxu0
        %1799 = vmatprep.mubr.bf16.mxu0 0
        %1800 = vmatmul.mubr.bf16.gmra.mrb[0].mxu0 %v1589
        %v1801 = vpop.f32.mrb[0].mxu0
        %v1802 = vadd.f32 0.0, %v1801
        %v1803 = vpop.f32.mrb[0].mxu0
        %v1804 = vpop.f32.mrb[0].mxu0
        %v1805 = vadd.f32 0.0, %v1804
        %v1806 = vpop.f32.mrb[0].mxu0
        %1807 = vmatprep.mubr.bf16.mxu0 0
        %1808 = vmatmul.mubr.bf16.gmra.mrb[0].mxu0 %v1590
        %v1809 = vpop.f32.mrb[0].mxu0
        %v1810 = vadd.f32 0.0, %v1809
        %v1811 = vpop.f32.mrb[0].mxu0
        %v1812 = vpop.f32.mrb[0].mxu0
        %v1813 = vadd.f32 0.0, %v1812
        %v1814 = vpop.f32.mrb[0].mxu0
        %1815 = vdwg.mxu0
        %v1848 = vunpack.c.l.b16 %v1075
        %v1849 = vunpack.c.l.b16 %v1076
        %v1850 = vunpack.c.l.b16 %v1077
        %v1851 = vunpack.c.l.b16 %v1078
        %v1852 = vunpack.c.l.b16 %v1079
        %v1853 = vunpack.c.l.b16 %v1080
        %v1854 = vunpack.c.l.b16 %v1081
        %v1855 = vunpack.c.l.b16 %v1082
        %v1856 = vunpack.c.l.b16 %v1083
        %v1857 = vunpack.c.l.b16 %v1084
        %v1858 = vunpack.c.l.b16 %v1085
        %v1859 = vunpack.c.l.b16 %v1086
        %v1860 = vunpack.c.l.b16 %v1087
        %v1861 = vunpack.c.l.b16 %v1088
        %v1862 = vunpack.c.l.b16 %v1089
        %v1863 = vunpack.c.l.b16 %v1090
        %v1864 = vunpack.c.l.b16 %v1091
        %v1865 = vunpack.c.l.b16 %v1092
        %v1866 = vunpack.c.l.b16 %v1093
        %v1867 = vunpack.c.l.b16 %v1094
        %v1868 = vunpack.c.l.b16 %v1095
        %v1869 = vunpack.c.l.b16 %v1096
        %v1870 = vunpack.c.l.b16 %v1097
        %v1871 = vunpack.c.l.b16 %v1098
        %v1872 = vunpack.c.l.b16 %v1099
        %v1873 = vunpack.c.l.b16 %v1100
        %v1874 = vunpack.c.l.b16 %v1101
        %v1875 = vunpack.c.l.b16 %v1102
        %v1876 = vunpack.c.l.b16 %v1103
        %v1877 = vunpack.c.l.b16 %v1104
        %v1878 = vunpack.c.l.b16 %v1105
        %v1879 = vunpack.c.l.b16 %v1106
        %v1880 = vpack.c.b16 %v1849, %v1848
        %v1881 = vpack.c.b16 %v1851, %v1850
        %v1882 = vpack.c.b16 %v1853, %v1852
        %v1883 = vpack.c.b16 %v1855, %v1854
        %v1884 = vpack.c.b16 %v1857, %v1856
        %v1885 = vpack.c.b16 %v1859, %v1858
        %v1886 = vpack.c.b16 %v1861, %v1860
        %v1887 = vpack.c.b16 %v1863, %v1862
        %v1888 = vpack.c.b16 %v1865, %v1864
        %v1889 = vpack.c.b16 %v1867, %v1866
        %v1890 = vpack.c.b16 %v1869, %v1868
        %v1891 = vpack.c.b16 %v1871, %v1870
        %v1892 = vpack.c.b16 %v1873, %v1872
        %v1893 = vpack.c.b16 %v1875, %v1874
        %v1894 = vpack.c.b16 %v1877, %v1876
        %v1895 = vpack.c.b16 %v1879, %v1878
        %v1928 = vunpack.c.l.b16 %v1107
        %v1929 = vunpack.c.l.b16 %v1108
        %v1930 = vunpack.c.l.b16 %v1109
        %v1931 = vunpack.c.l.b16 %v1110
        %v1932 = vunpack.c.l.b16 %v1111
        %v1933 = vunpack.c.l.b16 %v1112
        %v1934 = vunpack.c.l.b16 %v1113
        %v1935 = vunpack.c.l.b16 %v1114
        %v1936 = vunpack.c.l.b16 %v1115
        %v1937 = vunpack.c.l.b16 %v1116
        %v1938 = vunpack.c.l.b16 %v1117
        %v1939 = vunpack.c.l.b16 %v1118
        %v1940 = vunpack.c.l.b16 %v1119
        %v1941 = vunpack.c.l.b16 %v1120
        %v1942 = vunpack.c.l.b16 %v1121
        %v1943 = vunpack.c.l.b16 %v1122
        %v1944 = vpack.c.b16 %v1929, %v1928
        %v1945 = vpack.c.b16 %v1931, %v1930
        %v1946 = vpack.c.b16 %v1933, %v1932
        %v1947 = vpack.c.b16 %v1935, %v1934
        %v1948 = vpack.c.b16 %v1937, %v1936
        %v1949 = vpack.c.b16 %v1939, %v1938
        %v1950 = vpack.c.b16 %v1941, %v1940
        %v1951 = vpack.c.b16 %v1943, %v1942
        %1960 = vmatprep.subr.bf16.mxu0 0
        %1961 = vmatpush1.bf16.msra.mxu0 %v1944
        %1962 = vmatprep.subr.bf16.mxu0 0
        %1963 = vmatpush1.bf16.msra.mxu0 %v1945
        %1964 = vmatprep.subr.bf16.mxu0 0
        %1965 = vmatpush1.bf16.msra.mxu0 %v1946
        %1966 = vmatprep.subr.bf16.mxu0 0
        %1967 = vmatpush1.bf16.msra.mxu0 %v1947
        %1968 = vmatprep.subr.bf16.mxu0 0
        %1969 = vmatpush1.bf16.msra.mxu0 %v1948
        %1970 = vmatprep.subr.bf16.mxu0 0
        %1971 = vmatpush1.bf16.msra.mxu0 %v1949
        %1972 = vmatprep.subr.bf16.mxu0 0
        %1973 = vmatpush1.bf16.msra.mxu0 %v1950
        %1974 = vmatprep.subr.bf16.mxu0 0
        %1975 = vmatpush1.bf16.msra.mxu0 %v1951
        %1976 = vmatprep.subr.bf16.mxu0 0
        %1977 = vmatpush1.bf16.msra.mxu0 0
        %1978 = vmatprep.subr.bf16.mxu0 0
        %1979 = vmatpush1.bf16.msra.mxu0 0
        %1980 = vmatprep.subr.bf16.mxu0 0
        %1981 = vmatpush1.bf16.msra.mxu0 0
        %1982 = vmatprep.subr.bf16.mxu0 0
        %1983 = vmatpush1.bf16.msra.mxu0 0
        %1984 = vmatprep.subr.bf16.mxu0 0
        %1985 = vmatpush1.bf16.msra.mxu0 0
        %1986 = vmatprep.subr.bf16.mxu0 0
        %1987 = vmatpush1.bf16.msra.mxu0 0
        %1988 = vmatprep.subr.bf16.mxu0 0
        %1989 = vmatpush1.bf16.msra.mxu0 0
        %1990 = vmatprep.subr.bf16.mxu0 0
        %1991 = vmatpush1.bf16.msra.mxu0 0
        %1992 = vmatprep.mubr.bf16.mxu0 0
        %1993 = vmatmul.mubr.bf16.gmra.mrb[0].mxu0 %v1880
        %v1994 = vpop.f32.mrb[0].mxu0
        %v1995 = vadd.f32 %v1690, %v1994
        %v1996 = vpop.f32.mrb[0].mxu0
        %v1997 = vpop.f32.mrb[0].mxu0
        %v1998 = vadd.f32 %v1693, %v1997
        %v1999 = vpop.f32.mrb[0].mxu0
        %2000 = vmatprep.mubr.bf16.mxu0 0
        %2001 = vmatmul.mubr.bf16.gmra.mrb[0].mxu0 %v1881
        %v2002 = vpop.f32.mrb[0].mxu0
        %v2003 = vadd.f32 %v1698, %v2002
        %v2004 = vpop.f32.mrb[0].mxu0
        %v2005 = vpop.f32.mrb[0].mxu0
        %v2006 = vadd.f32 %v1701, %v2005
        %v2007 = vpop.f32.mrb[0].mxu0
        %2008 = vmatprep.mubr.bf16.mxu0 0
        %2009 = vmatmul.mubr.bf16.gmra.mrb[0].mxu0 %v1882
        %v2010 = vpop.f32.mrb[0].mxu0
        %v2011 = vadd.f32 %v1706, %v2010
        %v2012 = vpop.f32.mrb[0].mxu0
        %v2013 = vpop.f32.mrb[0].mxu0
        %v2014 = vadd.f32 %v1709, %v2013
        %v2015 = vpop.f32.mrb[0].mxu0
        %2016 = vmatprep.mubr.bf16.mxu0 0
        %2017 = vmatmul.mubr.bf16.gmra.mrb[0].mxu0 %v1883
        %v2018 = vpop.f32.mrb[0].mxu0
        %v2019 = vadd.f32 %v1714, %v2018
        %v2020 = vpop.f32.mrb[0].mxu0
        %v2021 = vpop.f32.mrb[0].mxu0
        %v2022 = vadd.f32 %v1717, %v2021
        %v2023 = vpop.f32.mrb[0].mxu0
        %2024 = vmatprep.mubr.bf16.mxu0 0
        %2025 = vmatmul.mubr.bf16.gmra.mrb[0].mxu0 %v1884
        %v2026 = vpop.f32.mrb[0].mxu0
        %v2027 = vadd.f32 %v1722, %v2026
        %v2028 = vpop.f32.mrb[0].mxu0
        %v2029 = vpop.f32.mrb[0].mxu0
        %v2030 = vadd.f32 %v1725, %v2029
        %v2031 = vpop.f32.mrb[0].mxu0
        %2032 = vmatprep.mubr.bf16.mxu0 0
        %2033 = vmatmul.mubr.bf16.gmra.mrb[0].mxu0 %v1885
        %v2034 = vpop.f32.mrb[0].mxu0
        %v2035 = vadd.f32 %v1730, %v2034
        %v2036 = vpop.f32.mrb[0].mxu0
        %v2037 = vpop.f32.mrb[0].mxu0
        %v2038 = vadd.f32 %v1733, %v2037
        %v2039 = vpop.f32.mrb[0].mxu0
        %2040 = vmatprep.mubr.bf16.mxu0 0
        %2041 = vmatmul.mubr.bf16.gmra.mrb[0].mxu0 %v1886
        %v2042 = vpop.f32.mrb[0].mxu0
        %v2043 = vadd.f32 %v1738, %v2042
        %v2044 = vpop.f32.mrb[0].mxu0
        %v2045 = vpop.f32.mrb[0].mxu0
        %v2046 = vadd.f32 %v1741, %v2045
        %v2047 = vpop.f32.mrb[0].mxu0
        %2048 = vmatprep.mubr.bf16.mxu0 0
        %2049 = vmatmul.mubr.bf16.gmra.mrb[0].mxu0 %v1887
        %v2050 = vpop.f32.mrb[0].mxu0
        %v2051 = vadd.f32 %v1746, %v2050
        %v2052 = vpop.f32.mrb[0].mxu0
        %v2053 = vpop.f32.mrb[0].mxu0
        %v2054 = vadd.f32 %v1749, %v2053
        %v2055 = vpop.f32.mrb[0].mxu0
        %2056 = vmatprep.mubr.bf16.mxu0 0
        %2057 = vmatmul.mubr.bf16.gmra.mrb[0].mxu0 %v1888
        %v2058 = vpop.f32.mrb[0].mxu0
        %v2059 = vadd.f32 %v1754, %v2058
        %v2060 = vpop.f32.mrb[0].mxu0
        %v2061 = vpop.f32.mrb[0].mxu0
        %v2062 = vadd.f32 %v1757, %v2061
        %v2063 = vpop.f32.mrb[0].mxu0
        %2064 = vmatprep.mubr.bf16.mxu0 0
        %2065 = vmatmul.mubr.bf16.gmra.mrb[0].mxu0 %v1889
        %v2066 = vpop.f32.mrb[0].mxu0
        %v2067 = vadd.f32 %v1762, %v2066
        %v2068 = vpop.f32.mrb[0].mxu0
        %v2069 = vpop.f32.mrb[0].mxu0
        %v2070 = vadd.f32 %v1765, %v2069
        %v2071 = vpop.f32.mrb[0].mxu0
        %2072 = vmatprep.mubr.bf16.mxu0 0
        %2073 = vmatmul.mubr.bf16.gmra.mrb[0].mxu0 %v1890
        %v2074 = vpop.f32.mrb[0].mxu0
        %v2075 = vadd.f32 %v1770, %v2074
        %v2076 = vpop.f32.mrb[0].mxu0
        %v2077 = vpop.f32.mrb[0].mxu0
        %v2078 = vadd.f32 %v1773, %v2077
        %v2079 = vpop.f32.mrb[0].mxu0
        %2080 = vmatprep.mubr.bf16.mxu0 0
        %2081 = vmatmul.mubr.bf16.gmra.mrb[0].mxu0 %v1891
        %v2082 = vpop.f32.mrb[0].mxu0
        %v2083 = vadd.f32 %v1778, %v2082
        %v2084 = vpop.f32.mrb[0].mxu0
        %v2085 = vpop.f32.mrb[0].mxu0
        %v2086 = vadd.f32 %v1781, %v2085
        %v2087 = vpop.f32.mrb[0].mxu0
        %2088 = vmatprep.mubr.bf16.mxu0 0
        %2089 = vmatmul.mubr.bf16.gmra.mrb[0].mxu0 %v1892
        %v2090 = vpop.f32.mrb[0].mxu0
        %v2091 = vadd.f32 %v1786, %v2090
        %v2092 = vpop.f32.mrb[0].mxu0
        %v2093 = vpop.f32.mrb[0].mxu0
        %v2094 = vadd.f32 %v1789, %v2093
        %v2095 = vpop.f32.mrb[0].mxu0
        %2096 = vmatprep.mubr.bf16.mxu0 0
        %2097 = vmatmul.mubr.bf16.gmra.mrb[0].mxu0 %v1893
        %v2098 = vpop.f32.mrb[0].mxu0
        %v2099 = vadd.f32 %v1794, %v2098
        %v2100 = vpop.f32.mrb[0].mxu0
        %v2101 = vpop.f32.mrb[0].mxu0
        %v2102 = vadd.f32 %v1797, %v2101
        %v2103 = vpop.f32.mrb[0].mxu0
        %2104 = vmatprep.mubr.bf16.mxu0 0
        %2105 = vmatmul.mubr.bf16.gmra.mrb[0].mxu0 %v1894
        %v2106 = vpop.f32.mrb[0].mxu0
        %v2107 = vadd.f32 %v1802, %v2106
        %v2108 = vpop.f32.mrb[0].mxu0
        %v2109 = vpop.f32.mrb[0].mxu0
        %v2110 = vadd.f32 %v1805, %v2109
        %v2111 = vpop.f32.mrb[0].mxu0
        %2112 = vmatprep.mubr.bf16.mxu0 0
        %2113 = vmatmul.mubr.bf16.gmra.mrb[0].mxu0 %v1895
        %v2114 = vpop.f32.mrb[0].mxu0
        %v2115 = vadd.f32 %v1810, %v2114
        %v2116 = vpop.f32.mrb[0].mxu0
        %v2117 = vpop.f32.mrb[0].mxu0
        %v2118 = vadd.f32 %v1813, %v2117
        %v2119 = vpop.f32.mrb[0].mxu0
        %2120 = vdwg.mxu0
        %v2121 = vld [vmem:[#allocation2] sm:$0xe]
        %v2122 = vld [vmem:[#allocation2 + $0xc] sm:$0xe]
        %v2123 = vld [vmem:[#allocation2 + $0x18] sm:$0xe]
        %v2124 = vld [vmem:[#allocation2 + $0x24] sm:$0xe]
        %v2125 = vld [vmem:[#allocation2 + $0x30] sm:$0xe]
        %v2126 = vld [vmem:[#allocation2 + $0x3c] sm:$0xe]
        %v2127 = vld [vmem:[#allocation2 + $0x48] sm:$0xe]
        %v2128 = vld [vmem:[#allocation2 + $0x54] sm:$0xe]
        %v2129 = vld [vmem:[#allocation2 + $0x60] sm:$0xe]
        %v2130 = vld [vmem:[#allocation2 + $0x6c] sm:$0xe]
        %v2131 = vld [vmem:[#allocation2 + $0x78] sm:$0xe]
        %v2132 = vld [vmem:[#allocation2 + $0x84] sm:$0xe]
        %v2133 = vld [vmem:[#allocation2 + $0x90] sm:$0xe]
        %v2134 = vld [vmem:[#allocation2 + $0x9c] sm:$0xe]
        %v2135 = vld [vmem:[#allocation2 + $0xa8] sm:$0xe]
        %v2136 = vld [vmem:[#allocation2 + $0xb4] sm:$0xe]
        %vm2169 = vcmask 1042432
        %vm2170 = vcmask 1046532
        %vm2171 = vmor %vm2169, %vm2170
        %v2172 = vrot.slane %v2121, 5
        %v2173 = vrot.slane %v2172, 4
        %v2174 = vrot.slane %v1076, 5
        %v2175 = vsel %vm2171, %v2173, %v2174
        %v2176 = vrot.slane %v2174, 4
        %v2177 = vrot.slane %v1123, 5
        %v2178 = vsel %vm2171, %v2176, %v2177
        %v2179 = vrot.slane %v2122, 5
        %v2180 = vrot.slane %v2179, 4
        %v2181 = vrot.slane %v1078, 5
        %v2182 = vsel %vm2171, %v2180, %v2181
        %v2183 = vrot.slane %v2181, 4
        %v2184 = vrot.slane %v1124, 5
        %v2185 = vsel %vm2171, %v2183, %v2184
        %v2186 = vrot.slane %v2123, 5
        %v2187 = vrot.slane %v2186, 4
        %v2188 = vrot.slane %v1080, 5
        %v2189 = vsel %vm2171, %v2187, %v2188
        %v2190 = vrot.slane %v2188, 4
        %v2191 = vrot.slane %v1125, 5
        %v2192 = vsel %vm2171, %v2190, %v2191
        %v2193 = vrot.slane %v2124, 5
        %v2194 = vrot.slane %v2193, 4
        %v2195 = vrot.slane %v1082, 5
        %v2196 = vsel %vm2171, %v2194, %v2195
        %v2197 = vrot.slane %v2195, 4
        %v2198 = vrot.slane %v1126, 5
        %v2199 = vsel %vm2171, %v2197, %v2198
        %v2200 = vrot.slane %v2125, 5
        %v2201 = vrot.slane %v2200, 4
        %v2202 = vrot.slane %v1084, 5
        %v2203 = vsel %vm2171, %v2201, %v2202
        %v2204 = vrot.slane %v2202, 4
        %v2205 = vrot.slane %v1127, 5
        %v2206 = vsel %vm2171, %v2204, %v2205
        %v2207 = vrot.slane %v2126, 5
        %v2208 = vrot.slane %v2207, 4
        %v2209 = vrot.slane %v1086, 5
        %v2210 = vsel %vm2171, %v2208, %v2209
        %v2211 = vrot.slane %v2209, 4
        %v2212 = vrot.slane %v1128, 5
        %v2213 = vsel %vm2171, %v2211, %v2212
        %v2214 = vrot.slane %v2127, 5
        %v2215 = vrot.slane %v2214, 4
        %v2216 = vrot.slane %v1088, 5
        %v2217 = vsel %vm2171, %v2215, %v2216
        %v2218 = vrot.slane %v2216, 4
        %v2219 = vrot.slane %v1129, 5
        %v2220 = vsel %vm2171, %v2218, %v2219
        %v2221 = vrot.slane %v2128, 5
        %v2222 = vrot.slane %v2221, 4
        %v2223 = vrot.slane %v1090, 5
        %v2224 = vsel %vm2171, %v2222, %v2223
        %v2225 = vrot.slane %v2223, 4
        %v2226 = vrot.slane %v1130, 5
        %v2227 = vsel %vm2171, %v2225, %v2226
        %v2228 = vrot.slane %v2129, 5
        %v2229 = vrot.slane %v2228, 4
        %v2230 = vrot.slane %v1092, 5
        %v2231 = vsel %vm2171, %v2229, %v2230
        %v2232 = vrot.slane %v2230, 4
        %v2233 = vrot.slane %v1131, 5
        %v2234 = vsel %vm2171, %v2232, %v2233
        %v2235 = vrot.slane %v2130, 5
        %v2236 = vrot.slane %v2235, 4
        %v2237 = vrot.slane %v1094, 5
        %v2238 = vsel %vm2171, %v2236, %v2237
        %v2239 = vrot.slane %v2237, 4
        %v2240 = vrot.slane %v1132, 5
        %v2241 = vsel %vm2171, %v2239, %v2240
        %v2242 = vrot.slane %v2131, 5
        %v2243 = vrot.slane %v2242, 4
        %v2244 = vrot.slane %v1096, 5
        %v2245 = vsel %vm2171, %v2243, %v2244
        %v2246 = vrot.slane %v2244, 4
        %v2247 = vrot.slane %v1133, 5
        %v2248 = vsel %vm2171, %v2246, %v2247
        %v2249 = vrot.slane %v2132, 5
        %v2250 = vrot.slane %v2249, 4
        %v2251 = vrot.slane %v1098, 5
        %v2252 = vsel %vm2171, %v2250, %v2251
        %v2253 = vrot.slane %v2251, 4
        %v2254 = vrot.slane %v1134, 5
        %v2255 = vsel %vm2171, %v2253, %v2254
        %v2256 = vrot.slane %v2133, 5
        %v2257 = vrot.slane %v2256, 4
        %v2258 = vrot.slane %v1100, 5
        %v2259 = vsel %vm2171, %v2257, %v2258
        %v2260 = vrot.slane %v2258, 4
        %v2261 = vrot.slane %v1135, 5
        %v2262 = vsel %vm2171, %v2260, %v2261
        %v2263 = vrot.slane %v2134, 5
        %v2264 = vrot.slane %v2263, 4
        %v2265 = vrot.slane %v1102, 5
        %v2266 = vsel %vm2171, %v2264, %v2265
        %v2267 = vrot.slane %v2265, 4
        %v2268 = vrot.slane %v1136, 5
        %v2269 = vsel %vm2171, %v2267, %v2268
        %v2270 = vrot.slane %v2135, 5
        %v2271 = vrot.slane %v2270, 4
        %v2272 = vrot.slane %v1104, 5
        %v2273 = vsel %vm2171, %v2271, %v2272
        %v2274 = vrot.slane %v2272, 4
        %v2275 = vrot.slane %v1137, 5
        %v2276 = vsel %vm2171, %v2274, %v2275
        %v2277 = vrot.slane %v2136, 5
        %v2278 = vrot.slane %v2277, 4
        %v2279 = vrot.slane %v1106, 5
        %v2280 = vsel %vm2171, %v2278, %v2279
        %v2281 = vrot.slane %v2279, 4
        %v2282 = vrot.slane %v1138, 5
        %v2283 = vsel %vm2171, %v2281, %v2282
        %s2284 = scalar_lea.vmem %s1, 128
        %v2285 = vld [vmem:[%s2284] sm:$0xf]
        %v2286 = vld [vmem:[%s2284 + $0x4] sm:$0xf]
        %v2287 = vld [vmem:[%s2284 + $0x8] sm:$0xf]
        %v2288 = vld [vmem:[%s2284 + $0xc] sm:$0xf]
        %v2289 = vld [vmem:[%s2284 + $0x10] sm:$0xf]
        %v2290 = vld [vmem:[%s2284 + $0x14] sm:$0xf]
        %v2291 = vld [vmem:[%s2284 + $0x18] sm:$0xf]
        %v2292 = vld [vmem:[%s2284 + $0x1c] sm:$0xf]
        %v2293 = vld [vmem:[%s2284 + $0x20] sm:$0xf]
        %v2294 = vld [vmem:[%s2284 + $0x24] sm:$0xf]
        %v2295 = vld [vmem:[%s2284 + $0x28] sm:$0xf]
        %v2296 = vld [vmem:[%s2284 + $0x2c] sm:$0xf]
        %v2297 = vld [vmem:[%s2284 + $0x30] sm:$0xf]
        %v2298 = vld [vmem:[%s2284 + $0x34] sm:$0xf]
        %v2299 = vld [vmem:[%s2284 + $0x38] sm:$0xf]
        %v2300 = vld [vmem:[%s2284 + $0x3c] sm:$0xf]
        %v2301 = vunpack.c.l.b16 %v2175
        %v2302 = vunpack.c.l.b16 %v2178
        %v2303 = vunpack.c.l.b16 %v2182
        %v2304 = vunpack.c.l.b16 %v2185
        %v2305 = vunpack.c.l.b16 %v2189
        %v2306 = vunpack.c.l.b16 %v2192
        %v2307 = vunpack.c.l.b16 %v2196
        %v2308 = vunpack.c.l.b16 %v2199
        %v2309 = vunpack.c.l.b16 %v2203
        %v2310 = vunpack.c.l.b16 %v2206
        %v2311 = vunpack.c.l.b16 %v2210
        %v2312 = vunpack.c.l.b16 %v2213
        %v2313 = vunpack.c.l.b16 %v2217
        %v2314 = vunpack.c.l.b16 %v2220
        %v2315 = vunpack.c.l.b16 %v2224
        %v2316 = vunpack.c.l.b16 %v2227
        %v2317 = vunpack.c.l.b16 %v2231
        %v2318 = vunpack.c.l.b16 %v2234
        %v2319 = vunpack.c.l.b16 %v2238
        %v2320 = vunpack.c.l.b16 %v2241
        %v2321 = vunpack.c.l.b16 %v2245
        %v2322 = vunpack.c.l.b16 %v2248
        %v2323 = vunpack.c.l.b16 %v2252
        %v2324 = vunpack.c.l.b16 %v2255
        %v2325 = vunpack.c.l.b16 %v2259
        %v2326 = vunpack.c.l.b16 %v2262
        %v2327 = vunpack.c.l.b16 %v2266
        %v2328 = vunpack.c.l.b16 %v2269
        %v2329 = vunpack.c.l.b16 %v2273
        %v2330 = vunpack.c.l.b16 %v2276
        %v2331 = vunpack.c.l.b16 %v2280
        %v2332 = vunpack.c.l.b16 %v2283
        %v2333 = vpack.c.b16 %v2302, %v2301
        %v2334 = vpack.c.b16 %v2304, %v2303
        %v2335 = vpack.c.b16 %v2306, %v2305
        %v2336 = vpack.c.b16 %v2308, %v2307
        %v2337 = vpack.c.b16 %v2310, %v2309
        %v2338 = vpack.c.b16 %v2312, %v2311
        %v2339 = vpack.c.b16 %v2314, %v2313
        %v2340 = vpack.c.b16 %v2316, %v2315
        %v2341 = vpack.c.b16 %v2318, %v2317
        %v2342 = vpack.c.b16 %v2320, %v2319
        %v2343 = vpack.c.b16 %v2322, %v2321
        %v2344 = vpack.c.b16 %v2324, %v2323
        %v2345 = vpack.c.b16 %v2326, %v2325
        %v2346 = vpack.c.b16 %v2328, %v2327
        %v2347 = vpack.c.b16 %v2330, %v2329
        %v2348 = vpack.c.b16 %v2332, %v2331
        %v2381 = vunpack.c.l.b16 %v2285
        %v2382 = vunpack.c.l.b16 %v2286
        %v2383 = vunpack.c.l.b16 %v2287
        %v2384 = vunpack.c.l.b16 %v2288
        %v2385 = vunpack.c.l.b16 %v2289
        %v2386 = vunpack.c.l.b16 %v2290
        %v2387 = vunpack.c.l.b16 %v2291
        %v2388 = vunpack.c.l.b16 %v2292
        %v2389 = vunpack.c.l.b16 %v2293
        %v2390 = vunpack.c.l.b16 %v2294
        %v2391 = vunpack.c.l.b16 %v2295
        %v2392 = vunpack.c.l.b16 %v2296
        %v2393 = vunpack.c.l.b16 %v2297
        %v2394 = vunpack.c.l.b16 %v2298
        %v2395 = vunpack.c.l.b16 %v2299
        %v2396 = vunpack.c.l.b16 %v2300
        %v2397 = vpack.c.b16 %v2382, %v2381
        %v2398 = vpack.c.b16 %v2384, %v2383
        %v2399 = vpack.c.b16 %v2386, %v2385
        %v2400 = vpack.c.b16 %v2388, %v2387
        %v2401 = vpack.c.b16 %v2390, %v2389
        %v2402 = vpack.c.b16 %v2392, %v2391
        %v2403 = vpack.c.b16 %v2394, %v2393
        %v2404 = vpack.c.b16 %v2396, %v2395
        %2413 = vmatprep.subr.bf16.mxu0 0
        %2414 = vmatpush1.bf16.msra.mxu0 %v2397
        %2415 = vmatprep.subr.bf16.mxu0 0
        %2416 = vmatpush1.bf16.msra.mxu0 %v2398
        %2417 = vmatprep.subr.bf16.mxu0 0
        %2418 = vmatpush1.bf16.msra.mxu0 %v2399
        %2419 = vmatprep.subr.bf16.mxu0 0
        %2420 = vmatpush1.bf16.msra.mxu0 %v2400
        %2421 = vmatprep.subr.bf16.mxu0 0
        %2422 = vmatpush1.bf16.msra.mxu0 %v2401
        %2423 = vmatprep.subr.bf16.mxu0 0
        %2424 = vmatpush1.bf16.msra.mxu0 %v2402
        %2425 = vmatprep.subr.bf16.mxu0 0
        %2426 = vmatpush1.bf16.msra.mxu0 %v2403
        %2427 = vmatprep.subr.bf16.mxu0 0
        %2428 = vmatpush1.bf16.msra.mxu0 %v2404
        %2429 = vmatprep.subr.bf16.mxu0 0
        %2430 = vmatpush1.bf16.msra.mxu0 0
        %2431 = vmatprep.subr.bf16.mxu0 0
        %2432 = vmatpush1.bf16.msra.mxu0 0
        %2433 = vmatprep.subr.bf16.mxu0 0
        %2434 = vmatpush1.bf16.msra.mxu0 0
        %2435 = vmatprep.subr.bf16.mxu0 0
        %2436 = vmatpush1.bf16.msra.mxu0 0
        %2437 = vmatprep.subr.bf16.mxu0 0
        %2438 = vmatpush1.bf16.msra.mxu0 0
        %2439 = vmatprep.subr.bf16.mxu0 0
        %2440 = vmatpush1.bf16.msra.mxu0 0
        %2441 = vmatprep.subr.bf16.mxu0 0
        %2442 = vmatpush1.bf16.msra.mxu0 0
        %2443 = vmatprep.subr.bf16.mxu0 0
        %2444 = vmatpush1.bf16.msra.mxu0 0
        %2445 = vmatprep.mubr.bf16.mxu0 0
        %2446 = vmatmul.mubr.bf16.gmra.mrb[0].mxu0 %v2333
        %v2447 = vpop.f32.mrb[0].mxu0
        %v2448 = vadd.f32 0.0, %v2447
        %v2449 = vpop.f32.mrb[0].mxu0
        %v2450 = vpop.f32.mrb[0].mxu0
        %v2451 = vadd.f32 0.0, %v2450
        %v2452 = vpop.f32.mrb[0].mxu0
        %2453 = vmatprep.mubr.bf16.mxu0 0
        %2454 = vmatmul.mubr.bf16.gmra.mrb[0].mxu0 %v2334
        %v2455 = vpop.f32.mrb[0].mxu0
        %v2456 = vadd.f32 0.0, %v2455
        %v2457 = vpop.f32.mrb[0].mxu0
        %v2458 = vpop.f32.mrb[0].mxu0
        %v2459 = vadd.f32 0.0, %v2458
        %v2460 = vpop.f32.mrb[0].mxu0
        %2461 = vmatprep.mubr.bf16.mxu0 0
        %2462 = vmatmul.mubr.bf16.gmra.mrb[0].mxu0 %v2335
        %v2463 = vpop.f32.mrb[0].mxu0
        %v2464 = vadd.f32 0.0, %v2463
        %v2465 = vpop.f32.mrb[0].mxu0
        %v2466 = vpop.f32.mrb[0].mxu0
        %v2467 = vadd.f32 0.0, %v2466
        %v2468 = vpop.f32.mrb[0].mxu0
        %2469 = vmatprep.mubr.bf16.mxu0 0
        %2470 = vmatmul.mubr.bf16.gmra.mrb[0].mxu0 %v2336
        %v2471 = vpop.f32.mrb[0].mxu0
        %v2472 = vadd.f32 0.0, %v2471
        %v2473 = vpop.f32.mrb[0].mxu0
        %v2474 = vpop.f32.mrb[0].mxu0
        %v2475 = vadd.f32 0.0, %v2474
        %v2476 = vpop.f32.mrb[0].mxu0
        %2477 = vmatprep.mubr.bf16.mxu0 0
        %2478 = vmatmul.mubr.bf16.gmra.mrb[0].mxu0 %v2337
        %v2479 = vpop.f32.mrb[0].mxu0
        %v2480 = vadd.f32 0.0, %v2479
        %v2481 = vpop.f32.mrb[0].mxu0
        %v2482 = vpop.f32.mrb[0].mxu0
        %v2483 = vadd.f32 0.0, %v2482
        %v2484 = vpop.f32.mrb[0].mxu0
        %2485 = vmatprep.mubr.bf16.mxu0 0
        %2486 = vmatmul.mubr.bf16.gmra.mrb[0].mxu0 %v2338
        %v2487 = vpop.f32.mrb[0].mxu0
        %v2488 = vadd.f32 0.0, %v2487
        %v2489 = vpop.f32.mrb[0].mxu0
        %v2490 = vpop.f32.mrb[0].mxu0
        %v2491 = vadd.f32 0.0, %v2490
        %v2492 = vpop.f32.mrb[0].mxu0
        %2493 = vmatprep.mubr.bf16.mxu0 0
        %2494 = vmatmul.mubr.bf16.gmra.mrb[0].mxu0 %v2339
        %v2495 = vpop.f32.mrb[0].mxu0
        %v2496 = vadd.f32 0.0, %v2495
        %v2497 = vpop.f32.mrb[0].mxu0
        %v2498 = vpop.f32.mrb[0].mxu0
        %v2499 = vadd.f32 0.0, %v2498
        %v2500 = vpop.f32.mrb[0].mxu0
        %2501 = vmatprep.mubr.bf16.mxu0 0
        %2502 = vmatmul.mubr.bf16.gmra.mrb[0].mxu0 %v2340
        %v2503 = vpop.f32.mrb[0].mxu0
        %v2504 = vadd.f32 0.0, %v2503
        %v2505 = vpop.f32.mrb[0].mxu0
        %v2506 = vpop.f32.mrb[0].mxu0
        %v2507 = vadd.f32 0.0, %v2506
        %v2508 = vpop.f32.mrb[0].mxu0
        %2509 = vmatprep.mubr.bf16.mxu0 0
        %2510 = vmatmul.mubr.bf16.gmra.mrb[0].mxu0 %v2341
        %v2511 = vpop.f32.mrb[0].mxu0
        %v2512 = vadd.f32 0.0, %v2511
        %v2513 = vpop.f32.mrb[0].mxu0
        %v2514 = vpop.f32.mrb[0].mxu0
        %v2515 = vadd.f32 0.0, %v2514
        %v2516 = vpop.f32.mrb[0].mxu0
        %2517 = vmatprep.mubr.bf16.mxu0 0
        %2518 = vmatmul.mubr.bf16.gmra.mrb[0].mxu0 %v2342
        %v2519 = vpop.f32.mrb[0].mxu0
        %v2520 = vadd.f32 0.0, %v2519
        %v2521 = vpop.f32.mrb[0].mxu0
        %v2522 = vpop.f32.mrb[0].mxu0
        %v2523 = vadd.f32 0.0, %v2522
        %v2524 = vpop.f32.mrb[0].mxu0
        %2525 = vmatprep.mubr.bf16.mxu0 0
        %2526 = vmatmul.mubr.bf16.gmra.mrb[0].mxu0 %v2343
        %v2527 = vpop.f32.mrb[0].mxu0
        %v2528 = vadd.f32 0.0, %v2527
        %v2529 = vpop.f32.mrb[0].mxu0
        %v2530 = vpop.f32.mrb[0].mxu0
        %v2531 = vadd.f32 0.0, %v2530
        %v2532 = vpop.f32.mrb[0].mxu0
        %2533 = vmatprep.mubr.bf16.mxu0 0
        %2534 = vmatmul.mubr.bf16.gmra.mrb[0].mxu0 %v2344
        %v2535 = vpop.f32.mrb[0].mxu0
        %v2536 = vadd.f32 0.0, %v2535
        %v2537 = vpop.f32.mrb[0].mxu0
        %v2538 = vpop.f32.mrb[0].mxu0
        %v2539 = vadd.f32 0.0, %v2538
        %v2540 = vpop.f32.mrb[0].mxu0
        %2541 = vmatprep.mubr.bf16.mxu0 0
        %2542 = vmatmul.mubr.bf16.gmra.mrb[0].mxu0 %v2345
        %v2543 = vpop.f32.mrb[0].mxu0
        %v2544 = vadd.f32 0.0, %v2543
        %v2545 = vpop.f32.mrb[0].mxu0
        %v2546 = vpop.f32.mrb[0].mxu0
        %v2547 = vadd.f32 0.0, %v2546
        %v2548 = vpop.f32.mrb[0].mxu0
        %2549 = vmatprep.mubr.bf16.mxu0 0
        %2550 = vmatmul.mubr.bf16.gmra.mrb[0].mxu0 %v2346
        %v2551 = vpop.f32.mrb[0].mxu0
        %v2552 = vadd.f32 0.0, %v2551
        %v2553 = vpop.f32.mrb[0].mxu0
        %v2554 = vpop.f32.mrb[0].mxu0
        %v2555 = vadd.f32 0.0, %v2554
        %v2556 = vpop.f32.mrb[0].mxu0
        %2557 = vmatprep.mubr.bf16.mxu0 0
        %2558 = vmatmul.mubr.bf16.gmra.mrb[0].mxu0 %v2347
        %v2559 = vpop.f32.mrb[0].mxu0
        %v2560 = vadd.f32 0.0, %v2559
        %v2561 = vpop.f32.mrb[0].mxu0
        %v2562 = vpop.f32.mrb[0].mxu0
        %v2563 = vadd.f32 0.0, %v2562
        %v2564 = vpop.f32.mrb[0].mxu0
        %2565 = vmatprep.mubr.bf16.mxu0 0
        %2566 = vmatmul.mubr.bf16.gmra.mrb[0].mxu0 %v2348
        %v2567 = vpop.f32.mrb[0].mxu0
        %v2568 = vadd.f32 0.0, %v2567
        %v2569 = vpop.f32.mrb[0].mxu0
        %v2570 = vpop.f32.mrb[0].mxu0
        %v2571 = vadd.f32 0.0, %v2570
        %v2572 = vpop.f32.mrb[0].mxu0
        %2573 = vdwg.mxu0
        %v2574 = vadd.f32 %v1995, %v2448
        %v2575 = vadd.f32 %v1998, %v2451
        %v2576 = vadd.f32 %v2003, %v2456
        %v2577 = vadd.f32 %v2006, %v2459
        %v2578 = vadd.f32 %v2011, %v2464
        %v2579 = vadd.f32 %v2014, %v2467
        %v2580 = vadd.f32 %v2019, %v2472
        %v2581 = vadd.f32 %v2022, %v2475
        %v2582 = vadd.f32 %v2027, %v2480
        %v2583 = vadd.f32 %v2030, %v2483
        %v2584 = vadd.f32 %v2035, %v2488
        %v2585 = vadd.f32 %v2038, %v2491
        %v2586 = vadd.f32 %v2043, %v2496
        %v2587 = vadd.f32 %v2046, %v2499
        %v2588 = vadd.f32 %v2051, %v2504
        %v2589 = vadd.f32 %v2054, %v2507
        %v2590 = vadd.f32 %v2059, %v2512
        %v2591 = vadd.f32 %v2062, %v2515
        %v2592 = vadd.f32 %v2067, %v2520
        %v2593 = vadd.f32 %v2070, %v2523
        %v2594 = vadd.f32 %v2075, %v2528
        %v2595 = vadd.f32 %v2078, %v2531
        %v2596 = vadd.f32 %v2083, %v2536
        %v2597 = vadd.f32 %v2086, %v2539
        %v2598 = vadd.f32 %v2091, %v2544
        %v2599 = vadd.f32 %v2094, %v2547
        %v2600 = vadd.f32 %v2099, %v2552
        %v2601 = vadd.f32 %v2102, %v2555
        %v2602 = vadd.f32 %v2107, %v2560
        %v2603 = vadd.f32 %v2110, %v2563
        %v2604 = vadd.f32 %v2115, %v2568
        %v2605 = vadd.f32 %v2118, %v2571
        %v2606 = vld [vmem:[%s960] sm:$0xf]
        %v2607 = vld [vmem:[%s960 + $0x4] sm:$0xf]
        %v2608 = vld [vmem:[%s960 + $0xc] sm:$0xf]
        %v2609 = vld [vmem:[%s960 + $0x10] sm:$0xf]
        %v2610 = vld [vmem:[%s960 + $0x18] sm:$0xf]
        %v2611 = vld [vmem:[%s960 + $0x1c] sm:$0xf]
        %v2612 = vld [vmem:[%s960 + $0x24] sm:$0xf]
        %v2613 = vld [vmem:[%s960 + $0x28] sm:$0xf]
        %v2614 = vld [vmem:[%s960 + $0x30] sm:$0xf]
        %v2615 = vld [vmem:[%s960 + $0x34] sm:$0xf]
        %v2616 = vld [vmem:[%s960 + $0x3c] sm:$0xf]
        %v2617 = vld [vmem:[%s960 + $0x40] sm:$0xf]
        %v2618 = vld [vmem:[%s960 + $0x48] sm:$0xf]
        %v2619 = vld [vmem:[%s960 + $0x4c] sm:$0xf]
        %v2620 = vld [vmem:[%s960 + $0x54] sm:$0xf]
        %v2621 = vld [vmem:[%s960 + $0x58] sm:$0xf]
        %v2622 = vld [vmem:[%s960 + $0x60] sm:$0xf]
        %v2623 = vld [vmem:[%s960 + $0x64] sm:$0xf]
        %v2624 = vld [vmem:[%s960 + $0x6c] sm:$0xf]
        %v2625 = vld [vmem:[%s960 + $0x70] sm:$0xf]
        %v2626 = vld [vmem:[%s960 + $0x78] sm:$0xf]
        %v2627 = vld [vmem:[%s960 + $0x7c] sm:$0xf]
        %v2628 = vld [vmem:[%s960 + $0x84] sm:$0xf]
        %v2629 = vld [vmem:[%s960 + $0x88] sm:$0xf]
        %v2630 = vld [vmem:[%s960 + $0x90] sm:$0xf]
        %v2631 = vld [vmem:[%s960 + $0x94] sm:$0xf]
        %v2632 = vld [vmem:[%s960 + $0x9c] sm:$0xf]
        %v2633 = vld [vmem:[%s960 + $0xa0] sm:$0xf]
        %v2634 = vld [vmem:[%s960 + $0xa8] sm:$0xf]
        %v2635 = vld [vmem:[%s960 + $0xac] sm:$0xf]
        %v2636 = vld [vmem:[%s960 + $0xb4] sm:$0xf]
        %v2637 = vld [vmem:[%s960 + $0xb8] sm:$0xf]
        %s2638 = scalar_lea.vmem %s1, 192
        %v2639 = vld [vmem:[%s2638] sm:$0xf]
        %v2640 = vld [vmem:[%s2638 + $0x4] sm:$0xf]
        %v2641 = vld [vmem:[%s2638 + $0x8] sm:$0xf]
        %v2642 = vld [vmem:[%s2638 + $0xc] sm:$0xf]
        %v2643 = vld [vmem:[%s2638 + $0x10] sm:$0xf]
        %v2644 = vld [vmem:[%s2638 + $0x14] sm:$0xf]
        %v2645 = vld [vmem:[%s2638 + $0x18] sm:$0xf]
        %v2646 = vld [vmem:[%s2638 + $0x1c] sm:$0xf]
        %v2647 = vld [vmem:[%s2638 + $0x20] sm:$0xf]
        %v2648 = vld [vmem:[%s2638 + $0x24] sm:$0xf]
        %v2649 = vld [vmem:[%s2638 + $0x28] sm:$0xf]
        %v2650 = vld [vmem:[%s2638 + $0x2c] sm:$0xf]
        %v2651 = vld [vmem:[%s2638 + $0x30] sm:$0xf]
        %v2652 = vld [vmem:[%s2638 + $0x34] sm:$0xf]
        %v2653 = vld [vmem:[%s2638 + $0x38] sm:$0xf]
        %v2654 = vld [vmem:[%s2638 + $0x3c] sm:$0xf]
        %v2687 = vunpack.c.l.b16 %v2606
        %v2688 = vunpack.c.l.b16 %v2607
        %v2689 = vunpack.c.l.b16 %v2608
        %v2690 = vunpack.c.l.b16 %v2609
        %v2691 = vunpack.c.l.b16 %v2610
        %v2692 = vunpack.c.l.b16 %v2611
        %v2693 = vunpack.c.l.b16 %v2612
        %v2694 = vunpack.c.l.b16 %v2613
        %v2695 = vunpack.c.l.b16 %v2614
        %v2696 = vunpack.c.l.b16 %v2615
        %v2697 = vunpack.c.l.b16 %v2616
        %v2698 = vunpack.c.l.b16 %v2617
        %v2699 = vunpack.c.l.b16 %v2618
        %v2700 = vunpack.c.l.b16 %v2619
        %v2701 = vunpack.c.l.b16 %v2620
        %v2702 = vunpack.c.l.b16 %v2621
        %v2703 = vunpack.c.l.b16 %v2622
        %v2704 = vunpack.c.l.b16 %v2623
        %v2705 = vunpack.c.l.b16 %v2624
        %v2706 = vunpack.c.l.b16 %v2625
        %v2707 = vunpack.c.l.b16 %v2626
        %v2708 = vunpack.c.l.b16 %v2627
        %v2709 = vunpack.c.l.b16 %v2628
        %v2710 = vunpack.c.l.b16 %v2629
        %v2711 = vunpack.c.l.b16 %v2630
        %v2712 = vunpack.c.l.b16 %v2631
        %v2713 = vunpack.c.l.b16 %v2632
        %v2714 = vunpack.c.l.b16 %v2633
        %v2715 = vunpack.c.l.b16 %v2634
        %v2716 = vunpack.c.l.b16 %v2635
        %v2717 = vunpack.c.l.b16 %v2636
        %v2718 = vunpack.c.l.b16 %v2637
        %v2719 = vpack.c.b16 %v2688, %v2687
        %v2720 = vpack.c.b16 %v2690, %v2689
        %v2721 = vpack.c.b16 %v2692, %v2691
        %v2722 = vpack.c.b16 %v2694, %v2693
        %v2723 = vpack.c.b16 %v2696, %v2695
        %v2724 = vpack.c.b16 %v2698, %v2697
        %v2725 = vpack.c.b16 %v2700, %v2699
        %v2726 = vpack.c.b16 %v2702, %v2701
        %v2727 = vpack.c.b16 %v2704, %v2703
        %v2728 = vpack.c.b16 %v2706, %v2705
        %v2729 = vpack.c.b16 %v2708, %v2707
        %v2730 = vpack.c.b16 %v2710, %v2709
        %v2731 = vpack.c.b16 %v2712, %v2711
        %v2732 = vpack.c.b16 %v2714, %v2713
        %v2733 = vpack.c.b16 %v2716, %v2715
        %v2734 = vpack.c.b16 %v2718, %v2717
        %v2767 = vunpack.c.l.b16 %v2639
        %v2768 = vunpack.c.l.b16 %v2640
        %v2769 = vunpack.c.l.b16 %v2641
        %v2770 = vunpack.c.l.b16 %v2642
        %v2771 = vunpack.c.l.b16 %v2643
        %v2772 = vunpack.c.l.b16 %v2644
        %v2773 = vunpack.c.l.b16 %v2645
        %v2774 = vunpack.c.l.b16 %v2646
        %v2775 = vunpack.c.l.b16 %v2647
        %v2776 = vunpack.c.l.b16 %v2648
        %v2777 = vunpack.c.l.b16 %v2649
        %v2778 = vunpack.c.l.b16 %v2650
        %v2779 = vunpack.c.l.b16 %v2651
        %v2780 = vunpack.c.l.b16 %v2652
        %v2781 = vunpack.c.l.b16 %v2653
        %v2782 = vunpack.c.l.b16 %v2654
        %v2783 = vpack.c.b16 %v2768, %v2767
        %v2784 = vpack.c.b16 %v2770, %v2769
        %v2785 = vpack.c.b16 %v2772, %v2771
        %v2786 = vpack.c.b16 %v2774, %v2773
        %v2787 = vpack.c.b16 %v2776, %v2775
        %v2788 = vpack.c.b16 %v2778, %v2777
        %v2789 = vpack.c.b16 %v2780, %v2779
        %v2790 = vpack.c.b16 %v2782, %v2781
        %2799 = vmatprep.subr.bf16.mxu0 0
        %2800 = vmatpush1.bf16.msra.mxu0 %v2783
        %2801 = vmatprep.subr.bf16.mxu0 0
        %2802 = vmatpush1.bf16.msra.mxu0 %v2784
        %2803 = vmatprep.subr.bf16.mxu0 0
        %2804 = vmatpush1.bf16.msra.mxu0 %v2785
        %2805 = vmatprep.subr.bf16.mxu0 0
        %2806 = vmatpush1.bf16.msra.mxu0 %v2786
        %2807 = vmatprep.subr.bf16.mxu0 0
        %2808 = vmatpush1.bf16.msra.mxu0 %v2787
        %2809 = vmatprep.subr.bf16.mxu0 0
        %2810 = vmatpush1.bf16.msra.mxu0 %v2788
        %2811 = vmatprep.subr.bf16.mxu0 0
        %2812 = vmatpush1.bf16.msra.mxu0 %v2789
        %2813 = vmatprep.subr.bf16.mxu0 0
        %2814 = vmatpush1.bf16.msra.mxu0 %v2790
        %2815 = vmatprep.subr.bf16.mxu0 0
        %2816 = vmatpush1.bf16.msra.mxu0 0
        %2817 = vmatprep.subr.bf16.mxu0 0
        %2818 = vmatpush1.bf16.msra.mxu0 0
        %2819 = vmatprep.subr.bf16.mxu0 0
        %2820 = vmatpush1.bf16.msra.mxu0 0
        %2821 = vmatprep.subr.bf16.mxu0 0
        %2822 = vmatpush1.bf16.msra.mxu0 0
        %2823 = vmatprep.subr.bf16.mxu0 0
        %2824 = vmatpush1.bf16.msra.mxu0 0
        %2825 = vmatprep.subr.bf16.mxu0 0
        %2826 = vmatpush1.bf16.msra.mxu0 0
        %2827 = vmatprep.subr.bf16.mxu0 0
        %2828 = vmatpush1.bf16.msra.mxu0 0
        %2829 = vmatprep.subr.bf16.mxu0 0
        %2830 = vmatpush1.bf16.msra.mxu0 0
        %2831 = vmatprep.mubr.bf16.mxu0 0
        %2832 = vmatmul.mubr.bf16.gmra.mrb[0].mxu0 %v2719
        %v2833 = vpop.f32.mrb[0].mxu0
        %v2834 = vadd.f32 0.0, %v2833
        %v2835 = vpop.f32.mrb[0].mxu0
        %v2836 = vpop.f32.mrb[0].mxu0
        %v2837 = vadd.f32 0.0, %v2836
        %v2838 = vpop.f32.mrb[0].mxu0
        %2839 = vmatprep.mubr.bf16.mxu0 0
        %2840 = vmatmul.mubr.bf16.gmra.mrb[0].mxu0 %v2720
        %v2841 = vpop.f32.mrb[0].mxu0
        %v2842 = vadd.f32 0.0, %v2841
        %v2843 = vpop.f32.mrb[0].mxu0
        %v2844 = vpop.f32.mrb[0].mxu0
        %v2845 = vadd.f32 0.0, %v2844
        %v2846 = vpop.f32.mrb[0].mxu0
        %2847 = vmatprep.mubr.bf16.mxu0 0
        %2848 = vmatmul.mubr.bf16.gmra.mrb[0].mxu0 %v2721
        %v2849 = vpop.f32.mrb[0].mxu0
        %v2850 = vadd.f32 0.0, %v2849
        %v2851 = vpop.f32.mrb[0].mxu0
        %v2852 = vpop.f32.mrb[0].mxu0
        %v2853 = vadd.f32 0.0, %v2852
        %v2854 = vpop.f32.mrb[0].mxu0
        %2855 = vmatprep.mubr.bf16.mxu0 0
        %2856 = vmatmul.mubr.bf16.gmra.mrb[0].mxu0 %v2722
        %v2857 = vpop.f32.mrb[0].mxu0
        %v2858 = vadd.f32 0.0, %v2857
        %v2859 = vpop.f32.mrb[0].mxu0
        %v2860 = vpop.f32.mrb[0].mxu0
        %v2861 = vadd.f32 0.0, %v2860
        %v2862 = vpop.f32.mrb[0].mxu0
        %2863 = vmatprep.mubr.bf16.mxu0 0
        %2864 = vmatmul.mubr.bf16.gmra.mrb[0].mxu0 %v2723
        %v2865 = vpop.f32.mrb[0].mxu0
        %v2866 = vadd.f32 0.0, %v2865
        %v2867 = vpop.f32.mrb[0].mxu0
        %v2868 = vpop.f32.mrb[0].mxu0
        %v2869 = vadd.f32 0.0, %v2868
        %v2870 = vpop.f32.mrb[0].mxu0
        %2871 = vmatprep.mubr.bf16.mxu0 0
        %2872 = vmatmul.mubr.bf16.gmra.mrb[0].mxu0 %v2724
        %v2873 = vpop.f32.mrb[0].mxu0
        %v2874 = vadd.f32 0.0, %v2873
        %v2875 = vpop.f32.mrb[0].mxu0
        %v2876 = vpop.f32.mrb[0].mxu0
        %v2877 = vadd.f32 0.0, %v2876
        %v2878 = vpop.f32.mrb[0].mxu0
        %2879 = vmatprep.mubr.bf16.mxu0 0
        %2880 = vmatmul.mubr.bf16.gmra.mrb[0].mxu0 %v2725
        %v2881 = vpop.f32.mrb[0].mxu0
        %v2882 = vadd.f32 0.0, %v2881
        %v2883 = vpop.f32.mrb[0].mxu0
        %v2884 = vpop.f32.mrb[0].mxu0
        %v2885 = vadd.f32 0.0, %v2884
        %v2886 = vpop.f32.mrb[0].mxu0
        %2887 = vmatprep.mubr.bf16.mxu0 0
        %2888 = vmatmul.mubr.bf16.gmra.mrb[0].mxu0 %v2726
        %v2889 = vpop.f32.mrb[0].mxu0
        %v2890 = vadd.f32 0.0, %v2889
        %v2891 = vpop.f32.mrb[0].mxu0
        %v2892 = vpop.f32.mrb[0].mxu0
        %v2893 = vadd.f32 0.0, %v2892
        %v2894 = vpop.f32.mrb[0].mxu0
        %2895 = vmatprep.mubr.bf16.mxu0 0
        %2896 = vmatmul.mubr.bf16.gmra.mrb[0].mxu0 %v2727
        %v2897 = vpop.f32.mrb[0].mxu0
        %v2898 = vadd.f32 0.0, %v2897
        %v2899 = vpop.f32.mrb[0].mxu0
        %v2900 = vpop.f32.mrb[0].mxu0
        %v2901 = vadd.f32 0.0, %v2900
        %v2902 = vpop.f32.mrb[0].mxu0
        %2903 = vmatprep.mubr.bf16.mxu0 0
        %2904 = vmatmul.mubr.bf16.gmra.mrb[0].mxu0 %v2728
        %v2905 = vpop.f32.mrb[0].mxu0
        %v2906 = vadd.f32 0.0, %v2905
        %v2907 = vpop.f32.mrb[0].mxu0
        %v2908 = vpop.f32.mrb[0].mxu0
        %v2909 = vadd.f32 0.0, %v2908
        %v2910 = vpop.f32.mrb[0].mxu0
        %2911 = vmatprep.mubr.bf16.mxu0 0
        %2912 = vmatmul.mubr.bf16.gmra.mrb[0].mxu0 %v2729
        %v2913 = vpop.f32.mrb[0].mxu0
        %v2914 = vadd.f32 0.0, %v2913
        %v2915 = vpop.f32.mrb[0].mxu0
        %v2916 = vpop.f32.mrb[0].mxu0
        %v2917 = vadd.f32 0.0, %v2916
        %v2918 = vpop.f32.mrb[0].mxu0
        %2919 = vmatprep.mubr.bf16.mxu0 0
        %2920 = vmatmul.mubr.bf16.gmra.mrb[0].mxu0 %v2730
        %v2921 = vpop.f32.mrb[0].mxu0
        %v2922 = vadd.f32 0.0, %v2921
        %v2923 = vpop.f32.mrb[0].mxu0
        %v2924 = vpop.f32.mrb[0].mxu0
        %v2925 = vadd.f32 0.0, %v2924
        %v2926 = vpop.f32.mrb[0].mxu0
        %2927 = vmatprep.mubr.bf16.mxu0 0
        %2928 = vmatmul.mubr.bf16.gmra.mrb[0].mxu0 %v2731
        %v2929 = vpop.f32.mrb[0].mxu0
        %v2930 = vadd.f32 0.0, %v2929
        %v2931 = vpop.f32.mrb[0].mxu0
        %v2932 = vpop.f32.mrb[0].mxu0
        %v2933 = vadd.f32 0.0, %v2932
        %v2934 = vpop.f32.mrb[0].mxu0
        %2935 = vmatprep.mubr.bf16.mxu0 0
        %2936 = vmatmul.mubr.bf16.gmra.mrb[0].mxu0 %v2732
        %v2937 = vpop.f32.mrb[0].mxu0
        %v2938 = vadd.f32 0.0, %v2937
        %v2939 = vpop.f32.mrb[0].mxu0
        %v2940 = vpop.f32.mrb[0].mxu0
        %v2941 = vadd.f32 0.0, %v2940
        %v2942 = vpop.f32.mrb[0].mxu0
        %2943 = vmatprep.mubr.bf16.mxu0 0
        %2944 = vmatmul.mubr.bf16.gmra.mrb[0].mxu0 %v2733
        %v2945 = vpop.f32.mrb[0].mxu0
        %v2946 = vadd.f32 0.0, %v2945
        %v2947 = vpop.f32.mrb[0].mxu0
        %v2948 = vpop.f32.mrb[0].mxu0
        %v2949 = vadd.f32 0.0, %v2948
        %v2950 = vpop.f32.mrb[0].mxu0
        %2951 = vmatprep.mubr.bf16.mxu0 0
        %2952 = vmatmul.mubr.bf16.gmra.mrb[0].mxu0 %v2734
        %v2953 = vpop.f32.mrb[0].mxu0
        %v2954 = vadd.f32 0.0, %v2953
        %v2955 = vpop.f32.mrb[0].mxu0
        %v2956 = vpop.f32.mrb[0].mxu0
        %v2957 = vadd.f32 0.0, %v2956
        %v2958 = vpop.f32.mrb[0].mxu0
        %2959 = vdwg.mxu0
        %v2960 = vadd.f32 %v2574, %v2834
        %v2961 = vadd.f32 %v2575, %v2837
        %v2962 = vadd.f32 %v2576, %v2842
        %v2963 = vadd.f32 %v2577, %v2845
        %v2964 = vadd.f32 %v2578, %v2850
        %v2965 = vadd.f32 %v2579, %v2853
        %v2966 = vadd.f32 %v2580, %v2858
        %v2967 = vadd.f32 %v2581, %v2861
        %v2968 = vadd.f32 %v2582, %v2866
        %v2969 = vadd.f32 %v2583, %v2869
        %v2970 = vadd.f32 %v2584, %v2874
        %v2971 = vadd.f32 %v2585, %v2877
        %v2972 = vadd.f32 %v2586, %v2882
        %v2973 = vadd.f32 %v2587, %v2885
        %v2974 = vadd.f32 %v2588, %v2890
        %v2975 = vadd.f32 %v2589, %v2893
        %v2976 = vadd.f32 %v2590, %v2898
        %v2977 = vadd.f32 %v2591, %v2901
        %v2978 = vadd.f32 %v2592, %v2906
        %v2979 = vadd.f32 %v2593, %v2909
        %v2980 = vadd.f32 %v2594, %v2914
        %v2981 = vadd.f32 %v2595, %v2917
        %v2982 = vadd.f32 %v2596, %v2922
        %v2983 = vadd.f32 %v2597, %v2925
        %v2984 = vadd.f32 %v2598, %v2930
        %v2985 = vadd.f32 %v2599, %v2933
        %v2986 = vadd.f32 %v2600, %v2938
        %v2987 = vadd.f32 %v2601, %v2941
        %v2988 = vadd.f32 %v2602, %v2946
        %v2989 = vadd.f32 %v2603, %v2949
        %v2990 = vadd.f32 %v2604, %v2954
        %v2991 = vadd.f32 %v2605, %v2957
        %v2992 = vld [vmem:[%s960] sm:$0xf]
        %v2993 = vld [vmem:[%s960 + $0x4] sm:$0xf]
        %v2994 = vld [vmem:[%s960 + $0x8] sm:$0x1]
        %v2995 = vld [vmem:[%s960 + $0xc] sm:$0xf]
        %v2996 = vld [vmem:[%s960 + $0x10] sm:$0xf]
        %v2997 = vld [vmem:[%s960 + $0x14] sm:$0x1]
        %v2998 = vld [vmem:[%s960 + $0x18] sm:$0xf]
        %v2999 = vld [vmem:[%s960 + $0x1c] sm:$0xf]
        %v3000 = vld [vmem:[%s960 + $0x20] sm:$0x1]
        %v3001 = vld [vmem:[%s960 + $0x24] sm:$0xf]
        %v3002 = vld [vmem:[%s960 + $0x28] sm:$0xf]
        %v3003 = vld [vmem:[%s960 + $0x2c] sm:$0x1]
        %v3004 = vld [vmem:[%s960 + $0x30] sm:$0xf]
        %v3005 = vld [vmem:[%s960 + $0x34] sm:$0xf]
        %v3006 = vld [vmem:[%s960 + $0x38] sm:$0x1]
        %v3007 = vld [vmem:[%s960 + $0x3c] sm:$0xf]
        %v3008 = vld [vmem:[%s960 + $0x40] sm:$0xf]
        %v3009 = vld [vmem:[%s960 + $0x44] sm:$0x1]
        %v3010 = vld [vmem:[%s960 + $0x48] sm:$0xf]
        %v3011 = vld [vmem:[%s960 + $0x4c] sm:$0xf]
        %v3012 = vld [vmem:[%s960 + $0x50] sm:$0x1]
        %v3013 = vld [vmem:[%s960 + $0x54] sm:$0xf]
        %v3014 = vld [vmem:[%s960 + $0x58] sm:$0xf]
        %v3015 = vld [vmem:[%s960 + $0x5c] sm:$0x1]
        %v3016 = vld [vmem:[%s960 + $0x60] sm:$0xf]
        %v3017 = vld [vmem:[%s960 + $0x64] sm:$0xf]
        %v3018 = vld [vmem:[%s960 + $0x68] sm:$0x1]
        %v3019 = vld [vmem:[%s960 + $0x6c] sm:$0xf]
        %v3020 = vld [vmem:[%s960 + $0x70] sm:$0xf]
        %v3021 = vld [vmem:[%s960 + $0x74] sm:$0x1]
        %v3022 = vld [vmem:[%s960 + $0x78] sm:$0xf]
        %v3023 = vld [vmem:[%s960 + $0x7c] sm:$0xf]
        %v3024 = vld [vmem:[%s960 + $0x80] sm:$0x1]
        %v3025 = vld [vmem:[%s960 + $0x84] sm:$0xf]
        %v3026 = vld [vmem:[%s960 + $0x88] sm:$0xf]
        %v3027 = vld [vmem:[%s960 + $0x8c] sm:$0x1]
        %v3028 = vld [vmem:[%s960 + $0x90] sm:$0xf]
        %v3029 = vld [vmem:[%s960 + $0x94] sm:$0xf]
        %v3030 = vld [vmem:[%s960 + $0x98] sm:$0x1]
        %v3031 = vld [vmem:[%s960 + $0x9c] sm:$0xf]
        %v3032 = vld [vmem:[%s960 + $0xa0] sm:$0xf]
        %v3033 = vld [vmem:[%s960 + $0xa4] sm:$0x1]
        %v3034 = vld [vmem:[%s960 + $0xa8] sm:$0xf]
        %v3035 = vld [vmem:[%s960 + $0xac] sm:$0xf]
        %v3036 = vld [vmem:[%s960 + $0xb0] sm:$0x1]
        %v3037 = vld [vmem:[%s960 + $0xb4] sm:$0xf]
        %v3038 = vld [vmem:[%s960 + $0xb8] sm:$0xf]
        %v3039 = vld [vmem:[%s960 + $0xbc] sm:$0x1]
        %v3041 = vshrl.u32 %v2992, 16
        %v3043 = vrot.slane %v3041, 4
        %v3044 = vshll.u32 %v2992, 16
        %v3046 = vrot.slane %v3044, 5
        %v3047 = vor.u32 %v3043, %v3046
        %v3048 = vrot.slane %v3047, 4
        %v3050 = vshll.u32 %v2993, 16
        %v3052 = vrot.slane %v3050, 5
        %v3053 = vsel %vm1141, %v3048, %v3052
        %v3054 = vshrl.u32 %v2993, 16
        %v3056 = vrot.slane %v3054, 4
        %v3057 = vor.u32 %v3056, %v3052
        %v3058 = vrot.slane %v3057, 4
        %v3060 = vshll.u32 %v2994, 16
        %v3062 = vrot.slane %v3060, 5
        %v3063 = vsel %vm1141, %v3058, %v3062
        %v3065 = vshrl.u32 %v2995, 16
        %v3067 = vrot.slane %v3065, 4
        %v3068 = vshll.u32 %v2995, 16
        %v3070 = vrot.slane %v3068, 5
        %v3071 = vor.u32 %v3067, %v3070
        %v3072 = vrot.slane %v3071, 4
        %v3074 = vshll.u32 %v2996, 16
        %v3076 = vrot.slane %v3074, 5
        %v3077 = vsel %vm1141, %v3072, %v3076
        %v3078 = vshrl.u32 %v2996, 16
        %v3080 = vrot.slane %v3078, 4
        %v3081 = vor.u32 %v3080, %v3076
        %v3082 = vrot.slane %v3081, 4
        %v3084 = vshll.u32 %v2997, 16
        %v3086 = vrot.slane %v3084, 5
        %v3087 = vsel %vm1141, %v3082, %v3086
        %v3089 = vshrl.u32 %v2998, 16
        %v3091 = vrot.slane %v3089, 4
        %v3092 = vshll.u32 %v2998, 16
        %v3094 = vrot.slane %v3092, 5
        %v3095 = vor.u32 %v3091, %v3094
        %v3096 = vrot.slane %v3095, 4
        %v3098 = vshll.u32 %v2999, 16
        %v3100 = vrot.slane %v3098, 5
        %v3101 = vsel %vm1141, %v3096, %v3100
        %v3102 = vshrl.u32 %v2999, 16
        %v3104 = vrot.slane %v3102, 4
        %v3105 = vor.u32 %v3104, %v3100
        %v3106 = vrot.slane %v3105, 4
        %v3108 = vshll.u32 %v3000, 16
        %v3110 = vrot.slane %v3108, 5
        %v3111 = vsel %vm1141, %v3106, %v3110
        %v3113 = vshrl.u32 %v3001, 16
        %v3115 = vrot.slane %v3113, 4
        %v3116 = vshll.u32 %v3001, 16
        %v3118 = vrot.slane %v3116, 5
        %v3119 = vor.u32 %v3115, %v3118
        %v3120 = vrot.slane %v3119, 4
        %v3122 = vshll.u32 %v3002, 16
        %v3124 = vrot.slane %v3122, 5
        %v3125 = vsel %vm1141, %v3120, %v3124
        %v3126 = vshrl.u32 %v3002, 16
        %v3128 = vrot.slane %v3126, 4
        %v3129 = vor.u32 %v3128, %v3124
        %v3130 = vrot.slane %v3129, 4
        %v3132 = vshll.u32 %v3003, 16
        %v3134 = vrot.slane %v3132, 5
        %v3135 = vsel %vm1141, %v3130, %v3134
        %v3137 = vshrl.u32 %v3004, 16
        %v3139 = vrot.slane %v3137, 4
        %v3140 = vshll.u32 %v3004, 16
        %v3142 = vrot.slane %v3140, 5
        %v3143 = vor.u32 %v3139, %v3142
        %v3144 = vrot.slane %v3143, 4
        %v3146 = vshll.u32 %v3005, 16
        %v3148 = vrot.slane %v3146, 5
        %v3149 = vsel %vm1141, %v3144, %v3148
        %v3150 = vshrl.u32 %v3005, 16
        %v3152 = vrot.slane %v3150, 4
        %v3153 = vor.u32 %v3152, %v3148
        %v3154 = vrot.slane %v3153, 4
        %v3156 = vshll.u32 %v3006, 16
        %v3158 = vrot.slane %v3156, 5
        %v3159 = vsel %vm1141, %v3154, %v3158
        %v3161 = vshrl.u32 %v3007, 16
        %v3163 = vrot.slane %v3161, 4
        %v3164 = vshll.u32 %v3007, 16
        %v3166 = vrot.slane %v3164, 5
        %v3167 = vor.u32 %v3163, %v3166
        %v3168 = vrot.slane %v3167, 4
        %v3170 = vshll.u32 %v3008, 16
        %v3172 = vrot.slane %v3170, 5
        %v3173 = vsel %vm1141, %v3168, %v3172
        %v3174 = vshrl.u32 %v3008, 16
        %v3176 = vrot.slane %v3174, 4
        %v3177 = vor.u32 %v3176, %v3172
        %v3178 = vrot.slane %v3177, 4
        %v3180 = vshll.u32 %v3009, 16
        %v3182 = vrot.slane %v3180, 5
        %v3183 = vsel %vm1141, %v3178, %v3182
        %v3185 = vshrl.u32 %v3010, 16
        %v3187 = vrot.slane %v3185, 4
        %v3188 = vshll.u32 %v3010, 16
        %v3190 = vrot.slane %v3188, 5
        %v3191 = vor.u32 %v3187, %v3190
        %v3192 = vrot.slane %v3191, 4
        %v3194 = vshll.u32 %v3011, 16
        %v3196 = vrot.slane %v3194, 5
        %v3197 = vsel %vm1141, %v3192, %v3196
        %v3198 = vshrl.u32 %v3011, 16
        %v3200 = vrot.slane %v3198, 4
        %v3201 = vor.u32 %v3200, %v3196
        %v3202 = vrot.slane %v3201, 4
        %v3204 = vshll.u32 %v3012, 16
        %v3206 = vrot.slane %v3204, 5
        %v3207 = vsel %vm1141, %v3202, %v3206
        %v3209 = vshrl.u32 %v3013, 16
        %v3211 = vrot.slane %v3209, 4
        %v3212 = vshll.u32 %v3013, 16
        %v3214 = vrot.slane %v3212, 5
        %v3215 = vor.u32 %v3211, %v3214
        %v3216 = vrot.slane %v3215, 4
        %v3218 = vshll.u32 %v3014, 16
        %v3220 = vrot.slane %v3218, 5
        %v3221 = vsel %vm1141, %v3216, %v3220
        %v3222 = vshrl.u32 %v3014, 16
        %v3224 = vrot.slane %v3222, 4
        %v3225 = vor.u32 %v3224, %v3220
        %v3226 = vrot.slane %v3225, 4
        %v3228 = vshll.u32 %v3015, 16
        %v3230 = vrot.slane %v3228, 5
        %v3231 = vsel %vm1141, %v3226, %v3230
        %v3233 = vshrl.u32 %v3016, 16
        %v3235 = vrot.slane %v3233, 4
        %v3236 = vshll.u32 %v3016, 16
        %v3238 = vrot.slane %v3236, 5
        %v3239 = vor.u32 %v3235, %v3238
        %v3240 = vrot.slane %v3239, 4
        %v3242 = vshll.u32 %v3017, 16
        %v3244 = vrot.slane %v3242, 5
        %v3245 = vsel %vm1141, %v3240, %v3244
        %v3246 = vshrl.u32 %v3017, 16
        %v3248 = vrot.slane %v3246, 4
        %v3249 = vor.u32 %v3248, %v3244
        %v3250 = vrot.slane %v3249, 4
        %v3252 = vshll.u32 %v3018, 16
        %v3254 = vrot.slane %v3252, 5
        %v3255 = vsel %vm1141, %v3250, %v3254
        %v3257 = vshrl.u32 %v3019, 16
        %v3259 = vrot.slane %v3257, 4
        %v3260 = vshll.u32 %v3019, 16
        %v3262 = vrot.slane %v3260, 5
        %v3263 = vor.u32 %v3259, %v3262
        %v3264 = vrot.slane %v3263, 4
        %v3266 = vshll.u32 %v3020, 16
        %v3268 = vrot.slane %v3266, 5
        %v3269 = vsel %vm1141, %v3264, %v3268
        %v3270 = vshrl.u32 %v3020, 16
        %v3272 = vrot.slane %v3270, 4
        %v3273 = vor.u32 %v3272, %v3268
        %v3274 = vrot.slane %v3273, 4
        %v3276 = vshll.u32 %v3021, 16
        %v3278 = vrot.slane %v3276, 5
        %v3279 = vsel %vm1141, %v3274, %v3278
        %v3281 = vshrl.u32 %v3022, 16
        %v3283 = vrot.slane %v3281, 4
        %v3284 = vshll.u32 %v3022, 16
        %v3286 = vrot.slane %v3284, 5
        %v3287 = vor.u32 %v3283, %v3286
        %v3288 = vrot.slane %v3287, 4
        %v3290 = vshll.u32 %v3023, 16
        %v3292 = vrot.slane %v3290, 5
        %v3293 = vsel %vm1141, %v3288, %v3292
        %v3294 = vshrl.u32 %v3023, 16
        %v3296 = vrot.slane %v3294, 4
        %v3297 = vor.u32 %v3296, %v3292
        %v3298 = vrot.slane %v3297, 4
        %v3300 = vshll.u32 %v3024, 16
        %v3302 = vrot.slane %v3300, 5
        %v3303 = vsel %vm1141, %v3298, %v3302
        %v3305 = vshrl.u32 %v3025, 16
        %v3307 = vrot.slane %v3305, 4
        %v3308 = vshll.u32 %v3025, 16
        %v3310 = vrot.slane %v3308, 5
        %v3311 = vor.u32 %v3307, %v3310
        %v3312 = vrot.slane %v3311, 4
        %v3314 = vshll.u32 %v3026, 16
        %v3316 = vrot.slane %v3314, 5
        %v3317 = vsel %vm1141, %v3312, %v3316
        %v3318 = vshrl.u32 %v3026, 16
        %v3320 = vrot.slane %v3318, 4
        %v3321 = vor.u32 %v3320, %v3316
        %v3322 = vrot.slane %v3321, 4
        %v3324 = vshll.u32 %v3027, 16
        %v3326 = vrot.slane %v3324, 5
        %v3327 = vsel %vm1141, %v3322, %v3326
        %v3329 = vshrl.u32 %v3028, 16
        %v3331 = vrot.slane %v3329, 4
        %v3332 = vshll.u32 %v3028, 16
        %v3334 = vrot.slane %v3332, 5
        %v3335 = vor.u32 %v3331, %v3334
        %v3336 = vrot.slane %v3335, 4
        %v3338 = vshll.u32 %v3029, 16
        %v3340 = vrot.slane %v3338, 5
        %v3341 = vsel %vm1141, %v3336, %v3340
        %v3342 = vshrl.u32 %v3029, 16
        %v3344 = vrot.slane %v3342, 4
        %v3345 = vor.u32 %v3344, %v3340
        %v3346 = vrot.slane %v3345, 4
        %v3348 = vshll.u32 %v3030, 16
        %v3350 = vrot.slane %v3348, 5
        %v3351 = vsel %vm1141, %v3346, %v3350
        %v3353 = vshrl.u32 %v3031, 16
        %v3355 = vrot.slane %v3353, 4
        %v3356 = vshll.u32 %v3031, 16
        %v3358 = vrot.slane %v3356, 5
        %v3359 = vor.u32 %v3355, %v3358
        %v3360 = vrot.slane %v3359, 4
        %v3362 = vshll.u32 %v3032, 16
        %v3364 = vrot.slane %v3362, 5
        %v3365 = vsel %vm1141, %v3360, %v3364
        %v3366 = vshrl.u32 %v3032, 16
        %v3368 = vrot.slane %v3366, 4
        %v3369 = vor.u32 %v3368, %v3364
        %v3370 = vrot.slane %v3369, 4
        %v3372 = vshll.u32 %v3033, 16
        %v3374 = vrot.slane %v3372, 5
        %v3375 = vsel %vm1141, %v3370, %v3374
        %v3377 = vshrl.u32 %v3034, 16
        %v3379 = vrot.slane %v3377, 4
        %v3380 = vshll.u32 %v3034, 16
        %v3382 = vrot.slane %v3380, 5
        %v3383 = vor.u32 %v3379, %v3382
        %v3384 = vrot.slane %v3383, 4
        %v3386 = vshll.u32 %v3035, 16
        %v3388 = vrot.slane %v3386, 5
        %v3389 = vsel %vm1141, %v3384, %v3388
        %v3390 = vshrl.u32 %v3035, 16
        %v3392 = vrot.slane %v3390, 4
        %v3393 = vor.u32 %v3392, %v3388
        %v3394 = vrot.slane %v3393, 4
        %v3396 = vshll.u32 %v3036, 16
        %v3398 = vrot.slane %v3396, 5
        %v3399 = vsel %vm1141, %v3394, %v3398
        %v3401 = vshrl.u32 %v3037, 16
        %v3403 = vrot.slane %v3401, 4
        %v3404 = vshll.u32 %v3037, 16
        %v3406 = vrot.slane %v3404, 5
        %v3407 = vor.u32 %v3403, %v3406
        %v3408 = vrot.slane %v3407, 4
        %v3410 = vshll.u32 %v3038, 16
        %v3412 = vrot.slane %v3410, 5
        %v3413 = vsel %vm1141, %v3408, %v3412
        %v3414 = vshrl.u32 %v3038, 16
        %v3416 = vrot.slane %v3414, 4
        %v3417 = vor.u32 %v3416, %v3412
        %v3418 = vrot.slane %v3417, 4
        %v3420 = vshll.u32 %v3039, 16
        %v3422 = vrot.slane %v3420, 5
        %v3423 = vsel %vm1141, %v3418, %v3422
        %s3424 = scalar_lea.vmem %s1, 256
        %v3425 = vld [vmem:[%s3424] sm:$0xf]
        %v3426 = vld [vmem:[%s3424 + $0x4] sm:$0xf]
        %v3427 = vld [vmem:[%s3424 + $0x8] sm:$0xf]
        %v3428 = vld [vmem:[%s3424 + $0xc] sm:$0xf]
        %v3429 = vld [vmem:[%s3424 + $0x10] sm:$0xf]
        %v3430 = vld [vmem:[%s3424 + $0x14] sm:$0xf]
        %v3431 = vld [vmem:[%s3424 + $0x18] sm:$0xf]
        %v3432 = vld [vmem:[%s3424 + $0x1c] sm:$0xf]
        %v3433 = vld [vmem:[%s3424 + $0x20] sm:$0xf]
        %v3434 = vld [vmem:[%s3424 + $0x24] sm:$0xf]
        %v3435 = vld [vmem:[%s3424 + $0x28] sm:$0xf]
        %v3436 = vld [vmem:[%s3424 + $0x2c] sm:$0xf]
        %v3437 = vld [vmem:[%s3424 + $0x30] sm:$0xf]
        %v3438 = vld [vmem:[%s3424 + $0x34] sm:$0xf]
        %v3439 = vld [vmem:[%s3424 + $0x38] sm:$0xf]
        %v3440 = vld [vmem:[%s3424 + $0x3c] sm:$0xf]
        %v3441 = vunpack.c.l.b16 %v3053
        %v3442 = vunpack.c.l.b16 %v3063
        %v3443 = vunpack.c.l.b16 %v3077
        %v3444 = vunpack.c.l.b16 %v3087
        %v3445 = vunpack.c.l.b16 %v3101
        %v3446 = vunpack.c.l.b16 %v3111
        %v3447 = vunpack.c.l.b16 %v3125
        %v3448 = vunpack.c.l.b16 %v3135
        %v3449 = vunpack.c.l.b16 %v3149
        %v3450 = vunpack.c.l.b16 %v3159
        %v3451 = vunpack.c.l.b16 %v3173
        %v3452 = vunpack.c.l.b16 %v3183
        %v3453 = vunpack.c.l.b16 %v3197
        %v3454 = vunpack.c.l.b16 %v3207
        %v3455 = vunpack.c.l.b16 %v3221
        %v3456 = vunpack.c.l.b16 %v3231
        %v3457 = vunpack.c.l.b16 %v3245
        %v3458 = vunpack.c.l.b16 %v3255
        %v3459 = vunpack.c.l.b16 %v3269
        %v3460 = vunpack.c.l.b16 %v3279
        %v3461 = vunpack.c.l.b16 %v3293
        %v3462 = vunpack.c.l.b16 %v3303
        %v3463 = vunpack.c.l.b16 %v3317
        %v3464 = vunpack.c.l.b16 %v3327
        %v3465 = vunpack.c.l.b16 %v3341
        %v3466 = vunpack.c.l.b16 %v3351
        %v3467 = vunpack.c.l.b16 %v3365
        %v3468 = vunpack.c.l.b16 %v3375
        %v3469 = vunpack.c.l.b16 %v3389
        %v3470 = vunpack.c.l.b16 %v3399
        %v3471 = vunpack.c.l.b16 %v3413
        %v3472 = vunpack.c.l.b16 %v3423
        %v3473 = vpack.c.b16 %v3442, %v3441
        %v3474 = vpack.c.b16 %v3444, %v3443
        %v3475 = vpack.c.b16 %v3446, %v3445
        %v3476 = vpack.c.b16 %v3448, %v3447
        %v3477 = vpack.c.b16 %v3450, %v3449
        %v3478 = vpack.c.b16 %v3452, %v3451
        %v3479 = vpack.c.b16 %v3454, %v3453
        %v3480 = vpack.c.b16 %v3456, %v3455
        %v3481 = vpack.c.b16 %v3458, %v3457
        %v3482 = vpack.c.b16 %v3460, %v3459
        %v3483 = vpack.c.b16 %v3462, %v3461
        %v3484 = vpack.c.b16 %v3464, %v3463
        %v3485 = vpack.c.b16 %v3466, %v3465
        %v3486 = vpack.c.b16 %v3468, %v3467
        %v3487 = vpack.c.b16 %v3470, %v3469
        %v3488 = vpack.c.b16 %v3472, %v3471
        %v3521 = vunpack.c.l.b16 %v3425
        %v3522 = vunpack.c.l.b16 %v3426
        %v3523 = vunpack.c.l.b16 %v3427
        %v3524 = vunpack.c.l.b16 %v3428
        %v3525 = vunpack.c.l.b16 %v3429
        %v3526 = vunpack.c.l.b16 %v3430
        %v3527 = vunpack.c.l.b16 %v3431
        %v3528 = vunpack.c.l.b16 %v3432
        %v3529 = vunpack.c.l.b16 %v3433
        %v3530 = vunpack.c.l.b16 %v3434
        %v3531 = vunpack.c.l.b16 %v3435
        %v3532 = vunpack.c.l.b16 %v3436
        %v3533 = vunpack.c.l.b16 %v3437
        %v3534 = vunpack.c.l.b16 %v3438
        %v3535 = vunpack.c.l.b16 %v3439
        %v3536 = vunpack.c.l.b16 %v3440
        %v3537 = vpack.c.b16 %v3522, %v3521
        %v3538 = vpack.c.b16 %v3524, %v3523
        %v3539 = vpack.c.b16 %v3526, %v3525
        %v3540 = vpack.c.b16 %v3528, %v3527
        %v3541 = vpack.c.b16 %v3530, %v3529
        %v3542 = vpack.c.b16 %v3532, %v3531
        %v3543 = vpack.c.b16 %v3534, %v3533
        %v3544 = vpack.c.b16 %v3536, %v3535
        %3553 = vmatprep.subr.bf16.mxu0 0
        %3554 = vmatpush1.bf16.msra.mxu0 %v3537
        %3555 = vmatprep.subr.bf16.mxu0 0
        %3556 = vmatpush1.bf16.msra.mxu0 %v3538
        %3557 = vmatprep.subr.bf16.mxu0 0
        %3558 = vmatpush1.bf16.msra.mxu0 %v3539
        %3559 = vmatprep.subr.bf16.mxu0 0
        %3560 = vmatpush1.bf16.msra.mxu0 %v3540
        %3561 = vmatprep.subr.bf16.mxu0 0
        %3562 = vmatpush1.bf16.msra.mxu0 %v3541
        %3563 = vmatprep.subr.bf16.mxu0 0
        %3564 = vmatpush1.bf16.msra.mxu0 %v3542
        %3565 = vmatprep.subr.bf16.mxu0 0
        %3566 = vmatpush1.bf16.msra.mxu0 %v3543
        %3567 = vmatprep.subr.bf16.mxu0 0
        %3568 = vmatpush1.bf16.msra.mxu0 %v3544
        %3569 = vmatprep.subr.bf16.mxu0 0
        %3570 = vmatpush1.bf16.msra.mxu0 0
        %3571 = vmatprep.subr.bf16.mxu0 0
        %3572 = vmatpush1.bf16.msra.mxu0 0
        %3573 = vmatprep.subr.bf16.mxu0 0
        %3574 = vmatpush1.bf16.msra.mxu0 0
        %3575 = vmatprep.subr.bf16.mxu0 0
        %3576 = vmatpush1.bf16.msra.mxu0 0
        %3577 = vmatprep.subr.bf16.mxu0 0
        %3578 = vmatpush1.bf16.msra.mxu0 0
        %3579 = vmatprep.subr.bf16.mxu0 0
        %3580 = vmatpush1.bf16.msra.mxu0 0
        %3581 = vmatprep.subr.bf16.mxu0 0
        %3582 = vmatpush1.bf16.msra.mxu0 0
        %3583 = vmatprep.subr.bf16.mxu0 0
        %3584 = vmatpush1.bf16.msra.mxu0 0
        %3585 = vmatprep.mubr.bf16.mxu0 0
        %3586 = vmatmul.mubr.bf16.gmra.mrb[0].mxu0 %v3473
        %v3587 = vpop.f32.mrb[0].mxu0
        %v3588 = vadd.f32 0.0, %v3587
        %v3589 = vpop.f32.mrb[0].mxu0
        %v3590 = vpop.f32.mrb[0].mxu0
        %v3591 = vadd.f32 0.0, %v3590
        %v3592 = vpop.f32.mrb[0].mxu0
        %3593 = vmatprep.mubr.bf16.mxu0 0
        %3594 = vmatmul.mubr.bf16.gmra.mrb[0].mxu0 %v3474
        %v3595 = vpop.f32.mrb[0].mxu0
        %v3596 = vadd.f32 0.0, %v3595
        %v3597 = vpop.f32.mrb[0].mxu0
        %v3598 = vpop.f32.mrb[0].mxu0
        %v3599 = vadd.f32 0.0, %v3598
        %v3600 = vpop.f32.mrb[0].mxu0
        %3601 = vmatprep.mubr.bf16.mxu0 0
        %3602 = vmatmul.mubr.bf16.gmra.mrb[0].mxu0 %v3475
        %v3603 = vpop.f32.mrb[0].mxu0
        %v3604 = vadd.f32 0.0, %v3603
        %v3605 = vpop.f32.mrb[0].mxu0
        %v3606 = vpop.f32.mrb[0].mxu0
        %v3607 = vadd.f32 0.0, %v3606
        %v3608 = vpop.f32.mrb[0].mxu0
        %3609 = vmatprep.mubr.bf16.mxu0 0
        %3610 = vmatmul.mubr.bf16.gmra.mrb[0].mxu0 %v3476
        %v3611 = vpop.f32.mrb[0].mxu0
        %v3612 = vadd.f32 0.0, %v3611
        %v3613 = vpop.f32.mrb[0].mxu0
        %v3614 = vpop.f32.mrb[0].mxu0
        %v3615 = vadd.f32 0.0, %v3614
        %v3616 = vpop.f32.mrb[0].mxu0
        %3617 = vmatprep.mubr.bf16.mxu0 0
        %3618 = vmatmul.mubr.bf16.gmra.mrb[0].mxu0 %v3477
        %v3619 = vpop.f32.mrb[0].mxu0
        %v3620 = vadd.f32 0.0, %v3619
        %v3621 = vpop.f32.mrb[0].mxu0
        %v3622 = vpop.f32.mrb[0].mxu0
        %v3623 = vadd.f32 0.0, %v3622
        %v3624 = vpop.f32.mrb[0].mxu0
        %3625 = vmatprep.mubr.bf16.mxu0 0
        %3626 = vmatmul.mubr.bf16.gmra.mrb[0].mxu0 %v3478
        %v3627 = vpop.f32.mrb[0].mxu0
        %v3628 = vadd.f32 0.0, %v3627
        %v3629 = vpop.f32.mrb[0].mxu0
        %v3630 = vpop.f32.mrb[0].mxu0
        %v3631 = vadd.f32 0.0, %v3630
        %v3632 = vpop.f32.mrb[0].mxu0
        %3633 = vmatprep.mubr.bf16.mxu0 0
        %3634 = vmatmul.mubr.bf16.gmra.mrb[0].mxu0 %v3479
        %v3635 = vpop.f32.mrb[0].mxu0
        %v3636 = vadd.f32 0.0, %v3635
        %v3637 = vpop.f32.mrb[0].mxu0
        %v3638 = vpop.f32.mrb[0].mxu0
        %v3639 = vadd.f32 0.0, %v3638
        %v3640 = vpop.f32.mrb[0].mxu0
        %3641 = vmatprep.mubr.bf16.mxu0 0
        %3642 = vmatmul.mubr.bf16.gmra.mrb[0].mxu0 %v3480
        %v3643 = vpop.f32.mrb[0].mxu0
        %v3644 = vadd.f32 0.0, %v3643
        %v3645 = vpop.f32.mrb[0].mxu0
        %v3646 = vpop.f32.mrb[0].mxu0
        %v3647 = vadd.f32 0.0, %v3646
        %v3648 = vpop.f32.mrb[0].mxu0
        %3649 = vmatprep.mubr.bf16.mxu0 0
        %3650 = vmatmul.mubr.bf16.gmra.mrb[0].mxu0 %v3481
        %v3651 = vpop.f32.mrb[0].mxu0
        %v3652 = vadd.f32 0.0, %v3651
        %v3653 = vpop.f32.mrb[0].mxu0
        %v3654 = vpop.f32.mrb[0].mxu0
        %v3655 = vadd.f32 0.0, %v3654
        %v3656 = vpop.f32.mrb[0].mxu0
        %3657 = vmatprep.mubr.bf16.mxu0 0
        %3658 = vmatmul.mubr.bf16.gmra.mrb[0].mxu0 %v3482
        %v3659 = vpop.f32.mrb[0].mxu0
        %v3660 = vadd.f32 0.0, %v3659
        %v3661 = vpop.f32.mrb[0].mxu0
        %v3662 = vpop.f32.mrb[0].mxu0
        %v3663 = vadd.f32 0.0, %v3662
        %v3664 = vpop.f32.mrb[0].mxu0
        %3665 = vmatprep.mubr.bf16.mxu0 0
        %3666 = vmatmul.mubr.bf16.gmra.mrb[0].mxu0 %v3483
        %v3667 = vpop.f32.mrb[0].mxu0
        %v3668 = vadd.f32 0.0, %v3667
        %v3669 = vpop.f32.mrb[0].mxu0
        %v3670 = vpop.f32.mrb[0].mxu0
        %v3671 = vadd.f32 0.0, %v3670
        %v3672 = vpop.f32.mrb[0].mxu0
        %3673 = vmatprep.mubr.bf16.mxu0 0
        %3674 = vmatmul.mubr.bf16.gmra.mrb[0].mxu0 %v3484
        %v3675 = vpop.f32.mrb[0].mxu0
        %v3676 = vadd.f32 0.0, %v3675
        %v3677 = vpop.f32.mrb[0].mxu0
        %v3678 = vpop.f32.mrb[0].mxu0
        %v3679 = vadd.f32 0.0, %v3678
        %v3680 = vpop.f32.mrb[0].mxu0
        %3681 = vmatprep.mubr.bf16.mxu0 0
        %3682 = vmatmul.mubr.bf16.gmra.mrb[0].mxu0 %v3485
        %v3683 = vpop.f32.mrb[0].mxu0
        %v3684 = vadd.f32 0.0, %v3683
        %v3685 = vpop.f32.mrb[0].mxu0
        %v3686 = vpop.f32.mrb[0].mxu0
        %v3687 = vadd.f32 0.0, %v3686
        %v3688 = vpop.f32.mrb[0].mxu0
        %3689 = vmatprep.mubr.bf16.mxu0 0
        %3690 = vmatmul.mubr.bf16.gmra.mrb[0].mxu0 %v3486
        %v3691 = vpop.f32.mrb[0].mxu0
        %v3692 = vadd.f32 0.0, %v3691
        %v3693 = vpop.f32.mrb[0].mxu0
        %v3694 = vpop.f32.mrb[0].mxu0
        %v3695 = vadd.f32 0.0, %v3694
        %v3696 = vpop.f32.mrb[0].mxu0
        %3697 = vmatprep.mubr.bf16.mxu0 0
        %3698 = vmatmul.mubr.bf16.gmra.mrb[0].mxu0 %v3487
        %v3699 = vpop.f32.mrb[0].mxu0
        %v3700 = vadd.f32 0.0, %v3699
        %v3701 = vpop.f32.mrb[0].mxu0
        %v3702 = vpop.f32.mrb[0].mxu0
        %v3703 = vadd.f32 0.0, %v3702
        %v3704 = vpop.f32.mrb[0].mxu0
        %3705 = vmatprep.mubr.bf16.mxu0 0
        %3706 = vmatmul.mubr.bf16.gmra.mrb[0].mxu0 %v3488
        %v3707 = vpop.f32.mrb[0].mxu0
        %v3708 = vadd.f32 0.0, %v3707
        %v3709 = vpop.f32.mrb[0].mxu0
        %v3710 = vpop.f32.mrb[0].mxu0
        %v3711 = vadd.f32 0.0, %v3710
        %v3712 = vpop.f32.mrb[0].mxu0
        %3713 = vdwg.mxu0
        %v3714 = vadd.f32 %v2960, %v3588
        %v3715 = vadd.f32 %v2961, %v3591
        %v3716 = vadd.f32 %v2962, %v3596
        %v3717 = vadd.f32 %v2963, %v3599
        %v3718 = vadd.f32 %v2964, %v3604
        %v3719 = vadd.f32 %v2965, %v3607
        %v3720 = vadd.f32 %v2966, %v3612
        %v3721 = vadd.f32 %v2967, %v3615
        %v3722 = vadd.f32 %v2968, %v3620
        %v3723 = vadd.f32 %v2969, %v3623
        %v3724 = vadd.f32 %v2970, %v3628
        %v3725 = vadd.f32 %v2971, %v3631
        %v3726 = vadd.f32 %v2972, %v3636
        %v3727 = vadd.f32 %v2973, %v3639
        %v3728 = vadd.f32 %v2974, %v3644
        %v3729 = vadd.f32 %v2975, %v3647
        %v3730 = vadd.f32 %v2976, %v3652
        %v3731 = vadd.f32 %v2977, %v3655
        %v3732 = vadd.f32 %v2978, %v3660
        %v3733 = vadd.f32 %v2979, %v3663
        %v3734 = vadd.f32 %v2980, %v3668
        %v3735 = vadd.f32 %v2981, %v3671
        %v3736 = vadd.f32 %v2982, %v3676
        %v3737 = vadd.f32 %v2983, %v3679
        %v3738 = vadd.f32 %v2984, %v3684
        %v3739 = vadd.f32 %v2985, %v3687
        %v3740 = vadd.f32 %v2986, %v3692
        %v3741 = vadd.f32 %v2987, %v3695
        %v3742 = vadd.f32 %v2988, %v3700
        %v3743 = vadd.f32 %v2989, %v3703
        %v3744 = vadd.f32 %v2990, %v3708
        %v3745 = vadd.f32 %v2991, %v3711
        %v3746 = vld [vmem:[%s960] sm:$0xe]
        %v3747 = vld [vmem:[%s960 + $0xc] sm:$0xe]
        %v3748 = vld [vmem:[%s960 + $0x18] sm:$0xe]
        %v3749 = vld [vmem:[%s960 + $0x24] sm:$0xe]
        %v3750 = vld [vmem:[%s960 + $0x30] sm:$0xe]
        %v3751 = vld [vmem:[%s960 + $0x3c] sm:$0xe]
        %v3752 = vld [vmem:[%s960 + $0x48] sm:$0xe]
        %v3753 = vld [vmem:[%s960 + $0x54] sm:$0xe]
        %v3754 = vld [vmem:[%s960 + $0x60] sm:$0xe]
        %v3755 = vld [vmem:[%s960 + $0x6c] sm:$0xe]
        %v3756 = vld [vmem:[%s960 + $0x78] sm:$0xe]
        %v3757 = vld [vmem:[%s960 + $0x84] sm:$0xe]
        %v3758 = vld [vmem:[%s960 + $0x90] sm:$0xe]
        %v3759 = vld [vmem:[%s960 + $0x9c] sm:$0xe]
        %v3760 = vld [vmem:[%s960 + $0xa8] sm:$0xe]
        %v3761 = vld [vmem:[%s960 + $0xb4] sm:$0xe]
        %v3810 = vrot.slane %v3746, 5
        %v3811 = vrot.slane %v3810, 4
        %v3812 = vrot.slane %v2993, 5
        %v3813 = vsel %vm2171, %v3811, %v3812
        %v3814 = vrot.slane %v3812, 4
        %v3815 = vrot.slane %v2994, 5
        %v3816 = vsel %vm2171, %v3814, %v3815
        %v3817 = vrot.slane %v3747, 5
        %v3818 = vrot.slane %v3817, 4
        %v3819 = vrot.slane %v2996, 5
        %v3820 = vsel %vm2171, %v3818, %v3819
        %v3821 = vrot.slane %v3819, 4
        %v3822 = vrot.slane %v2997, 5
        %v3823 = vsel %vm2171, %v3821, %v3822
        %v3824 = vrot.slane %v3748, 5
        %v3825 = vrot.slane %v3824, 4
        %v3826 = vrot.slane %v2999, 5
        %v3827 = vsel %vm2171, %v3825, %v3826
        %v3828 = vrot.slane %v3826, 4
        %v3829 = vrot.slane %v3000, 5
        %v3830 = vsel %vm2171, %v3828, %v3829
        %v3831 = vrot.slane %v3749, 5
        %v3832 = vrot.slane %v3831, 4
        %v3833 = vrot.slane %v3002, 5
        %v3834 = vsel %vm2171, %v3832, %v3833
        %v3835 = vrot.slane %v3833, 4
        %v3836 = vrot.slane %v3003, 5
        %v3837 = vsel %vm2171, %v3835, %v3836
        %v3838 = vrot.slane %v3750, 5
        %v3839 = vrot.slane %v3838, 4
        %v3840 = vrot.slane %v3005, 5
        %v3841 = vsel %vm2171, %v3839, %v3840
        %v3842 = vrot.slane %v3840, 4
        %v3843 = vrot.slane %v3006, 5
        %v3844 = vsel %vm2171, %v3842, %v3843
        %v3845 = vrot.slane %v3751, 5
        %v3846 = vrot.slane %v3845, 4
        %v3847 = vrot.slane %v3008, 5
        %v3848 = vsel %vm2171, %v3846, %v3847
        %v3849 = vrot.slane %v3847, 4
        %v3850 = vrot.slane %v3009, 5
        %v3851 = vsel %vm2171, %v3849, %v3850
        %v3852 = vrot.slane %v3752, 5
        %v3853 = vrot.slane %v3852, 4
        %v3854 = vrot.slane %v3011, 5
        %v3855 = vsel %vm2171, %v3853, %v3854
        %v3856 = vrot.slane %v3854, 4
        %v3857 = vrot.slane %v3012, 5
        %v3858 = vsel %vm2171, %v3856, %v3857
        %v3859 = vrot.slane %v3753, 5
        %v3860 = vrot.slane %v3859, 4
        %v3861 = vrot.slane %v3014, 5
        %v3862 = vsel %vm2171, %v3860, %v3861
        %v3863 = vrot.slane %v3861, 4
        %v3864 = vrot.slane %v3015, 5
        %v3865 = vsel %vm2171, %v3863, %v3864
        %v3866 = vrot.slane %v3754, 5
        %v3867 = vrot.slane %v3866, 4
        %v3868 = vrot.slane %v3017, 5
        %v3869 = vsel %vm2171, %v3867, %v3868
        %v3870 = vrot.slane %v3868, 4
        %v3871 = vrot.slane %v3018, 5
        %v3872 = vsel %vm2171, %v3870, %v3871
        %v3873 = vrot.slane %v3755, 5
        %v3874 = vrot.slane %v3873, 4
        %v3875 = vrot.slane %v3020, 5
        %v3876 = vsel %vm2171, %v3874, %v3875
        %v3877 = vrot.slane %v3875, 4
        %v3878 = vrot.slane %v3021, 5
        %v3879 = vsel %vm2171, %v3877, %v3878
        %v3880 = vrot.slane %v3756, 5
        %v3881 = vrot.slane %v3880, 4
        %v3882 = vrot.slane %v3023, 5
        %v3883 = vsel %vm2171, %v3881, %v3882
        %v3884 = vrot.slane %v3882, 4
        %v3885 = vrot.slane %v3024, 5
        %v3886 = vsel %vm2171, %v3884, %v3885
        %v3887 = vrot.slane %v3757, 5
        %v3888 = vrot.slane %v3887, 4
        %v3889 = vrot.slane %v3026, 5
        %v3890 = vsel %vm2171, %v3888, %v3889
        %v3891 = vrot.slane %v3889, 4
        %v3892 = vrot.slane %v3027, 5
        %v3893 = vsel %vm2171, %v3891, %v3892
        %v3894 = vrot.slane %v3758, 5
        %v3895 = vrot.slane %v3894, 4
        %v3896 = vrot.slane %v3029, 5
        %v3897 = vsel %vm2171, %v3895, %v3896
        %v3898 = vrot.slane %v3896, 4
        %v3899 = vrot.slane %v3030, 5
        %v3900 = vsel %vm2171, %v3898, %v3899
        %v3901 = vrot.slane %v3759, 5
        %v3902 = vrot.slane %v3901, 4
        %v3903 = vrot.slane %v3032, 5
        %v3904 = vsel %vm2171, %v3902, %v3903
        %v3905 = vrot.slane %v3903, 4
        %v3906 = vrot.slane %v3033, 5
        %v3907 = vsel %vm2171, %v3905, %v3906
        %v3908 = vrot.slane %v3760, 5
        %v3909 = vrot.slane %v3908, 4
        %v3910 = vrot.slane %v3035, 5
        %v3911 = vsel %vm2171, %v3909, %v3910
        %v3912 = vrot.slane %v3910, 4
        %v3913 = vrot.slane %v3036, 5
        %v3914 = vsel %vm2171, %v3912, %v3913
        %v3915 = vrot.slane %v3761, 5
        %v3916 = vrot.slane %v3915, 4
        %v3917 = vrot.slane %v3038, 5
        %v3918 = vsel %vm2171, %v3916, %v3917
        %v3919 = vrot.slane %v3917, 4
        %v3920 = vrot.slane %v3039, 5
        %v3921 = vsel %vm2171, %v3919, %v3920
        %s3922 = scalar_lea.vmem %s1, 320
        %v3923 = vld [vmem:[%s3922] sm:$0xf]
        %v3924 = vld [vmem:[%s3922 + $0x4] sm:$0xf]
        %v3925 = vld [vmem:[%s3922 + $0x8] sm:$0xf]
        %v3926 = vld [vmem:[%s3922 + $0xc] sm:$0xf]
        %v3927 = vld [vmem:[%s3922 + $0x10] sm:$0xf]
        %v3928 = vld [vmem:[%s3922 + $0x14] sm:$0xf]
        %v3929 = vld [vmem:[%s3922 + $0x18] sm:$0xf]
        %v3930 = vld [vmem:[%s3922 + $0x1c] sm:$0xf]
        %v3931 = vld [vmem:[%s3922 + $0x20] sm:$0xf]
        %v3932 = vld [vmem:[%s3922 + $0x24] sm:$0xf]
        %v3933 = vld [vmem:[%s3922 + $0x28] sm:$0xf]
        %v3934 = vld [vmem:[%s3922 + $0x2c] sm:$0xf]
        %v3935 = vld [vmem:[%s3922 + $0x30] sm:$0xf]
        %v3936 = vld [vmem:[%s3922 + $0x34] sm:$0xf]
        %v3937 = vld [vmem:[%s3922 + $0x38] sm:$0xf]
        %v3938 = vld [vmem:[%s3922 + $0x3c] sm:$0xf]
        %v3939 = vunpack.c.l.b16 %v3813
        %v3940 = vunpack.c.l.b16 %v3816
        %v3941 = vunpack.c.l.b16 %v3820
        %v3942 = vunpack.c.l.b16 %v3823
        %v3943 = vunpack.c.l.b16 %v3827
        %v3944 = vunpack.c.l.b16 %v3830
        %v3945 = vunpack.c.l.b16 %v3834
        %v3946 = vunpack.c.l.b16 %v3837
        %v3947 = vunpack.c.l.b16 %v3841
        %v3948 = vunpack.c.l.b16 %v3844
        %v3949 = vunpack.c.l.b16 %v3848
        %v3950 = vunpack.c.l.b16 %v3851
        %v3951 = vunpack.c.l.b16 %v3855
        %v3952 = vunpack.c.l.b16 %v3858
        %v3953 = vunpack.c.l.b16 %v3862
        %v3954 = vunpack.c.l.b16 %v3865
        %v3955 = vunpack.c.l.b16 %v3869
        %v3956 = vunpack.c.l.b16 %v3872
        %v3957 = vunpack.c.l.b16 %v3876
        %v3958 = vunpack.c.l.b16 %v3879
        %v3959 = vunpack.c.l.b16 %v3883
        %v3960 = vunpack.c.l.b16 %v3886
        %v3961 = vunpack.c.l.b16 %v3890
        %v3962 = vunpack.c.l.b16 %v3893
        %v3963 = vunpack.c.l.b16 %v3897
        %v3964 = vunpack.c.l.b16 %v3900
        %v3965 = vunpack.c.l.b16 %v3904
        %v3966 = vunpack.c.l.b16 %v3907
        %v3967 = vunpack.c.l.b16 %v3911
        %v3968 = vunpack.c.l.b16 %v3914
        %v3969 = vunpack.c.l.b16 %v3918
        %v3970 = vunpack.c.l.b16 %v3921
        %v3971 = vpack.c.b16 %v3940, %v3939
        %v3972 = vpack.c.b16 %v3942, %v3941
        %v3973 = vpack.c.b16 %v3944, %v3943
        %v3974 = vpack.c.b16 %v3946, %v3945
        %v3975 = vpack.c.b16 %v3948, %v3947
        %v3976 = vpack.c.b16 %v3950, %v3949
        %v3977 = vpack.c.b16 %v3952, %v3951
        %v3978 = vpack.c.b16 %v3954, %v3953
        %v3979 = vpack.c.b16 %v3956, %v3955
        %v3980 = vpack.c.b16 %v3958, %v3957
        %v3981 = vpack.c.b16 %v3960, %v3959
        %v3982 = vpack.c.b16 %v3962, %v3961
        %v3983 = vpack.c.b16 %v3964, %v3963
        %v3984 = vpack.c.b16 %v3966, %v3965
        %v3985 = vpack.c.b16 %v3968, %v3967
        %v3986 = vpack.c.b16 %v3970, %v3969
        %v4019 = vunpack.c.l.b16 %v3923
        %v4020 = vunpack.c.l.b16 %v3924
        %v4021 = vunpack.c.l.b16 %v3925
        %v4022 = vunpack.c.l.b16 %v3926
        %v4023 = vunpack.c.l.b16 %v3927
        %v4024 = vunpack.c.l.b16 %v3928
        %v4025 = vunpack.c.l.b16 %v3929
        %v4026 = vunpack.c.l.b16 %v3930
        %v4027 = vunpack.c.l.b16 %v3931
        %v4028 = vunpack.c.l.b16 %v3932
        %v4029 = vunpack.c.l.b16 %v3933
        %v4030 = vunpack.c.l.b16 %v3934
        %v4031 = vunpack.c.l.b16 %v3935
        %v4032 = vunpack.c.l.b16 %v3936
        %v4033 = vunpack.c.l.b16 %v3937
        %v4034 = vunpack.c.l.b16 %v3938
        %v4035 = vpack.c.b16 %v4020, %v4019
        %v4036 = vpack.c.b16 %v4022, %v4021
        %v4037 = vpack.c.b16 %v4024, %v4023
        %v4038 = vpack.c.b16 %v4026, %v4025
        %v4039 = vpack.c.b16 %v4028, %v4027
        %v4040 = vpack.c.b16 %v4030, %v4029
        %v4041 = vpack.c.b16 %v4032, %v4031
        %v4042 = vpack.c.b16 %v4034, %v4033
        %4051 = vmatprep.subr.bf16.mxu0 0
        %4052 = vmatpush1.bf16.msra.mxu0 %v4035
        %4053 = vmatprep.subr.bf16.mxu0 0
        %4054 = vmatpush1.bf16.msra.mxu0 %v4036
        %4055 = vmatprep.subr.bf16.mxu0 0
        %4056 = vmatpush1.bf16.msra.mxu0 %v4037
        %4057 = vmatprep.subr.bf16.mxu0 0
        %4058 = vmatpush1.bf16.msra.mxu0 %v4038
        %4059 = vmatprep.subr.bf16.mxu0 0
        %4060 = vmatpush1.bf16.msra.mxu0 %v4039
        %4061 = vmatprep.subr.bf16.mxu0 0
        %4062 = vmatpush1.bf16.msra.mxu0 %v4040
        %4063 = vmatprep.subr.bf16.mxu0 0
        %4064 = vmatpush1.bf16.msra.mxu0 %v4041
        %4065 = vmatprep.subr.bf16.mxu0 0
        %4066 = vmatpush1.bf16.msra.mxu0 %v4042
        %4067 = vmatprep.subr.bf16.mxu0 0
        %4068 = vmatpush1.bf16.msra.mxu0 0
        %4069 = vmatprep.subr.bf16.mxu0 0
        %4070 = vmatpush1.bf16.msra.mxu0 0
        %4071 = vmatprep.subr.bf16.mxu0 0
        %4072 = vmatpush1.bf16.msra.mxu0 0
        %4073 = vmatprep.subr.bf16.mxu0 0
        %4074 = vmatpush1.bf16.msra.mxu0 0
        %4075 = vmatprep.subr.bf16.mxu0 0
        %4076 = vmatpush1.bf16.msra.mxu0 0
        %4077 = vmatprep.subr.bf16.mxu0 0
        %4078 = vmatpush1.bf16.msra.mxu0 0
        %4079 = vmatprep.subr.bf16.mxu0 0
        %4080 = vmatpush1.bf16.msra.mxu0 0
        %4081 = vmatprep.subr.bf16.mxu0 0
        %4082 = vmatpush1.bf16.msra.mxu0 0
        %4083 = vmatprep.mubr.bf16.mxu0 0
        %4084 = vmatmul.mubr.bf16.gmra.mrb[0].mxu0 %v3971
        %v4085 = vpop.f32.mrb[0].mxu0
        %v4086 = vadd.f32 0.0, %v4085
        %v4087 = vpop.f32.mrb[0].mxu0
        %v4088 = vpop.f32.mrb[0].mxu0
        %v4089 = vadd.f32 0.0, %v4088
        %v4090 = vpop.f32.mrb[0].mxu0
        %4091 = vmatprep.mubr.bf16.mxu0 0
        %4092 = vmatmul.mubr.bf16.gmra.mrb[0].mxu0 %v3972
        %v4093 = vpop.f32.mrb[0].mxu0
        %v4094 = vadd.f32 0.0, %v4093
        %v4095 = vpop.f32.mrb[0].mxu0
        %v4096 = vpop.f32.mrb[0].mxu0
        %v4097 = vadd.f32 0.0, %v4096
        %v4098 = vpop.f32.mrb[0].mxu0
        %4099 = vmatprep.mubr.bf16.mxu0 0
        %4100 = vmatmul.mubr.bf16.gmra.mrb[0].mxu0 %v3973
        %v4101 = vpop.f32.mrb[0].mxu0
        %v4102 = vadd.f32 0.0, %v4101
        %v4103 = vpop.f32.mrb[0].mxu0
        %v4104 = vpop.f32.mrb[0].mxu0
        %v4105 = vadd.f32 0.0, %v4104
        %v4106 = vpop.f32.mrb[0].mxu0
        %4107 = vmatprep.mubr.bf16.mxu0 0
        %4108 = vmatmul.mubr.bf16.gmra.mrb[0].mxu0 %v3974
        %v4109 = vpop.f32.mrb[0].mxu0
        %v4110 = vadd.f32 0.0, %v4109
        %v4111 = vpop.f32.mrb[0].mxu0
        %v4112 = vpop.f32.mrb[0].mxu0
        %v4113 = vadd.f32 0.0, %v4112
        %v4114 = vpop.f32.mrb[0].mxu0
        %4115 = vmatprep.mubr.bf16.mxu0 0
        %4116 = vmatmul.mubr.bf16.gmra.mrb[0].mxu0 %v3975
        %v4117 = vpop.f32.mrb[0].mxu0
        %v4118 = vadd.f32 0.0, %v4117
        %v4119 = vpop.f32.mrb[0].mxu0
        %v4120 = vpop.f32.mrb[0].mxu0
        %v4121 = vadd.f32 0.0, %v4120
        %v4122 = vpop.f32.mrb[0].mxu0
        %4123 = vmatprep.mubr.bf16.mxu0 0
        %4124 = vmatmul.mubr.bf16.gmra.mrb[0].mxu0 %v3976
        %v4125 = vpop.f32.mrb[0].mxu0
        %v4126 = vadd.f32 0.0, %v4125
        %v4127 = vpop.f32.mrb[0].mxu0
        %v4128 = vpop.f32.mrb[0].mxu0
        %v4129 = vadd.f32 0.0, %v4128
        %v4130 = vpop.f32.mrb[0].mxu0
        %4131 = vmatprep.mubr.bf16.mxu0 0
        %4132 = vmatmul.mubr.bf16.gmra.mrb[0].mxu0 %v3977
        %v4133 = vpop.f32.mrb[0].mxu0
        %v4134 = vadd.f32 0.0, %v4133
        %v4135 = vpop.f32.mrb[0].mxu0
        %v4136 = vpop.f32.mrb[0].mxu0
        %v4137 = vadd.f32 0.0, %v4136
        %v4138 = vpop.f32.mrb[0].mxu0
        %4139 = vmatprep.mubr.bf16.mxu0 0
        %4140 = vmatmul.mubr.bf16.gmra.mrb[0].mxu0 %v3978
        %v4141 = vpop.f32.mrb[0].mxu0
        %v4142 = vadd.f32 0.0, %v4141
        %v4143 = vpop.f32.mrb[0].mxu0
        %v4144 = vpop.f32.mrb[0].mxu0
        %v4145 = vadd.f32 0.0, %v4144
        %v4146 = vpop.f32.mrb[0].mxu0
        %4147 = vmatprep.mubr.bf16.mxu0 0
        %4148 = vmatmul.mubr.bf16.gmra.mrb[0].mxu0 %v3979
        %v4149 = vpop.f32.mrb[0].mxu0
        %v4150 = vadd.f32 0.0, %v4149
        %v4151 = vpop.f32.mrb[0].mxu0
        %v4152 = vpop.f32.mrb[0].mxu0
        %v4153 = vadd.f32 0.0, %v4152
        %v4154 = vpop.f32.mrb[0].mxu0
        %4155 = vmatprep.mubr.bf16.mxu0 0
        %4156 = vmatmul.mubr.bf16.gmra.mrb[0].mxu0 %v3980
        %v4157 = vpop.f32.mrb[0].mxu0
        %v4158 = vadd.f32 0.0, %v4157
        %v4159 = vpop.f32.mrb[0].mxu0
        %v4160 = vpop.f32.mrb[0].mxu0
        %v4161 = vadd.f32 0.0, %v4160
        %v4162 = vpop.f32.mrb[0].mxu0
        %4163 = vmatprep.mubr.bf16.mxu0 0
        %4164 = vmatmul.mubr.bf16.gmra.mrb[0].mxu0 %v3981
        %v4165 = vpop.f32.mrb[0].mxu0
        %v4166 = vadd.f32 0.0, %v4165
        %v4167 = vpop.f32.mrb[0].mxu0
        %v4168 = vpop.f32.mrb[0].mxu0
        %v4169 = vadd.f32 0.0, %v4168
        %v4170 = vpop.f32.mrb[0].mxu0
        %4171 = vmatprep.mubr.bf16.mxu0 0
        %4172 = vmatmul.mubr.bf16.gmra.mrb[0].mxu0 %v3982
        %v4173 = vpop.f32.mrb[0].mxu0
        %v4174 = vadd.f32 0.0, %v4173
        %v4175 = vpop.f32.mrb[0].mxu0
        %v4176 = vpop.f32.mrb[0].mxu0
        %v4177 = vadd.f32 0.0, %v4176
        %v4178 = vpop.f32.mrb[0].mxu0
        %4179 = vmatprep.mubr.bf16.mxu0 0
        %4180 = vmatmul.mubr.bf16.gmra.mrb[0].mxu0 %v3983
        %v4181 = vpop.f32.mrb[0].mxu0
        %v4182 = vadd.f32 0.0, %v4181
        %v4183 = vpop.f32.mrb[0].mxu0
        %v4184 = vpop.f32.mrb[0].mxu0
        %v4185 = vadd.f32 0.0, %v4184
        %v4186 = vpop.f32.mrb[0].mxu0
        %4187 = vmatprep.mubr.bf16.mxu0 0
        %4188 = vmatmul.mubr.bf16.gmra.mrb[0].mxu0 %v3984
        %v4189 = vpop.f32.mrb[0].mxu0
        %v4190 = vadd.f32 0.0, %v4189
        %v4191 = vpop.f32.mrb[0].mxu0
        %v4192 = vpop.f32.mrb[0].mxu0
        %v4193 = vadd.f32 0.0, %v4192
        %v4194 = vpop.f32.mrb[0].mxu0
        %4195 = vmatprep.mubr.bf16.mxu0 0
        %4196 = vmatmul.mubr.bf16.gmra.mrb[0].mxu0 %v3985
        %v4197 = vpop.f32.mrb[0].mxu0
        %v4198 = vadd.f32 0.0, %v4197
        %v4199 = vpop.f32.mrb[0].mxu0
        %v4200 = vpop.f32.mrb[0].mxu0
        %v4201 = vadd.f32 0.0, %v4200
        %v4202 = vpop.f32.mrb[0].mxu0
        %4203 = vmatprep.mubr.bf16.mxu0 0
        %4204 = vmatmul.mubr.bf16.gmra.mrb[0].mxu0 %v3986
        %v4205 = vpop.f32.mrb[0].mxu0
        %v4206 = vadd.f32 0.0, %v4205
        %v4207 = vpop.f32.mrb[0].mxu0
        %v4208 = vpop.f32.mrb[0].mxu0
        %v4209 = vadd.f32 0.0, %v4208
        %v4210 = vpop.f32.mrb[0].mxu0
        %4211 = vdwg.mxu0
        %v4212 = vadd.f32 %v3714, %v4086
        %v4213 = vadd.f32 %v3715, %v4089
        %v4214 = vadd.f32 %v3716, %v4094
        %v4215 = vadd.f32 %v3717, %v4097
        %v4216 = vadd.f32 %v3718, %v4102
        %v4217 = vadd.f32 %v3719, %v4105
        %v4218 = vadd.f32 %v3720, %v4110
        %v4219 = vadd.f32 %v3721, %v4113
        %v4220 = vadd.f32 %v3722, %v4118
        %v4221 = vadd.f32 %v3723, %v4121
        %v4222 = vadd.f32 %v3724, %v4126
        %v4223 = vadd.f32 %v3725, %v4129
        %v4224 = vadd.f32 %v3726, %v4134
        %v4225 = vadd.f32 %v3727, %v4137
        %v4226 = vadd.f32 %v3728, %v4142
        %v4227 = vadd.f32 %v3729, %v4145
        %v4228 = vadd.f32 %v3730, %v4150
        %v4229 = vadd.f32 %v3731, %v4153
        %v4230 = vadd.f32 %v3732, %v4158
        %v4231 = vadd.f32 %v3733, %v4161
        %v4232 = vadd.f32 %v3734, %v4166
        %v4233 = vadd.f32 %v3735, %v4169
        %v4234 = vadd.f32 %v3736, %v4174
        %v4235 = vadd.f32 %v3737, %v4177
        %v4236 = vadd.f32 %v3738, %v4182
        %v4237 = vadd.f32 %v3739, %v4185
        %v4238 = vadd.f32 %v3740, %v4190
        %v4239 = vadd.f32 %v3741, %v4193
        %v4240 = vadd.f32 %v3742, %v4198
        %v4241 = vadd.f32 %v3743, %v4201
        %v4242 = vadd.f32 %v3744, %v4206
        %v4243 = vadd.f32 %v3745, %v4209
        %s4244 = scalar_lea.vmem [#allocation2], 24
        %v4245 = vld [vmem:[%s4244] sm:$0xf]
        %v4246 = vld [vmem:[%s4244 + $0x4] sm:$0xf]
        %v4247 = vld [vmem:[%s4244 + $0xc] sm:$0xf]
        %v4248 = vld [vmem:[%s4244 + $0x10] sm:$0xf]
        %v4249 = vld [vmem:[%s4244 + $0x18] sm:$0xf]
        %v4250 = vld [vmem:[%s4244 + $0x1c] sm:$0xf]
        %v4251 = vld [vmem:[%s4244 + $0x24] sm:$0xf]
        %v4252 = vld [vmem:[%s4244 + $0x28] sm:$0xf]
        %v4253 = vld [vmem:[%s4244 + $0x30] sm:$0xf]
        %v4254 = vld [vmem:[%s4244 + $0x34] sm:$0xf]
        %v4255 = vld [vmem:[%s4244 + $0x3c] sm:$0xf]
        %v4256 = vld [vmem:[%s4244 + $0x40] sm:$0xf]
        %v4257 = vld [vmem:[%s4244 + $0x48] sm:$0xf]
        %v4258 = vld [vmem:[%s4244 + $0x4c] sm:$0xf]
        %v4259 = vld [vmem:[%s4244 + $0x54] sm:$0xf]
        %v4260 = vld [vmem:[%s4244 + $0x58] sm:$0xf]
        %v4261 = vld [vmem:[%s4244 + $0x60] sm:$0xf]
        %v4262 = vld [vmem:[%s4244 + $0x64] sm:$0xf]
        %v4263 = vld [vmem:[%s4244 + $0x6c] sm:$0xf]
        %v4264 = vld [vmem:[%s4244 + $0x70] sm:$0xf]
        %v4265 = vld [vmem:[%s4244 + $0x78] sm:$0xf]
        %v4266 = vld [vmem:[%s4244 + $0x7c] sm:$0xf]
        %v4267 = vld [vmem:[%s4244 + $0x84] sm:$0xf]
        %v4268 = vld [vmem:[%s4244 + $0x88] sm:$0xf]
        %v4269 = vld [vmem:[%s4244 + $0x90] sm:$0xf]
        %v4270 = vld [vmem:[%s4244 + $0x94] sm:$0xf]
        %v4271 = vld [vmem:[%s4244 + $0x9c] sm:$0xf]
        %v4272 = vld [vmem:[%s4244 + $0xa0] sm:$0xf]
        %v4273 = vld [vmem:[%s4244 + $0xa8] sm:$0xf]
        %v4274 = vld [vmem:[%s4244 + $0xac] sm:$0xf]
        %v4275 = vld [vmem:[%s4244 + $0xb4] sm:$0xf]
        %v4276 = vld [vmem:[%s4244 + $0xb8] sm:$0xf]
        %s4277 = scalar_lea.vmem %s1, 384
        %v4278 = vld [vmem:[%s4277] sm:$0xf]
        %v4279 = vld [vmem:[%s4277 + $0x4] sm:$0xf]
        %v4280 = vld [vmem:[%s4277 + $0x8] sm:$0xf]
        %v4281 = vld [vmem:[%s4277 + $0xc] sm:$0xf]
        %v4282 = vld [vmem:[%s4277 + $0x10] sm:$0xf]
        %v4283 = vld [vmem:[%s4277 + $0x14] sm:$0xf]
        %v4284 = vld [vmem:[%s4277 + $0x18] sm:$0xf]
        %v4285 = vld [vmem:[%s4277 + $0x1c] sm:$0xf]
        %v4286 = vld [vmem:[%s4277 + $0x20] sm:$0xf]
        %v4287 = vld [vmem:[%s4277 + $0x24] sm:$0xf]
        %v4288 = vld [vmem:[%s4277 + $0x28] sm:$0xf]
        %v4289 = vld [vmem:[%s4277 + $0x2c] sm:$0xf]
        %v4290 = vld [vmem:[%s4277 + $0x30] sm:$0xf]
        %v4291 = vld [vmem:[%s4277 + $0x34] sm:$0xf]
        %v4292 = vld [vmem:[%s4277 + $0x38] sm:$0xf]
        %v4293 = vld [vmem:[%s4277 + $0x3c] sm:$0xf]
        %v4326 = vunpack.c.l.b16 %v4245
        %v4327 = vunpack.c.l.b16 %v4246
        %v4328 = vunpack.c.l.b16 %v4247
        %v4329 = vunpack.c.l.b16 %v4248
        %v4330 = vunpack.c.l.b16 %v4249
        %v4331 = vunpack.c.l.b16 %v4250
        %v4332 = vunpack.c.l.b16 %v4251
        %v4333 = vunpack.c.l.b16 %v4252
        %v4334 = vunpack.c.l.b16 %v4253
        %v4335 = vunpack.c.l.b16 %v4254
        %v4336 = vunpack.c.l.b16 %v4255
        %v4337 = vunpack.c.l.b16 %v4256
        %v4338 = vunpack.c.l.b16 %v4257
        %v4339 = vunpack.c.l.b16 %v4258
        %v4340 = vunpack.c.l.b16 %v4259
        %v4341 = vunpack.c.l.b16 %v4260
        %v4342 = vunpack.c.l.b16 %v4261
        %v4343 = vunpack.c.l.b16 %v4262
        %v4344 = vunpack.c.l.b16 %v4263
        %v4345 = vunpack.c.l.b16 %v4264
        %v4346 = vunpack.c.l.b16 %v4265
        %v4347 = vunpack.c.l.b16 %v4266
        %v4348 = vunpack.c.l.b16 %v4267
        %v4349 = vunpack.c.l.b16 %v4268
        %v4350 = vunpack.c.l.b16 %v4269
        %v4351 = vunpack.c.l.b16 %v4270
        %v4352 = vunpack.c.l.b16 %v4271
        %v4353 = vunpack.c.l.b16 %v4272
        %v4354 = vunpack.c.l.b16 %v4273
        %v4355 = vunpack.c.l.b16 %v4274
        %v4356 = vunpack.c.l.b16 %v4275
        %v4357 = vunpack.c.l.b16 %v4276
        %v4358 = vpack.c.b16 %v4327, %v4326
        %v4359 = vpack.c.b16 %v4329, %v4328
        %v4360 = vpack.c.b16 %v4331, %v4330
        %v4361 = vpack.c.b16 %v4333, %v4332
        %v4362 = vpack.c.b16 %v4335, %v4334
        %v4363 = vpack.c.b16 %v4337, %v4336
        %v4364 = vpack.c.b16 %v4339, %v4338
        %v4365 = vpack.c.b16 %v4341, %v4340
        %v4366 = vpack.c.b16 %v4343, %v4342
        %v4367 = vpack.c.b16 %v4345, %v4344
        %v4368 = vpack.c.b16 %v4347, %v4346
        %v4369 = vpack.c.b16 %v4349, %v4348
        %v4370 = vpack.c.b16 %v4351, %v4350
        %v4371 = vpack.c.b16 %v4353, %v4352
        %v4372 = vpack.c.b16 %v4355, %v4354
        %v4373 = vpack.c.b16 %v4357, %v4356
        %v4406 = vunpack.c.l.b16 %v4278
        %v4407 = vunpack.c.l.b16 %v4279
        %v4408 = vunpack.c.l.b16 %v4280
        %v4409 = vunpack.c.l.b16 %v4281
        %v4410 = vunpack.c.l.b16 %v4282
        %v4411 = vunpack.c.l.b16 %v4283
        %v4412 = vunpack.c.l.b16 %v4284
        %v4413 = vunpack.c.l.b16 %v4285
        %v4414 = vunpack.c.l.b16 %v4286
        %v4415 = vunpack.c.l.b16 %v4287
        %v4416 = vunpack.c.l.b16 %v4288
        %v4417 = vunpack.c.l.b16 %v4289
        %v4418 = vunpack.c.l.b16 %v4290
        %v4419 = vunpack.c.l.b16 %v4291
        %v4420 = vunpack.c.l.b16 %v4292
        %v4421 = vunpack.c.l.b16 %v4293
        %v4422 = vpack.c.b16 %v4407, %v4406
        %v4423 = vpack.c.b16 %v4409, %v4408
        %v4424 = vpack.c.b16 %v4411, %v4410
        %v4425 = vpack.c.b16 %v4413, %v4412
        %v4426 = vpack.c.b16 %v4415, %v4414
        %v4427 = vpack.c.b16 %v4417, %v4416
        %v4428 = vpack.c.b16 %v4419, %v4418
        %v4429 = vpack.c.b16 %v4421, %v4420
        %4438 = vmatprep.subr.bf16.mxu0 0
        %4439 = vmatpush1.bf16.msra.mxu0 %v4422
        %4440 = vmatprep.subr.bf16.mxu0 0
        %4441 = vmatpush1.bf16.msra.mxu0 %v4423
        %4442 = vmatprep.subr.bf16.mxu0 0
        %4443 = vmatpush1.bf16.msra.mxu0 %v4424
        %4444 = vmatprep.subr.bf16.mxu0 0
        %4445 = vmatpush1.bf16.msra.mxu0 %v4425
        %4446 = vmatprep.subr.bf16.mxu0 0
        %4447 = vmatpush1.bf16.msra.mxu0 %v4426
        %4448 = vmatprep.subr.bf16.mxu0 0
        %4449 = vmatpush1.bf16.msra.mxu0 %v4427
        %4450 = vmatprep.subr.bf16.mxu0 0
        %4451 = vmatpush1.bf16.msra.mxu0 %v4428
        %4452 = vmatprep.subr.bf16.mxu0 0
        %4453 = vmatpush1.bf16.msra.mxu0 %v4429
        %4454 = vmatprep.subr.bf16.mxu0 0
        %4455 = vmatpush1.bf16.msra.mxu0 0
        %4456 = vmatprep.subr.bf16.mxu0 0
        %4457 = vmatpush1.bf16.msra.mxu0 0
        %4458 = vmatprep.subr.bf16.mxu0 0
        %4459 = vmatpush1.bf16.msra.mxu0 0
        %4460 = vmatprep.subr.bf16.mxu0 0
        %4461 = vmatpush1.bf16.msra.mxu0 0
        %4462 = vmatprep.subr.bf16.mxu0 0
        %4463 = vmatpush1.bf16.msra.mxu0 0
        %4464 = vmatprep.subr.bf16.mxu0 0
        %4465 = vmatpush1.bf16.msra.mxu0 0
        %4466 = vmatprep.subr.bf16.mxu0 0
        %4467 = vmatpush1.bf16.msra.mxu0 0
        %4468 = vmatprep.subr.bf16.mxu0 0
        %4469 = vmatpush1.bf16.msra.mxu0 0
        %4470 = vmatprep.mubr.bf16.mxu0 0
        %4471 = vmatmul.mubr.bf16.gmra.mrb[0].mxu0 %v4358
        %v4472 = vpop.f32.mrb[0].mxu0
        %v4473 = vadd.f32 0.0, %v4472
        %v4474 = vpop.f32.mrb[0].mxu0
        %v4475 = vpop.f32.mrb[0].mxu0
        %v4476 = vadd.f32 0.0, %v4475
        %v4477 = vpop.f32.mrb[0].mxu0
        %4478 = vmatprep.mubr.bf16.mxu0 0
        %4479 = vmatmul.mubr.bf16.gmra.mrb[0].mxu0 %v4359
        %v4480 = vpop.f32.mrb[0].mxu0
        %v4481 = vadd.f32 0.0, %v4480
        %v4482 = vpop.f32.mrb[0].mxu0
        %v4483 = vpop.f32.mrb[0].mxu0
        %v4484 = vadd.f32 0.0, %v4483
        %v4485 = vpop.f32.mrb[0].mxu0
        %4486 = vmatprep.mubr.bf16.mxu0 0
        %4487 = vmatmul.mubr.bf16.gmra.mrb[0].mxu0 %v4360
        %v4488 = vpop.f32.mrb[0].mxu0
        %v4489 = vadd.f32 0.0, %v4488
        %v4490 = vpop.f32.mrb[0].mxu0
        %v4491 = vpop.f32.mrb[0].mxu0
        %v4492 = vadd.f32 0.0, %v4491
        %v4493 = vpop.f32.mrb[0].mxu0
        %4494 = vmatprep.mubr.bf16.mxu0 0
        %4495 = vmatmul.mubr.bf16.gmra.mrb[0].mxu0 %v4361
        %v4496 = vpop.f32.mrb[0].mxu0
        %v4497 = vadd.f32 0.0, %v4496
        %v4498 = vpop.f32.mrb[0].mxu0
        %v4499 = vpop.f32.mrb[0].mxu0
        %v4500 = vadd.f32 0.0, %v4499
        %v4501 = vpop.f32.mrb[0].mxu0
        %4502 = vmatprep.mubr.bf16.mxu0 0
        %4503 = vmatmul.mubr.bf16.gmra.mrb[0].mxu0 %v4362
        %v4504 = vpop.f32.mrb[0].mxu0
        %v4505 = vadd.f32 0.0, %v4504
        %v4506 = vpop.f32.mrb[0].mxu0
        %v4507 = vpop.f32.mrb[0].mxu0
        %v4508 = vadd.f32 0.0, %v4507
        %v4509 = vpop.f32.mrb[0].mxu0
        %4510 = vmatprep.mubr.bf16.mxu0 0
        %4511 = vmatmul.mubr.bf16.gmra.mrb[0].mxu0 %v4363
        %v4512 = vpop.f32.mrb[0].mxu0
        %v4513 = vadd.f32 0.0, %v4512
        %v4514 = vpop.f32.mrb[0].mxu0
        %v4515 = vpop.f32.mrb[0].mxu0
        %v4516 = vadd.f32 0.0, %v4515
        %v4517 = vpop.f32.mrb[0].mxu0
        %4518 = vmatprep.mubr.bf16.mxu0 0
        %4519 = vmatmul.mubr.bf16.gmra.mrb[0].mxu0 %v4364
        %v4520 = vpop.f32.mrb[0].mxu0
        %v4521 = vadd.f32 0.0, %v4520
        %v4522 = vpop.f32.mrb[0].mxu0
        %v4523 = vpop.f32.mrb[0].mxu0
        %v4524 = vadd.f32 0.0, %v4523
        %v4525 = vpop.f32.mrb[0].mxu0
        %4526 = vmatprep.mubr.bf16.mxu0 0
        %4527 = vmatmul.mubr.bf16.gmra.mrb[0].mxu0 %v4365
        %v4528 = vpop.f32.mrb[0].mxu0
        %v4529 = vadd.f32 0.0, %v4528
        %v4530 = vpop.f32.mrb[0].mxu0
        %v4531 = vpop.f32.mrb[0].mxu0
        %v4532 = vadd.f32 0.0, %v4531
        %v4533 = vpop.f32.mrb[0].mxu0
        %4534 = vmatprep.mubr.bf16.mxu0 0
        %4535 = vmatmul.mubr.bf16.gmra.mrb[0].mxu0 %v4366
        %v4536 = vpop.f32.mrb[0].mxu0
        %v4537 = vadd.f32 0.0, %v4536
        %v4538 = vpop.f32.mrb[0].mxu0
        %v4539 = vpop.f32.mrb[0].mxu0
        %v4540 = vadd.f32 0.0, %v4539
        %v4541 = vpop.f32.mrb[0].mxu0
        %4542 = vmatprep.mubr.bf16.mxu0 0
        %4543 = vmatmul.mubr.bf16.gmra.mrb[0].mxu0 %v4367
        %v4544 = vpop.f32.mrb[0].mxu0
        %v4545 = vadd.f32 0.0, %v4544
        %v4546 = vpop.f32.mrb[0].mxu0
        %v4547 = vpop.f32.mrb[0].mxu0
        %v4548 = vadd.f32 0.0, %v4547
        %v4549 = vpop.f32.mrb[0].mxu0
        %4550 = vmatprep.mubr.bf16.mxu0 0
        %4551 = vmatmul.mubr.bf16.gmra.mrb[0].mxu0 %v4368
        %v4552 = vpop.f32.mrb[0].mxu0
        %v4553 = vadd.f32 0.0, %v4552
        %v4554 = vpop.f32.mrb[0].mxu0
        %v4555 = vpop.f32.mrb[0].mxu0
        %v4556 = vadd.f32 0.0, %v4555
        %v4557 = vpop.f32.mrb[0].mxu0
        %4558 = vmatprep.mubr.bf16.mxu0 0
        %4559 = vmatmul.mubr.bf16.gmra.mrb[0].mxu0 %v4369
        %v4560 = vpop.f32.mrb[0].mxu0
        %v4561 = vadd.f32 0.0, %v4560
        %v4562 = vpop.f32.mrb[0].mxu0
        %v4563 = vpop.f32.mrb[0].mxu0
        %v4564 = vadd.f32 0.0, %v4563
        %v4565 = vpop.f32.mrb[0].mxu0
        %4566 = vmatprep.mubr.bf16.mxu0 0
        %4567 = vmatmul.mubr.bf16.gmra.mrb[0].mxu0 %v4370
        %v4568 = vpop.f32.mrb[0].mxu0
        %v4569 = vadd.f32 0.0, %v4568
        %v4570 = vpop.f32.mrb[0].mxu0
        %v4571 = vpop.f32.mrb[0].mxu0
        %v4572 = vadd.f32 0.0, %v4571
        %v4573 = vpop.f32.mrb[0].mxu0
        %4574 = vmatprep.mubr.bf16.mxu0 0
        %4575 = vmatmul.mubr.bf16.gmra.mrb[0].mxu0 %v4371
        %v4576 = vpop.f32.mrb[0].mxu0
        %v4577 = vadd.f32 0.0, %v4576
        %v4578 = vpop.f32.mrb[0].mxu0
        %v4579 = vpop.f32.mrb[0].mxu0
        %v4580 = vadd.f32 0.0, %v4579
        %v4581 = vpop.f32.mrb[0].mxu0
        %4582 = vmatprep.mubr.bf16.mxu0 0
        %4583 = vmatmul.mubr.bf16.gmra.mrb[0].mxu0 %v4372
        %v4584 = vpop.f32.mrb[0].mxu0
        %v4585 = vadd.f32 0.0, %v4584
        %v4586 = vpop.f32.mrb[0].mxu0
        %v4587 = vpop.f32.mrb[0].mxu0
        %v4588 = vadd.f32 0.0, %v4587
        %v4589 = vpop.f32.mrb[0].mxu0
        %4590 = vmatprep.mubr.bf16.mxu0 0
        %4591 = vmatmul.mubr.bf16.gmra.mrb[0].mxu0 %v4373
        %v4592 = vpop.f32.mrb[0].mxu0
        %v4593 = vadd.f32 0.0, %v4592
        %v4594 = vpop.f32.mrb[0].mxu0
        %v4595 = vpop.f32.mrb[0].mxu0
        %v4596 = vadd.f32 0.0, %v4595
        %v4597 = vpop.f32.mrb[0].mxu0
        %4598 = vdwg.mxu0
        %v4599 = vadd.f32 %v4212, %v4473
        %v4600 = vadd.f32 %v4213, %v4476
        %v4601 = vadd.f32 %v4214, %v4481
        %v4602 = vadd.f32 %v4215, %v4484
        %v4603 = vadd.f32 %v4216, %v4489
        %v4604 = vadd.f32 %v4217, %v4492
        %v4605 = vadd.f32 %v4218, %v4497
        %v4606 = vadd.f32 %v4219, %v4500
        %v4607 = vadd.f32 %v4220, %v4505
        %v4608 = vadd.f32 %v4221, %v4508
        %v4609 = vadd.f32 %v4222, %v4513
        %v4610 = vadd.f32 %v4223, %v4516
        %v4611 = vadd.f32 %v4224, %v4521
        %v4612 = vadd.f32 %v4225, %v4524
        %v4613 = vadd.f32 %v4226, %v4529
        %v4614 = vadd.f32 %v4227, %v4532
        %v4615 = vadd.f32 %v4228, %v4537
        %v4616 = vadd.f32 %v4229, %v4540
        %v4617 = vadd.f32 %v4230, %v4545
        %v4618 = vadd.f32 %v4231, %v4548
        %v4619 = vadd.f32 %v4232, %v4553
        %v4620 = vadd.f32 %v4233, %v4556
        %v4621 = vadd.f32 %v4234, %v4561
        %v4622 = vadd.f32 %v4235, %v4564
        %v4623 = vadd.f32 %v4236, %v4569
        %v4624 = vadd.f32 %v4237, %v4572
        %v4625 = vadd.f32 %v4238, %v4577
        %v4626 = vadd.f32 %v4239, %v4580
        %v4627 = vadd.f32 %v4240, %v4585
        %v4628 = vadd.f32 %v4241, %v4588
        %v4629 = vadd.f32 %v4242, %v4593
        %v4630 = vadd.f32 %v4243, %v4596
        %v4631 = vld [vmem:[%s4244] sm:$0xf]
        %v4632 = vld [vmem:[%s4244 + $0x4] sm:$0xf]
        %v4633 = vld [vmem:[%s4244 + $0x8] sm:$0x1]
        %v4634 = vld [vmem:[%s4244 + $0xc] sm:$0xf]
        %v4635 = vld [vmem:[%s4244 + $0x10] sm:$0xf]
        %v4636 = vld [vmem:[%s4244 + $0x14] sm:$0x1]
        %v4637 = vld [vmem:[%s4244 + $0x18] sm:$0xf]
        %v4638 = vld [vmem:[%s4244 + $0x1c] sm:$0xf]
        %v4639 = vld [vmem:[%s4244 + $0x20] sm:$0x1]
        %v4640 = vld [vmem:[%s4244 + $0x24] sm:$0xf]
        %v4641 = vld [vmem:[%s4244 + $0x28] sm:$0xf]
        %v4642 = vld [vmem:[%s4244 + $0x2c] sm:$0x1]
        %v4643 = vld [vmem:[%s4244 + $0x30] sm:$0xf]
        %v4644 = vld [vmem:[%s4244 + $0x34] sm:$0xf]
        %v4645 = vld [vmem:[%s4244 + $0x38] sm:$0x1]
        %v4646 = vld [vmem:[%s4244 + $0x3c] sm:$0xf]
        %v4647 = vld [vmem:[%s4244 + $0x40] sm:$0xf]
        %v4648 = vld [vmem:[%s4244 + $0x44] sm:$0x1]
        %v4649 = vld [vmem:[%s4244 + $0x48] sm:$0xf]
        %v4650 = vld [vmem:[%s4244 + $0x4c] sm:$0xf]
        %v4651 = vld [vmem:[%s4244 + $0x50] sm:$0x1]
        %v4652 = vld [vmem:[%s4244 + $0x54] sm:$0xf]
        %v4653 = vld [vmem:[%s4244 + $0x58] sm:$0xf]
        %v4654 = vld [vmem:[%s4244 + $0x5c] sm:$0x1]
        %v4655 = vld [vmem:[%s4244 + $0x60] sm:$0xf]
        %v4656 = vld [vmem:[%s4244 + $0x64] sm:$0xf]
        %v4657 = vld [vmem:[%s4244 + $0x68] sm:$0x1]
        %v4658 = vld [vmem:[%s4244 + $0x6c] sm:$0xf]
        %v4659 = vld [vmem:[%s4244 + $0x70] sm:$0xf]
        %v4660 = vld [vmem:[%s4244 + $0x74] sm:$0x1]
        %v4661 = vld [vmem:[%s4244 + $0x78] sm:$0xf]
        %v4662 = vld [vmem:[%s4244 + $0x7c] sm:$0xf]
        %v4663 = vld [vmem:[%s4244 + $0x80] sm:$0x1]
        %v4664 = vld [vmem:[%s4244 + $0x84] sm:$0xf]
        %v4665 = vld [vmem:[%s4244 + $0x88] sm:$0xf]
        %v4666 = vld [vmem:[%s4244 + $0x8c] sm:$0x1]
        %v4667 = vld [vmem:[%s4244 + $0x90] sm:$0xf]
        %v4668 = vld [vmem:[%s4244 + $0x94] sm:$0xf]
        %v4669 = vld [vmem:[%s4244 + $0x98] sm:$0x1]
        %v4670 = vld [vmem:[%s4244 + $0x9c] sm:$0xf]
        %v4671 = vld [vmem:[%s4244 + $0xa0] sm:$0xf]
        %v4672 = vld [vmem:[%s4244 + $0xa4] sm:$0x1]
        %v4673 = vld [vmem:[%s4244 + $0xa8] sm:$0xf]
        %v4674 = vld [vmem:[%s4244 + $0xac] sm:$0xf]
        %v4675 = vld [vmem:[%s4244 + $0xb0] sm:$0x1]
        %v4676 = vld [vmem:[%s4244 + $0xb4] sm:$0xf]
        %v4677 = vld [vmem:[%s4244 + $0xb8] sm:$0xf]
        %v4678 = vld [vmem:[%s4244 + $0xbc] sm:$0x1]
        %v4680 = vshrl.u32 %v4631, 16
        %v4682 = vrot.slane %v4680, 4
        %v4683 = vshll.u32 %v4631, 16
        %v4685 = vrot.slane %v4683, 5
        %v4686 = vor.u32 %v4682, %v4685
        %v4687 = vrot.slane %v4686, 4
        %v4689 = vshll.u32 %v4632, 16
        %v4691 = vrot.slane %v4689, 5
        %v4692 = vsel %vm1141, %v4687, %v4691
        %v4693 = vshrl.u32 %v4632, 16
        %v4695 = vrot.slane %v4693, 4
        %v4696 = vor.u32 %v4695, %v4691
        %v4697 = vrot.slane %v4696, 4
        %v4699 = vshll.u32 %v4633, 16
        %v4701 = vrot.slane %v4699, 5
        %v4702 = vsel %vm1141, %v4697, %v4701
        %v4704 = vshrl.u32 %v4634, 16
        %v4706 = vrot.slane %v4704, 4
        %v4707 = vshll.u32 %v4634, 16
        %v4709 = vrot.slane %v4707, 5
        %v4710 = vor.u32 %v4706, %v4709
        %v4711 = vrot.slane %v4710, 4
        %v4713 = vshll.u32 %v4635, 16
        %v4715 = vrot.slane %v4713, 5
        %v4716 = vsel %vm1141, %v4711, %v4715
        %v4717 = vshrl.u32 %v4635, 16
        %v4719 = vrot.slane %v4717, 4
        %v4720 = vor.u32 %v4719, %v4715
        %v4721 = vrot.slane %v4720, 4
        %v4723 = vshll.u32 %v4636, 16
        %v4725 = vrot.slane %v4723, 5
        %v4726 = vsel %vm1141, %v4721, %v4725
        %v4728 = vshrl.u32 %v4637, 16
        %v4730 = vrot.slane %v4728, 4
        %v4731 = vshll.u32 %v4637, 16
        %v4733 = vrot.slane %v4731, 5
        %v4734 = vor.u32 %v4730, %v4733
        %v4735 = vrot.slane %v4734, 4
        %v4737 = vshll.u32 %v4638, 16
        %v4739 = vrot.slane %v4737, 5
        %v4740 = vsel %vm1141, %v4735, %v4739
        %v4741 = vshrl.u32 %v4638, 16
        %v4743 = vrot.slane %v4741, 4
        %v4744 = vor.u32 %v4743, %v4739
        %v4745 = vrot.slane %v4744, 4
        %v4747 = vshll.u32 %v4639, 16
        %v4749 = vrot.slane %v4747, 5
        %v4750 = vsel %vm1141, %v4745, %v4749
        %v4752 = vshrl.u32 %v4640, 16
        %v4754 = vrot.slane %v4752, 4
        %v4755 = vshll.u32 %v4640, 16
        %v4757 = vrot.slane %v4755, 5
        %v4758 = vor.u32 %v4754, %v4757
        %v4759 = vrot.slane %v4758, 4
        %v4761 = vshll.u32 %v4641, 16
        %v4763 = vrot.slane %v4761, 5
        %v4764 = vsel %vm1141, %v4759, %v4763
        %v4765 = vshrl.u32 %v4641, 16
        %v4767 = vrot.slane %v4765, 4
        %v4768 = vor.u32 %v4767, %v4763
        %v4769 = vrot.slane %v4768, 4
        %v4771 = vshll.u32 %v4642, 16
        %v4773 = vrot.slane %v4771, 5
        %v4774 = vsel %vm1141, %v4769, %v4773
        %v4776 = vshrl.u32 %v4643, 16
        %v4778 = vrot.slane %v4776, 4
        %v4779 = vshll.u32 %v4643, 16
        %v4781 = vrot.slane %v4779, 5
        %v4782 = vor.u32 %v4778, %v4781
        %v4783 = vrot.slane %v4782, 4
        %v4785 = vshll.u32 %v4644, 16
        %v4787 = vrot.slane %v4785, 5
        %v4788 = vsel %vm1141, %v4783, %v4787
        %v4789 = vshrl.u32 %v4644, 16
        %v4791 = vrot.slane %v4789, 4
        %v4792 = vor.u32 %v4791, %v4787
        %v4793 = vrot.slane %v4792, 4
        %v4795 = vshll.u32 %v4645, 16
        %v4797 = vrot.slane %v4795, 5
        %v4798 = vsel %vm1141, %v4793, %v4797
        %v4800 = vshrl.u32 %v4646, 16
        %v4802 = vrot.slane %v4800, 4
        %v4803 = vshll.u32 %v4646, 16
        %v4805 = vrot.slane %v4803, 5
        %v4806 = vor.u32 %v4802, %v4805
        %v4807 = vrot.slane %v4806, 4
        %v4809 = vshll.u32 %v4647, 16
        %v4811 = vrot.slane %v4809, 5
        %v4812 = vsel %vm1141, %v4807, %v4811
        %v4813 = vshrl.u32 %v4647, 16
        %v4815 = vrot.slane %v4813, 4
        %v4816 = vor.u32 %v4815, %v4811
        %v4817 = vrot.slane %v4816, 4
        %v4819 = vshll.u32 %v4648, 16
        %v4821 = vrot.slane %v4819, 5
        %v4822 = vsel %vm1141, %v4817, %v4821
        %v4824 = vshrl.u32 %v4649, 16
        %v4826 = vrot.slane %v4824, 4
        %v4827 = vshll.u32 %v4649, 16
        %v4829 = vrot.slane %v4827, 5
        %v4830 = vor.u32 %v4826, %v4829
        %v4831 = vrot.slane %v4830, 4
        %v4833 = vshll.u32 %v4650, 16
        %v4835 = vrot.slane %v4833, 5
        %v4836 = vsel %vm1141, %v4831, %v4835
        %v4837 = vshrl.u32 %v4650, 16
        %v4839 = vrot.slane %v4837, 4
        %v4840 = vor.u32 %v4839, %v4835
        %v4841 = vrot.slane %v4840, 4
        %v4843 = vshll.u32 %v4651, 16
        %v4845 = vrot.slane %v4843, 5
        %v4846 = vsel %vm1141, %v4841, %v4845
        %v4848 = vshrl.u32 %v4652, 16
        %v4850 = vrot.slane %v4848, 4
        %v4851 = vshll.u32 %v4652, 16
        %v4853 = vrot.slane %v4851, 5
        %v4854 = vor.u32 %v4850, %v4853
        %v4855 = vrot.slane %v4854, 4
        %v4857 = vshll.u32 %v4653, 16
        %v4859 = vrot.slane %v4857, 5
        %v4860 = vsel %vm1141, %v4855, %v4859
        %v4861 = vshrl.u32 %v4653, 16
        %v4863 = vrot.slane %v4861, 4
        %v4864 = vor.u32 %v4863, %v4859
        %v4865 = vrot.slane %v4864, 4
        %v4867 = vshll.u32 %v4654, 16
        %v4869 = vrot.slane %v4867, 5
        %v4870 = vsel %vm1141, %v4865, %v4869
        %v4872 = vshrl.u32 %v4655, 16
        %v4874 = vrot.slane %v4872, 4
        %v4875 = vshll.u32 %v4655, 16
        %v4877 = vrot.slane %v4875, 5
        %v4878 = vor.u32 %v4874, %v4877
        %v4879 = vrot.slane %v4878, 4
        %v4881 = vshll.u32 %v4656, 16
        %v4883 = vrot.slane %v4881, 5
        %v4884 = vsel %vm1141, %v4879, %v4883
        %v4885 = vshrl.u32 %v4656, 16
        %v4887 = vrot.slane %v4885, 4
        %v4888 = vor.u32 %v4887, %v4883
        %v4889 = vrot.slane %v4888, 4
        %v4891 = vshll.u32 %v4657, 16
        %v4893 = vrot.slane %v4891, 5
        %v4894 = vsel %vm1141, %v4889, %v4893
        %v4896 = vshrl.u32 %v4658, 16
        %v4898 = vrot.slane %v4896, 4
        %v4899 = vshll.u32 %v4658, 16
        %v4901 = vrot.slane %v4899, 5
        %v4902 = vor.u32 %v4898, %v4901
        %v4903 = vrot.slane %v4902, 4
        %v4905 = vshll.u32 %v4659, 16
        %v4907 = vrot.slane %v4905, 5
        %v4908 = vsel %vm1141, %v4903, %v4907
        %v4909 = vshrl.u32 %v4659, 16
        %v4911 = vrot.slane %v4909, 4
        %v4912 = vor.u32 %v4911, %v4907
        %v4913 = vrot.slane %v4912, 4
        %v4915 = vshll.u32 %v4660, 16
        %v4917 = vrot.slane %v4915, 5
        %v4918 = vsel %vm1141, %v4913, %v4917
        %v4920 = vshrl.u32 %v4661, 16
        %v4922 = vrot.slane %v4920, 4
        %v4923 = vshll.u32 %v4661, 16
        %v4925 = vrot.slane %v4923, 5
        %v4926 = vor.u32 %v4922, %v4925
        %v4927 = vrot.slane %v4926, 4
        %v4929 = vshll.u32 %v4662, 16
        %v4931 = vrot.slane %v4929, 5
        %v4932 = vsel %vm1141, %v4927, %v4931
        %v4933 = vshrl.u32 %v4662, 16
        %v4935 = vrot.slane %v4933, 4
        %v4936 = vor.u32 %v4935, %v4931
        %v4937 = vrot.slane %v4936, 4
        %v4939 = vshll.u32 %v4663, 16
        %v4941 = vrot.slane %v4939, 5
        %v4942 = vsel %vm1141, %v4937, %v4941
        %v4944 = vshrl.u32 %v4664, 16
        %v4946 = vrot.slane %v4944, 4
        %v4947 = vshll.u32 %v4664, 16
        %v4949 = vrot.slane %v4947, 5
        %v4950 = vor.u32 %v4946, %v4949
        %v4951 = vrot.slane %v4950, 4
        %v4953 = vshll.u32 %v4665, 16
        %v4955 = vrot.slane %v4953, 5
        %v4956 = vsel %vm1141, %v4951, %v4955
        %v4957 = vshrl.u32 %v4665, 16
        %v4959 = vrot.slane %v4957, 4
        %v4960 = vor.u32 %v4959, %v4955
        %v4961 = vrot.slane %v4960, 4
        %v4963 = vshll.u32 %v4666, 16
        %v4965 = vrot.slane %v4963, 5
        %v4966 = vsel %vm1141, %v4961, %v4965
        %v4968 = vshrl.u32 %v4667, 16
        %v4970 = vrot.slane %v4968, 4
        %v4971 = vshll.u32 %v4667, 16
        %v4973 = vrot.slane %v4971, 5
        %v4974 = vor.u32 %v4970, %v4973
        %v4975 = vrot.slane %v4974, 4
        %v4977 = vshll.u32 %v4668, 16
        %v4979 = vrot.slane %v4977, 5
        %v4980 = vsel %vm1141, %v4975, %v4979
        %v4981 = vshrl.u32 %v4668, 16
        %v4983 = vrot.slane %v4981, 4
        %v4984 = vor.u32 %v4983, %v4979
        %v4985 = vrot.slane %v4984, 4
        %v4987 = vshll.u32 %v4669, 16
        %v4989 = vrot.slane %v4987, 5
        %v4990 = vsel %vm1141, %v4985, %v4989
        %v4992 = vshrl.u32 %v4670, 16
        %v4994 = vrot.slane %v4992, 4
        %v4995 = vshll.u32 %v4670, 16
        %v4997 = vrot.slane %v4995, 5
        %v4998 = vor.u32 %v4994, %v4997
        %v4999 = vrot.slane %v4998, 4
        %v5001 = vshll.u32 %v4671, 16
        %v5003 = vrot.slane %v5001, 5
        %v5004 = vsel %vm1141, %v4999, %v5003
        %v5005 = vshrl.u32 %v4671, 16
        %v5007 = vrot.slane %v5005, 4
        %v5008 = vor.u32 %v5007, %v5003
        %v5009 = vrot.slane %v5008, 4
        %v5011 = vshll.u32 %v4672, 16
        %v5013 = vrot.slane %v5011, 5
        %v5014 = vsel %vm1141, %v5009, %v5013
        %v5016 = vshrl.u32 %v4673, 16
        %v5018 = vrot.slane %v5016, 4
        %v5019 = vshll.u32 %v4673, 16
        %v5021 = vrot.slane %v5019, 5
        %v5022 = vor.u32 %v5018, %v5021
        %v5023 = vrot.slane %v5022, 4
        %v5025 = vshll.u32 %v4674, 16
        %v5027 = vrot.slane %v5025, 5
        %v5028 = vsel %vm1141, %v5023, %v5027
        %v5029 = vshrl.u32 %v4674, 16
        %v5031 = vrot.slane %v5029, 4
        %v5032 = vor.u32 %v5031, %v5027
        %v5033 = vrot.slane %v5032, 4
        %v5035 = vshll.u32 %v4675, 16
        %v5037 = vrot.slane %v5035, 5
        %v5038 = vsel %vm1141, %v5033, %v5037
        %v5040 = vshrl.u32 %v4676, 16
        %v5042 = vrot.slane %v5040, 4
        %v5043 = vshll.u32 %v4676, 16
        %v5045 = vrot.slane %v5043, 5
        %v5046 = vor.u32 %v5042, %v5045
        %v5047 = vrot.slane %v5046, 4
        %v5049 = vshll.u32 %v4677, 16
        %v5051 = vrot.slane %v5049, 5
        %v5052 = vsel %vm1141, %v5047, %v5051
        %v5053 = vshrl.u32 %v4677, 16
        %v5055 = vrot.slane %v5053, 4
        %v5056 = vor.u32 %v5055, %v5051
        %v5057 = vrot.slane %v5056, 4
        %v5059 = vshll.u32 %v4678, 16
        %v5061 = vrot.slane %v5059, 5
        %v5062 = vsel %vm1141, %v5057, %v5061
        %s5063 = scalar_lea.vmem %s1, 448
        %v5064 = vld [vmem:[%s5063] sm:$0xf]
        %v5065 = vld [vmem:[%s5063 + $0x4] sm:$0xf]
        %v5066 = vld [vmem:[%s5063 + $0x8] sm:$0xf]
        %v5067 = vld [vmem:[%s5063 + $0xc] sm:$0xf]
        %v5068 = vld [vmem:[%s5063 + $0x10] sm:$0xf]
        %v5069 = vld [vmem:[%s5063 + $0x14] sm:$0xf]
        %v5070 = vld [vmem:[%s5063 + $0x18] sm:$0xf]
        %v5071 = vld [vmem:[%s5063 + $0x1c] sm:$0xf]
        %v5072 = vld [vmem:[%s5063 + $0x20] sm:$0xf]
        %v5073 = vld [vmem:[%s5063 + $0x24] sm:$0xf]
        %v5074 = vld [vmem:[%s5063 + $0x28] sm:$0xf]
        %v5075 = vld [vmem:[%s5063 + $0x2c] sm:$0xf]
        %v5076 = vld [vmem:[%s5063 + $0x30] sm:$0xf]
        %v5077 = vld [vmem:[%s5063 + $0x34] sm:$0xf]
        %v5078 = vld [vmem:[%s5063 + $0x38] sm:$0xf]
        %v5079 = vld [vmem:[%s5063 + $0x3c] sm:$0xf]
        %v5080 = vunpack.c.l.b16 %v4692
        %v5081 = vunpack.c.l.b16 %v4702
        %v5082 = vunpack.c.l.b16 %v4716
        %v5083 = vunpack.c.l.b16 %v4726
        %v5084 = vunpack.c.l.b16 %v4740
        %v5085 = vunpack.c.l.b16 %v4750
        %v5086 = vunpack.c.l.b16 %v4764
        %v5087 = vunpack.c.l.b16 %v4774
        %v5088 = vunpack.c.l.b16 %v4788
        %v5089 = vunpack.c.l.b16 %v4798
        %v5090 = vunpack.c.l.b16 %v4812
        %v5091 = vunpack.c.l.b16 %v4822
        %v5092 = vunpack.c.l.b16 %v4836
        %v5093 = vunpack.c.l.b16 %v4846
        %v5094 = vunpack.c.l.b16 %v4860
        %v5095 = vunpack.c.l.b16 %v4870
        %v5096 = vunpack.c.l.b16 %v4884
        %v5097 = vunpack.c.l.b16 %v4894
        %v5098 = vunpack.c.l.b16 %v4908
        %v5099 = vunpack.c.l.b16 %v4918
        %v5100 = vunpack.c.l.b16 %v4932
        %v5101 = vunpack.c.l.b16 %v4942
        %v5102 = vunpack.c.l.b16 %v4956
        %v5103 = vunpack.c.l.b16 %v4966
        %v5104 = vunpack.c.l.b16 %v4980
        %v5105 = vunpack.c.l.b16 %v4990
        %v5106 = vunpack.c.l.b16 %v5004
        %v5107 = vunpack.c.l.b16 %v5014
        %v5108 = vunpack.c.l.b16 %v5028
        %v5109 = vunpack.c.l.b16 %v5038
        %v5110 = vunpack.c.l.b16 %v5052
        %v5111 = vunpack.c.l.b16 %v5062
        %v5112 = vpack.c.b16 %v5081, %v5080
        %v5113 = vpack.c.b16 %v5083, %v5082
        %v5114 = vpack.c.b16 %v5085, %v5084
        %v5115 = vpack.c.b16 %v5087, %v5086
        %v5116 = vpack.c.b16 %v5089, %v5088
        %v5117 = vpack.c.b16 %v5091, %v5090
        %v5118 = vpack.c.b16 %v5093, %v5092
        %v5119 = vpack.c.b16 %v5095, %v5094
        %v5120 = vpack.c.b16 %v5097, %v5096
        %v5121 = vpack.c.b16 %v5099, %v5098
        %v5122 = vpack.c.b16 %v5101, %v5100
        %v5123 = vpack.c.b16 %v5103, %v5102
        %v5124 = vpack.c.b16 %v5105, %v5104
        %v5125 = vpack.c.b16 %v5107, %v5106
        %v5126 = vpack.c.b16 %v5109, %v5108
        %v5127 = vpack.c.b16 %v5111, %v5110
        %v5160 = vunpack.c.l.b16 %v5064
        %v5161 = vunpack.c.l.b16 %v5065
        %v5162 = vunpack.c.l.b16 %v5066
        %v5163 = vunpack.c.l.b16 %v5067
        %v5164 = vunpack.c.l.b16 %v5068
        %v5165 = vunpack.c.l.b16 %v5069
        %v5166 = vunpack.c.l.b16 %v5070
        %v5167 = vunpack.c.l.b16 %v5071
        %v5168 = vunpack.c.l.b16 %v5072
        %v5169 = vunpack.c.l.b16 %v5073
        %v5170 = vunpack.c.l.b16 %v5074
        %v5171 = vunpack.c.l.b16 %v5075
        %v5172 = vunpack.c.l.b16 %v5076
        %v5173 = vunpack.c.l.b16 %v5077
        %v5174 = vunpack.c.l.b16 %v5078
        %v5175 = vunpack.c.l.b16 %v5079
        %v5176 = vpack.c.b16 %v5161, %v5160
        %v5177 = vpack.c.b16 %v5163, %v5162
        %v5178 = vpack.c.b16 %v5165, %v5164
        %v5179 = vpack.c.b16 %v5167, %v5166
        %v5180 = vpack.c.b16 %v5169, %v5168
        %v5181 = vpack.c.b16 %v5171, %v5170
        %v5182 = vpack.c.b16 %v5173, %v5172
        %v5183 = vpack.c.b16 %v5175, %v5174
        %5192 = vmatprep.subr.bf16.mxu0 0
        %5193 = vmatpush1.bf16.msra.mxu0 %v5176
        %5194 = vmatprep.subr.bf16.mxu0 0
        %5195 = vmatpush1.bf16.msra.mxu0 %v5177
        %5196 = vmatprep.subr.bf16.mxu0 0
        %5197 = vmatpush1.bf16.msra.mxu0 %v5178
        %5198 = vmatprep.subr.bf16.mxu0 0
        %5199 = vmatpush1.bf16.msra.mxu0 %v5179
        %5200 = vmatprep.subr.bf16.mxu0 0
        %5201 = vmatpush1.bf16.msra.mxu0 %v5180
        %5202 = vmatprep.subr.bf16.mxu0 0
        %5203 = vmatpush1.bf16.msra.mxu0 %v5181
        %5204 = vmatprep.subr.bf16.mxu0 0
        %5205 = vmatpush1.bf16.msra.mxu0 %v5182
        %5206 = vmatprep.subr.bf16.mxu0 0
        %5207 = vmatpush1.bf16.msra.mxu0 %v5183
        %5208 = vmatprep.subr.bf16.mxu0 0
        %5209 = vmatpush1.bf16.msra.mxu0 0
        %5210 = vmatprep.subr.bf16.mxu0 0
        %5211 = vmatpush1.bf16.msra.mxu0 0
        %5212 = vmatprep.subr.bf16.mxu0 0
        %5213 = vmatpush1.bf16.msra.mxu0 0
        %5214 = vmatprep.subr.bf16.mxu0 0
        %5215 = vmatpush1.bf16.msra.mxu0 0
        %5216 = vmatprep.subr.bf16.mxu0 0
        %5217 = vmatpush1.bf16.msra.mxu0 0
        %5218 = vmatprep.subr.bf16.mxu0 0
        %5219 = vmatpush1.bf16.msra.mxu0 0
        %5220 = vmatprep.subr.bf16.mxu0 0
        %5221 = vmatpush1.bf16.msra.mxu0 0
        %5222 = vmatprep.subr.bf16.mxu0 0
        %5223 = vmatpush1.bf16.msra.mxu0 0
        %5224 = vmatprep.mubr.bf16.mxu0 0
        %5225 = vmatmul.mubr.bf16.gmra.mrb[0].mxu0 %v5112
        %v5226 = vpop.f32.mrb[0].mxu0
        %v5227 = vadd.f32 0.0, %v5226
        %v5228 = vpop.f32.mrb[0].mxu0
        %v5229 = vpop.f32.mrb[0].mxu0
        %v5230 = vadd.f32 0.0, %v5229
        %v5231 = vpop.f32.mrb[0].mxu0
        %5232 = vmatprep.mubr.bf16.mxu0 0
        %5233 = vmatmul.mubr.bf16.gmra.mrb[0].mxu0 %v5113
        %v5234 = vpop.f32.mrb[0].mxu0
        %v5235 = vadd.f32 0.0, %v5234
        %v5236 = vpop.f32.mrb[0].mxu0
        %v5237 = vpop.f32.mrb[0].mxu0
        %v5238 = vadd.f32 0.0, %v5237
        %v5239 = vpop.f32.mrb[0].mxu0
        %5240 = vmatprep.mubr.bf16.mxu0 0
        %5241 = vmatmul.mubr.bf16.gmra.mrb[0].mxu0 %v5114
        %v5242 = vpop.f32.mrb[0].mxu0
        %v5243 = vadd.f32 0.0, %v5242
        %v5244 = vpop.f32.mrb[0].mxu0
        %v5245 = vpop.f32.mrb[0].mxu0
        %v5246 = vadd.f32 0.0, %v5245
        %v5247 = vpop.f32.mrb[0].mxu0
        %5248 = vmatprep.mubr.bf16.mxu0 0
        %5249 = vmatmul.mubr.bf16.gmra.mrb[0].mxu0 %v5115
        %v5250 = vpop.f32.mrb[0].mxu0
        %v5251 = vadd.f32 0.0, %v5250
        %v5252 = vpop.f32.mrb[0].mxu0
        %v5253 = vpop.f32.mrb[0].mxu0
        %v5254 = vadd.f32 0.0, %v5253
        %v5255 = vpop.f32.mrb[0].mxu0
        %5256 = vmatprep.mubr.bf16.mxu0 0
        %5257 = vmatmul.mubr.bf16.gmra.mrb[0].mxu0 %v5116
        %v5258 = vpop.f32.mrb[0].mxu0
        %v5259 = vadd.f32 0.0, %v5258
        %v5260 = vpop.f32.mrb[0].mxu0
        %v5261 = vpop.f32.mrb[0].mxu0
        %v5262 = vadd.f32 0.0, %v5261
        %v5263 = vpop.f32.mrb[0].mxu0
        %5264 = vmatprep.mubr.bf16.mxu0 0
        %5265 = vmatmul.mubr.bf16.gmra.mrb[0].mxu0 %v5117
        %v5266 = vpop.f32.mrb[0].mxu0
        %v5267 = vadd.f32 0.0, %v5266
        %v5268 = vpop.f32.mrb[0].mxu0
        %v5269 = vpop.f32.mrb[0].mxu0
        %v5270 = vadd.f32 0.0, %v5269
        %v5271 = vpop.f32.mrb[0].mxu0
        %5272 = vmatprep.mubr.bf16.mxu0 0
        %5273 = vmatmul.mubr.bf16.gmra.mrb[0].mxu0 %v5118
        %v5274 = vpop.f32.mrb[0].mxu0
        %v5275 = vadd.f32 0.0, %v5274
        %v5276 = vpop.f32.mrb[0].mxu0
        %v5277 = vpop.f32.mrb[0].mxu0
        %v5278 = vadd.f32 0.0, %v5277
        %v5279 = vpop.f32.mrb[0].mxu0
        %5280 = vmatprep.mubr.bf16.mxu0 0
        %5281 = vmatmul.mubr.bf16.gmra.mrb[0].mxu0 %v5119
        %v5282 = vpop.f32.mrb[0].mxu0
        %v5283 = vadd.f32 0.0, %v5282
        %v5284 = vpop.f32.mrb[0].mxu0
        %v5285 = vpop.f32.mrb[0].mxu0
        %v5286 = vadd.f32 0.0, %v5285
        %v5287 = vpop.f32.mrb[0].mxu0
        %5288 = vmatprep.mubr.bf16.mxu0 0
        %5289 = vmatmul.mubr.bf16.gmra.mrb[0].mxu0 %v5120
        %v5290 = vpop.f32.mrb[0].mxu0
        %v5291 = vadd.f32 0.0, %v5290
        %v5292 = vpop.f32.mrb[0].mxu0
        %v5293 = vpop.f32.mrb[0].mxu0
        %v5294 = vadd.f32 0.0, %v5293
        %v5295 = vpop.f32.mrb[0].mxu0
        %5296 = vmatprep.mubr.bf16.mxu0 0
        %5297 = vmatmul.mubr.bf16.gmra.mrb[0].mxu0 %v5121
        %v5298 = vpop.f32.mrb[0].mxu0
        %v5299 = vadd.f32 0.0, %v5298
        %v5300 = vpop.f32.mrb[0].mxu0
        %v5301 = vpop.f32.mrb[0].mxu0
        %v5302 = vadd.f32 0.0, %v5301
        %v5303 = vpop.f32.mrb[0].mxu0
        %5304 = vmatprep.mubr.bf16.mxu0 0
        %5305 = vmatmul.mubr.bf16.gmra.mrb[0].mxu0 %v5122
        %v5306 = vpop.f32.mrb[0].mxu0
        %v5307 = vadd.f32 0.0, %v5306
        %v5308 = vpop.f32.mrb[0].mxu0
        %v5309 = vpop.f32.mrb[0].mxu0
        %v5310 = vadd.f32 0.0, %v5309
        %v5311 = vpop.f32.mrb[0].mxu0
        %5312 = vmatprep.mubr.bf16.mxu0 0
        %5313 = vmatmul.mubr.bf16.gmra.mrb[0].mxu0 %v5123
        %v5314 = vpop.f32.mrb[0].mxu0
        %v5315 = vadd.f32 0.0, %v5314
        %v5316 = vpop.f32.mrb[0].mxu0
        %v5317 = vpop.f32.mrb[0].mxu0
        %v5318 = vadd.f32 0.0, %v5317
        %v5319 = vpop.f32.mrb[0].mxu0
        %5320 = vmatprep.mubr.bf16.mxu0 0
        %5321 = vmatmul.mubr.bf16.gmra.mrb[0].mxu0 %v5124
        %v5322 = vpop.f32.mrb[0].mxu0
        %v5323 = vadd.f32 0.0, %v5322
        %v5324 = vpop.f32.mrb[0].mxu0
        %v5325 = vpop.f32.mrb[0].mxu0
        %v5326 = vadd.f32 0.0, %v5325
        %v5327 = vpop.f32.mrb[0].mxu0
        %5328 = vmatprep.mubr.bf16.mxu0 0
        %5329 = vmatmul.mubr.bf16.gmra.mrb[0].mxu0 %v5125
        %v5330 = vpop.f32.mrb[0].mxu0
        %v5331 = vadd.f32 0.0, %v5330
        %v5332 = vpop.f32.mrb[0].mxu0
        %v5333 = vpop.f32.mrb[0].mxu0
        %v5334 = vadd.f32 0.0, %v5333
        %v5335 = vpop.f32.mrb[0].mxu0
        %5336 = vmatprep.mubr.bf16.mxu0 0
        %5337 = vmatmul.mubr.bf16.gmra.mrb[0].mxu0 %v5126
        %v5338 = vpop.f32.mrb[0].mxu0
        %v5339 = vadd.f32 0.0, %v5338
        %v5340 = vpop.f32.mrb[0].mxu0
        %v5341 = vpop.f32.mrb[0].mxu0
        %v5342 = vadd.f32 0.0, %v5341
        %v5343 = vpop.f32.mrb[0].mxu0
        %5344 = vmatprep.mubr.bf16.mxu0 0
        %5345 = vmatmul.mubr.bf16.gmra.mrb[0].mxu0 %v5127
        %v5346 = vpop.f32.mrb[0].mxu0
        %v5347 = vadd.f32 0.0, %v5346
        %v5348 = vpop.f32.mrb[0].mxu0
        %v5349 = vpop.f32.mrb[0].mxu0
        %v5350 = vadd.f32 0.0, %v5349
        %v5351 = vpop.f32.mrb[0].mxu0
        %5352 = vdwg.mxu0
        %v5353 = vadd.f32 %v4599, %v5227
        %v5354 = vadd.f32 %v4600, %v5230
        %v5355 = vadd.f32 %v4601, %v5235
        %v5356 = vadd.f32 %v4602, %v5238
        %v5357 = vadd.f32 %v4603, %v5243
        %v5358 = vadd.f32 %v4604, %v5246
        %v5359 = vadd.f32 %v4605, %v5251
        %v5360 = vadd.f32 %v4606, %v5254
        %v5361 = vadd.f32 %v4607, %v5259
        %v5362 = vadd.f32 %v4608, %v5262
        %v5363 = vadd.f32 %v4609, %v5267
        %v5364 = vadd.f32 %v4610, %v5270
        %v5365 = vadd.f32 %v4611, %v5275
        %v5366 = vadd.f32 %v4612, %v5278
        %v5367 = vadd.f32 %v4613, %v5283
        %v5368 = vadd.f32 %v4614, %v5286
        %v5369 = vadd.f32 %v4615, %v5291
        %v5370 = vadd.f32 %v4616, %v5294
        %v5371 = vadd.f32 %v4617, %v5299
        %v5372 = vadd.f32 %v4618, %v5302
        %v5373 = vadd.f32 %v4619, %v5307
        %v5374 = vadd.f32 %v4620, %v5310
        %v5375 = vadd.f32 %v4621, %v5315
        %v5376 = vadd.f32 %v4622, %v5318
        %v5377 = vadd.f32 %v4623, %v5323
        %v5378 = vadd.f32 %v4624, %v5326
        %v5379 = vadd.f32 %v4625, %v5331
        %v5380 = vadd.f32 %v4626, %v5334
        %v5381 = vadd.f32 %v4627, %v5339
        %v5382 = vadd.f32 %v4628, %v5342
        %v5383 = vadd.f32 %v4629, %v5347
        %v5384 = vadd.f32 %v4630, %v5350
        %v5385 = vld [vmem:[%s4244] sm:$0xe]
        %v5386 = vld [vmem:[%s4244 + $0xc] sm:$0xe]
        %v5387 = vld [vmem:[%s4244 + $0x18] sm:$0xe]
        %v5388 = vld [vmem:[%s4244 + $0x24] sm:$0xe]
        %v5389 = vld [vmem:[%s4244 + $0x30] sm:$0xe]
        %v5390 = vld [vmem:[%s4244 + $0x3c] sm:$0xe]
        %v5391 = vld [vmem:[%s4244 + $0x48] sm:$0xe]
        %v5392 = vld [vmem:[%s4244 + $0x54] sm:$0xe]
        %v5393 = vld [vmem:[%s4244 + $0x60] sm:$0xe]
        %v5394 = vld [vmem:[%s4244 + $0x6c] sm:$0xe]
        %v5395 = vld [vmem:[%s4244 + $0x78] sm:$0xe]
        %v5396 = vld [vmem:[%s4244 + $0x84] sm:$0xe]
        %v5397 = vld [vmem:[%s4244 + $0x90] sm:$0xe]
        %v5398 = vld [vmem:[%s4244 + $0x9c] sm:$0xe]
        %v5399 = vld [vmem:[%s4244 + $0xa8] sm:$0xe]
        %v5400 = vld [vmem:[%s4244 + $0xb4] sm:$0xe]
        %v5449 = vrot.slane %v5385, 5
        %v5450 = vrot.slane %v5449, 4
        %v5451 = vrot.slane %v4632, 5
        %v5452 = vsel %vm2171, %v5450, %v5451
        %v5453 = vrot.slane %v5451, 4
        %v5454 = vrot.slane %v4633, 5
        %v5455 = vsel %vm2171, %v5453, %v5454
        %v5456 = vrot.slane %v5386, 5
        %v5457 = vrot.slane %v5456, 4
        %v5458 = vrot.slane %v4635, 5
        %v5459 = vsel %vm2171, %v5457, %v5458
        %v5460 = vrot.slane %v5458, 4
        %v5461 = vrot.slane %v4636, 5
        %v5462 = vsel %vm2171, %v5460, %v5461
        %v5463 = vrot.slane %v5387, 5
        %v5464 = vrot.slane %v5463, 4
        %v5465 = vrot.slane %v4638, 5
        %v5466 = vsel %vm2171, %v5464, %v5465
        %v5467 = vrot.slane %v5465, 4
        %v5468 = vrot.slane %v4639, 5
        %v5469 = vsel %vm2171, %v5467, %v5468
        %v5470 = vrot.slane %v5388, 5
        %v5471 = vrot.slane %v5470, 4
        %v5472 = vrot.slane %v4641, 5
        %v5473 = vsel %vm2171, %v5471, %v5472
        %v5474 = vrot.slane %v5472, 4
        %v5475 = vrot.slane %v4642, 5
        %v5476 = vsel %vm2171, %v5474, %v5475
        %v5477 = vrot.slane %v5389, 5
        %v5478 = vrot.slane %v5477, 4
        %v5479 = vrot.slane %v4644, 5
        %v5480 = vsel %vm2171, %v5478, %v5479
        %v5481 = vrot.slane %v5479, 4
        %v5482 = vrot.slane %v4645, 5
        %v5483 = vsel %vm2171, %v5481, %v5482
        %v5484 = vrot.slane %v5390, 5
        %v5485 = vrot.slane %v5484, 4
        %v5486 = vrot.slane %v4647, 5
        %v5487 = vsel %vm2171, %v5485, %v5486
        %v5488 = vrot.slane %v5486, 4
        %v5489 = vrot.slane %v4648, 5
        %v5490 = vsel %vm2171, %v5488, %v5489
        %v5491 = vrot.slane %v5391, 5
        %v5492 = vrot.slane %v5491, 4
        %v5493 = vrot.slane %v4650, 5
        %v5494 = vsel %vm2171, %v5492, %v5493
        %v5495 = vrot.slane %v5493, 4
        %v5496 = vrot.slane %v4651, 5
        %v5497 = vsel %vm2171, %v5495, %v5496
        %v5498 = vrot.slane %v5392, 5
        %v5499 = vrot.slane %v5498, 4
        %v5500 = vrot.slane %v4653, 5
        %v5501 = vsel %vm2171, %v5499, %v5500
        %v5502 = vrot.slane %v5500, 4
        %v5503 = vrot.slane %v4654, 5
        %v5504 = vsel %vm2171, %v5502, %v5503
        %v5505 = vrot.slane %v5393, 5
        %v5506 = vrot.slane %v5505, 4
        %v5507 = vrot.slane %v4656, 5
        %v5508 = vsel %vm2171, %v5506, %v5507
        %v5509 = vrot.slane %v5507, 4
        %v5510 = vrot.slane %v4657, 5
        %v5511 = vsel %vm2171, %v5509, %v5510
        %v5512 = vrot.slane %v5394, 5
        %v5513 = vrot.slane %v5512, 4
        %v5514 = vrot.slane %v4659, 5
        %v5515 = vsel %vm2171, %v5513, %v5514
        %v5516 = vrot.slane %v5514, 4
        %v5517 = vrot.slane %v4660, 5
        %v5518 = vsel %vm2171, %v5516, %v5517
        %v5519 = vrot.slane %v5395, 5
        %v5520 = vrot.slane %v5519, 4
        %v5521 = vrot.slane %v4662, 5
        %v5522 = vsel %vm2171, %v5520, %v5521
        %v5523 = vrot.slane %v5521, 4
        %v5524 = vrot.slane %v4663, 5
        %v5525 = vsel %vm2171, %v5523, %v5524
        %v5526 = vrot.slane %v5396, 5
        %v5527 = vrot.slane %v5526, 4
        %v5528 = vrot.slane %v4665, 5
        %v5529 = vsel %vm2171, %v5527, %v5528
        %v5530 = vrot.slane %v5528, 4
        %v5531 = vrot.slane %v4666, 5
        %v5532 = vsel %vm2171, %v5530, %v5531
        %v5533 = vrot.slane %v5397, 5
        %v5534 = vrot.slane %v5533, 4
        %v5535 = vrot.slane %v4668, 5
        %v5536 = vsel %vm2171, %v5534, %v5535
        %v5537 = vrot.slane %v5535, 4
        %v5538 = vrot.slane %v4669, 5
        %v5539 = vsel %vm2171, %v5537, %v5538
        %v5540 = vrot.slane %v5398, 5
        %v5541 = vrot.slane %v5540, 4
        %v5542 = vrot.slane %v4671, 5
        %v5543 = vsel %vm2171, %v5541, %v5542
        %v5544 = vrot.slane %v5542, 4
        %v5545 = vrot.slane %v4672, 5
        %v5546 = vsel %vm2171, %v5544, %v5545
        %v5547 = vrot.slane %v5399, 5
        %v5548 = vrot.slane %v5547, 4
        %v5549 = vrot.slane %v4674, 5
        %v5550 = vsel %vm2171, %v5548, %v5549
        %v5551 = vrot.slane %v5549, 4
        %v5552 = vrot.slane %v4675, 5
        %v5553 = vsel %vm2171, %v5551, %v5552
        %v5554 = vrot.slane %v5400, 5
        %v5555 = vrot.slane %v5554, 4
        %v5556 = vrot.slane %v4677, 5
        %v5557 = vsel %vm2171, %v5555, %v5556
        %v5558 = vrot.slane %v5556, 4
        %v5559 = vrot.slane %v4678, 5
        %v5560 = vsel %vm2171, %v5558, %v5559
        %s5561 = scalar_lea.vmem %s1, 512
        %v5562 = vld [vmem:[%s5561] sm:$0xf]
        %v5563 = vld [vmem:[%s5561 + $0x4] sm:$0xf]
        %v5564 = vld [vmem:[%s5561 + $0x8] sm:$0xf]
        %v5565 = vld [vmem:[%s5561 + $0xc] sm:$0xf]
        %v5566 = vld [vmem:[%s5561 + $0x10] sm:$0xf]
        %v5567 = vld [vmem:[%s5561 + $0x14] sm:$0xf]
        %v5568 = vld [vmem:[%s5561 + $0x18] sm:$0xf]
        %v5569 = vld [vmem:[%s5561 + $0x1c] sm:$0xf]
        %v5570 = vld [vmem:[%s5561 + $0x20] sm:$0xf]
        %v5571 = vld [vmem:[%s5561 + $0x24] sm:$0xf]
        %v5572 = vld [vmem:[%s5561 + $0x28] sm:$0xf]
        %v5573 = vld [vmem:[%s5561 + $0x2c] sm:$0xf]
        %v5574 = vld [vmem:[%s5561 + $0x30] sm:$0xf]
        %v5575 = vld [vmem:[%s5561 + $0x34] sm:$0xf]
        %v5576 = vld [vmem:[%s5561 + $0x38] sm:$0xf]
        %v5577 = vld [vmem:[%s5561 + $0x3c] sm:$0xf]
        %v5578 = vunpack.c.l.b16 %v5452
        %v5579 = vunpack.c.l.b16 %v5455
        %v5580 = vunpack.c.l.b16 %v5459
        %v5581 = vunpack.c.l.b16 %v5462
        %v5582 = vunpack.c.l.b16 %v5466
        %v5583 = vunpack.c.l.b16 %v5469
        %v5584 = vunpack.c.l.b16 %v5473
        %v5585 = vunpack.c.l.b16 %v5476
        %v5586 = vunpack.c.l.b16 %v5480
        %v5587 = vunpack.c.l.b16 %v5483
        %v5588 = vunpack.c.l.b16 %v5487
        %v5589 = vunpack.c.l.b16 %v5490
        %v5590 = vunpack.c.l.b16 %v5494
        %v5591 = vunpack.c.l.b16 %v5497
        %v5592 = vunpack.c.l.b16 %v5501
        %v5593 = vunpack.c.l.b16 %v5504
        %v5594 = vunpack.c.l.b16 %v5508
        %v5595 = vunpack.c.l.b16 %v5511
        %v5596 = vunpack.c.l.b16 %v5515
        %v5597 = vunpack.c.l.b16 %v5518
        %v5598 = vunpack.c.l.b16 %v5522
        %v5599 = vunpack.c.l.b16 %v5525
        %v5600 = vunpack.c.l.b16 %v5529
        %v5601 = vunpack.c.l.b16 %v5532
        %v5602 = vunpack.c.l.b16 %v5536
        %v5603 = vunpack.c.l.b16 %v5539
        %v5604 = vunpack.c.l.b16 %v5543
        %v5605 = vunpack.c.l.b16 %v5546
        %v5606 = vunpack.c.l.b16 %v5550
        %v5607 = vunpack.c.l.b16 %v5553
        %v5608 = vunpack.c.l.b16 %v5557
        %v5609 = vunpack.c.l.b16 %v5560
        %v5610 = vpack.c.b16 %v5579, %v5578
        %v5611 = vpack.c.b16 %v5581, %v5580
        %v5612 = vpack.c.b16 %v5583, %v5582
        %v5613 = vpack.c.b16 %v5585, %v5584
        %v5614 = vpack.c.b16 %v5587, %v5586
        %v5615 = vpack.c.b16 %v5589, %v5588
        %v5616 = vpack.c.b16 %v5591, %v5590
        %v5617 = vpack.c.b16 %v5593, %v5592
        %v5618 = vpack.c.b16 %v5595, %v5594
        %v5619 = vpack.c.b16 %v5597, %v5596
        %v5620 = vpack.c.b16 %v5599, %v5598
        %v5621 = vpack.c.b16 %v5601, %v5600
        %v5622 = vpack.c.b16 %v5603, %v5602
        %v5623 = vpack.c.b16 %v5605, %v5604
        %v5624 = vpack.c.b16 %v5607, %v5606
        %v5625 = vpack.c.b16 %v5609, %v5608
        %v5658 = vunpack.c.l.b16 %v5562
        %v5659 = vunpack.c.l.b16 %v5563
        %v5660 = vunpack.c.l.b16 %v5564
        %v5661 = vunpack.c.l.b16 %v5565
        %v5662 = vunpack.c.l.b16 %v5566
        %v5663 = vunpack.c.l.b16 %v5567
        %v5664 = vunpack.c.l.b16 %v5568
        %v5665 = vunpack.c.l.b16 %v5569
        %v5666 = vunpack.c.l.b16 %v5570
        %v5667 = vunpack.c.l.b16 %v5571
        %v5668 = vunpack.c.l.b16 %v5572
        %v5669 = vunpack.c.l.b16 %v5573
        %v5670 = vunpack.c.l.b16 %v5574
        %v5671 = vunpack.c.l.b16 %v5575
        %v5672 = vunpack.c.l.b16 %v5576
        %v5673 = vunpack.c.l.b16 %v5577
        %v5674 = vpack.c.b16 %v5659, %v5658
        %v5675 = vpack.c.b16 %v5661, %v5660
        %v5676 = vpack.c.b16 %v5663, %v5662
        %v5677 = vpack.c.b16 %v5665, %v5664
        %v5678 = vpack.c.b16 %v5667, %v5666
        %v5679 = vpack.c.b16 %v5669, %v5668
        %v5680 = vpack.c.b16 %v5671, %v5670
        %v5681 = vpack.c.b16 %v5673, %v5672
        %5690 = vmatprep.subr.bf16.mxu0 0
        %5691 = vmatpush1.bf16.msra.mxu0 %v5674
        %5692 = vmatprep.subr.bf16.mxu0 0
        %5693 = vmatpush1.bf16.msra.mxu0 %v5675
        %5694 = vmatprep.subr.bf16.mxu0 0
        %5695 = vmatpush1.bf16.msra.mxu0 %v5676
        %5696 = vmatprep.subr.bf16.mxu0 0
        %5697 = vmatpush1.bf16.msra.mxu0 %v5677
        %5698 = vmatprep.subr.bf16.mxu0 0
        %5699 = vmatpush1.bf16.msra.mxu0 %v5678
        %5700 = vmatprep.subr.bf16.mxu0 0
        %5701 = vmatpush1.bf16.msra.mxu0 %v5679
        %5702 = vmatprep.subr.bf16.mxu0 0
        %5703 = vmatpush1.bf16.msra.mxu0 %v5680
        %5704 = vmatprep.subr.bf16.mxu0 0
        %5705 = vmatpush1.bf16.msra.mxu0 %v5681
        %5706 = vmatprep.subr.bf16.mxu0 0
        %5707 = vmatpush1.bf16.msra.mxu0 0
        %5708 = vmatprep.subr.bf16.mxu0 0
        %5709 = vmatpush1.bf16.msra.mxu0 0
        %5710 = vmatprep.subr.bf16.mxu0 0
        %5711 = vmatpush1.bf16.msra.mxu0 0
        %5712 = vmatprep.subr.bf16.mxu0 0
        %5713 = vmatpush1.bf16.msra.mxu0 0
        %5714 = vmatprep.subr.bf16.mxu0 0
        %5715 = vmatpush1.bf16.msra.mxu0 0
        %5716 = vmatprep.subr.bf16.mxu0 0
        %5717 = vmatpush1.bf16.msra.mxu0 0
        %5718 = vmatprep.subr.bf16.mxu0 0
        %5719 = vmatpush1.bf16.msra.mxu0 0
        %5720 = vmatprep.subr.bf16.mxu0 0
        %5721 = vmatpush1.bf16.msra.mxu0 0
        %5722 = vmatprep.mubr.bf16.mxu0 0
        %5723 = vmatmul.mubr.bf16.gmra.mrb[0].mxu0 %v5610
        %v5724 = vpop.f32.mrb[0].mxu0
        %v5725 = vadd.f32 0.0, %v5724
        %v5726 = vpop.f32.mrb[0].mxu0
        %v5727 = vpop.f32.mrb[0].mxu0
        %v5728 = vadd.f32 0.0, %v5727
        %v5729 = vpop.f32.mrb[0].mxu0
        %5730 = vmatprep.mubr.bf16.mxu0 0
        %5731 = vmatmul.mubr.bf16.gmra.mrb[0].mxu0 %v5611
        %v5732 = vpop.f32.mrb[0].mxu0
        %v5733 = vadd.f32 0.0, %v5732
        %v5734 = vpop.f32.mrb[0].mxu0
        %v5735 = vpop.f32.mrb[0].mxu0
        %v5736 = vadd.f32 0.0, %v5735
        %v5737 = vpop.f32.mrb[0].mxu0
        %5738 = vmatprep.mubr.bf16.mxu0 0
        %5739 = vmatmul.mubr.bf16.gmra.mrb[0].mxu0 %v5612
        %v5740 = vpop.f32.mrb[0].mxu0
        %v5741 = vadd.f32 0.0, %v5740
        %v5742 = vpop.f32.mrb[0].mxu0
        %v5743 = vpop.f32.mrb[0].mxu0
        %v5744 = vadd.f32 0.0, %v5743
        %v5745 = vpop.f32.mrb[0].mxu0
        %5746 = vmatprep.mubr.bf16.mxu0 0
        %5747 = vmatmul.mubr.bf16.gmra.mrb[0].mxu0 %v5613
        %v5748 = vpop.f32.mrb[0].mxu0
        %v5749 = vadd.f32 0.0, %v5748
        %v5750 = vpop.f32.mrb[0].mxu0
        %v5751 = vpop.f32.mrb[0].mxu0
        %v5752 = vadd.f32 0.0, %v5751
        %v5753 = vpop.f32.mrb[0].mxu0
        %5754 = vmatprep.mubr.bf16.mxu0 0
        %5755 = vmatmul.mubr.bf16.gmra.mrb[0].mxu0 %v5614
        %v5756 = vpop.f32.mrb[0].mxu0
        %v5757 = vadd.f32 0.0, %v5756
        %v5758 = vpop.f32.mrb[0].mxu0
        %v5759 = vpop.f32.mrb[0].mxu0
        %v5760 = vadd.f32 0.0, %v5759
        %v5761 = vpop.f32.mrb[0].mxu0
        %5762 = vmatprep.mubr.bf16.mxu0 0
        %5763 = vmatmul.mubr.bf16.gmra.mrb[0].mxu0 %v5615
        %v5764 = vpop.f32.mrb[0].mxu0
        %v5765 = vadd.f32 0.0, %v5764
        %v5766 = vpop.f32.mrb[0].mxu0
        %v5767 = vpop.f32.mrb[0].mxu0
        %v5768 = vadd.f32 0.0, %v5767
        %v5769 = vpop.f32.mrb[0].mxu0
        %5770 = vmatprep.mubr.bf16.mxu0 0
        %5771 = vmatmul.mubr.bf16.gmra.mrb[0].mxu0 %v5616
        %v5772 = vpop.f32.mrb[0].mxu0
        %v5773 = vadd.f32 0.0, %v5772
        %v5774 = vpop.f32.mrb[0].mxu0
        %v5775 = vpop.f32.mrb[0].mxu0
        %v5776 = vadd.f32 0.0, %v5775
        %v5777 = vpop.f32.mrb[0].mxu0
        %5778 = vmatprep.mubr.bf16.mxu0 0
        %5779 = vmatmul.mubr.bf16.gmra.mrb[0].mxu0 %v5617
        %v5780 = vpop.f32.mrb[0].mxu0
        %v5781 = vadd.f32 0.0, %v5780
        %v5782 = vpop.f32.mrb[0].mxu0
        %v5783 = vpop.f32.mrb[0].mxu0
        %v5784 = vadd.f32 0.0, %v5783
        %v5785 = vpop.f32.mrb[0].mxu0
        %5786 = vmatprep.mubr.bf16.mxu0 0
        %5787 = vmatmul.mubr.bf16.gmra.mrb[0].mxu0 %v5618
        %v5788 = vpop.f32.mrb[0].mxu0
        %v5789 = vadd.f32 0.0, %v5788
        %v5790 = vpop.f32.mrb[0].mxu0
        %v5791 = vpop.f32.mrb[0].mxu0
        %v5792 = vadd.f32 0.0, %v5791
        %v5793 = vpop.f32.mrb[0].mxu0
        %5794 = vmatprep.mubr.bf16.mxu0 0
        %5795 = vmatmul.mubr.bf16.gmra.mrb[0].mxu0 %v5619
        %v5796 = vpop.f32.mrb[0].mxu0
        %v5797 = vadd.f32 0.0, %v5796
        %v5798 = vpop.f32.mrb[0].mxu0
        %v5799 = vpop.f32.mrb[0].mxu0
        %v5800 = vadd.f32 0.0, %v5799
        %v5801 = vpop.f32.mrb[0].mxu0
        %5802 = vmatprep.mubr.bf16.mxu0 0
        %5803 = vmatmul.mubr.bf16.gmra.mrb[0].mxu0 %v5620
        %v5804 = vpop.f32.mrb[0].mxu0
        %v5805 = vadd.f32 0.0, %v5804
        %v5806 = vpop.f32.mrb[0].mxu0
        %v5807 = vpop.f32.mrb[0].mxu0
        %v5808 = vadd.f32 0.0, %v5807
        %v5809 = vpop.f32.mrb[0].mxu0
        %5810 = vmatprep.mubr.bf16.mxu0 0
        %5811 = vmatmul.mubr.bf16.gmra.mrb[0].mxu0 %v5621
        %v5812 = vpop.f32.mrb[0].mxu0
        %v5813 = vadd.f32 0.0, %v5812
        %v5814 = vpop.f32.mrb[0].mxu0
        %v5815 = vpop.f32.mrb[0].mxu0
        %v5816 = vadd.f32 0.0, %v5815
        %v5817 = vpop.f32.mrb[0].mxu0
        %5818 = vmatprep.mubr.bf16.mxu0 0
        %5819 = vmatmul.mubr.bf16.gmra.mrb[0].mxu0 %v5622
        %v5820 = vpop.f32.mrb[0].mxu0
        %v5821 = vadd.f32 0.0, %v5820
        %v5822 = vpop.f32.mrb[0].mxu0
        %v5823 = vpop.f32.mrb[0].mxu0
        %v5824 = vadd.f32 0.0, %v5823
        %v5825 = vpop.f32.mrb[0].mxu0
        %5826 = vmatprep.mubr.bf16.mxu0 0
        %5827 = vmatmul.mubr.bf16.gmra.mrb[0].mxu0 %v5623
        %v5828 = vpop.f32.mrb[0].mxu0
        %v5829 = vadd.f32 0.0, %v5828
        %v5830 = vpop.f32.mrb[0].mxu0
        %v5831 = vpop.f32.mrb[0].mxu0
        %v5832 = vadd.f32 0.0, %v5831
        %v5833 = vpop.f32.mrb[0].mxu0
        %5834 = vmatprep.mubr.bf16.mxu0 0
        %5835 = vmatmul.mubr.bf16.gmra.mrb[0].mxu0 %v5624
        %v5836 = vpop.f32.mrb[0].mxu0
        %v5837 = vadd.f32 0.0, %v5836
        %v5838 = vpop.f32.mrb[0].mxu0
        %v5839 = vpop.f32.mrb[0].mxu0
        %v5840 = vadd.f32 0.0, %v5839
        %v5841 = vpop.f32.mrb[0].mxu0
        %5842 = vmatprep.mubr.bf16.mxu0 0
        %5843 = vmatmul.mubr.bf16.gmra.mrb[0].mxu0 %v5625
        %v5844 = vpop.f32.mrb[0].mxu0
        %v5845 = vadd.f32 0.0, %v5844
        %v5846 = vpop.f32.mrb[0].mxu0
        %v5847 = vpop.f32.mrb[0].mxu0
        %v5848 = vadd.f32 0.0, %v5847
        %v5849 = vpop.f32.mrb[0].mxu0
        %5850 = vdwg.mxu0
        %v5851 = vadd.f32 %v5353, %v5725
        %v5852 = vadd.f32 %v5354, %v5728
        %v5853 = vadd.f32 %v5355, %v5733
        %v5854 = vadd.f32 %v5356, %v5736
        %v5855 = vadd.f32 %v5357, %v5741
        %v5856 = vadd.f32 %v5358, %v5744
        %v5857 = vadd.f32 %v5359, %v5749
        %v5858 = vadd.f32 %v5360, %v5752
        %v5859 = vadd.f32 %v5361, %v5757
        %v5860 = vadd.f32 %v5362, %v5760
        %v5861 = vadd.f32 %v5363, %v5765
        %v5862 = vadd.f32 %v5364, %v5768
        %v5863 = vadd.f32 %v5365, %v5773
        %v5864 = vadd.f32 %v5366, %v5776
        %v5865 = vadd.f32 %v5367, %v5781
        %v5866 = vadd.f32 %v5368, %v5784
        %v5867 = vadd.f32 %v5369, %v5789
        %v5868 = vadd.f32 %v5370, %v5792
        %v5869 = vadd.f32 %v5371, %v5797
        %v5870 = vadd.f32 %v5372, %v5800
        %v5871 = vadd.f32 %v5373, %v5805
        %v5872 = vadd.f32 %v5374, %v5808
        %v5873 = vadd.f32 %v5375, %v5813
        %v5874 = vadd.f32 %v5376, %v5816
        %v5875 = vadd.f32 %v5377, %v5821
        %v5876 = vadd.f32 %v5378, %v5824
        %v5877 = vadd.f32 %v5379, %v5829
        %v5878 = vadd.f32 %v5380, %v5832
        %v5879 = vadd.f32 %v5381, %v5837
        %v5880 = vadd.f32 %v5382, %v5840
        %v5881 = vadd.f32 %v5383, %v5845
        %v5882 = vadd.f32 %v5384, %v5848
        %v5883 = vld [vmem:[%s2] sm:$0x1]
        %v5885 = vlaneseq
        %v5886 = vshrl.u32 %v5885, 7
        %v5887 = vsub.s32 0, %v5886
        %v5888 = vrot.slane %v5883, %v5887
        %v5890 = vadd.f32 %v5851, %v5888
        %v5891 = vadd.f32 %v5852, %v5888
        %v5892 = vadd.f32 %v5853, %v5888
        %v5893 = vadd.f32 %v5854, %v5888
        %v5894 = vadd.f32 %v5855, %v5888
        %v5895 = vadd.f32 %v5856, %v5888
        %v5896 = vadd.f32 %v5857, %v5888
        %v5897 = vadd.f32 %v5858, %v5888
        %v5898 = vadd.f32 %v5859, %v5888
        %v5899 = vadd.f32 %v5860, %v5888
        %v5900 = vadd.f32 %v5861, %v5888
        %v5901 = vadd.f32 %v5862, %v5888
        %v5902 = vadd.f32 %v5863, %v5888
        %v5903 = vadd.f32 %v5864, %v5888
        %v5904 = vadd.f32 %v5865, %v5888
        %v5905 = vadd.f32 %v5866, %v5888
        %v5906 = vadd.f32 %v5867, %v5888
        %v5907 = vadd.f32 %v5868, %v5888
        %v5908 = vadd.f32 %v5869, %v5888
        %v5909 = vadd.f32 %v5870, %v5888
        %v5910 = vadd.f32 %v5871, %v5888
        %v5911 = vadd.f32 %v5872, %v5888
        %v5912 = vadd.f32 %v5873, %v5888
        %v5913 = vadd.f32 %v5874, %v5888
        %v5914 = vadd.f32 %v5875, %v5888
        %v5915 = vadd.f32 %v5876, %v5888
        %v5916 = vadd.f32 %v5877, %v5888
        %v5917 = vadd.f32 %v5878, %v5888
        %v5918 = vadd.f32 %v5879, %v5888
        %v5919 = vadd.f32 %v5880, %v5888
        %v5920 = vadd.f32 %v5881, %v5888
        %v5921 = vadd.f32 %v5882, %v5888
        %v5922 = vmax.f32 %v5890, 0.0
        %v5923 = vmax.f32 %v5891, 0.0
        %v5924 = vmax.f32 %v5892, 0.0
        %v5925 = vmax.f32 %v5893, 0.0
        %v5926 = vmax.f32 %v5894, 0.0
        %v5927 = vmax.f32 %v5895, 0.0
        %v5928 = vmax.f32 %v5896, 0.0
        %v5929 = vmax.f32 %v5897, 0.0
        %v5930 = vmax.f32 %v5898, 0.0
        %v5931 = vmax.f32 %v5899, 0.0
        %v5932 = vmax.f32 %v5900, 0.0
        %v5933 = vmax.f32 %v5901, 0.0
        %v5934 = vmax.f32 %v5902, 0.0
        %v5935 = vmax.f32 %v5903, 0.0
        %v5936 = vmax.f32 %v5904, 0.0
        %v5937 = vmax.f32 %v5905, 0.0
        %v5938 = vmax.f32 %v5906, 0.0
        %v5939 = vmax.f32 %v5907, 0.0
        %v5940 = vmax.f32 %v5908, 0.0
        %v5941 = vmax.f32 %v5909, 0.0
        %v5942 = vmax.f32 %v5910, 0.0
        %v5943 = vmax.f32 %v5911, 0.0
        %v5944 = vmax.f32 %v5912, 0.0
        %v5945 = vmax.f32 %v5913, 0.0
        %v5946 = vmax.f32 %v5914, 0.0
        %v5947 = vmax.f32 %v5915, 0.0
        %v5948 = vmax.f32 %v5916, 0.0
        %v5949 = vmax.f32 %v5917, 0.0
        %v5950 = vmax.f32 %v5918, 0.0
        %v5951 = vmax.f32 %v5919, 0.0
        %v5952 = vmax.f32 %v5920, 0.0
        %v5953 = vmax.f32 %v5921, 0.0
        %v5954 = vpack.c.bf16 %v5923, %v5922
        %v5955 = vpack.c.bf16 %v5925, %v5924
        %v5956 = vpack.c.bf16 %v5927, %v5926
        %v5957 = vpack.c.bf16 %v5929, %v5928
        %v5958 = vpack.c.bf16 %v5931, %v5930
        %v5959 = vpack.c.bf16 %v5933, %v5932
        %v5960 = vpack.c.bf16 %v5935, %v5934
        %v5961 = vpack.c.bf16 %v5937, %v5936
        %v5962 = vpack.c.bf16 %v5939, %v5938
        %v5963 = vpack.c.bf16 %v5941, %v5940
        %v5964 = vpack.c.bf16 %v5943, %v5942
        %v5965 = vpack.c.bf16 %v5945, %v5944
        %v5966 = vpack.c.bf16 %v5947, %v5946
        %v5967 = vpack.c.bf16 %v5949, %v5948
        %v5968 = vpack.c.bf16 %v5951, %v5950
        %v5969 = vpack.c.bf16 %v5953, %v5952
        %v5986 = vunpack.c.l.b16 %v5954
        %v5987 = vunpack.c.h.b16 %v5954
        %v5988 = vunpack.c.l.b16 %v5955
        %v5989 = vunpack.c.h.b16 %v5955
        %v5990 = vunpack.c.l.b16 %v5956
        %v5991 = vunpack.c.h.b16 %v5956
        %v5992 = vunpack.c.l.b16 %v5957
        %v5993 = vunpack.c.h.b16 %v5957
        %v5994 = vunpack.c.l.b16 %v5958
        %v5995 = vunpack.c.h.b16 %v5958
        %v5996 = vunpack.c.l.b16 %v5959
        %v5997 = vunpack.c.h.b16 %v5959
        %v5998 = vunpack.c.l.b16 %v5960
        %v5999 = vunpack.c.h.b16 %v5960
        %v6000 = vunpack.c.l.b16 %v5961
        %v6001 = vunpack.c.h.b16 %v5961
        %v6002 = vunpack.c.l.b16 %v5962
        %v6003 = vunpack.c.h.b16 %v5962
        %v6004 = vunpack.c.l.b16 %v5963
        %v6005 = vunpack.c.h.b16 %v5963
        %v6006 = vunpack.c.l.b16 %v5964
        %v6007 = vunpack.c.h.b16 %v5964
        %v6008 = vunpack.c.l.b16 %v5965
        %v6009 = vunpack.c.h.b16 %v5965
        %v6010 = vunpack.c.l.b16 %v5966
        %v6011 = vunpack.c.h.b16 %v5966
        %v6012 = vunpack.c.l.b16 %v5967
        %v6013 = vunpack.c.h.b16 %v5967
        %v6014 = vunpack.c.l.b16 %v5968
        %v6015 = vunpack.c.h.b16 %v5968
        %v6016 = vunpack.c.l.b16 %v5969
        %v6017 = vunpack.c.h.b16 %v5969
        %v6018 = vpack.c.b16 %v5986, %v5986
        %v6019 = vpack.c.b16 %v5987, %v5987
        %v6020 = vpack.c.b16 %v5988, %v5988
        %v6021 = vpack.c.b16 %v5989, %v5989
        %v6022 = vpack.c.b16 %v5990, %v5990
        %v6023 = vpack.c.b16 %v5991, %v5991
        %v6024 = vpack.c.b16 %v5992, %v5992
        %v6025 = vpack.c.b16 %v5993, %v5993
        %v6026 = vpack.c.b16 %v5994, %v5994
        %v6027 = vpack.c.b16 %v5995, %v5995
        %v6028 = vpack.c.b16 %v5996, %v5996
        %v6029 = vpack.c.b16 %v5997, %v5997
        %v6030 = vpack.c.b16 %v5998, %v5998
        %v6031 = vpack.c.b16 %v5999, %v5999
        %v6032 = vpack.c.b16 %v6000, %v6000
        %v6033 = vpack.c.b16 %v6001, %v6001
        %v6034 = vpack.c.b16 %v6002, %v6002
        %v6035 = vpack.c.b16 %v6003, %v6003
        %v6036 = vpack.c.b16 %v6004, %v6004
        %v6037 = vpack.c.b16 %v6005, %v6005
        %v6038 = vpack.c.b16 %v6006, %v6006
        %v6039 = vpack.c.b16 %v6007, %v6007
        %v6040 = vpack.c.b16 %v6008, %v6008
        %v6041 = vpack.c.b16 %v6009, %v6009
        %v6042 = vpack.c.b16 %v6010, %v6010
        %v6043 = vpack.c.b16 %v6011, %v6011
        %v6044 = vpack.c.b16 %v6012, %v6012
        %v6045 = vpack.c.b16 %v6013, %v6013
        %v6046 = vpack.c.b16 %v6014, %v6014
        %v6047 = vpack.c.b16 %v6015, %v6015
        %v6048 = vpack.c.b16 %v6016, %v6016
        %v6049 = vpack.c.b16 %v6017, %v6017
        %v6051 = vshrl.u32 %v6018, 16
        %v6053 = vrot.slane %v6051, 7
        %v6054 = vshll.u32 %v6018, 16
        %v6056 = vor.u32 %v6053, %v6054
        %v6057 = vrot.slane %v6053, 4
        %v6059 = vshrl.u32 %v6019, 16
        %v6061 = vrot.slane %v6059, 7
        %v6062 = vshll.u32 %v6019, 16
        %v6064 = vor.u32 %v6061, %v6062
        %v6065 = vsel %vm639, %v6057, %v6064
        %v6066 = vrot.slane %v6061, 4
        %v6068 = vshrl.u32 %v6020, 16
        %v6070 = vrot.slane %v6068, 7
        %v6071 = vshll.u32 %v6020, 16
        %v6073 = vor.u32 %v6070, %v6071
        %v6074 = vrot.slane %v6070, 4
        %v6076 = vshrl.u32 %v6021, 16
        %v6078 = vrot.slane %v6076, 7
        %v6079 = vshll.u32 %v6021, 16
        %v6081 = vor.u32 %v6078, %v6079
        %v6082 = vsel %vm639, %v6074, %v6081
        %v6083 = vrot.slane %v6078, 4
        %v6085 = vshrl.u32 %v6022, 16
        %v6087 = vrot.slane %v6085, 7
        %v6088 = vshll.u32 %v6022, 16
        %v6090 = vor.u32 %v6087, %v6088
        %v6091 = vrot.slane %v6087, 4
        %v6093 = vshrl.u32 %v6023, 16
        %v6095 = vrot.slane %v6093, 7
        %v6096 = vshll.u32 %v6023, 16
        %v6098 = vor.u32 %v6095, %v6096
        %v6099 = vsel %vm639, %v6091, %v6098
        %v6100 = vrot.slane %v6095, 4
        %v6102 = vshrl.u32 %v6024, 16
        %v6104 = vrot.slane %v6102, 7
        %v6105 = vshll.u32 %v6024, 16
        %v6107 = vor.u32 %v6104, %v6105
        %v6108 = vrot.slane %v6104, 4
        %v6110 = vshrl.u32 %v6025, 16
        %v6112 = vrot.slane %v6110, 7
        %v6113 = vshll.u32 %v6025, 16
        %v6115 = vor.u32 %v6112, %v6113
        %v6116 = vsel %vm639, %v6108, %v6115
        %v6117 = vrot.slane %v6112, 4
        %v6119 = vshrl.u32 %v6026, 16
        %v6121 = vrot.slane %v6119, 7
        %v6122 = vshll.u32 %v6026, 16
        %v6124 = vor.u32 %v6121, %v6122
        %v6125 = vrot.slane %v6121, 4
        %v6127 = vshrl.u32 %v6027, 16
        %v6129 = vrot.slane %v6127, 7
        %v6130 = vshll.u32 %v6027, 16
        %v6132 = vor.u32 %v6129, %v6130
        %v6133 = vsel %vm639, %v6125, %v6132
        %v6134 = vrot.slane %v6129, 4
        %v6136 = vshrl.u32 %v6028, 16
        %v6138 = vrot.slane %v6136, 7
        %v6139 = vshll.u32 %v6028, 16
        %v6141 = vor.u32 %v6138, %v6139
        %v6142 = vrot.slane %v6138, 4
        %v6144 = vshrl.u32 %v6029, 16
        %v6146 = vrot.slane %v6144, 7
        %v6147 = vshll.u32 %v6029, 16
        %v6149 = vor.u32 %v6146, %v6147
        %v6150 = vsel %vm639, %v6142, %v6149
        %v6151 = vrot.slane %v6146, 4
        %v6153 = vshrl.u32 %v6030, 16
        %v6155 = vrot.slane %v6153, 7
        %v6156 = vshll.u32 %v6030, 16
        %v6158 = vor.u32 %v6155, %v6156
        %v6159 = vrot.slane %v6155, 4
        %v6161 = vshrl.u32 %v6031, 16
        %v6163 = vrot.slane %v6161, 7
        %v6164 = vshll.u32 %v6031, 16
        %v6166 = vor.u32 %v6163, %v6164
        %v6167 = vsel %vm639, %v6159, %v6166
        %v6168 = vrot.slane %v6163, 4
        %v6170 = vshrl.u32 %v6032, 16
        %v6172 = vrot.slane %v6170, 7
        %v6173 = vshll.u32 %v6032, 16
        %v6175 = vor.u32 %v6172, %v6173
        %v6176 = vrot.slane %v6172, 4
        %v6178 = vshrl.u32 %v6033, 16
        %v6180 = vrot.slane %v6178, 7
        %v6181 = vshll.u32 %v6033, 16
        %v6183 = vor.u32 %v6180, %v6181
        %v6184 = vsel %vm639, %v6176, %v6183
        %v6185 = vrot.slane %v6180, 4
        %v6187 = vshrl.u32 %v6034, 16
        %v6189 = vrot.slane %v6187, 7
        %v6190 = vshll.u32 %v6034, 16
        %v6192 = vor.u32 %v6189, %v6190
        %v6193 = vrot.slane %v6189, 4
        %v6195 = vshrl.u32 %v6035, 16
        %v6197 = vrot.slane %v6195, 7
        %v6198 = vshll.u32 %v6035, 16
        %v6200 = vor.u32 %v6197, %v6198
        %v6201 = vsel %vm639, %v6193, %v6200
        %v6202 = vrot.slane %v6197, 4
        %v6204 = vshrl.u32 %v6036, 16
        %v6206 = vrot.slane %v6204, 7
        %v6207 = vshll.u32 %v6036, 16
        %v6209 = vor.u32 %v6206, %v6207
        %v6210 = vrot.slane %v6206, 4
        %v6212 = vshrl.u32 %v6037, 16
        %v6214 = vrot.slane %v6212, 7
        %v6215 = vshll.u32 %v6037, 16
        %v6217 = vor.u32 %v6214, %v6215
        %v6218 = vsel %vm639, %v6210, %v6217
        %v6219 = vrot.slane %v6214, 4
        %v6221 = vshrl.u32 %v6038, 16
        %v6223 = vrot.slane %v6221, 7
        %v6224 = vshll.u32 %v6038, 16
        %v6226 = vor.u32 %v6223, %v6224
        %v6227 = vrot.slane %v6223, 4
        %v6229 = vshrl.u32 %v6039, 16
        %v6231 = vrot.slane %v6229, 7
        %v6232 = vshll.u32 %v6039, 16
        %v6234 = vor.u32 %v6231, %v6232
        %v6235 = vsel %vm639, %v6227, %v6234
        %v6236 = vrot.slane %v6231, 4
        %v6238 = vshrl.u32 %v6040, 16
        %v6240 = vrot.slane %v6238, 7
        %v6241 = vshll.u32 %v6040, 16
        %v6243 = vor.u32 %v6240, %v6241
        %v6244 = vrot.slane %v6240, 4
        %v6246 = vshrl.u32 %v6041, 16
        %v6248 = vrot.slane %v6246, 7
        %v6249 = vshll.u32 %v6041, 16
        %v6251 = vor.u32 %v6248, %v6249
        %v6252 = vsel %vm639, %v6244, %v6251
        %v6253 = vrot.slane %v6248, 4
        %v6255 = vshrl.u32 %v6042, 16
        %v6257 = vrot.slane %v6255, 7
        %v6258 = vshll.u32 %v6042, 16
        %v6260 = vor.u32 %v6257, %v6258
        %v6261 = vrot.slane %v6257, 4
        %v6263 = vshrl.u32 %v6043, 16
        %v6265 = vrot.slane %v6263, 7
        %v6266 = vshll.u32 %v6043, 16
        %v6268 = vor.u32 %v6265, %v6266
        %v6269 = vsel %vm639, %v6261, %v6268
        %v6270 = vrot.slane %v6265, 4
        %v6272 = vshrl.u32 %v6044, 16
        %v6274 = vrot.slane %v6272, 7
        %v6275 = vshll.u32 %v6044, 16
        %v6277 = vor.u32 %v6274, %v6275
        %v6278 = vrot.slane %v6274, 4
        %v6280 = vshrl.u32 %v6045, 16
        %v6282 = vrot.slane %v6280, 7
        %v6283 = vshll.u32 %v6045, 16
        %v6285 = vor.u32 %v6282, %v6283
        %v6286 = vsel %vm639, %v6278, %v6285
        %v6287 = vrot.slane %v6282, 4
        %v6289 = vshrl.u32 %v6046, 16
        %v6291 = vrot.slane %v6289, 7
        %v6292 = vshll.u32 %v6046, 16
        %v6294 = vor.u32 %v6291, %v6292
        %v6295 = vrot.slane %v6291, 4
        %v6297 = vshrl.u32 %v6047, 16
        %v6299 = vrot.slane %v6297, 7
        %v6300 = vshll.u32 %v6047, 16
        %v6302 = vor.u32 %v6299, %v6300
        %v6303 = vsel %vm639, %v6295, %v6302
        %v6304 = vrot.slane %v6299, 4
        %v6306 = vshrl.u32 %v6048, 16
        %v6308 = vrot.slane %v6306, 7
        %v6309 = vshll.u32 %v6048, 16
        %v6311 = vor.u32 %v6308, %v6309
        %v6312 = vrot.slane %v6308, 4
        %v6314 = vshrl.u32 %v6049, 16
        %v6316 = vrot.slane %v6314, 7
        %v6317 = vshll.u32 %v6049, 16
        %v6319 = vor.u32 %v6316, %v6317
        %v6320 = vsel %vm639, %v6312, %v6319
        %v6321 = vrot.slane %v6316, 4
        %s6370 = scalar_lea.vmem [#allocation3], 12
        %v6371 = vld [vmem:[%s6370] sm:$0xf]
        %v6372 = vsel %vm962, %v6056, %v6371
        %6373 = vst [vmem:[%s6370] sm:$0xf] %v6372
        %6374 = vst [vmem:[%s6370 + $0x4] sm:$0xf] %v6065
        %v6375 = vld [vmem:[%s6370 + $0x8] sm:$0x1]
        %v6376 = vsel %vm250, %v6066, %v6375
        %6377 = vst [vmem:[%s6370 + $0x8] sm:$0x1] %v6376
        %v6378 = vld [vmem:[%s6370 + $0xc] sm:$0xf]
        %v6379 = vsel %vm962, %v6073, %v6378
        %6380 = vst [vmem:[%s6370 + $0xc] sm:$0xf] %v6379
        %6381 = vst [vmem:[%s6370 + $0x10] sm:$0xf] %v6082
        %v6382 = vld [vmem:[%s6370 + $0x14] sm:$0x1]
        %v6383 = vsel %vm250, %v6083, %v6382
        %6384 = vst [vmem:[%s6370 + $0x14] sm:$0x1] %v6383
        %v6385 = vld [vmem:[%s6370 + $0x18] sm:$0xf]
        %v6386 = vsel %vm962, %v6090, %v6385
        %6387 = vst [vmem:[%s6370 + $0x18] sm:$0xf] %v6386
        %6388 = vst [vmem:[%s6370 + $0x1c] sm:$0xf] %v6099
        %v6389 = vld [vmem:[%s6370 + $0x20] sm:$0x1]
        %v6390 = vsel %vm250, %v6100, %v6389
        %6391 = vst [vmem:[%s6370 + $0x20] sm:$0x1] %v6390
        %v6392 = vld [vmem:[%s6370 + $0x24] sm:$0xf]
        %v6393 = vsel %vm962, %v6107, %v6392
        %6394 = vst [vmem:[%s6370 + $0x24] sm:$0xf] %v6393
        %6395 = vst [vmem:[%s6370 + $0x28] sm:$0xf] %v6116
        %v6396 = vld [vmem:[%s6370 + $0x2c] sm:$0x1]
        %v6397 = vsel %vm250, %v6117, %v6396
        %6398 = vst [vmem:[%s6370 + $0x2c] sm:$0x1] %v6397
        %v6399 = vld [vmem:[%s6370 + $0x30] sm:$0xf]
        %v6400 = vsel %vm962, %v6124, %v6399
        %6401 = vst [vmem:[%s6370 + $0x30] sm:$0xf] %v6400
        %6402 = vst [vmem:[%s6370 + $0x34] sm:$0xf] %v6133
        %v6403 = vld [vmem:[%s6370 + $0x38] sm:$0x1]
        %v6404 = vsel %vm250, %v6134, %v6403
        %6405 = vst [vmem:[%s6370 + $0x38] sm:$0x1] %v6404
        %v6406 = vld [vmem:[%s6370 + $0x3c] sm:$0xf]
        %v6407 = vsel %vm962, %v6141, %v6406
        %6408 = vst [vmem:[%s6370 + $0x3c] sm:$0xf] %v6407
        %6409 = vst [vmem:[%s6370 + $0x40] sm:$0xf] %v6150
        %v6410 = vld [vmem:[%s6370 + $0x44] sm:$0x1]
        %v6411 = vsel %vm250, %v6151, %v6410
        %6412 = vst [vmem:[%s6370 + $0x44] sm:$0x1] %v6411
        %v6413 = vld [vmem:[%s6370 + $0x48] sm:$0xf]
        %v6414 = vsel %vm962, %v6158, %v6413
        %6415 = vst [vmem:[%s6370 + $0x48] sm:$0xf] %v6414
        %6416 = vst [vmem:[%s6370 + $0x4c] sm:$0xf] %v6167
        %v6417 = vld [vmem:[%s6370 + $0x50] sm:$0x1]
        %v6418 = vsel %vm250, %v6168, %v6417
        %6419 = vst [vmem:[%s6370 + $0x50] sm:$0x1] %v6418
        %v6420 = vld [vmem:[%s6370 + $0x54] sm:$0xf]
        %v6421 = vsel %vm962, %v6175, %v6420
        %6422 = vst [vmem:[%s6370 + $0x54] sm:$0xf] %v6421
        %6423 = vst [vmem:[%s6370 + $0x58] sm:$0xf] %v6184
        %v6424 = vld [vmem:[%s6370 + $0x5c] sm:$0x1]
        %v6425 = vsel %vm250, %v6185, %v6424
        %6426 = vst [vmem:[%s6370 + $0x5c] sm:$0x1] %v6425
        %v6427 = vld [vmem:[%s6370 + $0x60] sm:$0xf]
        %v6428 = vsel %vm962, %v6192, %v6427
        %6429 = vst [vmem:[%s6370 + $0x60] sm:$0xf] %v6428
        %6430 = vst [vmem:[%s6370 + $0x64] sm:$0xf] %v6201
        %v6431 = vld [vmem:[%s6370 + $0x68] sm:$0x1]
        %v6432 = vsel %vm250, %v6202, %v6431
        %6433 = vst [vmem:[%s6370 + $0x68] sm:$0x1] %v6432
        %v6434 = vld [vmem:[%s6370 + $0x6c] sm:$0xf]
        %v6435 = vsel %vm962, %v6209, %v6434
        %6436 = vst [vmem:[%s6370 + $0x6c] sm:$0xf] %v6435
        %6437 = vst [vmem:[%s6370 + $0x70] sm:$0xf] %v6218
        %v6438 = vld [vmem:[%s6370 + $0x74] sm:$0x1]
        %v6439 = vsel %vm250, %v6219, %v6438
        %6440 = vst [vmem:[%s6370 + $0x74] sm:$0x1] %v6439
        %v6441 = vld [vmem:[%s6370 + $0x78] sm:$0xf]
        %v6442 = vsel %vm962, %v6226, %v6441
        %6443 = vst [vmem:[%s6370 + $0x78] sm:$0xf] %v6442
        %6444 = vst [vmem:[%s6370 + $0x7c] sm:$0xf] %v6235
        %v6445 = vld [vmem:[%s6370 + $0x80] sm:$0x1]
        %v6446 = vsel %vm250, %v6236, %v6445
        %6447 = vst [vmem:[%s6370 + $0x80] sm:$0x1] %v6446
        %v6448 = vld [vmem:[%s6370 + $0x84] sm:$0xf]
        %v6449 = vsel %vm962, %v6243, %v6448
        %6450 = vst [vmem:[%s6370 + $0x84] sm:$0xf] %v6449
        %6451 = vst [vmem:[%s6370 + $0x88] sm:$0xf] %v6252
        %v6452 = vld [vmem:[%s6370 + $0x8c] sm:$0x1]
        %v6453 = vsel %vm250, %v6253, %v6452
        %6454 = vst [vmem:[%s6370 + $0x8c] sm:$0x1] %v6453
        %v6455 = vld [vmem:[%s6370 + $0x90] sm:$0xf]
        %v6456 = vsel %vm962, %v6260, %v6455
        %6457 = vst [vmem:[%s6370 + $0x90] sm:$0xf] %v6456
        %6458 = vst [vmem:[%s6370 + $0x94] sm:$0xf] %v6269
        %v6459 = vld [vmem:[%s6370 + $0x98] sm:$0x1]
        %v6460 = vsel %vm250, %v6270, %v6459
        %6461 = vst [vmem:[%s6370 + $0x98] sm:$0x1] %v6460
        %v6462 = vld [vmem:[%s6370 + $0x9c] sm:$0xf]
        %v6463 = vsel %vm962, %v6277, %v6462
        %6464 = vst [vmem:[%s6370 + $0x9c] sm:$0xf] %v6463
        %6465 = vst [vmem:[%s6370 + $0xa0] sm:$0xf] %v6286
        %v6466 = vld [vmem:[%s6370 + $0xa4] sm:$0x1]
        %v6467 = vsel %vm250, %v6287, %v6466
        %6468 = vst [vmem:[%s6370 + $0xa4] sm:$0x1] %v6467
        %v6469 = vld [vmem:[%s6370 + $0xa8] sm:$0xf]
        %v6470 = vsel %vm962, %v6294, %v6469
        %6471 = vst [vmem:[%s6370 + $0xa8] sm:$0xf] %v6470
        %6472 = vst [vmem:[%s6370 + $0xac] sm:$0xf] %v6303
        %v6473 = vld [vmem:[%s6370 + $0xb0] sm:$0x1]
        %v6474 = vsel %vm250, %v6304, %v6473
        %6475 = vst [vmem:[%s6370 + $0xb0] sm:$0x1] %v6474
        %v6476 = vld [vmem:[%s6370 + $0xb4] sm:$0xf]
        %v6477 = vsel %vm962, %v6311, %v6476
        %6478 = vst [vmem:[%s6370 + $0xb4] sm:$0xf] %v6477
        %6479 = vst [vmem:[%s6370 + $0xb8] sm:$0xf] %v6320
        %v6480 = vld [vmem:[%s6370 + $0xbc] sm:$0x1]
        %v6481 = vsel %vm250, %v6321, %v6480
        %6482 = vst [vmem:[%s6370 + $0xbc] sm:$0x1] %v6481
        %v6483 = vld [vmem:[#allocation3] sm:$0xf]
        %v6484 = vld [vmem:[#allocation3 + $0x4] sm:$0xf]
        %v6485 = vld [vmem:[#allocation3 + $0xc] sm:$0xf]
        %v6486 = vld [vmem:[#allocation3 + $0x10] sm:$0xf]
        %v6487 = vld [vmem:[#allocation3 + $0x18] sm:$0xf]
        %v6488 = vld [vmem:[#allocation3 + $0x1c] sm:$0xf]
        %v6489 = vld [vmem:[#allocation3 + $0x24] sm:$0xf]
        %v6490 = vld [vmem:[#allocation3 + $0x28] sm:$0xf]
        %v6491 = vld [vmem:[#allocation3 + $0x30] sm:$0xf]
        %v6492 = vld [vmem:[#allocation3 + $0x34] sm:$0xf]
        %v6493 = vld [vmem:[#allocation3 + $0x3c] sm:$0xf]
        %v6494 = vld [vmem:[#allocation3 + $0x40] sm:$0xf]
        %v6495 = vld [vmem:[#allocation3 + $0x48] sm:$0xf]
        %v6496 = vld [vmem:[#allocation3 + $0x4c] sm:$0xf]
        %v6497 = vld [vmem:[#allocation3 + $0x54] sm:$0xf]
        %v6498 = vld [vmem:[#allocation3 + $0x58] sm:$0xf]
        %v6499 = vld [vmem:[#allocation3 + $0x60] sm:$0xf]
        %v6500 = vld [vmem:[#allocation3 + $0x64] sm:$0xf]
        %v6501 = vld [vmem:[#allocation3 + $0x6c] sm:$0xf]
        %v6502 = vld [vmem:[#allocation3 + $0x70] sm:$0xf]
        %v6503 = vld [vmem:[#allocation3 + $0x78] sm:$0xf]
        %v6504 = vld [vmem:[#allocation3 + $0x7c] sm:$0xf]
        %v6505 = vld [vmem:[#allocation3 + $0x84] sm:$0xf]
        %v6506 = vld [vmem:[#allocation3 + $0x88] sm:$0xf]
        %v6507 = vld [vmem:[#allocation3 + $0x90] sm:$0xf]
        %v6508 = vld [vmem:[#allocation3 + $0x94] sm:$0xf]
        %v6509 = vld [vmem:[#allocation3 + $0x9c] sm:$0xf]
        %v6510 = vld [vmem:[#allocation3 + $0xa0] sm:$0xf]
        %v6511 = vld [vmem:[#allocation3 + $0xa8] sm:$0xf]
        %v6512 = vld [vmem:[#allocation3 + $0xac] sm:$0xf]
        %v6513 = vld [vmem:[#allocation3 + $0xb4] sm:$0xf]
        %v6514 = vld [vmem:[#allocation3 + $0xb8] sm:$0xf]
        %v6515 = vld [vmem:[#allocation4] sm:$0xf]
        %v6516 = vld [vmem:[#allocation4 + $0x4] sm:$0xf]
        %v6517 = vld [vmem:[#allocation4 + $0x8] sm:$0xf]
        %v6518 = vld [vmem:[#allocation4 + $0xc] sm:$0xf]
        %v6519 = vld [vmem:[#allocation4 + $0x10] sm:$0xf]
        %v6520 = vld [vmem:[#allocation4 + $0x14] sm:$0xf]
        %v6521 = vld [vmem:[#allocation4 + $0x18] sm:$0xf]
        %v6522 = vld [vmem:[#allocation4 + $0x1c] sm:$0xf]
        %v6523 = vld [vmem:[#allocation4 + $0x20] sm:$0xf]
        %v6524 = vld [vmem:[#allocation4 + $0x24] sm:$0xf]
        %v6525 = vld [vmem:[#allocation4 + $0x28] sm:$0xf]
        %v6526 = vld [vmem:[#allocation4 + $0x2c] sm:$0xf]
        %v6527 = vld [vmem:[#allocation4 + $0x30] sm:$0xf]
        %v6528 = vld [vmem:[#allocation4 + $0x34] sm:$0xf]
        %v6529 = vld [vmem:[#allocation4 + $0x38] sm:$0xf]
        %v6530 = vld [vmem:[#allocation4 + $0x3c] sm:$0xf]
        %v6531 = vld [vmem:[#allocation3 + $0x8] sm:$0x1]
        %v6532 = vld [vmem:[#allocation3 + $0x14] sm:$0x1]
        %v6533 = vld [vmem:[#allocation3 + $0x20] sm:$0x1]
        %v6534 = vld [vmem:[#allocation3 + $0x2c] sm:$0x1]
        %v6535 = vld [vmem:[#allocation3 + $0x38] sm:$0x1]
        %v6536 = vld [vmem:[#allocation3 + $0x44] sm:$0x1]
        %v6537 = vld [vmem:[#allocation3 + $0x50] sm:$0x1]
        %v6538 = vld [vmem:[#allocation3 + $0x5c] sm:$0x1]
        %v6539 = vld [vmem:[#allocation3 + $0x68] sm:$0x1]
        %v6540 = vld [vmem:[#allocation3 + $0x74] sm:$0x1]
        %v6541 = vld [vmem:[#allocation3 + $0x80] sm:$0x1]
        %v6542 = vld [vmem:[#allocation3 + $0x8c] sm:$0x1]
        %v6543 = vld [vmem:[#allocation3 + $0x98] sm:$0x1]
        %v6544 = vld [vmem:[#allocation3 + $0xa4] sm:$0x1]
        %v6545 = vld [vmem:[#allocation3 + $0xb0] sm:$0x1]
        %v6546 = vld [vmem:[#allocation3 + $0xbc] sm:$0x1]
        %v6548 = vshrl.u32 %v6483, 16
        %v6550 = vrot.slane %v6548, 4
        %v6551 = vshll.u32 %v6483, 16
        %v6553 = vrot.slane %v6551, 5
        %v6554 = vor.u32 %v6550, %v6553
        %v6555 = vrot.slane %v6554, 4
        %v6557 = vshll.u32 %v6484, 16
        %v6559 = vrot.slane %v6557, 5
        %v6560 = vsel %vm1141, %v6555, %v6559
        %v6561 = vshrl.u32 %v6484, 16
        %v6563 = vrot.slane %v6561, 4
        %v6564 = vor.u32 %v6563, %v6559
        %v6565 = vrot.slane %v6564, 4
        %v6567 = vshll.u32 %v6531, 16
        %v6569 = vrot.slane %v6567, 5
        %v6570 = vsel %vm1141, %v6565, %v6569
        %v6572 = vshrl.u32 %v6485, 16
        %v6574 = vrot.slane %v6572, 4
        %v6575 = vshll.u32 %v6485, 16
        %v6577 = vrot.slane %v6575, 5
        %v6578 = vor.u32 %v6574, %v6577
        %v6579 = vrot.slane %v6578, 4
        %v6581 = vshll.u32 %v6486, 16
        %v6583 = vrot.slane %v6581, 5
        %v6584 = vsel %vm1141, %v6579, %v6583
        %v6585 = vshrl.u32 %v6486, 16
        %v6587 = vrot.slane %v6585, 4
        %v6588 = vor.u32 %v6587, %v6583
        %v6589 = vrot.slane %v6588, 4
        %v6591 = vshll.u32 %v6532, 16
        %v6593 = vrot.slane %v6591, 5
        %v6594 = vsel %vm1141, %v6589, %v6593
        %v6596 = vshrl.u32 %v6487, 16
        %v6598 = vrot.slane %v6596, 4
        %v6599 = vshll.u32 %v6487, 16
        %v6601 = vrot.slane %v6599, 5
        %v6602 = vor.u32 %v6598, %v6601
        %v6603 = vrot.slane %v6602, 4
        %v6605 = vshll.u32 %v6488, 16
        %v6607 = vrot.slane %v6605, 5
        %v6608 = vsel %vm1141, %v6603, %v6607
        %v6609 = vshrl.u32 %v6488, 16
        %v6611 = vrot.slane %v6609, 4
        %v6612 = vor.u32 %v6611, %v6607
        %v6613 = vrot.slane %v6612, 4
        %v6615 = vshll.u32 %v6533, 16
        %v6617 = vrot.slane %v6615, 5
        %v6618 = vsel %vm1141, %v6613, %v6617
        %v6620 = vshrl.u32 %v6489, 16
        %v6622 = vrot.slane %v6620, 4
        %v6623 = vshll.u32 %v6489, 16
        %v6625 = vrot.slane %v6623, 5
        %v6626 = vor.u32 %v6622, %v6625
        %v6627 = vrot.slane %v6626, 4
        %v6629 = vshll.u32 %v6490, 16
        %v6631 = vrot.slane %v6629, 5
        %v6632 = vsel %vm1141, %v6627, %v6631
        %v6633 = vshrl.u32 %v6490, 16
        %v6635 = vrot.slane %v6633, 4
        %v6636 = vor.u32 %v6635, %v6631
        %v6637 = vrot.slane %v6636, 4
        %v6639 = vshll.u32 %v6534, 16
        %v6641 = vrot.slane %v6639, 5
        %v6642 = vsel %vm1141, %v6637, %v6641
        %v6644 = vshrl.u32 %v6491, 16
        %v6646 = vrot.slane %v6644, 4
        %v6647 = vshll.u32 %v6491, 16
        %v6649 = vrot.slane %v6647, 5
        %v6650 = vor.u32 %v6646, %v6649
        %v6651 = vrot.slane %v6650, 4
        %v6653 = vshll.u32 %v6492, 16
        %v6655 = vrot.slane %v6653, 5
        %v6656 = vsel %vm1141, %v6651, %v6655
        %v6657 = vshrl.u32 %v6492, 16
        %v6659 = vrot.slane %v6657, 4
        %v6660 = vor.u32 %v6659, %v6655
        %v6661 = vrot.slane %v6660, 4
        %v6663 = vshll.u32 %v6535, 16
        %v6665 = vrot.slane %v6663, 5
        %v6666 = vsel %vm1141, %v6661, %v6665
        %v6668 = vshrl.u32 %v6493, 16
        %v6670 = vrot.slane %v6668, 4
        %v6671 = vshll.u32 %v6493, 16
        %v6673 = vrot.slane %v6671, 5
        %v6674 = vor.u32 %v6670, %v6673
        %v6675 = vrot.slane %v6674, 4
        %v6677 = vshll.u32 %v6494, 16
        %v6679 = vrot.slane %v6677, 5
        %v6680 = vsel %vm1141, %v6675, %v6679
        %v6681 = vshrl.u32 %v6494, 16
        %v6683 = vrot.slane %v6681, 4
        %v6684 = vor.u32 %v6683, %v6679
        %v6685 = vrot.slane %v6684, 4
        %v6687 = vshll.u32 %v6536, 16
        %v6689 = vrot.slane %v6687, 5
        %v6690 = vsel %vm1141, %v6685, %v6689
        %v6692 = vshrl.u32 %v6495, 16
        %v6694 = vrot.slane %v6692, 4
        %v6695 = vshll.u32 %v6495, 16
        %v6697 = vrot.slane %v6695, 5
        %v6698 = vor.u32 %v6694, %v6697
        %v6699 = vrot.slane %v6698, 4
        %v6701 = vshll.u32 %v6496, 16
        %v6703 = vrot.slane %v6701, 5
        %v6704 = vsel %vm1141, %v6699, %v6703
        %v6705 = vshrl.u32 %v6496, 16
        %v6707 = vrot.slane %v6705, 4
        %v6708 = vor.u32 %v6707, %v6703
        %v6709 = vrot.slane %v6708, 4
        %v6711 = vshll.u32 %v6537, 16
        %v6713 = vrot.slane %v6711, 5
        %v6714 = vsel %vm1141, %v6709, %v6713
        %v6716 = vshrl.u32 %v6497, 16
        %v6718 = vrot.slane %v6716, 4
        %v6719 = vshll.u32 %v6497, 16
        %v6721 = vrot.slane %v6719, 5
        %v6722 = vor.u32 %v6718, %v6721
        %v6723 = vrot.slane %v6722, 4
        %v6725 = vshll.u32 %v6498, 16
        %v6727 = vrot.slane %v6725, 5
        %v6728 = vsel %vm1141, %v6723, %v6727
        %v6729 = vshrl.u32 %v6498, 16
        %v6731 = vrot.slane %v6729, 4
        %v6732 = vor.u32 %v6731, %v6727
        %v6733 = vrot.slane %v6732, 4
        %v6735 = vshll.u32 %v6538, 16
        %v6737 = vrot.slane %v6735, 5
        %v6738 = vsel %vm1141, %v6733, %v6737
        %v6740 = vshrl.u32 %v6499, 16
        %v6742 = vrot.slane %v6740, 4
        %v6743 = vshll.u32 %v6499, 16
        %v6745 = vrot.slane %v6743, 5
        %v6746 = vor.u32 %v6742, %v6745
        %v6747 = vrot.slane %v6746, 4
        %v6749 = vshll.u32 %v6500, 16
        %v6751 = vrot.slane %v6749, 5
        %v6752 = vsel %vm1141, %v6747, %v6751
        %v6753 = vshrl.u32 %v6500, 16
        %v6755 = vrot.slane %v6753, 4
        %v6756 = vor.u32 %v6755, %v6751
        %v6757 = vrot.slane %v6756, 4
        %v6759 = vshll.u32 %v6539, 16
        %v6761 = vrot.slane %v6759, 5
        %v6762 = vsel %vm1141, %v6757, %v6761
        %v6764 = vshrl.u32 %v6501, 16
        %v6766 = vrot.slane %v6764, 4
        %v6767 = vshll.u32 %v6501, 16
        %v6769 = vrot.slane %v6767, 5
        %v6770 = vor.u32 %v6766, %v6769
        %v6771 = vrot.slane %v6770, 4
        %v6773 = vshll.u32 %v6502, 16
        %v6775 = vrot.slane %v6773, 5
        %v6776 = vsel %vm1141, %v6771, %v6775
        %v6777 = vshrl.u32 %v6502, 16
        %v6779 = vrot.slane %v6777, 4
        %v6780 = vor.u32 %v6779, %v6775
        %v6781 = vrot.slane %v6780, 4
        %v6783 = vshll.u32 %v6540, 16
        %v6785 = vrot.slane %v6783, 5
        %v6786 = vsel %vm1141, %v6781, %v6785
        %v6788 = vshrl.u32 %v6503, 16
        %v6790 = vrot.slane %v6788, 4
        %v6791 = vshll.u32 %v6503, 16
        %v6793 = vrot.slane %v6791, 5
        %v6794 = vor.u32 %v6790, %v6793
        %v6795 = vrot.slane %v6794, 4
        %v6797 = vshll.u32 %v6504, 16
        %v6799 = vrot.slane %v6797, 5
        %v6800 = vsel %vm1141, %v6795, %v6799
        %v6801 = vshrl.u32 %v6504, 16
        %v6803 = vrot.slane %v6801, 4
        %v6804 = vor.u32 %v6803, %v6799
        %v6805 = vrot.slane %v6804, 4
        %v6807 = vshll.u32 %v6541, 16
        %v6809 = vrot.slane %v6807, 5
        %v6810 = vsel %vm1141, %v6805, %v6809
        %v6812 = vshrl.u32 %v6505, 16
        %v6814 = vrot.slane %v6812, 4
        %v6815 = vshll.u32 %v6505, 16
        %v6817 = vrot.slane %v6815, 5
        %v6818 = vor.u32 %v6814, %v6817
        %v6819 = vrot.slane %v6818, 4
        %v6821 = vshll.u32 %v6506, 16
        %v6823 = vrot.slane %v6821, 5
        %v6824 = vsel %vm1141, %v6819, %v6823
        %v6825 = vshrl.u32 %v6506, 16
        %v6827 = vrot.slane %v6825, 4
        %v6828 = vor.u32 %v6827, %v6823
        %v6829 = vrot.slane %v6828, 4
        %v6831 = vshll.u32 %v6542, 16
        %v6833 = vrot.slane %v6831, 5
        %v6834 = vsel %vm1141, %v6829, %v6833
        %v6836 = vshrl.u32 %v6507, 16
        %v6838 = vrot.slane %v6836, 4
        %v6839 = vshll.u32 %v6507, 16
        %v6841 = vrot.slane %v6839, 5
        %v6842 = vor.u32 %v6838, %v6841
        %v6843 = vrot.slane %v6842, 4
        %v6845 = vshll.u32 %v6508, 16
        %v6847 = vrot.slane %v6845, 5
        %v6848 = vsel %vm1141, %v6843, %v6847
        %v6849 = vshrl.u32 %v6508, 16
        %v6851 = vrot.slane %v6849, 4
        %v6852 = vor.u32 %v6851, %v6847
        %v6853 = vrot.slane %v6852, 4
        %v6855 = vshll.u32 %v6543, 16
        %v6857 = vrot.slane %v6855, 5
        %v6858 = vsel %vm1141, %v6853, %v6857
        %v6860 = vshrl.u32 %v6509, 16
        %v6862 = vrot.slane %v6860, 4
        %v6863 = vshll.u32 %v6509, 16
        %v6865 = vrot.slane %v6863, 5
        %v6866 = vor.u32 %v6862, %v6865
        %v6867 = vrot.slane %v6866, 4
        %v6869 = vshll.u32 %v6510, 16
        %v6871 = vrot.slane %v6869, 5
        %v6872 = vsel %vm1141, %v6867, %v6871
        %v6873 = vshrl.u32 %v6510, 16
        %v6875 = vrot.slane %v6873, 4
        %v6876 = vor.u32 %v6875, %v6871
        %v6877 = vrot.slane %v6876, 4
        %v6879 = vshll.u32 %v6544, 16
        %v6881 = vrot.slane %v6879, 5
        %v6882 = vsel %vm1141, %v6877, %v6881
        %v6884 = vshrl.u32 %v6511, 16
        %v6886 = vrot.slane %v6884, 4
        %v6887 = vshll.u32 %v6511, 16
        %v6889 = vrot.slane %v6887, 5
        %v6890 = vor.u32 %v6886, %v6889
        %v6891 = vrot.slane %v6890, 4
        %v6893 = vshll.u32 %v6512, 16
        %v6895 = vrot.slane %v6893, 5
        %v6896 = vsel %vm1141, %v6891, %v6895
        %v6897 = vshrl.u32 %v6512, 16
        %v6899 = vrot.slane %v6897, 4
        %v6900 = vor.u32 %v6899, %v6895
        %v6901 = vrot.slane %v6900, 4
        %v6903 = vshll.u32 %v6545, 16
        %v6905 = vrot.slane %v6903, 5
        %v6906 = vsel %vm1141, %v6901, %v6905
        %v6908 = vshrl.u32 %v6513, 16
        %v6910 = vrot.slane %v6908, 4
        %v6911 = vshll.u32 %v6513, 16
        %v6913 = vrot.slane %v6911, 5
        %v6914 = vor.u32 %v6910, %v6913
        %v6915 = vrot.slane %v6914, 4
        %v6917 = vshll.u32 %v6514, 16
        %v6919 = vrot.slane %v6917, 5
        %v6920 = vsel %vm1141, %v6915, %v6919
        %v6921 = vshrl.u32 %v6514, 16
        %v6923 = vrot.slane %v6921, 4
        %v6924 = vor.u32 %v6923, %v6919
        %v6925 = vrot.slane %v6924, 4
        %v6927 = vshll.u32 %v6546, 16
        %v6929 = vrot.slane %v6927, 5
        %v6930 = vsel %vm1141, %v6925, %v6929
        %s6931 = scalar_lea.vmem [#allocation4], 64
        %v6932 = vld [vmem:[%s6931] sm:$0xf]
        %v6933 = vld [vmem:[%s6931 + $0x4] sm:$0xf]
        %v6934 = vld [vmem:[%s6931 + $0x8] sm:$0xf]
        %v6935 = vld [vmem:[%s6931 + $0xc] sm:$0xf]
        %v6936 = vld [vmem:[%s6931 + $0x10] sm:$0xf]
        %v6937 = vld [vmem:[%s6931 + $0x14] sm:$0xf]
        %v6938 = vld [vmem:[%s6931 + $0x18] sm:$0xf]
        %v6939 = vld [vmem:[%s6931 + $0x1c] sm:$0xf]
        %v6940 = vld [vmem:[%s6931 + $0x20] sm:$0xf]
        %v6941 = vld [vmem:[%s6931 + $0x24] sm:$0xf]
        %v6942 = vld [vmem:[%s6931 + $0x28] sm:$0xf]
        %v6943 = vld [vmem:[%s6931 + $0x2c] sm:$0xf]
        %v6944 = vld [vmem:[%s6931 + $0x30] sm:$0xf]
        %v6945 = vld [vmem:[%s6931 + $0x34] sm:$0xf]
        %v6946 = vld [vmem:[%s6931 + $0x38] sm:$0xf]
        %v6947 = vld [vmem:[%s6931 + $0x3c] sm:$0xf]
        %v6948 = vunpack.c.l.b16 %v6560
        %v6949 = vunpack.c.l.b16 %v6570
        %v6950 = vunpack.c.l.b16 %v6584
        %v6951 = vunpack.c.l.b16 %v6594
        %v6952 = vunpack.c.l.b16 %v6608
        %v6953 = vunpack.c.l.b16 %v6618
        %v6954 = vunpack.c.l.b16 %v6632
        %v6955 = vunpack.c.l.b16 %v6642
        %v6956 = vunpack.c.l.b16 %v6656
        %v6957 = vunpack.c.l.b16 %v6666
        %v6958 = vunpack.c.l.b16 %v6680
        %v6959 = vunpack.c.l.b16 %v6690
        %v6960 = vunpack.c.l.b16 %v6704
        %v6961 = vunpack.c.l.b16 %v6714
        %v6962 = vunpack.c.l.b16 %v6728
        %v6963 = vunpack.c.l.b16 %v6738
        %v6964 = vunpack.c.l.b16 %v6752
        %v6965 = vunpack.c.l.b16 %v6762
        %v6966 = vunpack.c.l.b16 %v6776
        %v6967 = vunpack.c.l.b16 %v6786
        %v6968 = vunpack.c.l.b16 %v6800
        %v6969 = vunpack.c.l.b16 %v6810
        %v6970 = vunpack.c.l.b16 %v6824
        %v6971 = vunpack.c.l.b16 %v6834
        %v6972 = vunpack.c.l.b16 %v6848
        %v6973 = vunpack.c.l.b16 %v6858
        %v6974 = vunpack.c.l.b16 %v6872
        %v6975 = vunpack.c.l.b16 %v6882
        %v6976 = vunpack.c.l.b16 %v6896
        %v6977 = vunpack.c.l.b16 %v6906
        %v6978 = vunpack.c.l.b16 %v6920
        %v6979 = vunpack.c.l.b16 %v6930
        %v6980 = vpack.c.b16 %v6949, %v6948
        %v6981 = vpack.c.b16 %v6951, %v6950
        %v6982 = vpack.c.b16 %v6953, %v6952
        %v6983 = vpack.c.b16 %v6955, %v6954
        %v6984 = vpack.c.b16 %v6957, %v6956
        %v6985 = vpack.c.b16 %v6959, %v6958
        %v6986 = vpack.c.b16 %v6961, %v6960
        %v6987 = vpack.c.b16 %v6963, %v6962
        %v6988 = vpack.c.b16 %v6965, %v6964
        %v6989 = vpack.c.b16 %v6967, %v6966
        %v6990 = vpack.c.b16 %v6969, %v6968
        %v6991 = vpack.c.b16 %v6971, %v6970
        %v6992 = vpack.c.b16 %v6973, %v6972
        %v6993 = vpack.c.b16 %v6975, %v6974
        %v6994 = vpack.c.b16 %v6977, %v6976
        %v6995 = vpack.c.b16 %v6979, %v6978
        %v7028 = vunpack.c.l.b16 %v6932
        %v7029 = vunpack.c.l.b16 %v6933
        %v7030 = vunpack.c.l.b16 %v6934
        %v7031 = vunpack.c.l.b16 %v6935
        %v7032 = vunpack.c.l.b16 %v6936
        %v7033 = vunpack.c.l.b16 %v6937
        %v7034 = vunpack.c.l.b16 %v6938
        %v7035 = vunpack.c.l.b16 %v6939
        %v7036 = vunpack.c.l.b16 %v6940
        %v7037 = vunpack.c.l.b16 %v6941
        %v7038 = vunpack.c.l.b16 %v6942
        %v7039 = vunpack.c.l.b16 %v6943
        %v7040 = vunpack.c.l.b16 %v6944
        %v7041 = vunpack.c.l.b16 %v6945
        %v7042 = vunpack.c.l.b16 %v6946
        %v7043 = vunpack.c.l.b16 %v6947
        %v7044 = vpack.c.b16 %v7029, %v7028
        %v7045 = vpack.c.b16 %v7031, %v7030
        %v7046 = vpack.c.b16 %v7033, %v7032
        %v7047 = vpack.c.b16 %v7035, %v7034
        %v7048 = vpack.c.b16 %v7037, %v7036
        %v7049 = vpack.c.b16 %v7039, %v7038
        %v7050 = vpack.c.b16 %v7041, %v7040
        %v7051 = vpack.c.b16 %v7043, %v7042
        %7060 = vmatprep.subr.bf16.mxu0 0
        %7061 = vmatpush1.bf16.msra.mxu0 %v7044
        %7062 = vmatprep.subr.bf16.mxu0 0
        %7063 = vmatpush1.bf16.msra.mxu0 %v7045
        %7064 = vmatprep.subr.bf16.mxu0 0
        %7065 = vmatpush1.bf16.msra.mxu0 %v7046
        %7066 = vmatprep.subr.bf16.mxu0 0
        %7067 = vmatpush1.bf16.msra.mxu0 %v7047
        %7068 = vmatprep.subr.bf16.mxu0 0
        %7069 = vmatpush1.bf16.msra.mxu0 %v7048
        %7070 = vmatprep.subr.bf16.mxu0 0
        %7071 = vmatpush1.bf16.msra.mxu0 %v7049
        %7072 = vmatprep.subr.bf16.mxu0 0
        %7073 = vmatpush1.bf16.msra.mxu0 %v7050
        %7074 = vmatprep.subr.bf16.mxu0 0
        %7075 = vmatpush1.bf16.msra.mxu0 %v7051
        %7076 = vmatprep.subr.bf16.mxu0 0
        %7077 = vmatpush1.bf16.msra.mxu0 0
        %7078 = vmatprep.subr.bf16.mxu0 0
        %7079 = vmatpush1.bf16.msra.mxu0 0
        %7080 = vmatprep.subr.bf16.mxu0 0
        %7081 = vmatpush1.bf16.msra.mxu0 0
        %7082 = vmatprep.subr.bf16.mxu0 0
        %7083 = vmatpush1.bf16.msra.mxu0 0
        %7084 = vmatprep.subr.bf16.mxu0 0
        %7085 = vmatpush1.bf16.msra.mxu0 0
        %7086 = vmatprep.subr.bf16.mxu0 0
        %7087 = vmatpush1.bf16.msra.mxu0 0
        %7088 = vmatprep.subr.bf16.mxu0 0
        %7089 = vmatpush1.bf16.msra.mxu0 0
        %7090 = vmatprep.subr.bf16.mxu0 0
        %7091 = vmatpush1.bf16.msra.mxu0 0
        %7092 = vmatprep.mubr.bf16.mxu0 0
        %7093 = vmatmul.mubr.bf16.gmra.mrb[0].mxu0 %v6980
        %v7094 = vpop.f32.mrb[0].mxu0
        %v7095 = vadd.f32 0.0, %v7094
        %v7096 = vpop.f32.mrb[0].mxu0
        %v7097 = vpop.f32.mrb[0].mxu0
        %v7098 = vadd.f32 0.0, %v7097
        %v7099 = vpop.f32.mrb[0].mxu0
        %7100 = vmatprep.mubr.bf16.mxu0 0
        %7101 = vmatmul.mubr.bf16.gmra.mrb[0].mxu0 %v6981
        %v7102 = vpop.f32.mrb[0].mxu0
        %v7103 = vadd.f32 0.0, %v7102
        %v7104 = vpop.f32.mrb[0].mxu0
        %v7105 = vpop.f32.mrb[0].mxu0
        %v7106 = vadd.f32 0.0, %v7105
        %v7107 = vpop.f32.mrb[0].mxu0
        %7108 = vmatprep.mubr.bf16.mxu0 0
        %7109 = vmatmul.mubr.bf16.gmra.mrb[0].mxu0 %v6982
        %v7110 = vpop.f32.mrb[0].mxu0
        %v7111 = vadd.f32 0.0, %v7110
        %v7112 = vpop.f32.mrb[0].mxu0
        %v7113 = vpop.f32.mrb[0].mxu0
        %v7114 = vadd.f32 0.0, %v7113
        %v7115 = vpop.f32.mrb[0].mxu0
        %7116 = vmatprep.mubr.bf16.mxu0 0
        %7117 = vmatmul.mubr.bf16.gmra.mrb[0].mxu0 %v6983
        %v7118 = vpop.f32.mrb[0].mxu0
        %v7119 = vadd.f32 0.0, %v7118
        %v7120 = vpop.f32.mrb[0].mxu0
        %v7121 = vpop.f32.mrb[0].mxu0
        %v7122 = vadd.f32 0.0, %v7121
        %v7123 = vpop.f32.mrb[0].mxu0
        %7124 = vmatprep.mubr.bf16.mxu0 0
        %7125 = vmatmul.mubr.bf16.gmra.mrb[0].mxu0 %v6984
        %v7126 = vpop.f32.mrb[0].mxu0
        %v7127 = vadd.f32 0.0, %v7126
        %v7128 = vpop.f32.mrb[0].mxu0
        %v7129 = vpop.f32.mrb[0].mxu0
        %v7130 = vadd.f32 0.0, %v7129
        %v7131 = vpop.f32.mrb[0].mxu0
        %7132 = vmatprep.mubr.bf16.mxu0 0
        %7133 = vmatmul.mubr.bf16.gmra.mrb[0].mxu0 %v6985
        %v7134 = vpop.f32.mrb[0].mxu0
        %v7135 = vadd.f32 0.0, %v7134
        %v7136 = vpop.f32.mrb[0].mxu0
        %v7137 = vpop.f32.mrb[0].mxu0
        %v7138 = vadd.f32 0.0, %v7137
        %v7139 = vpop.f32.mrb[0].mxu0
        %7140 = vmatprep.mubr.bf16.mxu0 0
        %7141 = vmatmul.mubr.bf16.gmra.mrb[0].mxu0 %v6986
        %v7142 = vpop.f32.mrb[0].mxu0
        %v7143 = vadd.f32 0.0, %v7142
        %v7144 = vpop.f32.mrb[0].mxu0
        %v7145 = vpop.f32.mrb[0].mxu0
        %v7146 = vadd.f32 0.0, %v7145
        %v7147 = vpop.f32.mrb[0].mxu0
        %7148 = vmatprep.mubr.bf16.mxu0 0
        %7149 = vmatmul.mubr.bf16.gmra.mrb[0].mxu0 %v6987
        %v7150 = vpop.f32.mrb[0].mxu0
        %v7151 = vadd.f32 0.0, %v7150
        %v7152 = vpop.f32.mrb[0].mxu0
        %v7153 = vpop.f32.mrb[0].mxu0
        %v7154 = vadd.f32 0.0, %v7153
        %v7155 = vpop.f32.mrb[0].mxu0
        %7156 = vmatprep.mubr.bf16.mxu0 0
        %7157 = vmatmul.mubr.bf16.gmra.mrb[0].mxu0 %v6988
        %v7158 = vpop.f32.mrb[0].mxu0
        %v7159 = vadd.f32 0.0, %v7158
        %v7160 = vpop.f32.mrb[0].mxu0
        %v7161 = vpop.f32.mrb[0].mxu0
        %v7162 = vadd.f32 0.0, %v7161
        %v7163 = vpop.f32.mrb[0].mxu0
        %7164 = vmatprep.mubr.bf16.mxu0 0
        %7165 = vmatmul.mubr.bf16.gmra.mrb[0].mxu0 %v6989
        %v7166 = vpop.f32.mrb[0].mxu0
        %v7167 = vadd.f32 0.0, %v7166
        %v7168 = vpop.f32.mrb[0].mxu0
        %v7169 = vpop.f32.mrb[0].mxu0
        %v7170 = vadd.f32 0.0, %v7169
        %v7171 = vpop.f32.mrb[0].mxu0
        %7172 = vmatprep.mubr.bf16.mxu0 0
        %7173 = vmatmul.mubr.bf16.gmra.mrb[0].mxu0 %v6990
        %v7174 = vpop.f32.mrb[0].mxu0
        %v7175 = vadd.f32 0.0, %v7174
        %v7176 = vpop.f32.mrb[0].mxu0
        %v7177 = vpop.f32.mrb[0].mxu0
        %v7178 = vadd.f32 0.0, %v7177
        %v7179 = vpop.f32.mrb[0].mxu0
        %7180 = vmatprep.mubr.bf16.mxu0 0
        %7181 = vmatmul.mubr.bf16.gmra.mrb[0].mxu0 %v6991
        %v7182 = vpop.f32.mrb[0].mxu0
        %v7183 = vadd.f32 0.0, %v7182
        %v7184 = vpop.f32.mrb[0].mxu0
        %v7185 = vpop.f32.mrb[0].mxu0
        %v7186 = vadd.f32 0.0, %v7185
        %v7187 = vpop.f32.mrb[0].mxu0
        %7188 = vmatprep.mubr.bf16.mxu0 0
        %7189 = vmatmul.mubr.bf16.gmra.mrb[0].mxu0 %v6992
        %v7190 = vpop.f32.mrb[0].mxu0
        %v7191 = vadd.f32 0.0, %v7190
        %v7192 = vpop.f32.mrb[0].mxu0
        %v7193 = vpop.f32.mrb[0].mxu0
        %v7194 = vadd.f32 0.0, %v7193
        %v7195 = vpop.f32.mrb[0].mxu0
        %7196 = vmatprep.mubr.bf16.mxu0 0
        %7197 = vmatmul.mubr.bf16.gmra.mrb[0].mxu0 %v6993
        %v7198 = vpop.f32.mrb[0].mxu0
        %v7199 = vadd.f32 0.0, %v7198
        %v7200 = vpop.f32.mrb[0].mxu0
        %v7201 = vpop.f32.mrb[0].mxu0
        %v7202 = vadd.f32 0.0, %v7201
        %v7203 = vpop.f32.mrb[0].mxu0
        %7204 = vmatprep.mubr.bf16.mxu0 0
        %7205 = vmatmul.mubr.bf16.gmra.mrb[0].mxu0 %v6994
        %v7206 = vpop.f32.mrb[0].mxu0
        %v7207 = vadd.f32 0.0, %v7206
        %v7208 = vpop.f32.mrb[0].mxu0
        %v7209 = vpop.f32.mrb[0].mxu0
        %v7210 = vadd.f32 0.0, %v7209
        %v7211 = vpop.f32.mrb[0].mxu0
        %7212 = vmatprep.mubr.bf16.mxu0 0
        %7213 = vmatmul.mubr.bf16.gmra.mrb[0].mxu0 %v6995
        %v7214 = vpop.f32.mrb[0].mxu0
        %v7215 = vadd.f32 0.0, %v7214
        %v7216 = vpop.f32.mrb[0].mxu0
        %v7217 = vpop.f32.mrb[0].mxu0
        %v7218 = vadd.f32 0.0, %v7217
        %v7219 = vpop.f32.mrb[0].mxu0
        %7220 = vdwg.mxu0
        %v7253 = vunpack.c.l.b16 %v6483
        %v7254 = vunpack.c.l.b16 %v6484
        %v7255 = vunpack.c.l.b16 %v6485
        %v7256 = vunpack.c.l.b16 %v6486
        %v7257 = vunpack.c.l.b16 %v6487
        %v7258 = vunpack.c.l.b16 %v6488
        %v7259 = vunpack.c.l.b16 %v6489
        %v7260 = vunpack.c.l.b16 %v6490
        %v7261 = vunpack.c.l.b16 %v6491
        %v7262 = vunpack.c.l.b16 %v6492
        %v7263 = vunpack.c.l.b16 %v6493
        %v7264 = vunpack.c.l.b16 %v6494
        %v7265 = vunpack.c.l.b16 %v6495
        %v7266 = vunpack.c.l.b16 %v6496
        %v7267 = vunpack.c.l.b16 %v6497
        %v7268 = vunpack.c.l.b16 %v6498
        %v7269 = vunpack.c.l.b16 %v6499
        %v7270 = vunpack.c.l.b16 %v6500
        %v7271 = vunpack.c.l.b16 %v6501
        %v7272 = vunpack.c.l.b16 %v6502
        %v7273 = vunpack.c.l.b16 %v6503
        %v7274 = vunpack.c.l.b16 %v6504
        %v7275 = vunpack.c.l.b16 %v6505
        %v7276 = vunpack.c.l.b16 %v6506
        %v7277 = vunpack.c.l.b16 %v6507
        %v7278 = vunpack.c.l.b16 %v6508
        %v7279 = vunpack.c.l.b16 %v6509
        %v7280 = vunpack.c.l.b16 %v6510
        %v7281 = vunpack.c.l.b16 %v6511
        %v7282 = vunpack.c.l.b16 %v6512
        %v7283 = vunpack.c.l.b16 %v6513
        %v7284 = vunpack.c.l.b16 %v6514
        %v7285 = vpack.c.b16 %v7254, %v7253
        %v7286 = vpack.c.b16 %v7256, %v7255
        %v7287 = vpack.c.b16 %v7258, %v7257
        %v7288 = vpack.c.b16 %v7260, %v7259
        %v7289 = vpack.c.b16 %v7262, %v7261
        %v7290 = vpack.c.b16 %v7264, %v7263
        %v7291 = vpack.c.b16 %v7266, %v7265
        %v7292 = vpack.c.b16 %v7268, %v7267
        %v7293 = vpack.c.b16 %v7270, %v7269
        %v7294 = vpack.c.b16 %v7272, %v7271
        %v7295 = vpack.c.b16 %v7274, %v7273
        %v7296 = vpack.c.b16 %v7276, %v7275
        %v7297 = vpack.c.b16 %v7278, %v7277
        %v7298 = vpack.c.b16 %v7280, %v7279
        %v7299 = vpack.c.b16 %v7282, %v7281
        %v7300 = vpack.c.b16 %v7284, %v7283
        %v7333 = vunpack.c.l.b16 %v6515
        %v7334 = vunpack.c.l.b16 %v6516
        %v7335 = vunpack.c.l.b16 %v6517
        %v7336 = vunpack.c.l.b16 %v6518
        %v7337 = vunpack.c.l.b16 %v6519
        %v7338 = vunpack.c.l.b16 %v6520
        %v7339 = vunpack.c.l.b16 %v6521
        %v7340 = vunpack.c.l.b16 %v6522
        %v7341 = vunpack.c.l.b16 %v6523
        %v7342 = vunpack.c.l.b16 %v6524
        %v7343 = vunpack.c.l.b16 %v6525
        %v7344 = vunpack.c.l.b16 %v6526
        %v7345 = vunpack.c.l.b16 %v6527
        %v7346 = vunpack.c.l.b16 %v6528
        %v7347 = vunpack.c.l.b16 %v6529
        %v7348 = vunpack.c.l.b16 %v6530
        %v7349 = vpack.c.b16 %v7334, %v7333
        %v7350 = vpack.c.b16 %v7336, %v7335
        %v7351 = vpack.c.b16 %v7338, %v7337
        %v7352 = vpack.c.b16 %v7340, %v7339
        %v7353 = vpack.c.b16 %v7342, %v7341
        %v7354 = vpack.c.b16 %v7344, %v7343
        %v7355 = vpack.c.b16 %v7346, %v7345
        %v7356 = vpack.c.b16 %v7348, %v7347
        %7365 = vmatprep.subr.bf16.mxu0 0
        %7366 = vmatpush1.bf16.msra.mxu0 %v7349
        %7367 = vmatprep.subr.bf16.mxu0 0
        %7368 = vmatpush1.bf16.msra.mxu0 %v7350
        %7369 = vmatprep.subr.bf16.mxu0 0
        %7370 = vmatpush1.bf16.msra.mxu0 %v7351
        %7371 = vmatprep.subr.bf16.mxu0 0
        %7372 = vmatpush1.bf16.msra.mxu0 %v7352
        %7373 = vmatprep.subr.bf16.mxu0 0
        %7374 = vmatpush1.bf16.msra.mxu0 %v7353
        %7375 = vmatprep.subr.bf16.mxu0 0
        %7376 = vmatpush1.bf16.msra.mxu0 %v7354
        %7377 = vmatprep.subr.bf16.mxu0 0
        %7378 = vmatpush1.bf16.msra.mxu0 %v7355
        %7379 = vmatprep.subr.bf16.mxu0 0
        %7380 = vmatpush1.bf16.msra.mxu0 %v7356
        %7381 = vmatprep.subr.bf16.mxu0 0
        %7382 = vmatpush1.bf16.msra.mxu0 0
        %7383 = vmatprep.subr.bf16.mxu0 0
        %7384 = vmatpush1.bf16.msra.mxu0 0
        %7385 = vmatprep.subr.bf16.mxu0 0
        %7386 = vmatpush1.bf16.msra.mxu0 0
        %7387 = vmatprep.subr.bf16.mxu0 0
        %7388 = vmatpush1.bf16.msra.mxu0 0
        %7389 = vmatprep.subr.bf16.mxu0 0
        %7390 = vmatpush1.bf16.msra.mxu0 0
        %7391 = vmatprep.subr.bf16.mxu0 0
        %7392 = vmatpush1.bf16.msra.mxu0 0
        %7393 = vmatprep.subr.bf16.mxu0 0
        %7394 = vmatpush1.bf16.msra.mxu0 0
        %7395 = vmatprep.subr.bf16.mxu0 0
        %7396 = vmatpush1.bf16.msra.mxu0 0
        %7397 = vmatprep.mubr.bf16.mxu0 0
        %7398 = vmatmul.mubr.bf16.gmra.mrb[0].mxu0 %v7285
        %v7399 = vpop.f32.mrb[0].mxu0
        %v7400 = vadd.f32 %v7095, %v7399
        %v7401 = vpop.f32.mrb[0].mxu0
        %v7402 = vpop.f32.mrb[0].mxu0
        %v7403 = vadd.f32 %v7098, %v7402
        %v7404 = vpop.f32.mrb[0].mxu0
        %7405 = vmatprep.mubr.bf16.mxu0 0
        %7406 = vmatmul.mubr.bf16.gmra.mrb[0].mxu0 %v7286
        %v7407 = vpop.f32.mrb[0].mxu0
        %v7408 = vadd.f32 %v7103, %v7407
        %v7409 = vpop.f32.mrb[0].mxu0
        %v7410 = vpop.f32.mrb[0].mxu0
        %v7411 = vadd.f32 %v7106, %v7410
        %v7412 = vpop.f32.mrb[0].mxu0
        %7413 = vmatprep.mubr.bf16.mxu0 0
        %7414 = vmatmul.mubr.bf16.gmra.mrb[0].mxu0 %v7287
        %v7415 = vpop.f32.mrb[0].mxu0
        %v7416 = vadd.f32 %v7111, %v7415
        %v7417 = vpop.f32.mrb[0].mxu0
        %v7418 = vpop.f32.mrb[0].mxu0
        %v7419 = vadd.f32 %v7114, %v7418
        %v7420 = vpop.f32.mrb[0].mxu0
        %7421 = vmatprep.mubr.bf16.mxu0 0
        %7422 = vmatmul.mubr.bf16.gmra.mrb[0].mxu0 %v7288
        %v7423 = vpop.f32.mrb[0].mxu0
        %v7424 = vadd.f32 %v7119, %v7423
        %v7425 = vpop.f32.mrb[0].mxu0
        %v7426 = vpop.f32.mrb[0].mxu0
        %v7427 = vadd.f32 %v7122, %v7426
        %v7428 = vpop.f32.mrb[0].mxu0
        %7429 = vmatprep.mubr.bf16.mxu0 0
        %7430 = vmatmul.mubr.bf16.gmra.mrb[0].mxu0 %v7289
        %v7431 = vpop.f32.mrb[0].mxu0
        %v7432 = vadd.f32 %v7127, %v7431
        %v7433 = vpop.f32.mrb[0].mxu0
        %v7434 = vpop.f32.mrb[0].mxu0
        %v7435 = vadd.f32 %v7130, %v7434
        %v7436 = vpop.f32.mrb[0].mxu0
        %7437 = vmatprep.mubr.bf16.mxu0 0
        %7438 = vmatmul.mubr.bf16.gmra.mrb[0].mxu0 %v7290
        %v7439 = vpop.f32.mrb[0].mxu0
        %v7440 = vadd.f32 %v7135, %v7439
        %v7441 = vpop.f32.mrb[0].mxu0
        %v7442 = vpop.f32.mrb[0].mxu0
        %v7443 = vadd.f32 %v7138, %v7442
        %v7444 = vpop.f32.mrb[0].mxu0
        %7445 = vmatprep.mubr.bf16.mxu0 0
        %7446 = vmatmul.mubr.bf16.gmra.mrb[0].mxu0 %v7291
        %v7447 = vpop.f32.mrb[0].mxu0
        %v7448 = vadd.f32 %v7143, %v7447
        %v7449 = vpop.f32.mrb[0].mxu0
        %v7450 = vpop.f32.mrb[0].mxu0
        %v7451 = vadd.f32 %v7146, %v7450
        %v7452 = vpop.f32.mrb[0].mxu0
        %7453 = vmatprep.mubr.bf16.mxu0 0
        %7454 = vmatmul.mubr.bf16.gmra.mrb[0].mxu0 %v7292
        %v7455 = vpop.f32.mrb[0].mxu0
        %v7456 = vadd.f32 %v7151, %v7455
        %v7457 = vpop.f32.mrb[0].mxu0
        %v7458 = vpop.f32.mrb[0].mxu0
        %v7459 = vadd.f32 %v7154, %v7458
        %v7460 = vpop.f32.mrb[0].mxu0
        %7461 = vmatprep.mubr.bf16.mxu0 0
        %7462 = vmatmul.mubr.bf16.gmra.mrb[0].mxu0 %v7293
        %v7463 = vpop.f32.mrb[0].mxu0
        %v7464 = vadd.f32 %v7159, %v7463
        %v7465 = vpop.f32.mrb[0].mxu0
        %v7466 = vpop.f32.mrb[0].mxu0
        %v7467 = vadd.f32 %v7162, %v7466
        %v7468 = vpop.f32.mrb[0].mxu0
        %7469 = vmatprep.mubr.bf16.mxu0 0
        %7470 = vmatmul.mubr.bf16.gmra.mrb[0].mxu0 %v7294
        %v7471 = vpop.f32.mrb[0].mxu0
        %v7472 = vadd.f32 %v7167, %v7471
        %v7473 = vpop.f32.mrb[0].mxu0
        %v7474 = vpop.f32.mrb[0].mxu0
        %v7475 = vadd.f32 %v7170, %v7474
        %v7476 = vpop.f32.mrb[0].mxu0
        %7477 = vmatprep.mubr.bf16.mxu0 0
        %7478 = vmatmul.mubr.bf16.gmra.mrb[0].mxu0 %v7295
        %v7479 = vpop.f32.mrb[0].mxu0
        %v7480 = vadd.f32 %v7175, %v7479
        %v7481 = vpop.f32.mrb[0].mxu0
        %v7482 = vpop.f32.mrb[0].mxu0
        %v7483 = vadd.f32 %v7178, %v7482
        %v7484 = vpop.f32.mrb[0].mxu0
        %7485 = vmatprep.mubr.bf16.mxu0 0
        %7486 = vmatmul.mubr.bf16.gmra.mrb[0].mxu0 %v7296
        %v7487 = vpop.f32.mrb[0].mxu0
        %v7488 = vadd.f32 %v7183, %v7487
        %v7489 = vpop.f32.mrb[0].mxu0
        %v7490 = vpop.f32.mrb[0].mxu0
        %v7491 = vadd.f32 %v7186, %v7490
        %v7492 = vpop.f32.mrb[0].mxu0
        %7493 = vmatprep.mubr.bf16.mxu0 0
        %7494 = vmatmul.mubr.bf16.gmra.mrb[0].mxu0 %v7297
        %v7495 = vpop.f32.mrb[0].mxu0
        %v7496 = vadd.f32 %v7191, %v7495
        %v7497 = vpop.f32.mrb[0].mxu0
        %v7498 = vpop.f32.mrb[0].mxu0
        %v7499 = vadd.f32 %v7194, %v7498
        %v7500 = vpop.f32.mrb[0].mxu0
        %7501 = vmatprep.mubr.bf16.mxu0 0
        %7502 = vmatmul.mubr.bf16.gmra.mrb[0].mxu0 %v7298
        %v7503 = vpop.f32.mrb[0].mxu0
        %v7504 = vadd.f32 %v7199, %v7503
        %v7505 = vpop.f32.mrb[0].mxu0
        %v7506 = vpop.f32.mrb[0].mxu0
        %v7507 = vadd.f32 %v7202, %v7506
        %v7508 = vpop.f32.mrb[0].mxu0
        %7509 = vmatprep.mubr.bf16.mxu0 0
        %7510 = vmatmul.mubr.bf16.gmra.mrb[0].mxu0 %v7299
        %v7511 = vpop.f32.mrb[0].mxu0
        %v7512 = vadd.f32 %v7207, %v7511
        %v7513 = vpop.f32.mrb[0].mxu0
        %v7514 = vpop.f32.mrb[0].mxu0
        %v7515 = vadd.f32 %v7210, %v7514
        %v7516 = vpop.f32.mrb[0].mxu0
        %7517 = vmatprep.mubr.bf16.mxu0 0
        %7518 = vmatmul.mubr.bf16.gmra.mrb[0].mxu0 %v7300
        %v7519 = vpop.f32.mrb[0].mxu0
        %v7520 = vadd.f32 %v7215, %v7519
        %v7521 = vpop.f32.mrb[0].mxu0
        %v7522 = vpop.f32.mrb[0].mxu0
        %v7523 = vadd.f32 %v7218, %v7522
        %v7524 = vpop.f32.mrb[0].mxu0
        %7525 = vdwg.mxu0
        %v7526 = vld [vmem:[#allocation3] sm:$0xe]
        %v7527 = vld [vmem:[#allocation3 + $0xc] sm:$0xe]
        %v7528 = vld [vmem:[#allocation3 + $0x18] sm:$0xe]
        %v7529 = vld [vmem:[#allocation3 + $0x24] sm:$0xe]
        %v7530 = vld [vmem:[#allocation3 + $0x30] sm:$0xe]
        %v7531 = vld [vmem:[#allocation3 + $0x3c] sm:$0xe]
        %v7532 = vld [vmem:[#allocation3 + $0x48] sm:$0xe]
        %v7533 = vld [vmem:[#allocation3 + $0x54] sm:$0xe]
        %v7534 = vld [vmem:[#allocation3 + $0x60] sm:$0xe]
        %v7535 = vld [vmem:[#allocation3 + $0x6c] sm:$0xe]
        %v7536 = vld [vmem:[#allocation3 + $0x78] sm:$0xe]
        %v7537 = vld [vmem:[#allocation3 + $0x84] sm:$0xe]
        %v7538 = vld [vmem:[#allocation3 + $0x90] sm:$0xe]
        %v7539 = vld [vmem:[#allocation3 + $0x9c] sm:$0xe]
        %v7540 = vld [vmem:[#allocation3 + $0xa8] sm:$0xe]
        %v7541 = vld [vmem:[#allocation3 + $0xb4] sm:$0xe]
        %v7574 = vrot.slane %v7526, 5
        %v7575 = vrot.slane %v7574, 4
        %v7576 = vrot.slane %v6484, 5
        %v7577 = vsel %vm2171, %v7575, %v7576
        %v7578 = vrot.slane %v7576, 4
        %v7579 = vrot.slane %v6531, 5
        %v7580 = vsel %vm2171, %v7578, %v7579
        %v7581 = vrot.slane %v7527, 5
        %v7582 = vrot.slane %v7581, 4
        %v7583 = vrot.slane %v6486, 5
        %v7584 = vsel %vm2171, %v7582, %v7583
        %v7585 = vrot.slane %v7583, 4
        %v7586 = vrot.slane %v6532, 5
        %v7587 = vsel %vm2171, %v7585, %v7586
        %v7588 = vrot.slane %v7528, 5
        %v7589 = vrot.slane %v7588, 4
        %v7590 = vrot.slane %v6488, 5
        %v7591 = vsel %vm2171, %v7589, %v7590
        %v7592 = vrot.slane %v7590, 4
        %v7593 = vrot.slane %v6533, 5
        %v7594 = vsel %vm2171, %v7592, %v7593
        %v7595 = vrot.slane %v7529, 5
        %v7596 = vrot.slane %v7595, 4
        %v7597 = vrot.slane %v6490, 5
        %v7598 = vsel %vm2171, %v7596, %v7597
        %v7599 = vrot.slane %v7597, 4
        %v7600 = vrot.slane %v6534, 5
        %v7601 = vsel %vm2171, %v7599, %v7600
        %v7602 = vrot.slane %v7530, 5
        %v7603 = vrot.slane %v7602, 4
        %v7604 = vrot.slane %v6492, 5
        %v7605 = vsel %vm2171, %v7603, %v7604
        %v7606 = vrot.slane %v7604, 4
        %v7607 = vrot.slane %v6535, 5
        %v7608 = vsel %vm2171, %v7606, %v7607
        %v7609 = vrot.slane %v7531, 5
        %v7610 = vrot.slane %v7609, 4
        %v7611 = vrot.slane %v6494, 5
        %v7612 = vsel %vm2171, %v7610, %v7611
        %v7613 = vrot.slane %v7611, 4
        %v7614 = vrot.slane %v6536, 5
        %v7615 = vsel %vm2171, %v7613, %v7614
        %v7616 = vrot.slane %v7532, 5
        %v7617 = vrot.slane %v7616, 4
        %v7618 = vrot.slane %v6496, 5
        %v7619 = vsel %vm2171, %v7617, %v7618
        %v7620 = vrot.slane %v7618, 4
        %v7621 = vrot.slane %v6537, 5
        %v7622 = vsel %vm2171, %v7620, %v7621
        %v7623 = vrot.slane %v7533, 5
        %v7624 = vrot.slane %v7623, 4
        %v7625 = vrot.slane %v6498, 5
        %v7626 = vsel %vm2171, %v7624, %v7625
        %v7627 = vrot.slane %v7625, 4
        %v7628 = vrot.slane %v6538, 5
        %v7629 = vsel %vm2171, %v7627, %v7628
        %v7630 = vrot.slane %v7534, 5
        %v7631 = vrot.slane %v7630, 4
        %v7632 = vrot.slane %v6500, 5
        %v7633 = vsel %vm2171, %v7631, %v7632
        %v7634 = vrot.slane %v7632, 4
        %v7635 = vrot.slane %v6539, 5
        %v7636 = vsel %vm2171, %v7634, %v7635
        %v7637 = vrot.slane %v7535, 5
        %v7638 = vrot.slane %v7637, 4
        %v7639 = vrot.slane %v6502, 5
        %v7640 = vsel %vm2171, %v7638, %v7639
        %v7641 = vrot.slane %v7639, 4
        %v7642 = vrot.slane %v6540, 5
        %v7643 = vsel %vm2171, %v7641, %v7642
        %v7644 = vrot.slane %v7536, 5
        %v7645 = vrot.slane %v7644, 4
        %v7646 = vrot.slane %v6504, 5
        %v7647 = vsel %vm2171, %v7645, %v7646
        %v7648 = vrot.slane %v7646, 4
        %v7649 = vrot.slane %v6541, 5
        %v7650 = vsel %vm2171, %v7648, %v7649
        %v7651 = vrot.slane %v7537, 5
        %v7652 = vrot.slane %v7651, 4
        %v7653 = vrot.slane %v6506, 5
        %v7654 = vsel %vm2171, %v7652, %v7653
        %v7655 = vrot.slane %v7653, 4
        %v7656 = vrot.slane %v6542, 5
        %v7657 = vsel %vm2171, %v7655, %v7656
        %v7658 = vrot.slane %v7538, 5
        %v7659 = vrot.slane %v7658, 4
        %v7660 = vrot.slane %v6508, 5
        %v7661 = vsel %vm2171, %v7659, %v7660
        %v7662 = vrot.slane %v7660, 4
        %v7663 = vrot.slane %v6543, 5
        %v7664 = vsel %vm2171, %v7662, %v7663
        %v7665 = vrot.slane %v7539, 5
        %v7666 = vrot.slane %v7665, 4
        %v7667 = vrot.slane %v6510, 5
        %v7668 = vsel %vm2171, %v7666, %v7667
        %v7669 = vrot.slane %v7667, 4
        %v7670 = vrot.slane %v6544, 5
        %v7671 = vsel %vm2171, %v7669, %v7670
        %v7672 = vrot.slane %v7540, 5
        %v7673 = vrot.slane %v7672, 4
        %v7674 = vrot.slane %v6512, 5
        %v7675 = vsel %vm2171, %v7673, %v7674
        %v7676 = vrot.slane %v7674, 4
        %v7677 = vrot.slane %v6545, 5
        %v7678 = vsel %vm2171, %v7676, %v7677
        %v7679 = vrot.slane %v7541, 5
        %v7680 = vrot.slane %v7679, 4
        %v7681 = vrot.slane %v6514, 5
        %v7682 = vsel %vm2171, %v7680, %v7681
        %v7683 = vrot.slane %v7681, 4
        %v7684 = vrot.slane %v6546, 5
        %v7685 = vsel %vm2171, %v7683, %v7684
        %s7686 = scalar_lea.vmem [#allocation4], 128
        %v7687 = vld [vmem:[%s7686] sm:$0xf]
        %v7688 = vld [vmem:[%s7686 + $0x4] sm:$0xf]
        %v7689 = vld [vmem:[%s7686 + $0x8] sm:$0xf]
        %v7690 = vld [vmem:[%s7686 + $0xc] sm:$0xf]
        %v7691 = vld [vmem:[%s7686 + $0x10] sm:$0xf]
        %v7692 = vld [vmem:[%s7686 + $0x14] sm:$0xf]
        %v7693 = vld [vmem:[%s7686 + $0x18] sm:$0xf]
        %v7694 = vld [vmem:[%s7686 + $0x1c] sm:$0xf]
        %v7695 = vld [vmem:[%s7686 + $0x20] sm:$0xf]
        %v7696 = vld [vmem:[%s7686 + $0x24] sm:$0xf]
        %v7697 = vld [vmem:[%s7686 + $0x28] sm:$0xf]
        %v7698 = vld [vmem:[%s7686 + $0x2c] sm:$0xf]
        %v7699 = vld [vmem:[%s7686 + $0x30] sm:$0xf]
        %v7700 = vld [vmem:[%s7686 + $0x34] sm:$0xf]
        %v7701 = vld [vmem:[%s7686 + $0x38] sm:$0xf]
        %v7702 = vld [vmem:[%s7686 + $0x3c] sm:$0xf]
        %v7703 = vunpack.c.l.b16 %v7577
        %v7704 = vunpack.c.l.b16 %v7580
        %v7705 = vunpack.c.l.b16 %v7584
        %v7706 = vunpack.c.l.b16 %v7587
        %v7707 = vunpack.c.l.b16 %v7591
        %v7708 = vunpack.c.l.b16 %v7594
        %v7709 = vunpack.c.l.b16 %v7598
        %v7710 = vunpack.c.l.b16 %v7601
        %v7711 = vunpack.c.l.b16 %v7605
        %v7712 = vunpack.c.l.b16 %v7608
        %v7713 = vunpack.c.l.b16 %v7612
        %v7714 = vunpack.c.l.b16 %v7615
        %v7715 = vunpack.c.l.b16 %v7619
        %v7716 = vunpack.c.l.b16 %v7622
        %v7717 = vunpack.c.l.b16 %v7626
        %v7718 = vunpack.c.l.b16 %v7629
        %v7719 = vunpack.c.l.b16 %v7633
        %v7720 = vunpack.c.l.b16 %v7636
        %v7721 = vunpack.c.l.b16 %v7640
        %v7722 = vunpack.c.l.b16 %v7643
        %v7723 = vunpack.c.l.b16 %v7647
        %v7724 = vunpack.c.l.b16 %v7650
        %v7725 = vunpack.c.l.b16 %v7654
        %v7726 = vunpack.c.l.b16 %v7657
        %v7727 = vunpack.c.l.b16 %v7661
        %v7728 = vunpack.c.l.b16 %v7664
        %v7729 = vunpack.c.l.b16 %v7668
        %v7730 = vunpack.c.l.b16 %v7671
        %v7731 = vunpack.c.l.b16 %v7675
        %v7732 = vunpack.c.l.b16 %v7678
        %v7733 = vunpack.c.l.b16 %v7682
        %v7734 = vunpack.c.l.b16 %v7685
        %v7735 = vpack.c.b16 %v7704, %v7703
        %v7736 = vpack.c.b16 %v7706, %v7705
        %v7737 = vpack.c.b16 %v7708, %v7707
        %v7738 = vpack.c.b16 %v7710, %v7709
        %v7739 = vpack.c.b16 %v7712, %v7711
        %v7740 = vpack.c.b16 %v7714, %v7713
        %v7741 = vpack.c.b16 %v7716, %v7715
        %v7742 = vpack.c.b16 %v7718, %v7717
        %v7743 = vpack.c.b16 %v7720, %v7719
        %v7744 = vpack.c.b16 %v7722, %v7721
        %v7745 = vpack.c.b16 %v7724, %v7723
        %v7746 = vpack.c.b16 %v7726, %v7725
        %v7747 = vpack.c.b16 %v7728, %v7727
        %v7748 = vpack.c.b16 %v7730, %v7729
        %v7749 = vpack.c.b16 %v7732, %v7731
        %v7750 = vpack.c.b16 %v7734, %v7733
        %v7783 = vunpack.c.l.b16 %v7687
        %v7784 = vunpack.c.l.b16 %v7688
        %v7785 = vunpack.c.l.b16 %v7689
        %v7786 = vunpack.c.l.b16 %v7690
        %v7787 = vunpack.c.l.b16 %v7691
        %v7788 = vunpack.c.l.b16 %v7692
        %v7789 = vunpack.c.l.b16 %v7693
        %v7790 = vunpack.c.l.b16 %v7694
        %v7791 = vunpack.c.l.b16 %v7695
        %v7792 = vunpack.c.l.b16 %v7696
        %v7793 = vunpack.c.l.b16 %v7697
        %v7794 = vunpack.c.l.b16 %v7698
        %v7795 = vunpack.c.l.b16 %v7699
        %v7796 = vunpack.c.l.b16 %v7700
        %v7797 = vunpack.c.l.b16 %v7701
        %v7798 = vunpack.c.l.b16 %v7702
        %v7799 = vpack.c.b16 %v7784, %v7783
        %v7800 = vpack.c.b16 %v7786, %v7785
        %v7801 = vpack.c.b16 %v7788, %v7787
        %v7802 = vpack.c.b16 %v7790, %v7789
        %v7803 = vpack.c.b16 %v7792, %v7791
        %v7804 = vpack.c.b16 %v7794, %v7793
        %v7805 = vpack.c.b16 %v7796, %v7795
        %v7806 = vpack.c.b16 %v7798, %v7797
        %7815 = vmatprep.subr.bf16.mxu0 0
        %7816 = vmatpush1.bf16.msra.mxu0 %v7799
        %7817 = vmatprep.subr.bf16.mxu0 0
        %7818 = vmatpush1.bf16.msra.mxu0 %v7800
        %7819 = vmatprep.subr.bf16.mxu0 0
        %7820 = vmatpush1.bf16.msra.mxu0 %v7801
        %7821 = vmatprep.subr.bf16.mxu0 0
        %7822 = vmatpush1.bf16.msra.mxu0 %v7802
        %7823 = vmatprep.subr.bf16.mxu0 0
        %7824 = vmatpush1.bf16.msra.mxu0 %v7803
        %7825 = vmatprep.subr.bf16.mxu0 0
        %7826 = vmatpush1.bf16.msra.mxu0 %v7804
        %7827 = vmatprep.subr.bf16.mxu0 0
        %7828 = vmatpush1.bf16.msra.mxu0 %v7805
        %7829 = vmatprep.subr.bf16.mxu0 0
        %7830 = vmatpush1.bf16.msra.mxu0 %v7806
        %7831 = vmatprep.subr.bf16.mxu0 0
        %7832 = vmatpush1.bf16.msra.mxu0 0
        %7833 = vmatprep.subr.bf16.mxu0 0
        %7834 = vmatpush1.bf16.msra.mxu0 0
        %7835 = vmatprep.subr.bf16.mxu0 0
        %7836 = vmatpush1.bf16.msra.mxu0 0
        %7837 = vmatprep.subr.bf16.mxu0 0
        %7838 = vmatpush1.bf16.msra.mxu0 0
        %7839 = vmatprep.subr.bf16.mxu0 0
        %7840 = vmatpush1.bf16.msra.mxu0 0
        %7841 = vmatprep.subr.bf16.mxu0 0
        %7842 = vmatpush1.bf16.msra.mxu0 0
        %7843 = vmatprep.subr.bf16.mxu0 0
        %7844 = vmatpush1.bf16.msra.mxu0 0
        %7845 = vmatprep.subr.bf16.mxu0 0
        %7846 = vmatpush1.bf16.msra.mxu0 0
        %7847 = vmatprep.mubr.bf16.mxu0 0
        %7848 = vmatmul.mubr.bf16.gmra.mrb[0].mxu0 %v7735
        %v7849 = vpop.f32.mrb[0].mxu0
        %v7850 = vadd.f32 0.0, %v7849
        %v7851 = vpop.f32.mrb[0].mxu0
        %v7852 = vpop.f32.mrb[0].mxu0
        %v7853 = vadd.f32 0.0, %v7852
        %v7854 = vpop.f32.mrb[0].mxu0
        %7855 = vmatprep.mubr.bf16.mxu0 0
        %7856 = vmatmul.mubr.bf16.gmra.mrb[0].mxu0 %v7736
        %v7857 = vpop.f32.mrb[0].mxu0
        %v7858 = vadd.f32 0.0, %v7857
        %v7859 = vpop.f32.mrb[0].mxu0
        %v7860 = vpop.f32.mrb[0].mxu0
        %v7861 = vadd.f32 0.0, %v7860
        %v7862 = vpop.f32.mrb[0].mxu0
        %7863 = vmatprep.mubr.bf16.mxu0 0
        %7864 = vmatmul.mubr.bf16.gmra.mrb[0].mxu0 %v7737
        %v7865 = vpop.f32.mrb[0].mxu0
        %v7866 = vadd.f32 0.0, %v7865
        %v7867 = vpop.f32.mrb[0].mxu0
        %v7868 = vpop.f32.mrb[0].mxu0
        %v7869 = vadd.f32 0.0, %v7868
        %v7870 = vpop.f32.mrb[0].mxu0
        %7871 = vmatprep.mubr.bf16.mxu0 0
        %7872 = vmatmul.mubr.bf16.gmra.mrb[0].mxu0 %v7738
        %v7873 = vpop.f32.mrb[0].mxu0
        %v7874 = vadd.f32 0.0, %v7873
        %v7875 = vpop.f32.mrb[0].mxu0
        %v7876 = vpop.f32.mrb[0].mxu0
        %v7877 = vadd.f32 0.0, %v7876
        %v7878 = vpop.f32.mrb[0].mxu0
        %7879 = vmatprep.mubr.bf16.mxu0 0
        %7880 = vmatmul.mubr.bf16.gmra.mrb[0].mxu0 %v7739
        %v7881 = vpop.f32.mrb[0].mxu0
        %v7882 = vadd.f32 0.0, %v7881
        %v7883 = vpop.f32.mrb[0].mxu0
        %v7884 = vpop.f32.mrb[0].mxu0
        %v7885 = vadd.f32 0.0, %v7884
        %v7886 = vpop.f32.mrb[0].mxu0
        %7887 = vmatprep.mubr.bf16.mxu0 0
        %7888 = vmatmul.mubr.bf16.gmra.mrb[0].mxu0 %v7740
        %v7889 = vpop.f32.mrb[0].mxu0
        %v7890 = vadd.f32 0.0, %v7889
        %v7891 = vpop.f32.mrb[0].mxu0
        %v7892 = vpop.f32.mrb[0].mxu0
        %v7893 = vadd.f32 0.0, %v7892
        %v7894 = vpop.f32.mrb[0].mxu0
        %7895 = vmatprep.mubr.bf16.mxu0 0
        %7896 = vmatmul.mubr.bf16.gmra.mrb[0].mxu0 %v7741
        %v7897 = vpop.f32.mrb[0].mxu0
        %v7898 = vadd.f32 0.0, %v7897
        %v7899 = vpop.f32.mrb[0].mxu0
        %v7900 = vpop.f32.mrb[0].mxu0
        %v7901 = vadd.f32 0.0, %v7900
        %v7902 = vpop.f32.mrb[0].mxu0
        %7903 = vmatprep.mubr.bf16.mxu0 0
        %7904 = vmatmul.mubr.bf16.gmra.mrb[0].mxu0 %v7742
        %v7905 = vpop.f32.mrb[0].mxu0
        %v7906 = vadd.f32 0.0, %v7905
        %v7907 = vpop.f32.mrb[0].mxu0
        %v7908 = vpop.f32.mrb[0].mxu0
        %v7909 = vadd.f32 0.0, %v7908
        %v7910 = vpop.f32.mrb[0].mxu0
        %7911 = vmatprep.mubr.bf16.mxu0 0
        %7912 = vmatmul.mubr.bf16.gmra.mrb[0].mxu0 %v7743
        %v7913 = vpop.f32.mrb[0].mxu0
        %v7914 = vadd.f32 0.0, %v7913
        %v7915 = vpop.f32.mrb[0].mxu0
        %v7916 = vpop.f32.mrb[0].mxu0
        %v7917 = vadd.f32 0.0, %v7916
        %v7918 = vpop.f32.mrb[0].mxu0
        %7919 = vmatprep.mubr.bf16.mxu0 0
        %7920 = vmatmul.mubr.bf16.gmra.mrb[0].mxu0 %v7744
        %v7921 = vpop.f32.mrb[0].mxu0
        %v7922 = vadd.f32 0.0, %v7921
        %v7923 = vpop.f32.mrb[0].mxu0
        %v7924 = vpop.f32.mrb[0].mxu0
        %v7925 = vadd.f32 0.0, %v7924
        %v7926 = vpop.f32.mrb[0].mxu0
        %7927 = vmatprep.mubr.bf16.mxu0 0
        %7928 = vmatmul.mubr.bf16.gmra.mrb[0].mxu0 %v7745
        %v7929 = vpop.f32.mrb[0].mxu0
        %v7930 = vadd.f32 0.0, %v7929
        %v7931 = vpop.f32.mrb[0].mxu0
        %v7932 = vpop.f32.mrb[0].mxu0
        %v7933 = vadd.f32 0.0, %v7932
        %v7934 = vpop.f32.mrb[0].mxu0
        %7935 = vmatprep.mubr.bf16.mxu0 0
        %7936 = vmatmul.mubr.bf16.gmra.mrb[0].mxu0 %v7746
        %v7937 = vpop.f32.mrb[0].mxu0
        %v7938 = vadd.f32 0.0, %v7937
        %v7939 = vpop.f32.mrb[0].mxu0
        %v7940 = vpop.f32.mrb[0].mxu0
        %v7941 = vadd.f32 0.0, %v7940
        %v7942 = vpop.f32.mrb[0].mxu0
        %7943 = vmatprep.mubr.bf16.mxu0 0
        %7944 = vmatmul.mubr.bf16.gmra.mrb[0].mxu0 %v7747
        %v7945 = vpop.f32.mrb[0].mxu0
        %v7946 = vadd.f32 0.0, %v7945
        %v7947 = vpop.f32.mrb[0].mxu0
        %v7948 = vpop.f32.mrb[0].mxu0
        %v7949 = vadd.f32 0.0, %v7948
        %v7950 = vpop.f32.mrb[0].mxu0
        %7951 = vmatprep.mubr.bf16.mxu0 0
        %7952 = vmatmul.mubr.bf16.gmra.mrb[0].mxu0 %v7748
        %v7953 = vpop.f32.mrb[0].mxu0
        %v7954 = vadd.f32 0.0, %v7953
        %v7955 = vpop.f32.mrb[0].mxu0
        %v7956 = vpop.f32.mrb[0].mxu0
        %v7957 = vadd.f32 0.0, %v7956
        %v7958 = vpop.f32.mrb[0].mxu0
        %7959 = vmatprep.mubr.bf16.mxu0 0
        %7960 = vmatmul.mubr.bf16.gmra.mrb[0].mxu0 %v7749
        %v7961 = vpop.f32.mrb[0].mxu0
        %v7962 = vadd.f32 0.0, %v7961
        %v7963 = vpop.f32.mrb[0].mxu0
        %v7964 = vpop.f32.mrb[0].mxu0
        %v7965 = vadd.f32 0.0, %v7964
        %v7966 = vpop.f32.mrb[0].mxu0
        %7967 = vmatprep.mubr.bf16.mxu0 0
        %7968 = vmatmul.mubr.bf16.gmra.mrb[0].mxu0 %v7750
        %v7969 = vpop.f32.mrb[0].mxu0
        %v7970 = vadd.f32 0.0, %v7969
        %v7971 = vpop.f32.mrb[0].mxu0
        %v7972 = vpop.f32.mrb[0].mxu0
        %v7973 = vadd.f32 0.0, %v7972
        %v7974 = vpop.f32.mrb[0].mxu0
        %7975 = vdwg.mxu0
        %v7976 = vadd.f32 %v7400, %v7850
        %v7977 = vadd.f32 %v7403, %v7853
        %v7978 = vadd.f32 %v7408, %v7858
        %v7979 = vadd.f32 %v7411, %v7861
        %v7980 = vadd.f32 %v7416, %v7866
        %v7981 = vadd.f32 %v7419, %v7869
        %v7982 = vadd.f32 %v7424, %v7874
        %v7983 = vadd.f32 %v7427, %v7877
        %v7984 = vadd.f32 %v7432, %v7882
        %v7985 = vadd.f32 %v7435, %v7885
        %v7986 = vadd.f32 %v7440, %v7890
        %v7987 = vadd.f32 %v7443, %v7893
        %v7988 = vadd.f32 %v7448, %v7898
        %v7989 = vadd.f32 %v7451, %v7901
        %v7990 = vadd.f32 %v7456, %v7906
        %v7991 = vadd.f32 %v7459, %v7909
        %v7992 = vadd.f32 %v7464, %v7914
        %v7993 = vadd.f32 %v7467, %v7917
        %v7994 = vadd.f32 %v7472, %v7922
        %v7995 = vadd.f32 %v7475, %v7925
        %v7996 = vadd.f32 %v7480, %v7930
        %v7997 = vadd.f32 %v7483, %v7933
        %v7998 = vadd.f32 %v7488, %v7938
        %v7999 = vadd.f32 %v7491, %v7941
        %v8000 = vadd.f32 %v7496, %v7946
        %v8001 = vadd.f32 %v7499, %v7949
        %v8002 = vadd.f32 %v7504, %v7954
        %v8003 = vadd.f32 %v7507, %v7957
        %v8004 = vadd.f32 %v7512, %v7962
        %v8005 = vadd.f32 %v7515, %v7965
        %v8006 = vadd.f32 %v7520, %v7970
        %v8007 = vadd.f32 %v7523, %v7973
        %v8008 = vld [vmem:[%s6370] sm:$0xf]
        %v8009 = vld [vmem:[%s6370 + $0x4] sm:$0xf]
        %v8010 = vld [vmem:[%s6370 + $0xc] sm:$0xf]
        %v8011 = vld [vmem:[%s6370 + $0x10] sm:$0xf]
        %v8012 = vld [vmem:[%s6370 + $0x18] sm:$0xf]
        %v8013 = vld [vmem:[%s6370 + $0x1c] sm:$0xf]
        %v8014 = vld [vmem:[%s6370 + $0x24] sm:$0xf]
        %v8015 = vld [vmem:[%s6370 + $0x28] sm:$0xf]
        %v8016 = vld [vmem:[%s6370 + $0x30] sm:$0xf]
        %v8017 = vld [vmem:[%s6370 + $0x34] sm:$0xf]
        %v8018 = vld [vmem:[%s6370 + $0x3c] sm:$0xf]
        %v8019 = vld [vmem:[%s6370 + $0x40] sm:$0xf]
        %v8020 = vld [vmem:[%s6370 + $0x48] sm:$0xf]
        %v8021 = vld [vmem:[%s6370 + $0x4c] sm:$0xf]
        %v8022 = vld [vmem:[%s6370 + $0x54] sm:$0xf]
        %v8023 = vld [vmem:[%s6370 + $0x58] sm:$0xf]
        %v8024 = vld [vmem:[%s6370 + $0x60] sm:$0xf]
        %v8025 = vld [vmem:[%s6370 + $0x64] sm:$0xf]
        %v8026 = vld [vmem:[%s6370 + $0x6c] sm:$0xf]
        %v8027 = vld [vmem:[%s6370 + $0x70] sm:$0xf]
        %v8028 = vld [vmem:[%s6370 + $0x78] sm:$0xf]
        %v8029 = vld [vmem:[%s6370 + $0x7c] sm:$0xf]
        %v8030 = vld [vmem:[%s6370 + $0x84] sm:$0xf]
        %v8031 = vld [vmem:[%s6370 + $0x88] sm:$0xf]
        %v8032 = vld [vmem:[%s6370 + $0x90] sm:$0xf]
        %v8033 = vld [vmem:[%s6370 + $0x94] sm:$0xf]
        %v8034 = vld [vmem:[%s6370 + $0x9c] sm:$0xf]
        %v8035 = vld [vmem:[%s6370 + $0xa0] sm:$0xf]
        %v8036 = vld [vmem:[%s6370 + $0xa8] sm:$0xf]
        %v8037 = vld [vmem:[%s6370 + $0xac] sm:$0xf]
        %v8038 = vld [vmem:[%s6370 + $0xb4] sm:$0xf]
        %v8039 = vld [vmem:[%s6370 + $0xb8] sm:$0xf]
        %s8040 = scalar_lea.vmem [#allocation4], 192
        %v8041 = vld [vmem:[%s8040] sm:$0xf]
        %v8042 = vld [vmem:[%s8040 + $0x4] sm:$0xf]
        %v8043 = vld [vmem:[%s8040 + $0x8] sm:$0xf]
        %v8044 = vld [vmem:[%s8040 + $0xc] sm:$0xf]
        %v8045 = vld [vmem:[%s8040 + $0x10] sm:$0xf]
        %v8046 = vld [vmem:[%s8040 + $0x14] sm:$0xf]
        %v8047 = vld [vmem:[%s8040 + $0x18] sm:$0xf]
        %v8048 = vld [vmem:[%s8040 + $0x1c] sm:$0xf]
        %v8049 = vld [vmem:[%s8040 + $0x20] sm:$0xf]
        %v8050 = vld [vmem:[%s8040 + $0x24] sm:$0xf]
        %v8051 = vld [vmem:[%s8040 + $0x28] sm:$0xf]
        %v8052 = vld [vmem:[%s8040 + $0x2c] sm:$0xf]
        %v8053 = vld [vmem:[%s8040 + $0x30] sm:$0xf]
        %v8054 = vld [vmem:[%s8040 + $0x34] sm:$0xf]
        %v8055 = vld [vmem:[%s8040 + $0x38] sm:$0xf]
        %v8056 = vld [vmem:[%s8040 + $0x3c] sm:$0xf]
        %v8089 = vunpack.c.l.b16 %v8008
        %v8090 = vunpack.c.l.b16 %v8009
        %v8091 = vunpack.c.l.b16 %v8010
        %v8092 = vunpack.c.l.b16 %v8011
        %v8093 = vunpack.c.l.b16 %v8012
        %v8094 = vunpack.c.l.b16 %v8013
        %v8095 = vunpack.c.l.b16 %v8014
        %v8096 = vunpack.c.l.b16 %v8015
        %v8097 = vunpack.c.l.b16 %v8016
        %v8098 = vunpack.c.l.b16 %v8017
        %v8099 = vunpack.c.l.b16 %v8018
        %v8100 = vunpack.c.l.b16 %v8019
        %v8101 = vunpack.c.l.b16 %v8020
        %v8102 = vunpack.c.l.b16 %v8021
        %v8103 = vunpack.c.l.b16 %v8022
        %v8104 = vunpack.c.l.b16 %v8023
        %v8105 = vunpack.c.l.b16 %v8024
        %v8106 = vunpack.c.l.b16 %v8025
        %v8107 = vunpack.c.l.b16 %v8026
        %v8108 = vunpack.c.l.b16 %v8027
        %v8109 = vunpack.c.l.b16 %v8028
        %v8110 = vunpack.c.l.b16 %v8029
        %v8111 = vunpack.c.l.b16 %v8030
        %v8112 = vunpack.c.l.b16 %v8031
        %v8113 = vunpack.c.l.b16 %v8032
        %v8114 = vunpack.c.l.b16 %v8033
        %v8115 = vunpack.c.l.b16 %v8034
        %v8116 = vunpack.c.l.b16 %v8035
        %v8117 = vunpack.c.l.b16 %v8036
        %v8118 = vunpack.c.l.b16 %v8037
        %v8119 = vunpack.c.l.b16 %v8038
        %v8120 = vunpack.c.l.b16 %v8039
        %v8121 = vpack.c.b16 %v8090, %v8089
        %v8122 = vpack.c.b16 %v8092, %v8091
        %v8123 = vpack.c.b16 %v8094, %v8093
        %v8124 = vpack.c.b16 %v8096, %v8095
        %v8125 = vpack.c.b16 %v8098, %v8097
        %v8126 = vpack.c.b16 %v8100, %v8099
        %v8127 = vpack.c.b16 %v8102, %v8101
        %v8128 = vpack.c.b16 %v8104, %v8103
        %v8129 = vpack.c.b16 %v8106, %v8105
        %v8130 = vpack.c.b16 %v8108, %v8107
        %v8131 = vpack.c.b16 %v8110, %v8109
        %v8132 = vpack.c.b16 %v8112, %v8111
        %v8133 = vpack.c.b16 %v8114, %v8113
        %v8134 = vpack.c.b16 %v8116, %v8115
        %v8135 = vpack.c.b16 %v8118, %v8117
        %v8136 = vpack.c.b16 %v8120, %v8119
        %v8169 = vunpack.c.l.b16 %v8041
        %v8170 = vunpack.c.l.b16 %v8042
        %v8171 = vunpack.c.l.b16 %v8043
        %v8172 = vunpack.c.l.b16 %v8044
        %v8173 = vunpack.c.l.b16 %v8045
        %v8174 = vunpack.c.l.b16 %v8046
        %v8175 = vunpack.c.l.b16 %v8047
        %v8176 = vunpack.c.l.b16 %v8048
        %v8177 = vunpack.c.l.b16 %v8049
        %v8178 = vunpack.c.l.b16 %v8050
        %v8179 = vunpack.c.l.b16 %v8051
        %v8180 = vunpack.c.l.b16 %v8052
        %v8181 = vunpack.c.l.b16 %v8053
        %v8182 = vunpack.c.l.b16 %v8054
        %v8183 = vunpack.c.l.b16 %v8055
        %v8184 = vunpack.c.l.b16 %v8056
        %v8185 = vpack.c.b16 %v8170, %v8169
        %v8186 = vpack.c.b16 %v8172, %v8171
        %v8187 = vpack.c.b16 %v8174, %v8173
        %v8188 = vpack.c.b16 %v8176, %v8175
        %v8189 = vpack.c.b16 %v8178, %v8177
        %v8190 = vpack.c.b16 %v8180, %v8179
        %v8191 = vpack.c.b16 %v8182, %v8181
        %v8192 = vpack.c.b16 %v8184, %v8183
        %8201 = vmatprep.subr.bf16.mxu0 0
        %8202 = vmatpush1.bf16.msra.mxu0 %v8185
        %8203 = vmatprep.subr.bf16.mxu0 0
        %8204 = vmatpush1.bf16.msra.mxu0 %v8186
        %8205 = vmatprep.subr.bf16.mxu0 0
        %8206 = vmatpush1.bf16.msra.mxu0 %v8187
        %8207 = vmatprep.subr.bf16.mxu0 0
        %8208 = vmatpush1.bf16.msra.mxu0 %v8188
        %8209 = vmatprep.subr.bf16.mxu0 0
        %8210 = vmatpush1.bf16.msra.mxu0 %v8189
        %8211 = vmatprep.subr.bf16.mxu0 0
        %8212 = vmatpush1.bf16.msra.mxu0 %v8190
        %8213 = vmatprep.subr.bf16.mxu0 0
        %8214 = vmatpush1.bf16.msra.mxu0 %v8191
        %8215 = vmatprep.subr.bf16.mxu0 0
        %8216 = vmatpush1.bf16.msra.mxu0 %v8192
        %8217 = vmatprep.subr.bf16.mxu0 0
        %8218 = vmatpush1.bf16.msra.mxu0 0
        %8219 = vmatprep.subr.bf16.mxu0 0
        %8220 = vmatpush1.bf16.msra.mxu0 0
        %8221 = vmatprep.subr.bf16.mxu0 0
        %8222 = vmatpush1.bf16.msra.mxu0 0
        %8223 = vmatprep.subr.bf16.mxu0 0
        %8224 = vmatpush1.bf16.msra.mxu0 0
        %8225 = vmatprep.subr.bf16.mxu0 0
        %8226 = vmatpush1.bf16.msra.mxu0 0
        %8227 = vmatprep.subr.bf16.mxu0 0
        %8228 = vmatpush1.bf16.msra.mxu0 0
        %8229 = vmatprep.subr.bf16.mxu0 0
        %8230 = vmatpush1.bf16.msra.mxu0 0
        %8231 = vmatprep.subr.bf16.mxu0 0
        %8232 = vmatpush1.bf16.msra.mxu0 0
        %8233 = vmatprep.mubr.bf16.mxu0 0
        %8234 = vmatmul.mubr.bf16.gmra.mrb[0].mxu0 %v8121
        %v8235 = vpop.f32.mrb[0].mxu0
        %v8236 = vadd.f32 0.0, %v8235
        %v8237 = vpop.f32.mrb[0].mxu0
        %v8238 = vpop.f32.mrb[0].mxu0
        %v8239 = vadd.f32 0.0, %v8238
        %v8240 = vpop.f32.mrb[0].mxu0
        %8241 = vmatprep.mubr.bf16.mxu0 0
        %8242 = vmatmul.mubr.bf16.gmra.mrb[0].mxu0 %v8122
        %v8243 = vpop.f32.mrb[0].mxu0
        %v8244 = vadd.f32 0.0, %v8243
        %v8245 = vpop.f32.mrb[0].mxu0
        %v8246 = vpop.f32.mrb[0].mxu0
        %v8247 = vadd.f32 0.0, %v8246
        %v8248 = vpop.f32.mrb[0].mxu0
        %8249 = vmatprep.mubr.bf16.mxu0 0
        %8250 = vmatmul.mubr.bf16.gmra.mrb[0].mxu0 %v8123
        %v8251 = vpop.f32.mrb[0].mxu0
        %v8252 = vadd.f32 0.0, %v8251
        %v8253 = vpop.f32.mrb[0].mxu0
        %v8254 = vpop.f32.mrb[0].mxu0
        %v8255 = vadd.f32 0.0, %v8254
        %v8256 = vpop.f32.mrb[0].mxu0
        %8257 = vmatprep.mubr.bf16.mxu0 0
        %8258 = vmatmul.mubr.bf16.gmra.mrb[0].mxu0 %v8124
        %v8259 = vpop.f32.mrb[0].mxu0
        %v8260 = vadd.f32 0.0, %v8259
        %v8261 = vpop.f32.mrb[0].mxu0
        %v8262 = vpop.f32.mrb[0].mxu0
        %v8263 = vadd.f32 0.0, %v8262
        %v8264 = vpop.f32.mrb[0].mxu0
        %8265 = vmatprep.mubr.bf16.mxu0 0
        %8266 = vmatmul.mubr.bf16.gmra.mrb[0].mxu0 %v8125
        %v8267 = vpop.f32.mrb[0].mxu0
        %v8268 = vadd.f32 0.0, %v8267
        %v8269 = vpop.f32.mrb[0].mxu0
        %v8270 = vpop.f32.mrb[0].mxu0
        %v8271 = vadd.f32 0.0, %v8270
        %v8272 = vpop.f32.mrb[0].mxu0
        %8273 = vmatprep.mubr.bf16.mxu0 0
        %8274 = vmatmul.mubr.bf16.gmra.mrb[0].mxu0 %v8126
        %v8275 = vpop.f32.mrb[0].mxu0
        %v8276 = vadd.f32 0.0, %v8275
        %v8277 = vpop.f32.mrb[0].mxu0
        %v8278 = vpop.f32.mrb[0].mxu0
        %v8279 = vadd.f32 0.0, %v8278
        %v8280 = vpop.f32.mrb[0].mxu0
        %8281 = vmatprep.mubr.bf16.mxu0 0
        %8282 = vmatmul.mubr.bf16.gmra.mrb[0].mxu0 %v8127
        %v8283 = vpop.f32.mrb[0].mxu0
        %v8284 = vadd.f32 0.0, %v8283
        %v8285 = vpop.f32.mrb[0].mxu0
        %v8286 = vpop.f32.mrb[0].mxu0
        %v8287 = vadd.f32 0.0, %v8286
        %v8288 = vpop.f32.mrb[0].mxu0
        %8289 = vmatprep.mubr.bf16.mxu0 0
        %8290 = vmatmul.mubr.bf16.gmra.mrb[0].mxu0 %v8128
        %v8291 = vpop.f32.mrb[0].mxu0
        %v8292 = vadd.f32 0.0, %v8291
        %v8293 = vpop.f32.mrb[0].mxu0
        %v8294 = vpop.f32.mrb[0].mxu0
        %v8295 = vadd.f32 0.0, %v8294
        %v8296 = vpop.f32.mrb[0].mxu0
        %8297 = vmatprep.mubr.bf16.mxu0 0
        %8298 = vmatmul.mubr.bf16.gmra.mrb[0].mxu0 %v8129
        %v8299 = vpop.f32.mrb[0].mxu0
        %v8300 = vadd.f32 0.0, %v8299
        %v8301 = vpop.f32.mrb[0].mxu0
        %v8302 = vpop.f32.mrb[0].mxu0
        %v8303 = vadd.f32 0.0, %v8302
        %v8304 = vpop.f32.mrb[0].mxu0
        %8305 = vmatprep.mubr.bf16.mxu0 0
        %8306 = vmatmul.mubr.bf16.gmra.mrb[0].mxu0 %v8130
        %v8307 = vpop.f32.mrb[0].mxu0
        %v8308 = vadd.f32 0.0, %v8307
        %v8309 = vpop.f32.mrb[0].mxu0
        %v8310 = vpop.f32.mrb[0].mxu0
        %v8311 = vadd.f32 0.0, %v8310
        %v8312 = vpop.f32.mrb[0].mxu0
        %8313 = vmatprep.mubr.bf16.mxu0 0
        %8314 = vmatmul.mubr.bf16.gmra.mrb[0].mxu0 %v8131
        %v8315 = vpop.f32.mrb[0].mxu0
        %v8316 = vadd.f32 0.0, %v8315
        %v8317 = vpop.f32.mrb[0].mxu0
        %v8318 = vpop.f32.mrb[0].mxu0
        %v8319 = vadd.f32 0.0, %v8318
        %v8320 = vpop.f32.mrb[0].mxu0
        %8321 = vmatprep.mubr.bf16.mxu0 0
        %8322 = vmatmul.mubr.bf16.gmra.mrb[0].mxu0 %v8132
        %v8323 = vpop.f32.mrb[0].mxu0
        %v8324 = vadd.f32 0.0, %v8323
        %v8325 = vpop.f32.mrb[0].mxu0
        %v8326 = vpop.f32.mrb[0].mxu0
        %v8327 = vadd.f32 0.0, %v8326
        %v8328 = vpop.f32.mrb[0].mxu0
        %8329 = vmatprep.mubr.bf16.mxu0 0
        %8330 = vmatmul.mubr.bf16.gmra.mrb[0].mxu0 %v8133
        %v8331 = vpop.f32.mrb[0].mxu0
        %v8332 = vadd.f32 0.0, %v8331
        %v8333 = vpop.f32.mrb[0].mxu0
        %v8334 = vpop.f32.mrb[0].mxu0
        %v8335 = vadd.f32 0.0, %v8334
        %v8336 = vpop.f32.mrb[0].mxu0
        %8337 = vmatprep.mubr.bf16.mxu0 0
        %8338 = vmatmul.mubr.bf16.gmra.mrb[0].mxu0 %v8134
        %v8339 = vpop.f32.mrb[0].mxu0
        %v8340 = vadd.f32 0.0, %v8339
        %v8341 = vpop.f32.mrb[0].mxu0
        %v8342 = vpop.f32.mrb[0].mxu0
        %v8343 = vadd.f32 0.0, %v8342
        %v8344 = vpop.f32.mrb[0].mxu0
        %8345 = vmatprep.mubr.bf16.mxu0 0
        %8346 = vmatmul.mubr.bf16.gmra.mrb[0].mxu0 %v8135
        %v8347 = vpop.f32.mrb[0].mxu0
        %v8348 = vadd.f32 0.0, %v8347
        %v8349 = vpop.f32.mrb[0].mxu0
        %v8350 = vpop.f32.mrb[0].mxu0
        %v8351 = vadd.f32 0.0, %v8350
        %v8352 = vpop.f32.mrb[0].mxu0
        %8353 = vmatprep.mubr.bf16.mxu0 0
        %8354 = vmatmul.mubr.bf16.gmra.mrb[0].mxu0 %v8136
        %v8355 = vpop.f32.mrb[0].mxu0
        %v8356 = vadd.f32 0.0, %v8355
        %v8357 = vpop.f32.mrb[0].mxu0
        %v8358 = vpop.f32.mrb[0].mxu0
        %v8359 = vadd.f32 0.0, %v8358
        %v8360 = vpop.f32.mrb[0].mxu0
        %8361 = vdwg.mxu0
        %v8362 = vadd.f32 %v7976, %v8236
        %v8363 = vadd.f32 %v7977, %v8239
        %v8364 = vadd.f32 %v7978, %v8244
        %v8365 = vadd.f32 %v7979, %v8247
        %v8366 = vadd.f32 %v7980, %v8252
        %v8367 = vadd.f32 %v7981, %v8255
        %v8368 = vadd.f32 %v7982, %v8260
        %v8369 = vadd.f32 %v7983, %v8263
        %v8370 = vadd.f32 %v7984, %v8268
        %v8371 = vadd.f32 %v7985, %v8271
        %v8372 = vadd.f32 %v7986, %v8276
        %v8373 = vadd.f32 %v7987, %v8279
        %v8374 = vadd.f32 %v7988, %v8284
        %v8375 = vadd.f32 %v7989, %v8287
        %v8376 = vadd.f32 %v7990, %v8292
        %v8377 = vadd.f32 %v7991, %v8295
        %v8378 = vadd.f32 %v7992, %v8300
        %v8379 = vadd.f32 %v7993, %v8303
        %v8380 = vadd.f32 %v7994, %v8308
        %v8381 = vadd.f32 %v7995, %v8311
        %v8382 = vadd.f32 %v7996, %v8316
        %v8383 = vadd.f32 %v7997, %v8319
        %v8384 = vadd.f32 %v7998, %v8324
        %v8385 = vadd.f32 %v7999, %v8327
        %v8386 = vadd.f32 %v8000, %v8332
        %v8387 = vadd.f32 %v8001, %v8335
        %v8388 = vadd.f32 %v8002, %v8340
        %v8389 = vadd.f32 %v8003, %v8343
        %v8390 = vadd.f32 %v8004, %v8348
        %v8391 = vadd.f32 %v8005, %v8351
        %v8392 = vadd.f32 %v8006, %v8356
        %v8393 = vadd.f32 %v8007, %v8359
        %v8394 = vld [vmem:[%s6370] sm:$0xf]
        %v8395 = vld [vmem:[%s6370 + $0x4] sm:$0xf]
        %v8396 = vld [vmem:[%s6370 + $0x8] sm:$0x1]
        %v8397 = vld [vmem:[%s6370 + $0xc] sm:$0xf]
        %v8398 = vld [vmem:[%s6370 + $0x10] sm:$0xf]
        %v8399 = vld [vmem:[%s6370 + $0x14] sm:$0x1]
        %v8400 = vld [vmem:[%s6370 + $0x18] sm:$0xf]
        %v8401 = vld [vmem:[%s6370 + $0x1c] sm:$0xf]
        %v8402 = vld [vmem:[%s6370 + $0x20] sm:$0x1]
        %v8403 = vld [vmem:[%s6370 + $0x24] sm:$0xf]
        %v8404 = vld [vmem:[%s6370 + $0x28] sm:$0xf]
        %v8405 = vld [vmem:[%s6370 + $0x2c] sm:$0x1]
        %v8406 = vld [vmem:[%s6370 + $0x30] sm:$0xf]
        %v8407 = vld [vmem:[%s6370 + $0x34] sm:$0xf]
        %v8408 = vld [vmem:[%s6370 + $0x38] sm:$0x1]
        %v8409 = vld [vmem:[%s6370 + $0x3c] sm:$0xf]
        %v8410 = vld [vmem:[%s6370 + $0x40] sm:$0xf]
        %v8411 = vld [vmem:[%s6370 + $0x44] sm:$0x1]
        %v8412 = vld [vmem:[%s6370 + $0x48] sm:$0xf]
        %v8413 = vld [vmem:[%s6370 + $0x4c] sm:$0xf]
        %v8414 = vld [vmem:[%s6370 + $0x50] sm:$0x1]
        %v8415 = vld [vmem:[%s6370 + $0x54] sm:$0xf]
        %v8416 = vld [vmem:[%s6370 + $0x58] sm:$0xf]
        %v8417 = vld [vmem:[%s6370 + $0x5c] sm:$0x1]
        %v8418 = vld [vmem:[%s6370 + $0x60] sm:$0xf]
        %v8419 = vld [vmem:[%s6370 + $0x64] sm:$0xf]
        %v8420 = vld [vmem:[%s6370 + $0x68] sm:$0x1]
        %v8421 = vld [vmem:[%s6370 + $0x6c] sm:$0xf]
        %v8422 = vld [vmem:[%s6370 + $0x70] sm:$0xf]
        %v8423 = vld [vmem:[%s6370 + $0x74] sm:$0x1]
        %v8424 = vld [vmem:[%s6370 + $0x78] sm:$0xf]
        %v8425 = vld [vmem:[%s6370 + $0x7c] sm:$0xf]
        %v8426 = vld [vmem:[%s6370 + $0x80] sm:$0x1]
        %v8427 = vld [vmem:[%s6370 + $0x84] sm:$0xf]
        %v8428 = vld [vmem:[%s6370 + $0x88] sm:$0xf]
        %v8429 = vld [vmem:[%s6370 + $0x8c] sm:$0x1]
        %v8430 = vld [vmem:[%s6370 + $0x90] sm:$0xf]
        %v8431 = vld [vmem:[%s6370 + $0x94] sm:$0xf]
        %v8432 = vld [vmem:[%s6370 + $0x98] sm:$0x1]
        %v8433 = vld [vmem:[%s6370 + $0x9c] sm:$0xf]
        %v8434 = vld [vmem:[%s6370 + $0xa0] sm:$0xf]
        %v8435 = vld [vmem:[%s6370 + $0xa4] sm:$0x1]
        %v8436 = vld [vmem:[%s6370 + $0xa8] sm:$0xf]
        %v8437 = vld [vmem:[%s6370 + $0xac] sm:$0xf]
        %v8438 = vld [vmem:[%s6370 + $0xb0] sm:$0x1]
        %v8439 = vld [vmem:[%s6370 + $0xb4] sm:$0xf]
        %v8440 = vld [vmem:[%s6370 + $0xb8] sm:$0xf]
        %v8441 = vld [vmem:[%s6370 + $0xbc] sm:$0x1]
        %v8443 = vshrl.u32 %v8394, 16
        %v8445 = vrot.slane %v8443, 4
        %v8446 = vshll.u32 %v8394, 16
        %v8448 = vrot.slane %v8446, 5
        %v8449 = vor.u32 %v8445, %v8448
        %v8450 = vrot.slane %v8449, 4
        %v8452 = vshll.u32 %v8395, 16
        %v8454 = vrot.slane %v8452, 5
        %v8455 = vsel %vm1141, %v8450, %v8454
        %v8456 = vshrl.u32 %v8395, 16
        %v8458 = vrot.slane %v8456, 4
        %v8459 = vor.u32 %v8458, %v8454
        %v8460 = vrot.slane %v8459, 4
        %v8462 = vshll.u32 %v8396, 16
        %v8464 = vrot.slane %v8462, 5
        %v8465 = vsel %vm1141, %v8460, %v8464
        %v8467 = vshrl.u32 %v8397, 16
        %v8469 = vrot.slane %v8467, 4
        %v8470 = vshll.u32 %v8397, 16
        %v8472 = vrot.slane %v8470, 5
        %v8473 = vor.u32 %v8469, %v8472
        %v8474 = vrot.slane %v8473, 4
        %v8476 = vshll.u32 %v8398, 16
        %v8478 = vrot.slane %v8476, 5
        %v8479 = vsel %vm1141, %v8474, %v8478
        %v8480 = vshrl.u32 %v8398, 16
        %v8482 = vrot.slane %v8480, 4
        %v8483 = vor.u32 %v8482, %v8478
        %v8484 = vrot.slane %v8483, 4
        %v8486 = vshll.u32 %v8399, 16
        %v8488 = vrot.slane %v8486, 5
        %v8489 = vsel %vm1141, %v8484, %v8488
        %v8491 = vshrl.u32 %v8400, 16
        %v8493 = vrot.slane %v8491, 4
        %v8494 = vshll.u32 %v8400, 16
        %v8496 = vrot.slane %v8494, 5
        %v8497 = vor.u32 %v8493, %v8496
        %v8498 = vrot.slane %v8497, 4
        %v8500 = vshll.u32 %v8401, 16
        %v8502 = vrot.slane %v8500, 5
        %v8503 = vsel %vm1141, %v8498, %v8502
        %v8504 = vshrl.u32 %v8401, 16
        %v8506 = vrot.slane %v8504, 4
        %v8507 = vor.u32 %v8506, %v8502
        %v8508 = vrot.slane %v8507, 4
        %v8510 = vshll.u32 %v8402, 16
        %v8512 = vrot.slane %v8510, 5
        %v8513 = vsel %vm1141, %v8508, %v8512
        %v8515 = vshrl.u32 %v8403, 16
        %v8517 = vrot.slane %v8515, 4
        %v8518 = vshll.u32 %v8403, 16
        %v8520 = vrot.slane %v8518, 5
        %v8521 = vor.u32 %v8517, %v8520
        %v8522 = vrot.slane %v8521, 4
        %v8524 = vshll.u32 %v8404, 16
        %v8526 = vrot.slane %v8524, 5
        %v8527 = vsel %vm1141, %v8522, %v8526
        %v8528 = vshrl.u32 %v8404, 16
        %v8530 = vrot.slane %v8528, 4
        %v8531 = vor.u32 %v8530, %v8526
        %v8532 = vrot.slane %v8531, 4
        %v8534 = vshll.u32 %v8405, 16
        %v8536 = vrot.slane %v8534, 5
        %v8537 = vsel %vm1141, %v8532, %v8536
        %v8539 = vshrl.u32 %v8406, 16
        %v8541 = vrot.slane %v8539, 4
        %v8542 = vshll.u32 %v8406, 16
        %v8544 = vrot.slane %v8542, 5
        %v8545 = vor.u32 %v8541, %v8544
        %v8546 = vrot.slane %v8545, 4
        %v8548 = vshll.u32 %v8407, 16
        %v8550 = vrot.slane %v8548, 5
        %v8551 = vsel %vm1141, %v8546, %v8550
        %v8552 = vshrl.u32 %v8407, 16
        %v8554 = vrot.slane %v8552, 4
        %v8555 = vor.u32 %v8554, %v8550
        %v8556 = vrot.slane %v8555, 4
        %v8558 = vshll.u32 %v8408, 16
        %v8560 = vrot.slane %v8558, 5
        %v8561 = vsel %vm1141, %v8556, %v8560
        %v8563 = vshrl.u32 %v8409, 16
        %v8565 = vrot.slane %v8563, 4
        %v8566 = vshll.u32 %v8409, 16
        %v8568 = vrot.slane %v8566, 5
        %v8569 = vor.u32 %v8565, %v8568
        %v8570 = vrot.slane %v8569, 4
        %v8572 = vshll.u32 %v8410, 16
        %v8574 = vrot.slane %v8572, 5
        %v8575 = vsel %vm1141, %v8570, %v8574
        %v8576 = vshrl.u32 %v8410, 16
        %v8578 = vrot.slane %v8576, 4
        %v8579 = vor.u32 %v8578, %v8574
        %v8580 = vrot.slane %v8579, 4
        %v8582 = vshll.u32 %v8411, 16
        %v8584 = vrot.slane %v8582, 5
        %v8585 = vsel %vm1141, %v8580, %v8584
        %v8587 = vshrl.u32 %v8412, 16
        %v8589 = vrot.slane %v8587, 4
        %v8590 = vshll.u32 %v8412, 16
        %v8592 = vrot.slane %v8590, 5
        %v8593 = vor.u32 %v8589, %v8592
        %v8594 = vrot.slane %v8593, 4
        %v8596 = vshll.u32 %v8413, 16
        %v8598 = vrot.slane %v8596, 5
        %v8599 = vsel %vm1141, %v8594, %v8598
        %v8600 = vshrl.u32 %v8413, 16
        %v8602 = vrot.slane %v8600, 4
        %v8603 = vor.u32 %v8602, %v8598
        %v8604 = vrot.slane %v8603, 4
        %v8606 = vshll.u32 %v8414, 16
        %v8608 = vrot.slane %v8606, 5
        %v8609 = vsel %vm1141, %v8604, %v8608
        %v8611 = vshrl.u32 %v8415, 16
        %v8613 = vrot.slane %v8611, 4
        %v8614 = vshll.u32 %v8415, 16
        %v8616 = vrot.slane %v8614, 5
        %v8617 = vor.u32 %v8613, %v8616
        %v8618 = vrot.slane %v8617, 4
        %v8620 = vshll.u32 %v8416, 16
        %v8622 = vrot.slane %v8620, 5
        %v8623 = vsel %vm1141, %v8618, %v8622
        %v8624 = vshrl.u32 %v8416, 16
        %v8626 = vrot.slane %v8624, 4
        %v8627 = vor.u32 %v8626, %v8622
        %v8628 = vrot.slane %v8627, 4
        %v8630 = vshll.u32 %v8417, 16
        %v8632 = vrot.slane %v8630, 5
        %v8633 = vsel %vm1141, %v8628, %v8632
        %v8635 = vshrl.u32 %v8418, 16
        %v8637 = vrot.slane %v8635, 4
        %v8638 = vshll.u32 %v8418, 16
        %v8640 = vrot.slane %v8638, 5
        %v8641 = vor.u32 %v8637, %v8640
        %v8642 = vrot.slane %v8641, 4
        %v8644 = vshll.u32 %v8419, 16
        %v8646 = vrot.slane %v8644, 5
        %v8647 = vsel %vm1141, %v8642, %v8646
        %v8648 = vshrl.u32 %v8419, 16
        %v8650 = vrot.slane %v8648, 4
        %v8651 = vor.u32 %v8650, %v8646
        %v8652 = vrot.slane %v8651, 4
        %v8654 = vshll.u32 %v8420, 16
        %v8656 = vrot.slane %v8654, 5
        %v8657 = vsel %vm1141, %v8652, %v8656
        %v8659 = vshrl.u32 %v8421, 16
        %v8661 = vrot.slane %v8659, 4
        %v8662 = vshll.u32 %v8421, 16
        %v8664 = vrot.slane %v8662, 5
        %v8665 = vor.u32 %v8661, %v8664
        %v8666 = vrot.slane %v8665, 4
        %v8668 = vshll.u32 %v8422, 16
        %v8670 = vrot.slane %v8668, 5
        %v8671 = vsel %vm1141, %v8666, %v8670
        %v8672 = vshrl.u32 %v8422, 16
        %v8674 = vrot.slane %v8672, 4
        %v8675 = vor.u32 %v8674, %v8670
        %v8676 = vrot.slane %v8675, 4
        %v8678 = vshll.u32 %v8423, 16
        %v8680 = vrot.slane %v8678, 5
        %v8681 = vsel %vm1141, %v8676, %v8680
        %v8683 = vshrl.u32 %v8424, 16
        %v8685 = vrot.slane %v8683, 4
        %v8686 = vshll.u32 %v8424, 16
        %v8688 = vrot.slane %v8686, 5
        %v8689 = vor.u32 %v8685, %v8688
        %v8690 = vrot.slane %v8689, 4
        %v8692 = vshll.u32 %v8425, 16
        %v8694 = vrot.slane %v8692, 5
        %v8695 = vsel %vm1141, %v8690, %v8694
        %v8696 = vshrl.u32 %v8425, 16
        %v8698 = vrot.slane %v8696, 4
        %v8699 = vor.u32 %v8698, %v8694
        %v8700 = vrot.slane %v8699, 4
        %v8702 = vshll.u32 %v8426, 16
        %v8704 = vrot.slane %v8702, 5
        %v8705 = vsel %vm1141, %v8700, %v8704
        %v8707 = vshrl.u32 %v8427, 16
        %v8709 = vrot.slane %v8707, 4
        %v8710 = vshll.u32 %v8427, 16
        %v8712 = vrot.slane %v8710, 5
        %v8713 = vor.u32 %v8709, %v8712
        %v8714 = vrot.slane %v8713, 4
        %v8716 = vshll.u32 %v8428, 16
        %v8718 = vrot.slane %v8716, 5
        %v8719 = vsel %vm1141, %v8714, %v8718
        %v8720 = vshrl.u32 %v8428, 16
        %v8722 = vrot.slane %v8720, 4
        %v8723 = vor.u32 %v8722, %v8718
        %v8724 = vrot.slane %v8723, 4
        %v8726 = vshll.u32 %v8429, 16
        %v8728 = vrot.slane %v8726, 5
        %v8729 = vsel %vm1141, %v8724, %v8728
        %v8731 = vshrl.u32 %v8430, 16
        %v8733 = vrot.slane %v8731, 4
        %v8734 = vshll.u32 %v8430, 16
        %v8736 = vrot.slane %v8734, 5
        %v8737 = vor.u32 %v8733, %v8736
        %v8738 = vrot.slane %v8737, 4
        %v8740 = vshll.u32 %v8431, 16
        %v8742 = vrot.slane %v8740, 5
        %v8743 = vsel %vm1141, %v8738, %v8742
        %v8744 = vshrl.u32 %v8431, 16
        %v8746 = vrot.slane %v8744, 4
        %v8747 = vor.u32 %v8746, %v8742
        %v8748 = vrot.slane %v8747, 4
        %v8750 = vshll.u32 %v8432, 16
        %v8752 = vrot.slane %v8750, 5
        %v8753 = vsel %vm1141, %v8748, %v8752
        %v8755 = vshrl.u32 %v8433, 16
        %v8757 = vrot.slane %v8755, 4
        %v8758 = vshll.u32 %v8433, 16
        %v8760 = vrot.slane %v8758, 5
        %v8761 = vor.u32 %v8757, %v8760
        %v8762 = vrot.slane %v8761, 4
        %v8764 = vshll.u32 %v8434, 16
        %v8766 = vrot.slane %v8764, 5
        %v8767 = vsel %vm1141, %v8762, %v8766
        %v8768 = vshrl.u32 %v8434, 16
        %v8770 = vrot.slane %v8768, 4
        %v8771 = vor.u32 %v8770, %v8766
        %v8772 = vrot.slane %v8771, 4
        %v8774 = vshll.u32 %v8435, 16
        %v8776 = vrot.slane %v8774, 5
        %v8777 = vsel %vm1141, %v8772, %v8776
        %v8779 = vshrl.u32 %v8436, 16
        %v8781 = vrot.slane %v8779, 4
        %v8782 = vshll.u32 %v8436, 16
        %v8784 = vrot.slane %v8782, 5
        %v8785 = vor.u32 %v8781, %v8784
        %v8786 = vrot.slane %v8785, 4
        %v8788 = vshll.u32 %v8437, 16
        %v8790 = vrot.slane %v8788, 5
        %v8791 = vsel %vm1141, %v8786, %v8790
        %v8792 = vshrl.u32 %v8437, 16
        %v8794 = vrot.slane %v8792, 4
        %v8795 = vor.u32 %v8794, %v8790
        %v8796 = vrot.slane %v8795, 4
        %v8798 = vshll.u32 %v8438, 16
        %v8800 = vrot.slane %v8798, 5
        %v8801 = vsel %vm1141, %v8796, %v8800
        %v8803 = vshrl.u32 %v8439, 16
        %v8805 = vrot.slane %v8803, 4
        %v8806 = vshll.u32 %v8439, 16
        %v8808 = vrot.slane %v8806, 5
        %v8809 = vor.u32 %v8805, %v8808
        %v8810 = vrot.slane %v8809, 4
        %v8812 = vshll.u32 %v8440, 16
        %v8814 = vrot.slane %v8812, 5
        %v8815 = vsel %vm1141, %v8810, %v8814
        %v8816 = vshrl.u32 %v8440, 16
        %v8818 = vrot.slane %v8816, 4
        %v8819 = vor.u32 %v8818, %v8814
        %v8820 = vrot.slane %v8819, 4
        %v8822 = vshll.u32 %v8441, 16
        %v8824 = vrot.slane %v8822, 5
        %v8825 = vsel %vm1141, %v8820, %v8824
        %s8826 = scalar_lea.vmem [#allocation4], 256
        %v8827 = vld [vmem:[%s8826] sm:$0xf]
        %v8828 = vld [vmem:[%s8826 + $0x4] sm:$0xf]
        %v8829 = vld [vmem:[%s8826 + $0x8] sm:$0xf]
        %v8830 = vld [vmem:[%s8826 + $0xc] sm:$0xf]
        %v8831 = vld [vmem:[%s8826 + $0x10] sm:$0xf]
        %v8832 = vld [vmem:[%s8826 + $0x14] sm:$0xf]
        %v8833 = vld [vmem:[%s8826 + $0x18] sm:$0xf]
        %v8834 = vld [vmem:[%s8826 + $0x1c] sm:$0xf]
        %v8835 = vld [vmem:[%s8826 + $0x20] sm:$0xf]
        %v8836 = vld [vmem:[%s8826 + $0x24] sm:$0xf]
        %v8837 = vld [vmem:[%s8826 + $0x28] sm:$0xf]
        %v8838 = vld [vmem:[%s8826 + $0x2c] sm:$0xf]
        %v8839 = vld [vmem:[%s8826 + $0x30] sm:$0xf]
        %v8840 = vld [vmem:[%s8826 + $0x34] sm:$0xf]
        %v8841 = vld [vmem:[%s8826 + $0x38] sm:$0xf]
        %v8842 = vld [vmem:[%s8826 + $0x3c] sm:$0xf]
        %v8843 = vunpack.c.l.b16 %v8455
        %v8844 = vunpack.c.l.b16 %v8465
        %v8845 = vunpack.c.l.b16 %v8479
        %v8846 = vunpack.c.l.b16 %v8489
        %v8847 = vunpack.c.l.b16 %v8503
        %v8848 = vunpack.c.l.b16 %v8513
        %v8849 = vunpack.c.l.b16 %v8527
        %v8850 = vunpack.c.l.b16 %v8537
        %v8851 = vunpack.c.l.b16 %v8551
        %v8852 = vunpack.c.l.b16 %v8561
        %v8853 = vunpack.c.l.b16 %v8575
        %v8854 = vunpack.c.l.b16 %v8585
        %v8855 = vunpack.c.l.b16 %v8599
        %v8856 = vunpack.c.l.b16 %v8609
        %v8857 = vunpack.c.l.b16 %v8623
        %v8858 = vunpack.c.l.b16 %v8633
        %v8859 = vunpack.c.l.b16 %v8647
        %v8860 = vunpack.c.l.b16 %v8657
        %v8861 = vunpack.c.l.b16 %v8671
        %v8862 = vunpack.c.l.b16 %v8681
        %v8863 = vunpack.c.l.b16 %v8695
        %v8864 = vunpack.c.l.b16 %v8705
        %v8865 = vunpack.c.l.b16 %v8719
        %v8866 = vunpack.c.l.b16 %v8729
        %v8867 = vunpack.c.l.b16 %v8743
        %v8868 = vunpack.c.l.b16 %v8753
        %v8869 = vunpack.c.l.b16 %v8767
        %v8870 = vunpack.c.l.b16 %v8777
        %v8871 = vunpack.c.l.b16 %v8791
        %v8872 = vunpack.c.l.b16 %v8801
        %v8873 = vunpack.c.l.b16 %v8815
        %v8874 = vunpack.c.l.b16 %v8825
        %v8875 = vpack.c.b16 %v8844, %v8843
        %v8876 = vpack.c.b16 %v8846, %v8845
        %v8877 = vpack.c.b16 %v8848, %v8847
        %v8878 = vpack.c.b16 %v8850, %v8849
        %v8879 = vpack.c.b16 %v8852, %v8851
        %v8880 = vpack.c.b16 %v8854, %v8853
        %v8881 = vpack.c.b16 %v8856, %v8855
        %v8882 = vpack.c.b16 %v8858, %v8857
        %v8883 = vpack.c.b16 %v8860, %v8859
        %v8884 = vpack.c.b16 %v8862, %v8861
        %v8885 = vpack.c.b16 %v8864, %v8863
        %v8886 = vpack.c.b16 %v8866, %v8865
        %v8887 = vpack.c.b16 %v8868, %v8867
        %v8888 = vpack.c.b16 %v8870, %v8869
        %v8889 = vpack.c.b16 %v8872, %v8871
        %v8890 = vpack.c.b16 %v8874, %v8873
        %v8923 = vunpack.c.l.b16 %v8827
        %v8924 = vunpack.c.l.b16 %v8828
        %v8925 = vunpack.c.l.b16 %v8829
        %v8926 = vunpack.c.l.b16 %v8830
        %v8927 = vunpack.c.l.b16 %v8831
        %v8928 = vunpack.c.l.b16 %v8832
        %v8929 = vunpack.c.l.b16 %v8833
        %v8930 = vunpack.c.l.b16 %v8834
        %v8931 = vunpack.c.l.b16 %v8835
        %v8932 = vunpack.c.l.b16 %v8836
        %v8933 = vunpack.c.l.b16 %v8837
        %v8934 = vunpack.c.l.b16 %v8838
        %v8935 = vunpack.c.l.b16 %v8839
        %v8936 = vunpack.c.l.b16 %v8840
        %v8937 = vunpack.c.l.b16 %v8841
        %v8938 = vunpack.c.l.b16 %v8842
        %v8939 = vpack.c.b16 %v8924, %v8923
        %v8940 = vpack.c.b16 %v8926, %v8925
        %v8941 = vpack.c.b16 %v8928, %v8927
        %v8942 = vpack.c.b16 %v8930, %v8929
        %v8943 = vpack.c.b16 %v8932, %v8931
        %v8944 = vpack.c.b16 %v8934, %v8933
        %v8945 = vpack.c.b16 %v8936, %v8935
        %v8946 = vpack.c.b16 %v8938, %v8937
        %8955 = vmatprep.subr.bf16.mxu0 0
        %8956 = vmatpush1.bf16.msra.mxu0 %v8939
        %8957 = vmatprep.subr.bf16.mxu0 0
        %8958 = vmatpush1.bf16.msra.mxu0 %v8940
        %8959 = vmatprep.subr.bf16.mxu0 0
        %8960 = vmatpush1.bf16.msra.mxu0 %v8941
        %8961 = vmatprep.subr.bf16.mxu0 0
        %8962 = vmatpush1.bf16.msra.mxu0 %v8942
        %8963 = vmatprep.subr.bf16.mxu0 0
        %8964 = vmatpush1.bf16.msra.mxu0 %v8943
        %8965 = vmatprep.subr.bf16.mxu0 0
        %8966 = vmatpush1.bf16.msra.mxu0 %v8944
        %8967 = vmatprep.subr.bf16.mxu0 0
        %8968 = vmatpush1.bf16.msra.mxu0 %v8945
        %8969 = vmatprep.subr.bf16.mxu0 0
        %8970 = vmatpush1.bf16.msra.mxu0 %v8946
        %8971 = vmatprep.subr.bf16.mxu0 0
        %8972 = vmatpush1.bf16.msra.mxu0 0
        %8973 = vmatprep.subr.bf16.mxu0 0
        %8974 = vmatpush1.bf16.msra.mxu0 0
        %8975 = vmatprep.subr.bf16.mxu0 0
        %8976 = vmatpush1.bf16.msra.mxu0 0
        %8977 = vmatprep.subr.bf16.mxu0 0
        %8978 = vmatpush1.bf16.msra.mxu0 0
        %8979 = vmatprep.subr.bf16.mxu0 0
        %8980 = vmatpush1.bf16.msra.mxu0 0
        %8981 = vmatprep.subr.bf16.mxu0 0
        %8982 = vmatpush1.bf16.msra.mxu0 0
        %8983 = vmatprep.subr.bf16.mxu0 0
        %8984 = vmatpush1.bf16.msra.mxu0 0
        %8985 = vmatprep.subr.bf16.mxu0 0
        %8986 = vmatpush1.bf16.msra.mxu0 0
        %8987 = vmatprep.mubr.bf16.mxu0 0
        %8988 = vmatmul.mubr.bf16.gmra.mrb[0].mxu0 %v8875
        %v8989 = vpop.f32.mrb[0].mxu0
        %v8990 = vadd.f32 0.0, %v8989
        %v8991 = vpop.f32.mrb[0].mxu0
        %v8992 = vpop.f32.mrb[0].mxu0
        %v8993 = vadd.f32 0.0, %v8992
        %v8994 = vpop.f32.mrb[0].mxu0
        %8995 = vmatprep.mubr.bf16.mxu0 0
        %8996 = vmatmul.mubr.bf16.gmra.mrb[0].mxu0 %v8876
        %v8997 = vpop.f32.mrb[0].mxu0
        %v8998 = vadd.f32 0.0, %v8997
        %v8999 = vpop.f32.mrb[0].mxu0
        %v9000 = vpop.f32.mrb[0].mxu0
        %v9001 = vadd.f32 0.0, %v9000
        %v9002 = vpop.f32.mrb[0].mxu0
        %9003 = vmatprep.mubr.bf16.mxu0 0
        %9004 = vmatmul.mubr.bf16.gmra.mrb[0].mxu0 %v8877
        %v9005 = vpop.f32.mrb[0].mxu0
        %v9006 = vadd.f32 0.0, %v9005
        %v9007 = vpop.f32.mrb[0].mxu0
        %v9008 = vpop.f32.mrb[0].mxu0
        %v9009 = vadd.f32 0.0, %v9008
        %v9010 = vpop.f32.mrb[0].mxu0
        %9011 = vmatprep.mubr.bf16.mxu0 0
        %9012 = vmatmul.mubr.bf16.gmra.mrb[0].mxu0 %v8878
        %v9013 = vpop.f32.mrb[0].mxu0
        %v9014 = vadd.f32 0.0, %v9013
        %v9015 = vpop.f32.mrb[0].mxu0
        %v9016 = vpop.f32.mrb[0].mxu0
        %v9017 = vadd.f32 0.0, %v9016
        %v9018 = vpop.f32.mrb[0].mxu0
        %9019 = vmatprep.mubr.bf16.mxu0 0
        %9020 = vmatmul.mubr.bf16.gmra.mrb[0].mxu0 %v8879
        %v9021 = vpop.f32.mrb[0].mxu0
        %v9022 = vadd.f32 0.0, %v9021
        %v9023 = vpop.f32.mrb[0].mxu0
        %v9024 = vpop.f32.mrb[0].mxu0
        %v9025 = vadd.f32 0.0, %v9024
        %v9026 = vpop.f32.mrb[0].mxu0
        %9027 = vmatprep.mubr.bf16.mxu0 0
        %9028 = vmatmul.mubr.bf16.gmra.mrb[0].mxu0 %v8880
        %v9029 = vpop.f32.mrb[0].mxu0
        %v9030 = vadd.f32 0.0, %v9029
        %v9031 = vpop.f32.mrb[0].mxu0
        %v9032 = vpop.f32.mrb[0].mxu0
        %v9033 = vadd.f32 0.0, %v9032
        %v9034 = vpop.f32.mrb[0].mxu0
        %9035 = vmatprep.mubr.bf16.mxu0 0
        %9036 = vmatmul.mubr.bf16.gmra.mrb[0].mxu0 %v8881
        %v9037 = vpop.f32.mrb[0].mxu0
        %v9038 = vadd.f32 0.0, %v9037
        %v9039 = vpop.f32.mrb[0].mxu0
        %v9040 = vpop.f32.mrb[0].mxu0
        %v9041 = vadd.f32 0.0, %v9040
        %v9042 = vpop.f32.mrb[0].mxu0
        %9043 = vmatprep.mubr.bf16.mxu0 0
        %9044 = vmatmul.mubr.bf16.gmra.mrb[0].mxu0 %v8882
        %v9045 = vpop.f32.mrb[0].mxu0
        %v9046 = vadd.f32 0.0, %v9045
        %v9047 = vpop.f32.mrb[0].mxu0
        %v9048 = vpop.f32.mrb[0].mxu0
        %v9049 = vadd.f32 0.0, %v9048
        %v9050 = vpop.f32.mrb[0].mxu0
        %9051 = vmatprep.mubr.bf16.mxu0 0
        %9052 = vmatmul.mubr.bf16.gmra.mrb[0].mxu0 %v8883
        %v9053 = vpop.f32.mrb[0].mxu0
        %v9054 = vadd.f32 0.0, %v9053
        %v9055 = vpop.f32.mrb[0].mxu0
        %v9056 = vpop.f32.mrb[0].mxu0
        %v9057 = vadd.f32 0.0, %v9056
        %v9058 = vpop.f32.mrb[0].mxu0
        %9059 = vmatprep.mubr.bf16.mxu0 0
        %9060 = vmatmul.mubr.bf16.gmra.mrb[0].mxu0 %v8884
        %v9061 = vpop.f32.mrb[0].mxu0
        %v9062 = vadd.f32 0.0, %v9061
        %v9063 = vpop.f32.mrb[0].mxu0
        %v9064 = vpop.f32.mrb[0].mxu0
        %v9065 = vadd.f32 0.0, %v9064
        %v9066 = vpop.f32.mrb[0].mxu0
        %9067 = vmatprep.mubr.bf16.mxu0 0
        %9068 = vmatmul.mubr.bf16.gmra.mrb[0].mxu0 %v8885
        %v9069 = vpop.f32.mrb[0].mxu0
        %v9070 = vadd.f32 0.0, %v9069
        %v9071 = vpop.f32.mrb[0].mxu0
        %v9072 = vpop.f32.mrb[0].mxu0
        %v9073 = vadd.f32 0.0, %v9072
        %v9074 = vpop.f32.mrb[0].mxu0
        %9075 = vmatprep.mubr.bf16.mxu0 0
        %9076 = vmatmul.mubr.bf16.gmra.mrb[0].mxu0 %v8886
        %v9077 = vpop.f32.mrb[0].mxu0
        %v9078 = vadd.f32 0.0, %v9077
        %v9079 = vpop.f32.mrb[0].mxu0
        %v9080 = vpop.f32.mrb[0].mxu0
        %v9081 = vadd.f32 0.0, %v9080
        %v9082 = vpop.f32.mrb[0].mxu0
        %9083 = vmatprep.mubr.bf16.mxu0 0
        %9084 = vmatmul.mubr.bf16.gmra.mrb[0].mxu0 %v8887
        %v9085 = vpop.f32.mrb[0].mxu0
        %v9086 = vadd.f32 0.0, %v9085
        %v9087 = vpop.f32.mrb[0].mxu0
        %v9088 = vpop.f32.mrb[0].mxu0
        %v9089 = vadd.f32 0.0, %v9088
        %v9090 = vpop.f32.mrb[0].mxu0
        %9091 = vmatprep.mubr.bf16.mxu0 0
        %9092 = vmatmul.mubr.bf16.gmra.mrb[0].mxu0 %v8888
        %v9093 = vpop.f32.mrb[0].mxu0
        %v9094 = vadd.f32 0.0, %v9093
        %v9095 = vpop.f32.mrb[0].mxu0
        %v9096 = vpop.f32.mrb[0].mxu0
        %v9097 = vadd.f32 0.0, %v9096
        %v9098 = vpop.f32.mrb[0].mxu0
        %9099 = vmatprep.mubr.bf16.mxu0 0
        %9100 = vmatmul.mubr.bf16.gmra.mrb[0].mxu0 %v8889
        %v9101 = vpop.f32.mrb[0].mxu0
        %v9102 = vadd.f32 0.0, %v9101
        %v9103 = vpop.f32.mrb[0].mxu0
        %v9104 = vpop.f32.mrb[0].mxu0
        %v9105 = vadd.f32 0.0, %v9104
        %v9106 = vpop.f32.mrb[0].mxu0
        %9107 = vmatprep.mubr.bf16.mxu0 0
        %9108 = vmatmul.mubr.bf16.gmra.mrb[0].mxu0 %v8890
        %v9109 = vpop.f32.mrb[0].mxu0
        %v9110 = vadd.f32 0.0, %v9109
        %v9111 = vpop.f32.mrb[0].mxu0
        %v9112 = vpop.f32.mrb[0].mxu0
        %v9113 = vadd.f32 0.0, %v9112
        %v9114 = vpop.f32.mrb[0].mxu0
        %9115 = vdwg.mxu0
        %v9116 = vadd.f32 %v8362, %v8990
        %v9117 = vadd.f32 %v8363, %v8993
        %v9118 = vadd.f32 %v8364, %v8998
        %v9119 = vadd.f32 %v8365, %v9001
        %v9120 = vadd.f32 %v8366, %v9006
        %v9121 = vadd.f32 %v8367, %v9009
        %v9122 = vadd.f32 %v8368, %v9014
        %v9123 = vadd.f32 %v8369, %v9017
        %v9124 = vadd.f32 %v8370, %v9022
        %v9125 = vadd.f32 %v8371, %v9025
        %v9126 = vadd.f32 %v8372, %v9030
        %v9127 = vadd.f32 %v8373, %v9033
        %v9128 = vadd.f32 %v8374, %v9038
        %v9129 = vadd.f32 %v8375, %v9041
        %v9130 = vadd.f32 %v8376, %v9046
        %v9131 = vadd.f32 %v8377, %v9049
        %v9132 = vadd.f32 %v8378, %v9054
        %v9133 = vadd.f32 %v8379, %v9057
        %v9134 = vadd.f32 %v8380, %v9062
        %v9135 = vadd.f32 %v8381, %v9065
        %v9136 = vadd.f32 %v8382, %v9070
        %v9137 = vadd.f32 %v8383, %v9073
        %v9138 = vadd.f32 %v8384, %v9078
        %v9139 = vadd.f32 %v8385, %v9081
        %v9140 = vadd.f32 %v8386, %v9086
        %v9141 = vadd.f32 %v8387, %v9089
        %v9142 = vadd.f32 %v8388, %v9094
        %v9143 = vadd.f32 %v8389, %v9097
        %v9144 = vadd.f32 %v8390, %v9102
        %v9145 = vadd.f32 %v8391, %v9105
        %v9146 = vadd.f32 %v8392, %v9110
        %v9147 = vadd.f32 %v8393, %v9113
        %v9148 = vld [vmem:[%s6370] sm:$0xe]
        %v9149 = vld [vmem:[%s6370 + $0xc] sm:$0xe]
        %v9150 = vld [vmem:[%s6370 + $0x18] sm:$0xe]
        %v9151 = vld [vmem:[%s6370 + $0x24] sm:$0xe]
        %v9152 = vld [vmem:[%s6370 + $0x30] sm:$0xe]
        %v9153 = vld [vmem:[%s6370 + $0x3c] sm:$0xe]
        %v9154 = vld [vmem:[%s6370 + $0x48] sm:$0xe]
        %v9155 = vld [vmem:[%s6370 + $0x54] sm:$0xe]
        %v9156 = vld [vmem:[%s6370 + $0x60] sm:$0xe]
        %v9157 = vld [vmem:[%s6370 + $0x6c] sm:$0xe]
        %v9158 = vld [vmem:[%s6370 + $0x78] sm:$0xe]
        %v9159 = vld [vmem:[%s6370 + $0x84] sm:$0xe]
        %v9160 = vld [vmem:[%s6370 + $0x90] sm:$0xe]
        %v9161 = vld [vmem:[%s6370 + $0x9c] sm:$0xe]
        %v9162 = vld [vmem:[%s6370 + $0xa8] sm:$0xe]
        %v9163 = vld [vmem:[%s6370 + $0xb4] sm:$0xe]
        %v9212 = vrot.slane %v9148, 5
        %v9213 = vrot.slane %v9212, 4
        %v9214 = vrot.slane %v8395, 5
        %v9215 = vsel %vm2171, %v9213, %v9214
        %v9216 = vrot.slane %v9214, 4
        %v9217 = vrot.slane %v8396, 5
        %v9218 = vsel %vm2171, %v9216, %v9217
        %v9219 = vrot.slane %v9149, 5
        %v9220 = vrot.slane %v9219, 4
        %v9221 = vrot.slane %v8398, 5
        %v9222 = vsel %vm2171, %v9220, %v9221
        %v9223 = vrot.slane %v9221, 4
        %v9224 = vrot.slane %v8399, 5
        %v9225 = vsel %vm2171, %v9223, %v9224
        %v9226 = vrot.slane %v9150, 5
        %v9227 = vrot.slane %v9226, 4
        %v9228 = vrot.slane %v8401, 5
        %v9229 = vsel %vm2171, %v9227, %v9228
        %v9230 = vrot.slane %v9228, 4
        %v9231 = vrot.slane %v8402, 5
        %v9232 = vsel %vm2171, %v9230, %v9231
        %v9233 = vrot.slane %v9151, 5
        %v9234 = vrot.slane %v9233, 4
        %v9235 = vrot.slane %v8404, 5
        %v9236 = vsel %vm2171, %v9234, %v9235
        %v9237 = vrot.slane %v9235, 4
        %v9238 = vrot.slane %v8405, 5
        %v9239 = vsel %vm2171, %v9237, %v9238
        %v9240 = vrot.slane %v9152, 5
        %v9241 = vrot.slane %v9240, 4
        %v9242 = vrot.slane %v8407, 5
        %v9243 = vsel %vm2171, %v9241, %v9242
        %v9244 = vrot.slane %v9242, 4
        %v9245 = vrot.slane %v8408, 5
        %v9246 = vsel %vm2171, %v9244, %v9245
        %v9247 = vrot.slane %v9153, 5
        %v9248 = vrot.slane %v9247, 4
        %v9249 = vrot.slane %v8410, 5
        %v9250 = vsel %vm2171, %v9248, %v9249
        %v9251 = vrot.slane %v9249, 4
        %v9252 = vrot.slane %v8411, 5
        %v9253 = vsel %vm2171, %v9251, %v9252
        %v9254 = vrot.slane %v9154, 5
        %v9255 = vrot.slane %v9254, 4
        %v9256 = vrot.slane %v8413, 5
        %v9257 = vsel %vm2171, %v9255, %v9256
        %v9258 = vrot.slane %v9256, 4
        %v9259 = vrot.slane %v8414, 5
        %v9260 = vsel %vm2171, %v9258, %v9259
        %v9261 = vrot.slane %v9155, 5
        %v9262 = vrot.slane %v9261, 4
        %v9263 = vrot.slane %v8416, 5
        %v9264 = vsel %vm2171, %v9262, %v9263
        %v9265 = vrot.slane %v9263, 4
        %v9266 = vrot.slane %v8417, 5
        %v9267 = vsel %vm2171, %v9265, %v9266
        %v9268 = vrot.slane %v9156, 5
        %v9269 = vrot.slane %v9268, 4
        %v9270 = vrot.slane %v8419, 5
        %v9271 = vsel %vm2171, %v9269, %v9270
        %v9272 = vrot.slane %v9270, 4
        %v9273 = vrot.slane %v8420, 5
        %v9274 = vsel %vm2171, %v9272, %v9273
        %v9275 = vrot.slane %v9157, 5
        %v9276 = vrot.slane %v9275, 4
        %v9277 = vrot.slane %v8422, 5
        %v9278 = vsel %vm2171, %v9276, %v9277
        %v9279 = vrot.slane %v9277, 4
        %v9280 = vrot.slane %v8423, 5
        %v9281 = vsel %vm2171, %v9279, %v9280
        %v9282 = vrot.slane %v9158, 5
        %v9283 = vrot.slane %v9282, 4
        %v9284 = vrot.slane %v8425, 5
        %v9285 = vsel %vm2171, %v9283, %v9284
        %v9286 = vrot.slane %v9284, 4
        %v9287 = vrot.slane %v8426, 5
        %v9288 = vsel %vm2171, %v9286, %v9287
        %v9289 = vrot.slane %v9159, 5
        %v9290 = vrot.slane %v9289, 4
        %v9291 = vrot.slane %v8428, 5
        %v9292 = vsel %vm2171, %v9290, %v9291
        %v9293 = vrot.slane %v9291, 4
        %v9294 = vrot.slane %v8429, 5
        %v9295 = vsel %vm2171, %v9293, %v9294
        %v9296 = vrot.slane %v9160, 5
        %v9297 = vrot.slane %v9296, 4
        %v9298 = vrot.slane %v8431, 5
        %v9299 = vsel %vm2171, %v9297, %v9298
        %v9300 = vrot.slane %v9298, 4
        %v9301 = vrot.slane %v8432, 5
        %v9302 = vsel %vm2171, %v9300, %v9301
        %v9303 = vrot.slane %v9161, 5
        %v9304 = vrot.slane %v9303, 4
        %v9305 = vrot.slane %v8434, 5
        %v9306 = vsel %vm2171, %v9304, %v9305
        %v9307 = vrot.slane %v9305, 4
        %v9308 = vrot.slane %v8435, 5
        %v9309 = vsel %vm2171, %v9307, %v9308
        %v9310 = vrot.slane %v9162, 5
        %v9311 = vrot.slane %v9310, 4
        %v9312 = vrot.slane %v8437, 5
        %v9313 = vsel %vm2171, %v9311, %v9312
        %v9314 = vrot.slane %v9312, 4
        %v9315 = vrot.slane %v8438, 5
        %v9316 = vsel %vm2171, %v9314, %v9315
        %v9317 = vrot.slane %v9163, 5
        %v9318 = vrot.slane %v9317, 4
        %v9319 = vrot.slane %v8440, 5
        %v9320 = vsel %vm2171, %v9318, %v9319
        %v9321 = vrot.slane %v9319, 4
        %v9322 = vrot.slane %v8441, 5
        %v9323 = vsel %vm2171, %v9321, %v9322
        %s9324 = scalar_lea.vmem [#allocation4], 320
        %v9325 = vld [vmem:[%s9324] sm:$0xf]
        %v9326 = vld [vmem:[%s9324 + $0x4] sm:$0xf]
        %v9327 = vld [vmem:[%s9324 + $0x8] sm:$0xf]
        %v9328 = vld [vmem:[%s9324 + $0xc] sm:$0xf]
        %v9329 = vld [vmem:[%s9324 + $0x10] sm:$0xf]
        %v9330 = vld [vmem:[%s9324 + $0x14] sm:$0xf]
        %v9331 = vld [vmem:[%s9324 + $0x18] sm:$0xf]
        %v9332 = vld [vmem:[%s9324 + $0x1c] sm:$0xf]
        %v9333 = vld [vmem:[%s9324 + $0x20] sm:$0xf]
        %v9334 = vld [vmem:[%s9324 + $0x24] sm:$0xf]
        %v9335 = vld [vmem:[%s9324 + $0x28] sm:$0xf]
        %v9336 = vld [vmem:[%s9324 + $0x2c] sm:$0xf]
        %v9337 = vld [vmem:[%s9324 + $0x30] sm:$0xf]
        %v9338 = vld [vmem:[%s9324 + $0x34] sm:$0xf]
        %v9339 = vld [vmem:[%s9324 + $0x38] sm:$0xf]
        %v9340 = vld [vmem:[%s9324 + $0x3c] sm:$0xf]
        %v9341 = vunpack.c.l.b16 %v9215
        %v9342 = vunpack.c.l.b16 %v9218
        %v9343 = vunpack.c.l.b16 %v9222
        %v9344 = vunpack.c.l.b16 %v9225
        %v9345 = vunpack.c.l.b16 %v9229
        %v9346 = vunpack.c.l.b16 %v9232
        %v9347 = vunpack.c.l.b16 %v9236
        %v9348 = vunpack.c.l.b16 %v9239
        %v9349 = vunpack.c.l.b16 %v9243
        %v9350 = vunpack.c.l.b16 %v9246
        %v9351 = vunpack.c.l.b16 %v9250
        %v9352 = vunpack.c.l.b16 %v9253
        %v9353 = vunpack.c.l.b16 %v9257
        %v9354 = vunpack.c.l.b16 %v9260
        %v9355 = vunpack.c.l.b16 %v9264
        %v9356 = vunpack.c.l.b16 %v9267
        %v9357 = vunpack.c.l.b16 %v9271
        %v9358 = vunpack.c.l.b16 %v9274
        %v9359 = vunpack.c.l.b16 %v9278
        %v9360 = vunpack.c.l.b16 %v9281
        %v9361 = vunpack.c.l.b16 %v9285
        %v9362 = vunpack.c.l.b16 %v9288
        %v9363 = vunpack.c.l.b16 %v9292
        %v9364 = vunpack.c.l.b16 %v9295
        %v9365 = vunpack.c.l.b16 %v9299
        %v9366 = vunpack.c.l.b16 %v9302
        %v9367 = vunpack.c.l.b16 %v9306
        %v9368 = vunpack.c.l.b16 %v9309
        %v9369 = vunpack.c.l.b16 %v9313
        %v9370 = vunpack.c.l.b16 %v9316
        %v9371 = vunpack.c.l.b16 %v9320
        %v9372 = vunpack.c.l.b16 %v9323
        %v9373 = vpack.c.b16 %v9342, %v9341
        %v9374 = vpack.c.b16 %v9344, %v9343
        %v9375 = vpack.c.b16 %v9346, %v9345
        %v9376 = vpack.c.b16 %v9348, %v9347
        %v9377 = vpack.c.b16 %v9350, %v9349
        %v9378 = vpack.c.b16 %v9352, %v9351
        %v9379 = vpack.c.b16 %v9354, %v9353
        %v9380 = vpack.c.b16 %v9356, %v9355
        %v9381 = vpack.c.b16 %v9358, %v9357
        %v9382 = vpack.c.b16 %v9360, %v9359
        %v9383 = vpack.c.b16 %v9362, %v9361
        %v9384 = vpack.c.b16 %v9364, %v9363
        %v9385 = vpack.c.b16 %v9366, %v9365
        %v9386 = vpack.c.b16 %v9368, %v9367
        %v9387 = vpack.c.b16 %v9370, %v9369
        %v9388 = vpack.c.b16 %v9372, %v9371
        %v9421 = vunpack.c.l.b16 %v9325
        %v9422 = vunpack.c.l.b16 %v9326
        %v9423 = vunpack.c.l.b16 %v9327
        %v9424 = vunpack.c.l.b16 %v9328
        %v9425 = vunpack.c.l.b16 %v9329
        %v9426 = vunpack.c.l.b16 %v9330
        %v9427 = vunpack.c.l.b16 %v9331
        %v9428 = vunpack.c.l.b16 %v9332
        %v9429 = vunpack.c.l.b16 %v9333
        %v9430 = vunpack.c.l.b16 %v9334
        %v9431 = vunpack.c.l.b16 %v9335
        %v9432 = vunpack.c.l.b16 %v9336
        %v9433 = vunpack.c.l.b16 %v9337
        %v9434 = vunpack.c.l.b16 %v9338
        %v9435 = vunpack.c.l.b16 %v9339
        %v9436 = vunpack.c.l.b16 %v9340
        %v9437 = vpack.c.b16 %v9422, %v9421
        %v9438 = vpack.c.b16 %v9424, %v9423
        %v9439 = vpack.c.b16 %v9426, %v9425
        %v9440 = vpack.c.b16 %v9428, %v9427
        %v9441 = vpack.c.b16 %v9430, %v9429
        %v9442 = vpack.c.b16 %v9432, %v9431
        %v9443 = vpack.c.b16 %v9434, %v9433
        %v9444 = vpack.c.b16 %v9436, %v9435
        %9453 = vmatprep.subr.bf16.mxu0 0
        %9454 = vmatpush1.bf16.msra.mxu0 %v9437
        %9455 = vmatprep.subr.bf16.mxu0 0
        %9456 = vmatpush1.bf16.msra.mxu0 %v9438
        %9457 = vmatprep.subr.bf16.mxu0 0
        %9458 = vmatpush1.bf16.msra.mxu0 %v9439
        %9459 = vmatprep.subr.bf16.mxu0 0
        %9460 = vmatpush1.bf16.msra.mxu0 %v9440
        %9461 = vmatprep.subr.bf16.mxu0 0
        %9462 = vmatpush1.bf16.msra.mxu0 %v9441
        %9463 = vmatprep.subr.bf16.mxu0 0
        %9464 = vmatpush1.bf16.msra.mxu0 %v9442
        %9465 = vmatprep.subr.bf16.mxu0 0
        %9466 = vmatpush1.bf16.msra.mxu0 %v9443
        %9467 = vmatprep.subr.bf16.mxu0 0
        %9468 = vmatpush1.bf16.msra.mxu0 %v9444
        %9469 = vmatprep.subr.bf16.mxu0 0
        %9470 = vmatpush1.bf16.msra.mxu0 0
        %9471 = vmatprep.subr.bf16.mxu0 0
        %9472 = vmatpush1.bf16.msra.mxu0 0
        %9473 = vmatprep.subr.bf16.mxu0 0
        %9474 = vmatpush1.bf16.msra.mxu0 0
        %9475 = vmatprep.subr.bf16.mxu0 0
        %9476 = vmatpush1.bf16.msra.mxu0 0
        %9477 = vmatprep.subr.bf16.mxu0 0
        %9478 = vmatpush1.bf16.msra.mxu0 0
        %9479 = vmatprep.subr.bf16.mxu0 0
        %9480 = vmatpush1.bf16.msra.mxu0 0
        %9481 = vmatprep.subr.bf16.mxu0 0
        %9482 = vmatpush1.bf16.msra.mxu0 0
        %9483 = vmatprep.subr.bf16.mxu0 0
        %9484 = vmatpush1.bf16.msra.mxu0 0
        %9485 = vmatprep.mubr.bf16.mxu0 0
        %9486 = vmatmul.mubr.bf16.gmra.mrb[0].mxu0 %v9373
        %v9487 = vpop.f32.mrb[0].mxu0
        %v9488 = vadd.f32 0.0, %v9487
        %v9489 = vpop.f32.mrb[0].mxu0
        %v9490 = vpop.f32.mrb[0].mxu0
        %v9491 = vadd.f32 0.0, %v9490
        %v9492 = vpop.f32.mrb[0].mxu0
        %9493 = vmatprep.mubr.bf16.mxu0 0
        %9494 = vmatmul.mubr.bf16.gmra.mrb[0].mxu0 %v9374
        %v9495 = vpop.f32.mrb[0].mxu0
        %v9496 = vadd.f32 0.0, %v9495
        %v9497 = vpop.f32.mrb[0].mxu0
        %v9498 = vpop.f32.mrb[0].mxu0
        %v9499 = vadd.f32 0.0, %v9498
        %v9500 = vpop.f32.mrb[0].mxu0
        %9501 = vmatprep.mubr.bf16.mxu0 0
        %9502 = vmatmul.mubr.bf16.gmra.mrb[0].mxu0 %v9375
        %v9503 = vpop.f32.mrb[0].mxu0
        %v9504 = vadd.f32 0.0, %v9503
        %v9505 = vpop.f32.mrb[0].mxu0
        %v9506 = vpop.f32.mrb[0].mxu0
        %v9507 = vadd.f32 0.0, %v9506
        %v9508 = vpop.f32.mrb[0].mxu0
        %9509 = vmatprep.mubr.bf16.mxu0 0
        %9510 = vmatmul.mubr.bf16.gmra.mrb[0].mxu0 %v9376
        %v9511 = vpop.f32.mrb[0].mxu0
        %v9512 = vadd.f32 0.0, %v9511
        %v9513 = vpop.f32.mrb[0].mxu0
        %v9514 = vpop.f32.mrb[0].mxu0
        %v9515 = vadd.f32 0.0, %v9514
        %v9516 = vpop.f32.mrb[0].mxu0
        %9517 = vmatprep.mubr.bf16.mxu0 0
        %9518 = vmatmul.mubr.bf16.gmra.mrb[0].mxu0 %v9377
        %v9519 = vpop.f32.mrb[0].mxu0
        %v9520 = vadd.f32 0.0, %v9519
        %v9521 = vpop.f32.mrb[0].mxu0
        %v9522 = vpop.f32.mrb[0].mxu0
        %v9523 = vadd.f32 0.0, %v9522
        %v9524 = vpop.f32.mrb[0].mxu0
        %9525 = vmatprep.mubr.bf16.mxu0 0
        %9526 = vmatmul.mubr.bf16.gmra.mrb[0].mxu0 %v9378
        %v9527 = vpop.f32.mrb[0].mxu0
        %v9528 = vadd.f32 0.0, %v9527
        %v9529 = vpop.f32.mrb[0].mxu0
        %v9530 = vpop.f32.mrb[0].mxu0
        %v9531 = vadd.f32 0.0, %v9530
        %v9532 = vpop.f32.mrb[0].mxu0
        %9533 = vmatprep.mubr.bf16.mxu0 0
        %9534 = vmatmul.mubr.bf16.gmra.mrb[0].mxu0 %v9379
        %v9535 = vpop.f32.mrb[0].mxu0
        %v9536 = vadd.f32 0.0, %v9535
        %v9537 = vpop.f32.mrb[0].mxu0
        %v9538 = vpop.f32.mrb[0].mxu0
        %v9539 = vadd.f32 0.0, %v9538
        %v9540 = vpop.f32.mrb[0].mxu0
        %9541 = vmatprep.mubr.bf16.mxu0 0
        %9542 = vmatmul.mubr.bf16.gmra.mrb[0].mxu0 %v9380
        %v9543 = vpop.f32.mrb[0].mxu0
        %v9544 = vadd.f32 0.0, %v9543
        %v9545 = vpop.f32.mrb[0].mxu0
        %v9546 = vpop.f32.mrb[0].mxu0
        %v9547 = vadd.f32 0.0, %v9546
        %v9548 = vpop.f32.mrb[0].mxu0
        %9549 = vmatprep.mubr.bf16.mxu0 0
        %9550 = vmatmul.mubr.bf16.gmra.mrb[0].mxu0 %v9381
        %v9551 = vpop.f32.mrb[0].mxu0
        %v9552 = vadd.f32 0.0, %v9551
        %v9553 = vpop.f32.mrb[0].mxu0
        %v9554 = vpop.f32.mrb[0].mxu0
        %v9555 = vadd.f32 0.0, %v9554
        %v9556 = vpop.f32.mrb[0].mxu0
        %9557 = vmatprep.mubr.bf16.mxu0 0
        %9558 = vmatmul.mubr.bf16.gmra.mrb[0].mxu0 %v9382
        %v9559 = vpop.f32.mrb[0].mxu0
        %v9560 = vadd.f32 0.0, %v9559
        %v9561 = vpop.f32.mrb[0].mxu0
        %v9562 = vpop.f32.mrb[0].mxu0
        %v9563 = vadd.f32 0.0, %v9562
        %v9564 = vpop.f32.mrb[0].mxu0
        %9565 = vmatprep.mubr.bf16.mxu0 0
        %9566 = vmatmul.mubr.bf16.gmra.mrb[0].mxu0 %v9383
        %v9567 = vpop.f32.mrb[0].mxu0
        %v9568 = vadd.f32 0.0, %v9567
        %v9569 = vpop.f32.mrb[0].mxu0
        %v9570 = vpop.f32.mrb[0].mxu0
        %v9571 = vadd.f32 0.0, %v9570
        %v9572 = vpop.f32.mrb[0].mxu0
        %9573 = vmatprep.mubr.bf16.mxu0 0
        %9574 = vmatmul.mubr.bf16.gmra.mrb[0].mxu0 %v9384
        %v9575 = vpop.f32.mrb[0].mxu0
        %v9576 = vadd.f32 0.0, %v9575
        %v9577 = vpop.f32.mrb[0].mxu0
        %v9578 = vpop.f32.mrb[0].mxu0
        %v9579 = vadd.f32 0.0, %v9578
        %v9580 = vpop.f32.mrb[0].mxu0
        %9581 = vmatprep.mubr.bf16.mxu0 0
        %9582 = vmatmul.mubr.bf16.gmra.mrb[0].mxu0 %v9385
        %v9583 = vpop.f32.mrb[0].mxu0
        %v9584 = vadd.f32 0.0, %v9583
        %v9585 = vpop.f32.mrb[0].mxu0
        %v9586 = vpop.f32.mrb[0].mxu0
        %v9587 = vadd.f32 0.0, %v9586
        %v9588 = vpop.f32.mrb[0].mxu0
        %9589 = vmatprep.mubr.bf16.mxu0 0
        %9590 = vmatmul.mubr.bf16.gmra.mrb[0].mxu0 %v9386
        %v9591 = vpop.f32.mrb[0].mxu0
        %v9592 = vadd.f32 0.0, %v9591
        %v9593 = vpop.f32.mrb[0].mxu0
        %v9594 = vpop.f32.mrb[0].mxu0
        %v9595 = vadd.f32 0.0, %v9594
        %v9596 = vpop.f32.mrb[0].mxu0
        %9597 = vmatprep.mubr.bf16.mxu0 0
        %9598 = vmatmul.mubr.bf16.gmra.mrb[0].mxu0 %v9387
        %v9599 = vpop.f32.mrb[0].mxu0
        %v9600 = vadd.f32 0.0, %v9599
        %v9601 = vpop.f32.mrb[0].mxu0
        %v9602 = vpop.f32.mrb[0].mxu0
        %v9603 = vadd.f32 0.0, %v9602
        %v9604 = vpop.f32.mrb[0].mxu0
        %9605 = vmatprep.mubr.bf16.mxu0 0
        %9606 = vmatmul.mubr.bf16.gmra.mrb[0].mxu0 %v9388
        %v9607 = vpop.f32.mrb[0].mxu0
        %v9608 = vadd.f32 0.0, %v9607
        %v9609 = vpop.f32.mrb[0].mxu0
        %v9610 = vpop.f32.mrb[0].mxu0
        %v9611 = vadd.f32 0.0, %v9610
        %v9612 = vpop.f32.mrb[0].mxu0
        %9613 = vdwg.mxu0
        %v9614 = vadd.f32 %v9116, %v9488
        %v9615 = vadd.f32 %v9117, %v9491
        %v9616 = vadd.f32 %v9118, %v9496
        %v9617 = vadd.f32 %v9119, %v9499
        %v9618 = vadd.f32 %v9120, %v9504
        %v9619 = vadd.f32 %v9121, %v9507
        %v9620 = vadd.f32 %v9122, %v9512
        %v9621 = vadd.f32 %v9123, %v9515
        %v9622 = vadd.f32 %v9124, %v9520
        %v9623 = vadd.f32 %v9125, %v9523
        %v9624 = vadd.f32 %v9126, %v9528
        %v9625 = vadd.f32 %v9127, %v9531
        %v9626 = vadd.f32 %v9128, %v9536
        %v9627 = vadd.f32 %v9129, %v9539
        %v9628 = vadd.f32 %v9130, %v9544
        %v9629 = vadd.f32 %v9131, %v9547
        %v9630 = vadd.f32 %v9132, %v9552
        %v9631 = vadd.f32 %v9133, %v9555
        %v9632 = vadd.f32 %v9134, %v9560
        %v9633 = vadd.f32 %v9135, %v9563
        %v9634 = vadd.f32 %v9136, %v9568
        %v9635 = vadd.f32 %v9137, %v9571
        %v9636 = vadd.f32 %v9138, %v9576
        %v9637 = vadd.f32 %v9139, %v9579
        %v9638 = vadd.f32 %v9140, %v9584
        %v9639 = vadd.f32 %v9141, %v9587
        %v9640 = vadd.f32 %v9142, %v9592
        %v9641 = vadd.f32 %v9143, %v9595
        %v9642 = vadd.f32 %v9144, %v9600
        %v9643 = vadd.f32 %v9145, %v9603
        %v9644 = vadd.f32 %v9146, %v9608
        %v9645 = vadd.f32 %v9147, %v9611
        %s9646 = scalar_lea.vmem [#allocation3], 24
        %v9647 = vld [vmem:[%s9646] sm:$0xf]
        %v9648 = vld [vmem:[%s9646 + $0x4] sm:$0xf]
        %v9649 = vld [vmem:[%s9646 + $0xc] sm:$0xf]
        %v9650 = vld [vmem:[%s9646 + $0x10] sm:$0xf]
        %v9651 = vld [vmem:[%s9646 + $0x18] sm:$0xf]
        %v9652 = vld [vmem:[%s9646 + $0x1c] sm:$0xf]
        %v9653 = vld [vmem:[%s9646 + $0x24] sm:$0xf]
        %v9654 = vld [vmem:[%s9646 + $0x28] sm:$0xf]
        %v9655 = vld [vmem:[%s9646 + $0x30] sm:$0xf]
        %v9656 = vld [vmem:[%s9646 + $0x34] sm:$0xf]
        %v9657 = vld [vmem:[%s9646 + $0x3c] sm:$0xf]
        %v9658 = vld [vmem:[%s9646 + $0x40] sm:$0xf]
        %v9659 = vld [vmem:[%s9646 + $0x48] sm:$0xf]
        %v9660 = vld [vmem:[%s9646 + $0x4c] sm:$0xf]
        %v9661 = vld [vmem:[%s9646 + $0x54] sm:$0xf]
        %v9662 = vld [vmem:[%s9646 + $0x58] sm:$0xf]
        %v9663 = vld [vmem:[%s9646 + $0x60] sm:$0xf]
        %v9664 = vld [vmem:[%s9646 + $0x64] sm:$0xf]
        %v9665 = vld [vmem:[%s9646 + $0x6c] sm:$0xf]
        %v9666 = vld [vmem:[%s9646 + $0x70] sm:$0xf]
        %v9667 = vld [vmem:[%s9646 + $0x78] sm:$0xf]
        %v9668 = vld [vmem:[%s9646 + $0x7c] sm:$0xf]
        %v9669 = vld [vmem:[%s9646 + $0x84] sm:$0xf]
        %v9670 = vld [vmem:[%s9646 + $0x88] sm:$0xf]
        %v9671 = vld [vmem:[%s9646 + $0x90] sm:$0xf]
        %v9672 = vld [vmem:[%s9646 + $0x94] sm:$0xf]
        %v9673 = vld [vmem:[%s9646 + $0x9c] sm:$0xf]
        %v9674 = vld [vmem:[%s9646 + $0xa0] sm:$0xf]
        %v9675 = vld [vmem:[%s9646 + $0xa8] sm:$0xf]
        %v9676 = vld [vmem:[%s9646 + $0xac] sm:$0xf]
        %v9677 = vld [vmem:[%s9646 + $0xb4] sm:$0xf]
        %v9678 = vld [vmem:[%s9646 + $0xb8] sm:$0xf]
        %s9679 = scalar_lea.vmem [#allocation4], 384
        %v9680 = vld [vmem:[%s9679] sm:$0xf]
        %v9681 = vld [vmem:[%s9679 + $0x4] sm:$0xf]
        %v9682 = vld [vmem:[%s9679 + $0x8] sm:$0xf]
        %v9683 = vld [vmem:[%s9679 + $0xc] sm:$0xf]
        %v9684 = vld [vmem:[%s9679 + $0x10] sm:$0xf]
        %v9685 = vld [vmem:[%s9679 + $0x14] sm:$0xf]
        %v9686 = vld [vmem:[%s9679 + $0x18] sm:$0xf]
        %v9687 = vld [vmem:[%s9679 + $0x1c] sm:$0xf]
        %v9688 = vld [vmem:[%s9679 + $0x20] sm:$0xf]
        %v9689 = vld [vmem:[%s9679 + $0x24] sm:$0xf]
        %v9690 = vld [vmem:[%s9679 + $0x28] sm:$0xf]
        %v9691 = vld [vmem:[%s9679 + $0x2c] sm:$0xf]
        %v9692 = vld [vmem:[%s9679 + $0x30] sm:$0xf]
        %v9693 = vld [vmem:[%s9679 + $0x34] sm:$0xf]
        %v9694 = vld [vmem:[%s9679 + $0x38] sm:$0xf]
        %v9695 = vld [vmem:[%s9679 + $0x3c] sm:$0xf]
        %v9728 = vunpack.c.l.b16 %v9647
        %v9729 = vunpack.c.l.b16 %v9648
        %v9730 = vunpack.c.l.b16 %v9649
        %v9731 = vunpack.c.l.b16 %v9650
        %v9732 = vunpack.c.l.b16 %v9651
        %v9733 = vunpack.c.l.b16 %v9652
        %v9734 = vunpack.c.l.b16 %v9653
        %v9735 = vunpack.c.l.b16 %v9654
        %v9736 = vunpack.c.l.b16 %v9655
        %v9737 = vunpack.c.l.b16 %v9656
        %v9738 = vunpack.c.l.b16 %v9657
        %v9739 = vunpack.c.l.b16 %v9658
        %v9740 = vunpack.c.l.b16 %v9659
        %v9741 = vunpack.c.l.b16 %v9660
        %v9742 = vunpack.c.l.b16 %v9661
        %v9743 = vunpack.c.l.b16 %v9662
        %v9744 = vunpack.c.l.b16 %v9663
        %v9745 = vunpack.c.l.b16 %v9664
        %v9746 = vunpack.c.l.b16 %v9665
        %v9747 = vunpack.c.l.b16 %v9666
        %v9748 = vunpack.c.l.b16 %v9667
        %v9749 = vunpack.c.l.b16 %v9668
        %v9750 = vunpack.c.l.b16 %v9669
        %v9751 = vunpack.c.l.b16 %v9670
        %v9752 = vunpack.c.l.b16 %v9671
        %v9753 = vunpack.c.l.b16 %v9672
        %v9754 = vunpack.c.l.b16 %v9673
        %v9755 = vunpack.c.l.b16 %v9674
        %v9756 = vunpack.c.l.b16 %v9675
        %v9757 = vunpack.c.l.b16 %v9676
        %v9758 = vunpack.c.l.b16 %v9677
        %v9759 = vunpack.c.l.b16 %v9678
        %v9760 = vpack.c.b16 %v9729, %v9728
        %v9761 = vpack.c.b16 %v9731, %v9730
        %v9762 = vpack.c.b16 %v9733, %v9732
        %v9763 = vpack.c.b16 %v9735, %v9734
        %v9764 = vpack.c.b16 %v9737, %v9736
        %v9765 = vpack.c.b16 %v9739, %v9738
        %v9766 = vpack.c.b16 %v9741, %v9740
        %v9767 = vpack.c.b16 %v9743, %v9742
        %v9768 = vpack.c.b16 %v9745, %v9744
        %v9769 = vpack.c.b16 %v9747, %v9746
        %v9770 = vpack.c.b16 %v9749, %v9748
        %v9771 = vpack.c.b16 %v9751, %v9750
        %v9772 = vpack.c.b16 %v9753, %v9752
        %v9773 = vpack.c.b16 %v9755, %v9754
        %v9774 = vpack.c.b16 %v9757, %v9756
        %v9775 = vpack.c.b16 %v9759, %v9758
        %v9808 = vunpack.c.l.b16 %v9680
        %v9809 = vunpack.c.l.b16 %v9681
        %v9810 = vunpack.c.l.b16 %v9682
        %v9811 = vunpack.c.l.b16 %v9683
        %v9812 = vunpack.c.l.b16 %v9684
        %v9813 = vunpack.c.l.b16 %v9685
        %v9814 = vunpack.c.l.b16 %v9686
        %v9815 = vunpack.c.l.b16 %v9687
        %v9816 = vunpack.c.l.b16 %v9688
        %v9817 = vunpack.c.l.b16 %v9689
        %v9818 = vunpack.c.l.b16 %v9690
        %v9819 = vunpack.c.l.b16 %v9691
        %v9820 = vunpack.c.l.b16 %v9692
        %v9821 = vunpack.c.l.b16 %v9693
        %v9822 = vunpack.c.l.b16 %v9694
        %v9823 = vunpack.c.l.b16 %v9695
        %v9824 = vpack.c.b16 %v9809, %v9808
        %v9825 = vpack.c.b16 %v9811, %v9810
        %v9826 = vpack.c.b16 %v9813, %v9812
        %v9827 = vpack.c.b16 %v9815, %v9814
        %v9828 = vpack.c.b16 %v9817, %v9816
        %v9829 = vpack.c.b16 %v9819, %v9818
        %v9830 = vpack.c.b16 %v9821, %v9820
        %v9831 = vpack.c.b16 %v9823, %v9822
        %9840 = vmatprep.subr.bf16.mxu0 0
        %9841 = vmatpush1.bf16.msra.mxu0 %v9824
        %9842 = vmatprep.subr.bf16.mxu0 0
        %9843 = vmatpush1.bf16.msra.mxu0 %v9825
        %9844 = vmatprep.subr.bf16.mxu0 0
        %9845 = vmatpush1.bf16.msra.mxu0 %v9826
        %9846 = vmatprep.subr.bf16.mxu0 0
        %9847 = vmatpush1.bf16.msra.mxu0 %v9827
        %9848 = vmatprep.subr.bf16.mxu0 0
        %9849 = vmatpush1.bf16.msra.mxu0 %v9828
        %9850 = vmatprep.subr.bf16.mxu0 0
        %9851 = vmatpush1.bf16.msra.mxu0 %v9829
        %9852 = vmatprep.subr.bf16.mxu0 0
        %9853 = vmatpush1.bf16.msra.mxu0 %v9830
        %9854 = vmatprep.subr.bf16.mxu0 0
        %9855 = vmatpush1.bf16.msra.mxu0 %v9831
        %9856 = vmatprep.subr.bf16.mxu0 0
        %9857 = vmatpush1.bf16.msra.mxu0 0
        %9858 = vmatprep.subr.bf16.mxu0 0
        %9859 = vmatpush1.bf16.msra.mxu0 0
        %9860 = vmatprep.subr.bf16.mxu0 0
        %9861 = vmatpush1.bf16.msra.mxu0 0
        %9862 = vmatprep.subr.bf16.mxu0 0
        %9863 = vmatpush1.bf16.msra.mxu0 0
        %9864 = vmatprep.subr.bf16.mxu0 0
        %9865 = vmatpush1.bf16.msra.mxu0 0
        %9866 = vmatprep.subr.bf16.mxu0 0
        %9867 = vmatpush1.bf16.msra.mxu0 0
        %9868 = vmatprep.subr.bf16.mxu0 0
        %9869 = vmatpush1.bf16.msra.mxu0 0
        %9870 = vmatprep.subr.bf16.mxu0 0
        %9871 = vmatpush1.bf16.msra.mxu0 0
        %9872 = vmatprep.mubr.bf16.mxu0 0
        %9873 = vmatmul.mubr.bf16.gmra.mrb[0].mxu0 %v9760
        %v9874 = vpop.f32.mrb[0].mxu0
        %v9875 = vadd.f32 0.0, %v9874
        %v9876 = vpop.f32.mrb[0].mxu0
        %v9877 = vpop.f32.mrb[0].mxu0
        %v9878 = vadd.f32 0.0, %v9877
        %v9879 = vpop.f32.mrb[0].mxu0
        %9880 = vmatprep.mubr.bf16.mxu0 0
        %9881 = vmatmul.mubr.bf16.gmra.mrb[0].mxu0 %v9761
        %v9882 = vpop.f32.mrb[0].mxu0
        %v9883 = vadd.f32 0.0, %v9882
        %v9884 = vpop.f32.mrb[0].mxu0
        %v9885 = vpop.f32.mrb[0].mxu0
        %v9886 = vadd.f32 0.0, %v9885
        %v9887 = vpop.f32.mrb[0].mxu0
        %9888 = vmatprep.mubr.bf16.mxu0 0
        %9889 = vmatmul.mubr.bf16.gmra.mrb[0].mxu0 %v9762
        %v9890 = vpop.f32.mrb[0].mxu0
        %v9891 = vadd.f32 0.0, %v9890
        %v9892 = vpop.f32.mrb[0].mxu0
        %v9893 = vpop.f32.mrb[0].mxu0
        %v9894 = vadd.f32 0.0, %v9893
        %v9895 = vpop.f32.mrb[0].mxu0
        %9896 = vmatprep.mubr.bf16.mxu0 0
        %9897 = vmatmul.mubr.bf16.gmra.mrb[0].mxu0 %v9763
        %v9898 = vpop.f32.mrb[0].mxu0
        %v9899 = vadd.f32 0.0, %v9898
        %v9900 = vpop.f32.mrb[0].mxu0
        %v9901 = vpop.f32.mrb[0].mxu0
        %v9902 = vadd.f32 0.0, %v9901
        %v9903 = vpop.f32.mrb[0].mxu0
        %9904 = vmatprep.mubr.bf16.mxu0 0
        %9905 = vmatmul.mubr.bf16.gmra.mrb[0].mxu0 %v9764
        %v9906 = vpop.f32.mrb[0].mxu0
        %v9907 = vadd.f32 0.0, %v9906
        %v9908 = vpop.f32.mrb[0].mxu0
        %v9909 = vpop.f32.mrb[0].mxu0
        %v9910 = vadd.f32 0.0, %v9909
        %v9911 = vpop.f32.mrb[0].mxu0
        %9912 = vmatprep.mubr.bf16.mxu0 0
        %9913 = vmatmul.mubr.bf16.gmra.mrb[0].mxu0 %v9765
        %v9914 = vpop.f32.mrb[0].mxu0
        %v9915 = vadd.f32 0.0, %v9914
        %v9916 = vpop.f32.mrb[0].mxu0
        %v9917 = vpop.f32.mrb[0].mxu0
        %v9918 = vadd.f32 0.0, %v9917
        %v9919 = vpop.f32.mrb[0].mxu0
        %9920 = vmatprep.mubr.bf16.mxu0 0
        %9921 = vmatmul.mubr.bf16.gmra.mrb[0].mxu0 %v9766
        %v9922 = vpop.f32.mrb[0].mxu0
        %v9923 = vadd.f32 0.0, %v9922
        %v9924 = vpop.f32.mrb[0].mxu0
        %v9925 = vpop.f32.mrb[0].mxu0
        %v9926 = vadd.f32 0.0, %v9925
        %v9927 = vpop.f32.mrb[0].mxu0
        %9928 = vmatprep.mubr.bf16.mxu0 0
        %9929 = vmatmul.mubr.bf16.gmra.mrb[0].mxu0 %v9767
        %v9930 = vpop.f32.mrb[0].mxu0
        %v9931 = vadd.f32 0.0, %v9930
        %v9932 = vpop.f32.mrb[0].mxu0
        %v9933 = vpop.f32.mrb[0].mxu0
        %v9934 = vadd.f32 0.0, %v9933
        %v9935 = vpop.f32.mrb[0].mxu0
        %9936 = vmatprep.mubr.bf16.mxu0 0
        %9937 = vmatmul.mubr.bf16.gmra.mrb[0].mxu0 %v9768
        %v9938 = vpop.f32.mrb[0].mxu0
        %v9939 = vadd.f32 0.0, %v9938
        %v9940 = vpop.f32.mrb[0].mxu0
        %v9941 = vpop.f32.mrb[0].mxu0
        %v9942 = vadd.f32 0.0, %v9941
        %v9943 = vpop.f32.mrb[0].mxu0
        %9944 = vmatprep.mubr.bf16.mxu0 0
        %9945 = vmatmul.mubr.bf16.gmra.mrb[0].mxu0 %v9769
        %v9946 = vpop.f32.mrb[0].mxu0
        %v9947 = vadd.f32 0.0, %v9946
        %v9948 = vpop.f32.mrb[0].mxu0
        %v9949 = vpop.f32.mrb[0].mxu0
        %v9950 = vadd.f32 0.0, %v9949
        %v9951 = vpop.f32.mrb[0].mxu0
        %9952 = vmatprep.mubr.bf16.mxu0 0
        %9953 = vmatmul.mubr.bf16.gmra.mrb[0].mxu0 %v9770
        %v9954 = vpop.f32.mrb[0].mxu0
        %v9955 = vadd.f32 0.0, %v9954
        %v9956 = vpop.f32.mrb[0].mxu0
        %v9957 = vpop.f32.mrb[0].mxu0
        %v9958 = vadd.f32 0.0, %v9957
        %v9959 = vpop.f32.mrb[0].mxu0
        %9960 = vmatprep.mubr.bf16.mxu0 0
        %9961 = vmatmul.mubr.bf16.gmra.mrb[0].mxu0 %v9771
        %v9962 = vpop.f32.mrb[0].mxu0
        %v9963 = vadd.f32 0.0, %v9962
        %v9964 = vpop.f32.mrb[0].mxu0
        %v9965 = vpop.f32.mrb[0].mxu0
        %v9966 = vadd.f32 0.0, %v9965
        %v9967 = vpop.f32.mrb[0].mxu0
        %9968 = vmatprep.mubr.bf16.mxu0 0
        %9969 = vmatmul.mubr.bf16.gmra.mrb[0].mxu0 %v9772
        %v9970 = vpop.f32.mrb[0].mxu0
        %v9971 = vadd.f32 0.0, %v9970
        %v9972 = vpop.f32.mrb[0].mxu0
        %v9973 = vpop.f32.mrb[0].mxu0
        %v9974 = vadd.f32 0.0, %v9973
        %v9975 = vpop.f32.mrb[0].mxu0
        %9976 = vmatprep.mubr.bf16.mxu0 0
        %9977 = vmatmul.mubr.bf16.gmra.mrb[0].mxu0 %v9773
        %v9978 = vpop.f32.mrb[0].mxu0
        %v9979 = vadd.f32 0.0, %v9978
        %v9980 = vpop.f32.mrb[0].mxu0
        %v9981 = vpop.f32.mrb[0].mxu0
        %v9982 = vadd.f32 0.0, %v9981
        %v9983 = vpop.f32.mrb[0].mxu0
        %9984 = vmatprep.mubr.bf16.mxu0 0
        %9985 = vmatmul.mubr.bf16.gmra.mrb[0].mxu0 %v9774
        %v9986 = vpop.f32.mrb[0].mxu0
        %v9987 = vadd.f32 0.0, %v9986
        %v9988 = vpop.f32.mrb[0].mxu0
        %v9989 = vpop.f32.mrb[0].mxu0
        %v9990 = vadd.f32 0.0, %v9989
        %v9991 = vpop.f32.mrb[0].mxu0
        %9992 = vmatprep.mubr.bf16.mxu0 0
        %9993 = vmatmul.mubr.bf16.gmra.mrb[0].mxu0 %v9775
        %v9994 = vpop.f32.mrb[0].mxu0
        %v9995 = vadd.f32 0.0, %v9994
        %v9996 = vpop.f32.mrb[0].mxu0
        %v9997 = vpop.f32.mrb[0].mxu0
        %v9998 = vadd.f32 0.0, %v9997
        %v9999 = vpop.f32.mrb[0].mxu0
        %10000 = vdwg.mxu0
        %v10001 = vadd.f32 %v9614, %v9875
        %v10002 = vadd.f32 %v9615, %v9878
        %v10003 = vadd.f32 %v9616, %v9883
        %v10004 = vadd.f32 %v9617, %v9886
        %v10005 = vadd.f32 %v9618, %v9891
        %v10006 = vadd.f32 %v9619, %v9894
        %v10007 = vadd.f32 %v9620, %v9899
        %v10008 = vadd.f32 %v9621, %v9902
        %v10009 = vadd.f32 %v9622, %v9907
        %v10010 = vadd.f32 %v9623, %v9910
        %v10011 = vadd.f32 %v9624, %v9915
        %v10012 = vadd.f32 %v9625, %v9918
        %v10013 = vadd.f32 %v9626, %v9923
        %v10014 = vadd.f32 %v9627, %v9926
        %v10015 = vadd.f32 %v9628, %v9931
        %v10016 = vadd.f32 %v9629, %v9934
        %v10017 = vadd.f32 %v9630, %v9939
        %v10018 = vadd.f32 %v9631, %v9942
        %v10019 = vadd.f32 %v9632, %v9947
        %v10020 = vadd.f32 %v9633, %v9950
        %v10021 = vadd.f32 %v9634, %v9955
        %v10022 = vadd.f32 %v9635, %v9958
        %v10023 = vadd.f32 %v9636, %v9963
        %v10024 = vadd.f32 %v9637, %v9966
        %v10025 = vadd.f32 %v9638, %v9971
        %v10026 = vadd.f32 %v9639, %v9974
        %v10027 = vadd.f32 %v9640, %v9979
        %v10028 = vadd.f32 %v9641, %v9982
        %v10029 = vadd.f32 %v9642, %v9987
        %v10030 = vadd.f32 %v9643, %v9990
        %v10031 = vadd.f32 %v9644, %v9995
        %v10032 = vadd.f32 %v9645, %v9998
        %v10033 = vld [vmem:[%s9646] sm:$0xf]
        %v10034 = vld [vmem:[%s9646 + $0x4] sm:$0xf]
        %v10035 = vld [vmem:[%s9646 + $0x8] sm:$0x1]
        %v10036 = vld [vmem:[%s9646 + $0xc] sm:$0xf]
        %v10037 = vld [vmem:[%s9646 + $0x10] sm:$0xf]
        %v10038 = vld [vmem:[%s9646 + $0x14] sm:$0x1]
        %v10039 = vld [vmem:[%s9646 + $0x18] sm:$0xf]
        %v10040 = vld [vmem:[%s9646 + $0x1c] sm:$0xf]
        %v10041 = vld [vmem:[%s9646 + $0x20] sm:$0x1]
        %v10042 = vld [vmem:[%s9646 + $0x24] sm:$0xf]
        %v10043 = vld [vmem:[%s9646 + $0x28] sm:$0xf]
        %v10044 = vld [vmem:[%s9646 + $0x2c] sm:$0x1]
        %v10045 = vld [vmem:[%s9646 + $0x30] sm:$0xf]
        %v10046 = vld [vmem:[%s9646 + $0x34] sm:$0xf]
        %v10047 = vld [vmem:[%s9646 + $0x38] sm:$0x1]
        %v10048 = vld [vmem:[%s9646 + $0x3c] sm:$0xf]
        %v10049 = vld [vmem:[%s9646 + $0x40] sm:$0xf]
        %v10050 = vld [vmem:[%s9646 + $0x44] sm:$0x1]
        %v10051 = vld [vmem:[%s9646 + $0x48] sm:$0xf]
        %v10052 = vld [vmem:[%s9646 + $0x4c] sm:$0xf]
        %v10053 = vld [vmem:[%s9646 + $0x50] sm:$0x1]
        %v10054 = vld [vmem:[%s9646 + $0x54] sm:$0xf]
        %v10055 = vld [vmem:[%s9646 + $0x58] sm:$0xf]
        %v10056 = vld [vmem:[%s9646 + $0x5c] sm:$0x1]
        %v10057 = vld [vmem:[%s9646 + $0x60] sm:$0xf]
        %v10058 = vld [vmem:[%s9646 + $0x64] sm:$0xf]
        %v10059 = vld [vmem:[%s9646 + $0x68] sm:$0x1]
        %v10060 = vld [vmem:[%s9646 + $0x6c] sm:$0xf]
        %v10061 = vld [vmem:[%s9646 + $0x70] sm:$0xf]
        %v10062 = vld [vmem:[%s9646 + $0x74] sm:$0x1]
        %v10063 = vld [vmem:[%s9646 + $0x78] sm:$0xf]
        %v10064 = vld [vmem:[%s9646 + $0x7c] sm:$0xf]
        %v10065 = vld [vmem:[%s9646 + $0x80] sm:$0x1]
        %v10066 = vld [vmem:[%s9646 + $0x84] sm:$0xf]
        %v10067 = vld [vmem:[%s9646 + $0x88] sm:$0xf]
        %v10068 = vld [vmem:[%s9646 + $0x8c] sm:$0x1]
        %v10069 = vld [vmem:[%s9646 + $0x90] sm:$0xf]
        %v10070 = vld [vmem:[%s9646 + $0x94] sm:$0xf]
        %v10071 = vld [vmem:[%s9646 + $0x98] sm:$0x1]
        %v10072 = vld [vmem:[%s9646 + $0x9c] sm:$0xf]
        %v10073 = vld [vmem:[%s9646 + $0xa0] sm:$0xf]
        %v10074 = vld [vmem:[%s9646 + $0xa4] sm:$0x1]
        %v10075 = vld [vmem:[%s9646 + $0xa8] sm:$0xf]
        %v10076 = vld [vmem:[%s9646 + $0xac] sm:$0xf]
        %v10077 = vld [vmem:[%s9646 + $0xb0] sm:$0x1]
        %v10078 = vld [vmem:[%s9646 + $0xb4] sm:$0xf]
        %v10079 = vld [vmem:[%s9646 + $0xb8] sm:$0xf]
        %v10080 = vld [vmem:[%s9646 + $0xbc] sm:$0x1]
        %v10082 = vshrl.u32 %v10033, 16
        %v10084 = vrot.slane %v10082, 4
        %v10085 = vshll.u32 %v10033, 16
        %v10087 = vrot.slane %v10085, 5
        %v10088 = vor.u32 %v10084, %v10087
        %v10089 = vrot.slane %v10088, 4
        %v10091 = vshll.u32 %v10034, 16
        %v10093 = vrot.slane %v10091, 5
        %v10094 = vsel %vm1141, %v10089, %v10093
        %v10095 = vshrl.u32 %v10034, 16
        %v10097 = vrot.slane %v10095, 4
        %v10098 = vor.u32 %v10097, %v10093
        %v10099 = vrot.slane %v10098, 4
        %v10101 = vshll.u32 %v10035, 16
        %v10103 = vrot.slane %v10101, 5
        %v10104 = vsel %vm1141, %v10099, %v10103
        %v10106 = vshrl.u32 %v10036, 16
        %v10108 = vrot.slane %v10106, 4
        %v10109 = vshll.u32 %v10036, 16
        %v10111 = vrot.slane %v10109, 5
        %v10112 = vor.u32 %v10108, %v10111
        %v10113 = vrot.slane %v10112, 4
        %v10115 = vshll.u32 %v10037, 16
        %v10117 = vrot.slane %v10115, 5
        %v10118 = vsel %vm1141, %v10113, %v10117
        %v10119 = vshrl.u32 %v10037, 16
        %v10121 = vrot.slane %v10119, 4
        %v10122 = vor.u32 %v10121, %v10117
        %v10123 = vrot.slane %v10122, 4
        %v10125 = vshll.u32 %v10038, 16
        %v10127 = vrot.slane %v10125, 5
        %v10128 = vsel %vm1141, %v10123, %v10127
        %v10130 = vshrl.u32 %v10039, 16
        %v10132 = vrot.slane %v10130, 4
        %v10133 = vshll.u32 %v10039, 16
        %v10135 = vrot.slane %v10133, 5
        %v10136 = vor.u32 %v10132, %v10135
        %v10137 = vrot.slane %v10136, 4
        %v10139 = vshll.u32 %v10040, 16
        %v10141 = vrot.slane %v10139, 5
        %v10142 = vsel %vm1141, %v10137, %v10141
        %v10143 = vshrl.u32 %v10040, 16
        %v10145 = vrot.slane %v10143, 4
        %v10146 = vor.u32 %v10145, %v10141
        %v10147 = vrot.slane %v10146, 4
        %v10149 = vshll.u32 %v10041, 16
        %v10151 = vrot.slane %v10149, 5
        %v10152 = vsel %vm1141, %v10147, %v10151
        %v10154 = vshrl.u32 %v10042, 16
        %v10156 = vrot.slane %v10154, 4
        %v10157 = vshll.u32 %v10042, 16
        %v10159 = vrot.slane %v10157, 5
        %v10160 = vor.u32 %v10156, %v10159
        %v10161 = vrot.slane %v10160, 4
        %v10163 = vshll.u32 %v10043, 16
        %v10165 = vrot.slane %v10163, 5
        %v10166 = vsel %vm1141, %v10161, %v10165
        %v10167 = vshrl.u32 %v10043, 16
        %v10169 = vrot.slane %v10167, 4
        %v10170 = vor.u32 %v10169, %v10165
        %v10171 = vrot.slane %v10170, 4
        %v10173 = vshll.u32 %v10044, 16
        %v10175 = vrot.slane %v10173, 5
        %v10176 = vsel %vm1141, %v10171, %v10175
        %v10178 = vshrl.u32 %v10045, 16
        %v10180 = vrot.slane %v10178, 4
        %v10181 = vshll.u32 %v10045, 16
        %v10183 = vrot.slane %v10181, 5
        %v10184 = vor.u32 %v10180, %v10183
        %v10185 = vrot.slane %v10184, 4
        %v10187 = vshll.u32 %v10046, 16
        %v10189 = vrot.slane %v10187, 5
        %v10190 = vsel %vm1141, %v10185, %v10189
        %v10191 = vshrl.u32 %v10046, 16
        %v10193 = vrot.slane %v10191, 4
        %v10194 = vor.u32 %v10193, %v10189
        %v10195 = vrot.slane %v10194, 4
        %v10197 = vshll.u32 %v10047, 16
        %v10199 = vrot.slane %v10197, 5
        %v10200 = vsel %vm1141, %v10195, %v10199
        %v10202 = vshrl.u32 %v10048, 16
        %v10204 = vrot.slane %v10202, 4
        %v10205 = vshll.u32 %v10048, 16
        %v10207 = vrot.slane %v10205, 5
        %v10208 = vor.u32 %v10204, %v10207
        %v10209 = vrot.slane %v10208, 4
        %v10211 = vshll.u32 %v10049, 16
        %v10213 = vrot.slane %v10211, 5
        %v10214 = vsel %vm1141, %v10209, %v10213
        %v10215 = vshrl.u32 %v10049, 16
        %v10217 = vrot.slane %v10215, 4
        %v10218 = vor.u32 %v10217, %v10213
        %v10219 = vrot.slane %v10218, 4
        %v10221 = vshll.u32 %v10050, 16
        %v10223 = vrot.slane %v10221, 5
        %v10224 = vsel %vm1141, %v10219, %v10223
        %v10226 = vshrl.u32 %v10051, 16
        %v10228 = vrot.slane %v10226, 4
        %v10229 = vshll.u32 %v10051, 16
        %v10231 = vrot.slane %v10229, 5
        %v10232 = vor.u32 %v10228, %v10231
        %v10233 = vrot.slane %v10232, 4
        %v10235 = vshll.u32 %v10052, 16
        %v10237 = vrot.slane %v10235, 5
        %v10238 = vsel %vm1141, %v10233, %v10237
        %v10239 = vshrl.u32 %v10052, 16
        %v10241 = vrot.slane %v10239, 4
        %v10242 = vor.u32 %v10241, %v10237
        %v10243 = vrot.slane %v10242, 4
        %v10245 = vshll.u32 %v10053, 16
        %v10247 = vrot.slane %v10245, 5
        %v10248 = vsel %vm1141, %v10243, %v10247
        %v10250 = vshrl.u32 %v10054, 16
        %v10252 = vrot.slane %v10250, 4
        %v10253 = vshll.u32 %v10054, 16
        %v10255 = vrot.slane %v10253, 5
        %v10256 = vor.u32 %v10252, %v10255
        %v10257 = vrot.slane %v10256, 4
        %v10259 = vshll.u32 %v10055, 16
        %v10261 = vrot.slane %v10259, 5
        %v10262 = vsel %vm1141, %v10257, %v10261
        %v10263 = vshrl.u32 %v10055, 16
        %v10265 = vrot.slane %v10263, 4
        %v10266 = vor.u32 %v10265, %v10261
        %v10267 = vrot.slane %v10266, 4
        %v10269 = vshll.u32 %v10056, 16
        %v10271 = vrot.slane %v10269, 5
        %v10272 = vsel %vm1141, %v10267, %v10271
        %v10274 = vshrl.u32 %v10057, 16
        %v10276 = vrot.slane %v10274, 4
        %v10277 = vshll.u32 %v10057, 16
        %v10279 = vrot.slane %v10277, 5
        %v10280 = vor.u32 %v10276, %v10279
        %v10281 = vrot.slane %v10280, 4
        %v10283 = vshll.u32 %v10058, 16
        %v10285 = vrot.slane %v10283, 5
        %v10286 = vsel %vm1141, %v10281, %v10285
        %v10287 = vshrl.u32 %v10058, 16
        %v10289 = vrot.slane %v10287, 4
        %v10290 = vor.u32 %v10289, %v10285
        %v10291 = vrot.slane %v10290, 4
        %v10293 = vshll.u32 %v10059, 16
        %v10295 = vrot.slane %v10293, 5
        %v10296 = vsel %vm1141, %v10291, %v10295
        %v10298 = vshrl.u32 %v10060, 16
        %v10300 = vrot.slane %v10298, 4
        %v10301 = vshll.u32 %v10060, 16
        %v10303 = vrot.slane %v10301, 5
        %v10304 = vor.u32 %v10300, %v10303
        %v10305 = vrot.slane %v10304, 4
        %v10307 = vshll.u32 %v10061, 16
        %v10309 = vrot.slane %v10307, 5
        %v10310 = vsel %vm1141, %v10305, %v10309
        %v10311 = vshrl.u32 %v10061, 16
        %v10313 = vrot.slane %v10311, 4
        %v10314 = vor.u32 %v10313, %v10309
        %v10315 = vrot.slane %v10314, 4
        %v10317 = vshll.u32 %v10062, 16
        %v10319 = vrot.slane %v10317, 5
        %v10320 = vsel %vm1141, %v10315, %v10319
        %v10322 = vshrl.u32 %v10063, 16
        %v10324 = vrot.slane %v10322, 4
        %v10325 = vshll.u32 %v10063, 16
        %v10327 = vrot.slane %v10325, 5
        %v10328 = vor.u32 %v10324, %v10327
        %v10329 = vrot.slane %v10328, 4
        %v10331 = vshll.u32 %v10064, 16
        %v10333 = vrot.slane %v10331, 5
        %v10334 = vsel %vm1141, %v10329, %v10333
        %v10335 = vshrl.u32 %v10064, 16
        %v10337 = vrot.slane %v10335, 4
        %v10338 = vor.u32 %v10337, %v10333
        %v10339 = vrot.slane %v10338, 4
        %v10341 = vshll.u32 %v10065, 16
        %v10343 = vrot.slane %v10341, 5
        %v10344 = vsel %vm1141, %v10339, %v10343
        %v10346 = vshrl.u32 %v10066, 16
        %v10348 = vrot.slane %v10346, 4
        %v10349 = vshll.u32 %v10066, 16
        %v10351 = vrot.slane %v10349, 5
        %v10352 = vor.u32 %v10348, %v10351
        %v10353 = vrot.slane %v10352, 4
        %v10355 = vshll.u32 %v10067, 16
        %v10357 = vrot.slane %v10355, 5
        %v10358 = vsel %vm1141, %v10353, %v10357
        %v10359 = vshrl.u32 %v10067, 16
        %v10361 = vrot.slane %v10359, 4
        %v10362 = vor.u32 %v10361, %v10357
        %v10363 = vrot.slane %v10362, 4
        %v10365 = vshll.u32 %v10068, 16
        %v10367 = vrot.slane %v10365, 5
        %v10368 = vsel %vm1141, %v10363, %v10367
        %v10370 = vshrl.u32 %v10069, 16
        %v10372 = vrot.slane %v10370, 4
        %v10373 = vshll.u32 %v10069, 16
        %v10375 = vrot.slane %v10373, 5
        %v10376 = vor.u32 %v10372, %v10375
        %v10377 = vrot.slane %v10376, 4
        %v10379 = vshll.u32 %v10070, 16
        %v10381 = vrot.slane %v10379, 5
        %v10382 = vsel %vm1141, %v10377, %v10381
        %v10383 = vshrl.u32 %v10070, 16
        %v10385 = vrot.slane %v10383, 4
        %v10386 = vor.u32 %v10385, %v10381
        %v10387 = vrot.slane %v10386, 4
        %v10389 = vshll.u32 %v10071, 16
        %v10391 = vrot.slane %v10389, 5
        %v10392 = vsel %vm1141, %v10387, %v10391
        %v10394 = vshrl.u32 %v10072, 16
        %v10396 = vrot.slane %v10394, 4
        %v10397 = vshll.u32 %v10072, 16
        %v10399 = vrot.slane %v10397, 5
        %v10400 = vor.u32 %v10396, %v10399
        %v10401 = vrot.slane %v10400, 4
        %v10403 = vshll.u32 %v10073, 16
        %v10405 = vrot.slane %v10403, 5
        %v10406 = vsel %vm1141, %v10401, %v10405
        %v10407 = vshrl.u32 %v10073, 16
        %v10409 = vrot.slane %v10407, 4
        %v10410 = vor.u32 %v10409, %v10405
        %v10411 = vrot.slane %v10410, 4
        %v10413 = vshll.u32 %v10074, 16
        %v10415 = vrot.slane %v10413, 5
        %v10416 = vsel %vm1141, %v10411, %v10415
        %v10418 = vshrl.u32 %v10075, 16
        %v10420 = vrot.slane %v10418, 4
        %v10421 = vshll.u32 %v10075, 16
        %v10423 = vrot.slane %v10421, 5
        %v10424 = vor.u32 %v10420, %v10423
        %v10425 = vrot.slane %v10424, 4
        %v10427 = vshll.u32 %v10076, 16
        %v10429 = vrot.slane %v10427, 5
        %v10430 = vsel %vm1141, %v10425, %v10429
        %v10431 = vshrl.u32 %v10076, 16
        %v10433 = vrot.slane %v10431, 4
        %v10434 = vor.u32 %v10433, %v10429
        %v10435 = vrot.slane %v10434, 4
        %v10437 = vshll.u32 %v10077, 16
        %v10439 = vrot.slane %v10437, 5
        %v10440 = vsel %vm1141, %v10435, %v10439
        %v10442 = vshrl.u32 %v10078, 16
        %v10444 = vrot.slane %v10442, 4
        %v10445 = vshll.u32 %v10078, 16
        %v10447 = vrot.slane %v10445, 5
        %v10448 = vor.u32 %v10444, %v10447
        %v10449 = vrot.slane %v10448, 4
        %v10451 = vshll.u32 %v10079, 16
        %v10453 = vrot.slane %v10451, 5
        %v10454 = vsel %vm1141, %v10449, %v10453
        %v10455 = vshrl.u32 %v10079, 16
        %v10457 = vrot.slane %v10455, 4
        %v10458 = vor.u32 %v10457, %v10453
        %v10459 = vrot.slane %v10458, 4
        %v10461 = vshll.u32 %v10080, 16
        %v10463 = vrot.slane %v10461, 5
        %v10464 = vsel %vm1141, %v10459, %v10463
        %s10465 = scalar_lea.vmem [#allocation4], 448
        %v10466 = vld [vmem:[%s10465] sm:$0xf]
        %v10467 = vld [vmem:[%s10465 + $0x4] sm:$0xf]
        %v10468 = vld [vmem:[%s10465 + $0x8] sm:$0xf]
        %v10469 = vld [vmem:[%s10465 + $0xc] sm:$0xf]
        %v10470 = vld [vmem:[%s10465 + $0x10] sm:$0xf]
        %v10471 = vld [vmem:[%s10465 + $0x14] sm:$0xf]
        %v10472 = vld [vmem:[%s10465 + $0x18] sm:$0xf]
        %v10473 = vld [vmem:[%s10465 + $0x1c] sm:$0xf]
        %v10474 = vld [vmem:[%s10465 + $0x20] sm:$0xf]
        %v10475 = vld [vmem:[%s10465 + $0x24] sm:$0xf]
        %v10476 = vld [vmem:[%s10465 + $0x28] sm:$0xf]
        %v10477 = vld [vmem:[%s10465 + $0x2c] sm:$0xf]
        %v10478 = vld [vmem:[%s10465 + $0x30] sm:$0xf]
        %v10479 = vld [vmem:[%s10465 + $0x34] sm:$0xf]
        %v10480 = vld [vmem:[%s10465 + $0x38] sm:$0xf]
        %v10481 = vld [vmem:[%s10465 + $0x3c] sm:$0xf]
        %v10482 = vunpack.c.l.b16 %v10094
        %v10483 = vunpack.c.l.b16 %v10104
        %v10484 = vunpack.c.l.b16 %v10118
        %v10485 = vunpack.c.l.b16 %v10128
        %v10486 = vunpack.c.l.b16 %v10142
        %v10487 = vunpack.c.l.b16 %v10152
        %v10488 = vunpack.c.l.b16 %v10166
        %v10489 = vunpack.c.l.b16 %v10176
        %v10490 = vunpack.c.l.b16 %v10190
        %v10491 = vunpack.c.l.b16 %v10200
        %v10492 = vunpack.c.l.b16 %v10214
        %v10493 = vunpack.c.l.b16 %v10224
        %v10494 = vunpack.c.l.b16 %v10238
        %v10495 = vunpack.c.l.b16 %v10248
        %v10496 = vunpack.c.l.b16 %v10262
        %v10497 = vunpack.c.l.b16 %v10272
        %v10498 = vunpack.c.l.b16 %v10286
        %v10499 = vunpack.c.l.b16 %v10296
        %v10500 = vunpack.c.l.b16 %v10310
        %v10501 = vunpack.c.l.b16 %v10320
        %v10502 = vunpack.c.l.b16 %v10334
        %v10503 = vunpack.c.l.b16 %v10344
        %v10504 = vunpack.c.l.b16 %v10358
        %v10505 = vunpack.c.l.b16 %v10368
        %v10506 = vunpack.c.l.b16 %v10382
        %v10507 = vunpack.c.l.b16 %v10392
        %v10508 = vunpack.c.l.b16 %v10406
        %v10509 = vunpack.c.l.b16 %v10416
        %v10510 = vunpack.c.l.b16 %v10430
        %v10511 = vunpack.c.l.b16 %v10440
        %v10512 = vunpack.c.l.b16 %v10454
        %v10513 = vunpack.c.l.b16 %v10464
        %v10514 = vpack.c.b16 %v10483, %v10482
        %v10515 = vpack.c.b16 %v10485, %v10484
        %v10516 = vpack.c.b16 %v10487, %v10486
        %v10517 = vpack.c.b16 %v10489, %v10488
        %v10518 = vpack.c.b16 %v10491, %v10490
        %v10519 = vpack.c.b16 %v10493, %v10492
        %v10520 = vpack.c.b16 %v10495, %v10494
        %v10521 = vpack.c.b16 %v10497, %v10496
        %v10522 = vpack.c.b16 %v10499, %v10498
        %v10523 = vpack.c.b16 %v10501, %v10500
        %v10524 = vpack.c.b16 %v10503, %v10502
        %v10525 = vpack.c.b16 %v10505, %v10504
        %v10526 = vpack.c.b16 %v10507, %v10506
        %v10527 = vpack.c.b16 %v10509, %v10508
        %v10528 = vpack.c.b16 %v10511, %v10510
        %v10529 = vpack.c.b16 %v10513, %v10512
        %v10562 = vunpack.c.l.b16 %v10466
        %v10563 = vunpack.c.l.b16 %v10467
        %v10564 = vunpack.c.l.b16 %v10468
        %v10565 = vunpack.c.l.b16 %v10469
        %v10566 = vunpack.c.l.b16 %v10470
        %v10567 = vunpack.c.l.b16 %v10471
        %v10568 = vunpack.c.l.b16 %v10472
        %v10569 = vunpack.c.l.b16 %v10473
        %v10570 = vunpack.c.l.b16 %v10474
        %v10571 = vunpack.c.l.b16 %v10475
        %v10572 = vunpack.c.l.b16 %v10476
        %v10573 = vunpack.c.l.b16 %v10477
        %v10574 = vunpack.c.l.b16 %v10478
        %v10575 = vunpack.c.l.b16 %v10479
        %v10576 = vunpack.c.l.b16 %v10480
        %v10577 = vunpack.c.l.b16 %v10481
        %v10578 = vpack.c.b16 %v10563, %v10562
        %v10579 = vpack.c.b16 %v10565, %v10564
        %v10580 = vpack.c.b16 %v10567, %v10566
        %v10581 = vpack.c.b16 %v10569, %v10568
        %v10582 = vpack.c.b16 %v10571, %v10570
        %v10583 = vpack.c.b16 %v10573, %v10572
        %v10584 = vpack.c.b16 %v10575, %v10574
        %v10585 = vpack.c.b16 %v10577, %v10576
        %10594 = vmatprep.subr.bf16.mxu0 0
        %10595 = vmatpush1.bf16.msra.mxu0 %v10578
        %10596 = vmatprep.subr.bf16.mxu0 0
        %10597 = vmatpush1.bf16.msra.mxu0 %v10579
        %10598 = vmatprep.subr.bf16.mxu0 0
        %10599 = vmatpush1.bf16.msra.mxu0 %v10580
        %10600 = vmatprep.subr.bf16.mxu0 0
        %10601 = vmatpush1.bf16.msra.mxu0 %v10581
        %10602 = vmatprep.subr.bf16.mxu0 0
        %10603 = vmatpush1.bf16.msra.mxu0 %v10582
        %10604 = vmatprep.subr.bf16.mxu0 0
        %10605 = vmatpush1.bf16.msra.mxu0 %v10583
        %10606 = vmatprep.subr.bf16.mxu0 0
        %10607 = vmatpush1.bf16.msra.mxu0 %v10584
        %10608 = vmatprep.subr.bf16.mxu0 0
        %10609 = vmatpush1.bf16.msra.mxu0 %v10585
        %10610 = vmatprep.subr.bf16.mxu0 0
        %10611 = vmatpush1.bf16.msra.mxu0 0
        %10612 = vmatprep.subr.bf16.mxu0 0
        %10613 = vmatpush1.bf16.msra.mxu0 0
        %10614 = vmatprep.subr.bf16.mxu0 0
        %10615 = vmatpush1.bf16.msra.mxu0 0
        %10616 = vmatprep.subr.bf16.mxu0 0
        %10617 = vmatpush1.bf16.msra.mxu0 0
        %10618 = vmatprep.subr.bf16.mxu0 0
        %10619 = vmatpush1.bf16.msra.mxu0 0
        %10620 = vmatprep.subr.bf16.mxu0 0
        %10621 = vmatpush1.bf16.msra.mxu0 0
        %10622 = vmatprep.subr.bf16.mxu0 0
        %10623 = vmatpush1.bf16.msra.mxu0 0
        %10624 = vmatprep.subr.bf16.mxu0 0
        %10625 = vmatpush1.bf16.msra.mxu0 0
        %10626 = vmatprep.mubr.bf16.mxu0 0
        %10627 = vmatmul.mubr.bf16.gmra.mrb[0].mxu0 %v10514
        %v10628 = vpop.f32.mrb[0].mxu0
        %v10629 = vadd.f32 0.0, %v10628
        %v10630 = vpop.f32.mrb[0].mxu0
        %v10631 = vpop.f32.mrb[0].mxu0
        %v10632 = vadd.f32 0.0, %v10631
        %v10633 = vpop.f32.mrb[0].mxu0
        %10634 = vmatprep.mubr.bf16.mxu0 0
        %10635 = vmatmul.mubr.bf16.gmra.mrb[0].mxu0 %v10515
        %v10636 = vpop.f32.mrb[0].mxu0
        %v10637 = vadd.f32 0.0, %v10636
        %v10638 = vpop.f32.mrb[0].mxu0
        %v10639 = vpop.f32.mrb[0].mxu0
        %v10640 = vadd.f32 0.0, %v10639
        %v10641 = vpop.f32.mrb[0].mxu0
        %10642 = vmatprep.mubr.bf16.mxu0 0
        %10643 = vmatmul.mubr.bf16.gmra.mrb[0].mxu0 %v10516
        %v10644 = vpop.f32.mrb[0].mxu0
        %v10645 = vadd.f32 0.0, %v10644
        %v10646 = vpop.f32.mrb[0].mxu0
        %v10647 = vpop.f32.mrb[0].mxu0
        %v10648 = vadd.f32 0.0, %v10647
        %v10649 = vpop.f32.mrb[0].mxu0
        %10650 = vmatprep.mubr.bf16.mxu0 0
        %10651 = vmatmul.mubr.bf16.gmra.mrb[0].mxu0 %v10517
        %v10652 = vpop.f32.mrb[0].mxu0
        %v10653 = vadd.f32 0.0, %v10652
        %v10654 = vpop.f32.mrb[0].mxu0
        %v10655 = vpop.f32.mrb[0].mxu0
        %v10656 = vadd.f32 0.0, %v10655
        %v10657 = vpop.f32.mrb[0].mxu0
        %10658 = vmatprep.mubr.bf16.mxu0 0
        %10659 = vmatmul.mubr.bf16.gmra.mrb[0].mxu0 %v10518
        %v10660 = vpop.f32.mrb[0].mxu0
        %v10661 = vadd.f32 0.0, %v10660
        %v10662 = vpop.f32.mrb[0].mxu0
        %v10663 = vpop.f32.mrb[0].mxu0
        %v10664 = vadd.f32 0.0, %v10663
        %v10665 = vpop.f32.mrb[0].mxu0
        %10666 = vmatprep.mubr.bf16.mxu0 0
        %10667 = vmatmul.mubr.bf16.gmra.mrb[0].mxu0 %v10519
        %v10668 = vpop.f32.mrb[0].mxu0
        %v10669 = vadd.f32 0.0, %v10668
        %v10670 = vpop.f32.mrb[0].mxu0
        %v10671 = vpop.f32.mrb[0].mxu0
        %v10672 = vadd.f32 0.0, %v10671
        %v10673 = vpop.f32.mrb[0].mxu0
        %10674 = vmatprep.mubr.bf16.mxu0 0
        %10675 = vmatmul.mubr.bf16.gmra.mrb[0].mxu0 %v10520
        %v10676 = vpop.f32.mrb[0].mxu0
        %v10677 = vadd.f32 0.0, %v10676
        %v10678 = vpop.f32.mrb[0].mxu0
        %v10679 = vpop.f32.mrb[0].mxu0
        %v10680 = vadd.f32 0.0, %v10679
        %v10681 = vpop.f32.mrb[0].mxu0
        %10682 = vmatprep.mubr.bf16.mxu0 0
        %10683 = vmatmul.mubr.bf16.gmra.mrb[0].mxu0 %v10521
        %v10684 = vpop.f32.mrb[0].mxu0
        %v10685 = vadd.f32 0.0, %v10684
        %v10686 = vpop.f32.mrb[0].mxu0
        %v10687 = vpop.f32.mrb[0].mxu0
        %v10688 = vadd.f32 0.0, %v10687
        %v10689 = vpop.f32.mrb[0].mxu0
        %10690 = vmatprep.mubr.bf16.mxu0 0
        %10691 = vmatmul.mubr.bf16.gmra.mrb[0].mxu0 %v10522
        %v10692 = vpop.f32.mrb[0].mxu0
        %v10693 = vadd.f32 0.0, %v10692
        %v10694 = vpop.f32.mrb[0].mxu0
        %v10695 = vpop.f32.mrb[0].mxu0
        %v10696 = vadd.f32 0.0, %v10695
        %v10697 = vpop.f32.mrb[0].mxu0
        %10698 = vmatprep.mubr.bf16.mxu0 0
        %10699 = vmatmul.mubr.bf16.gmra.mrb[0].mxu0 %v10523
        %v10700 = vpop.f32.mrb[0].mxu0
        %v10701 = vadd.f32 0.0, %v10700
        %v10702 = vpop.f32.mrb[0].mxu0
        %v10703 = vpop.f32.mrb[0].mxu0
        %v10704 = vadd.f32 0.0, %v10703
        %v10705 = vpop.f32.mrb[0].mxu0
        %10706 = vmatprep.mubr.bf16.mxu0 0
        %10707 = vmatmul.mubr.bf16.gmra.mrb[0].mxu0 %v10524
        %v10708 = vpop.f32.mrb[0].mxu0
        %v10709 = vadd.f32 0.0, %v10708
        %v10710 = vpop.f32.mrb[0].mxu0
        %v10711 = vpop.f32.mrb[0].mxu0
        %v10712 = vadd.f32 0.0, %v10711
        %v10713 = vpop.f32.mrb[0].mxu0
        %10714 = vmatprep.mubr.bf16.mxu0 0
        %10715 = vmatmul.mubr.bf16.gmra.mrb[0].mxu0 %v10525
        %v10716 = vpop.f32.mrb[0].mxu0
        %v10717 = vadd.f32 0.0, %v10716
        %v10718 = vpop.f32.mrb[0].mxu0
        %v10719 = vpop.f32.mrb[0].mxu0
        %v10720 = vadd.f32 0.0, %v10719
        %v10721 = vpop.f32.mrb[0].mxu0
        %10722 = vmatprep.mubr.bf16.mxu0 0
        %10723 = vmatmul.mubr.bf16.gmra.mrb[0].mxu0 %v10526
        %v10724 = vpop.f32.mrb[0].mxu0
        %v10725 = vadd.f32 0.0, %v10724
        %v10726 = vpop.f32.mrb[0].mxu0
        %v10727 = vpop.f32.mrb[0].mxu0
        %v10728 = vadd.f32 0.0, %v10727
        %v10729 = vpop.f32.mrb[0].mxu0
        %10730 = vmatprep.mubr.bf16.mxu0 0
        %10731 = vmatmul.mubr.bf16.gmra.mrb[0].mxu0 %v10527
        %v10732 = vpop.f32.mrb[0].mxu0
        %v10733 = vadd.f32 0.0, %v10732
        %v10734 = vpop.f32.mrb[0].mxu0
        %v10735 = vpop.f32.mrb[0].mxu0
        %v10736 = vadd.f32 0.0, %v10735
        %v10737 = vpop.f32.mrb[0].mxu0
        %10738 = vmatprep.mubr.bf16.mxu0 0
        %10739 = vmatmul.mubr.bf16.gmra.mrb[0].mxu0 %v10528
        %v10740 = vpop.f32.mrb[0].mxu0
        %v10741 = vadd.f32 0.0, %v10740
        %v10742 = vpop.f32.mrb[0].mxu0
        %v10743 = vpop.f32.mrb[0].mxu0
        %v10744 = vadd.f32 0.0, %v10743
        %v10745 = vpop.f32.mrb[0].mxu0
        %10746 = vmatprep.mubr.bf16.mxu0 0
        %10747 = vmatmul.mubr.bf16.gmra.mrb[0].mxu0 %v10529
        %v10748 = vpop.f32.mrb[0].mxu0
        %v10749 = vadd.f32 0.0, %v10748
        %v10750 = vpop.f32.mrb[0].mxu0
        %v10751 = vpop.f32.mrb[0].mxu0
        %v10752 = vadd.f32 0.0, %v10751
        %v10753 = vpop.f32.mrb[0].mxu0
        %10754 = vdwg.mxu0
        %v10755 = vadd.f32 %v10001, %v10629
        %v10756 = vadd.f32 %v10002, %v10632
        %v10757 = vadd.f32 %v10003, %v10637
        %v10758 = vadd.f32 %v10004, %v10640
        %v10759 = vadd.f32 %v10005, %v10645
        %v10760 = vadd.f32 %v10006, %v10648
        %v10761 = vadd.f32 %v10007, %v10653
        %v10762 = vadd.f32 %v10008, %v10656
        %v10763 = vadd.f32 %v10009, %v10661
        %v10764 = vadd.f32 %v10010, %v10664
        %v10765 = vadd.f32 %v10011, %v10669
        %v10766 = vadd.f32 %v10012, %v10672
        %v10767 = vadd.f32 %v10013, %v10677
        %v10768 = vadd.f32 %v10014, %v10680
        %v10769 = vadd.f32 %v10015, %v10685
        %v10770 = vadd.f32 %v10016, %v10688
        %v10771 = vadd.f32 %v10017, %v10693
        %v10772 = vadd.f32 %v10018, %v10696
        %v10773 = vadd.f32 %v10019, %v10701
        %v10774 = vadd.f32 %v10020, %v10704
        %v10775 = vadd.f32 %v10021, %v10709
        %v10776 = vadd.f32 %v10022, %v10712
        %v10777 = vadd.f32 %v10023, %v10717
        %v10778 = vadd.f32 %v10024, %v10720
        %v10779 = vadd.f32 %v10025, %v10725
        %v10780 = vadd.f32 %v10026, %v10728
        %v10781 = vadd.f32 %v10027, %v10733
        %v10782 = vadd.f32 %v10028, %v10736
        %v10783 = vadd.f32 %v10029, %v10741
        %v10784 = vadd.f32 %v10030, %v10744
        %v10785 = vadd.f32 %v10031, %v10749
        %v10786 = vadd.f32 %v10032, %v10752
        %v10787 = vld [vmem:[%s9646] sm:$0xe]
        %v10788 = vld [vmem:[%s9646 + $0xc] sm:$0xe]
        %v10789 = vld [vmem:[%s9646 + $0x18] sm:$0xe]
        %v10790 = vld [vmem:[%s9646 + $0x24] sm:$0xe]
        %v10791 = vld [vmem:[%s9646 + $0x30] sm:$0xe]
        %v10792 = vld [vmem:[%s9646 + $0x3c] sm:$0xe]
        %v10793 = vld [vmem:[%s9646 + $0x48] sm:$0xe]
        %v10794 = vld [vmem:[%s9646 + $0x54] sm:$0xe]
        %v10795 = vld [vmem:[%s9646 + $0x60] sm:$0xe]
        %v10796 = vld [vmem:[%s9646 + $0x6c] sm:$0xe]
        %v10797 = vld [vmem:[%s9646 + $0x78] sm:$0xe]
        %v10798 = vld [vmem:[%s9646 + $0x84] sm:$0xe]
        %v10799 = vld [vmem:[%s9646 + $0x90] sm:$0xe]
        %v10800 = vld [vmem:[%s9646 + $0x9c] sm:$0xe]
        %v10801 = vld [vmem:[%s9646 + $0xa8] sm:$0xe]
        %v10802 = vld [vmem:[%s9646 + $0xb4] sm:$0xe]
        %v10851 = vrot.slane %v10787, 5
        %v10852 = vrot.slane %v10851, 4
        %v10853 = vrot.slane %v10034, 5
        %v10854 = vsel %vm2171, %v10852, %v10853
        %v10855 = vrot.slane %v10853, 4
        %v10856 = vrot.slane %v10035, 5
        %v10857 = vsel %vm2171, %v10855, %v10856
        %v10858 = vrot.slane %v10788, 5
        %v10859 = vrot.slane %v10858, 4
        %v10860 = vrot.slane %v10037, 5
        %v10861 = vsel %vm2171, %v10859, %v10860
        %v10862 = vrot.slane %v10860, 4
        %v10863 = vrot.slane %v10038, 5
        %v10864 = vsel %vm2171, %v10862, %v10863
        %v10865 = vrot.slane %v10789, 5
        %v10866 = vrot.slane %v10865, 4
        %v10867 = vrot.slane %v10040, 5
        %v10868 = vsel %vm2171, %v10866, %v10867
        %v10869 = vrot.slane %v10867, 4
        %v10870 = vrot.slane %v10041, 5
        %v10871 = vsel %vm2171, %v10869, %v10870
        %v10872 = vrot.slane %v10790, 5
        %v10873 = vrot.slane %v10872, 4
        %v10874 = vrot.slane %v10043, 5
        %v10875 = vsel %vm2171, %v10873, %v10874
        %v10876 = vrot.slane %v10874, 4
        %v10877 = vrot.slane %v10044, 5
        %v10878 = vsel %vm2171, %v10876, %v10877
        %v10879 = vrot.slane %v10791, 5
        %v10880 = vrot.slane %v10879, 4
        %v10881 = vrot.slane %v10046, 5
        %v10882 = vsel %vm2171, %v10880, %v10881
        %v10883 = vrot.slane %v10881, 4
        %v10884 = vrot.slane %v10047, 5
        %v10885 = vsel %vm2171, %v10883, %v10884
        %v10886 = vrot.slane %v10792, 5
        %v10887 = vrot.slane %v10886, 4
        %v10888 = vrot.slane %v10049, 5
        %v10889 = vsel %vm2171, %v10887, %v10888
        %v10890 = vrot.slane %v10888, 4
        %v10891 = vrot.slane %v10050, 5
        %v10892 = vsel %vm2171, %v10890, %v10891
        %v10893 = vrot.slane %v10793, 5
        %v10894 = vrot.slane %v10893, 4
        %v10895 = vrot.slane %v10052, 5
        %v10896 = vsel %vm2171, %v10894, %v10895
        %v10897 = vrot.slane %v10895, 4
        %v10898 = vrot.slane %v10053, 5
        %v10899 = vsel %vm2171, %v10897, %v10898
        %v10900 = vrot.slane %v10794, 5
        %v10901 = vrot.slane %v10900, 4
        %v10902 = vrot.slane %v10055, 5
        %v10903 = vsel %vm2171, %v10901, %v10902
        %v10904 = vrot.slane %v10902, 4
        %v10905 = vrot.slane %v10056, 5
        %v10906 = vsel %vm2171, %v10904, %v10905
        %v10907 = vrot.slane %v10795, 5
        %v10908 = vrot.slane %v10907, 4
        %v10909 = vrot.slane %v10058, 5
        %v10910 = vsel %vm2171, %v10908, %v10909
        %v10911 = vrot.slane %v10909, 4
        %v10912 = vrot.slane %v10059, 5
        %v10913 = vsel %vm2171, %v10911, %v10912
        %v10914 = vrot.slane %v10796, 5
        %v10915 = vrot.slane %v10914, 4
        %v10916 = vrot.slane %v10061, 5
        %v10917 = vsel %vm2171, %v10915, %v10916
        %v10918 = vrot.slane %v10916, 4
        %v10919 = vrot.slane %v10062, 5
        %v10920 = vsel %vm2171, %v10918, %v10919
        %v10921 = vrot.slane %v10797, 5
        %v10922 = vrot.slane %v10921, 4
        %v10923 = vrot.slane %v10064, 5
        %v10924 = vsel %vm2171, %v10922, %v10923
        %v10925 = vrot.slane %v10923, 4
        %v10926 = vrot.slane %v10065, 5
        %v10927 = vsel %vm2171, %v10925, %v10926
        %v10928 = vrot.slane %v10798, 5
        %v10929 = vrot.slane %v10928, 4
        %v10930 = vrot.slane %v10067, 5
        %v10931 = vsel %vm2171, %v10929, %v10930
        %v10932 = vrot.slane %v10930, 4
        %v10933 = vrot.slane %v10068, 5
        %v10934 = vsel %vm2171, %v10932, %v10933
        %v10935 = vrot.slane %v10799, 5
        %v10936 = vrot.slane %v10935, 4
        %v10937 = vrot.slane %v10070, 5
        %v10938 = vsel %vm2171, %v10936, %v10937
        %v10939 = vrot.slane %v10937, 4
        %v10940 = vrot.slane %v10071, 5
        %v10941 = vsel %vm2171, %v10939, %v10940
        %v10942 = vrot.slane %v10800, 5
        %v10943 = vrot.slane %v10942, 4
        %v10944 = vrot.slane %v10073, 5
        %v10945 = vsel %vm2171, %v10943, %v10944
        %v10946 = vrot.slane %v10944, 4
        %v10947 = vrot.slane %v10074, 5
        %v10948 = vsel %vm2171, %v10946, %v10947
        %v10949 = vrot.slane %v10801, 5
        %v10950 = vrot.slane %v10949, 4
        %v10951 = vrot.slane %v10076, 5
        %v10952 = vsel %vm2171, %v10950, %v10951
        %v10953 = vrot.slane %v10951, 4
        %v10954 = vrot.slane %v10077, 5
        %v10955 = vsel %vm2171, %v10953, %v10954
        %v10956 = vrot.slane %v10802, 5
        %v10957 = vrot.slane %v10956, 4
        %v10958 = vrot.slane %v10079, 5
        %v10959 = vsel %vm2171, %v10957, %v10958
        %v10960 = vrot.slane %v10958, 4
        %v10961 = vrot.slane %v10080, 5
        %v10962 = vsel %vm2171, %v10960, %v10961
        %s10963 = scalar_lea.vmem [#allocation4], 512
        %v10964 = vld [vmem:[%s10963] sm:$0xf]
        %v10965 = vld [vmem:[%s10963 + $0x4] sm:$0xf]
        %v10966 = vld [vmem:[%s10963 + $0x8] sm:$0xf]
        %v10967 = vld [vmem:[%s10963 + $0xc] sm:$0xf]
        %v10968 = vld [vmem:[%s10963 + $0x10] sm:$0xf]
        %v10969 = vld [vmem:[%s10963 + $0x14] sm:$0xf]
        %v10970 = vld [vmem:[%s10963 + $0x18] sm:$0xf]
        %v10971 = vld [vmem:[%s10963 + $0x1c] sm:$0xf]
        %v10972 = vld [vmem:[%s10963 + $0x20] sm:$0xf]
        %v10973 = vld [vmem:[%s10963 + $0x24] sm:$0xf]
        %v10974 = vld [vmem:[%s10963 + $0x28] sm:$0xf]
        %v10975 = vld [vmem:[%s10963 + $0x2c] sm:$0xf]
        %v10976 = vld [vmem:[%s10963 + $0x30] sm:$0xf]
        %v10977 = vld [vmem:[%s10963 + $0x34] sm:$0xf]
        %v10978 = vld [vmem:[%s10963 + $0x38] sm:$0xf]
        %v10979 = vld [vmem:[%s10963 + $0x3c] sm:$0xf]
        %v10980 = vunpack.c.l.b16 %v10854
        %v10981 = vunpack.c.l.b16 %v10857
        %v10982 = vunpack.c.l.b16 %v10861
        %v10983 = vunpack.c.l.b16 %v10864
        %v10984 = vunpack.c.l.b16 %v10868
        %v10985 = vunpack.c.l.b16 %v10871
        %v10986 = vunpack.c.l.b16 %v10875
        %v10987 = vunpack.c.l.b16 %v10878
        %v10988 = vunpack.c.l.b16 %v10882
        %v10989 = vunpack.c.l.b16 %v10885
        %v10990 = vunpack.c.l.b16 %v10889
        %v10991 = vunpack.c.l.b16 %v10892
        %v10992 = vunpack.c.l.b16 %v10896
        %v10993 = vunpack.c.l.b16 %v10899
        %v10994 = vunpack.c.l.b16 %v10903
        %v10995 = vunpack.c.l.b16 %v10906
        %v10996 = vunpack.c.l.b16 %v10910
        %v10997 = vunpack.c.l.b16 %v10913
        %v10998 = vunpack.c.l.b16 %v10917
        %v10999 = vunpack.c.l.b16 %v10920
        %v11000 = vunpack.c.l.b16 %v10924
        %v11001 = vunpack.c.l.b16 %v10927
        %v11002 = vunpack.c.l.b16 %v10931
        %v11003 = vunpack.c.l.b16 %v10934
        %v11004 = vunpack.c.l.b16 %v10938
        %v11005 = vunpack.c.l.b16 %v10941
        %v11006 = vunpack.c.l.b16 %v10945
        %v11007 = vunpack.c.l.b16 %v10948
        %v11008 = vunpack.c.l.b16 %v10952
        %v11009 = vunpack.c.l.b16 %v10955
        %v11010 = vunpack.c.l.b16 %v10959
        %v11011 = vunpack.c.l.b16 %v10962
        %v11012 = vpack.c.b16 %v10981, %v10980
        %v11013 = vpack.c.b16 %v10983, %v10982
        %v11014 = vpack.c.b16 %v10985, %v10984
        %v11015 = vpack.c.b16 %v10987, %v10986
        %v11016 = vpack.c.b16 %v10989, %v10988
        %v11017 = vpack.c.b16 %v10991, %v10990
        %v11018 = vpack.c.b16 %v10993, %v10992
        %v11019 = vpack.c.b16 %v10995, %v10994
        %v11020 = vpack.c.b16 %v10997, %v10996
        %v11021 = vpack.c.b16 %v10999, %v10998
        %v11022 = vpack.c.b16 %v11001, %v11000
        %v11023 = vpack.c.b16 %v11003, %v11002
        %v11024 = vpack.c.b16 %v11005, %v11004
        %v11025 = vpack.c.b16 %v11007, %v11006
        %v11026 = vpack.c.b16 %v11009, %v11008
        %v11027 = vpack.c.b16 %v11011, %v11010
        %v11060 = vunpack.c.l.b16 %v10964
        %v11061 = vunpack.c.l.b16 %v10965
        %v11062 = vunpack.c.l.b16 %v10966
        %v11063 = vunpack.c.l.b16 %v10967
        %v11064 = vunpack.c.l.b16 %v10968
        %v11065 = vunpack.c.l.b16 %v10969
        %v11066 = vunpack.c.l.b16 %v10970
        %v11067 = vunpack.c.l.b16 %v10971
        %v11068 = vunpack.c.l.b16 %v10972
        %v11069 = vunpack.c.l.b16 %v10973
        %v11070 = vunpack.c.l.b16 %v10974
        %v11071 = vunpack.c.l.b16 %v10975
        %v11072 = vunpack.c.l.b16 %v10976
        %v11073 = vunpack.c.l.b16 %v10977
        %v11074 = vunpack.c.l.b16 %v10978
        %v11075 = vunpack.c.l.b16 %v10979
        %v11076 = vpack.c.b16 %v11061, %v11060
        %v11077 = vpack.c.b16 %v11063, %v11062
        %v11078 = vpack.c.b16 %v11065, %v11064
        %v11079 = vpack.c.b16 %v11067, %v11066
        %v11080 = vpack.c.b16 %v11069, %v11068
        %v11081 = vpack.c.b16 %v11071, %v11070
        %v11082 = vpack.c.b16 %v11073, %v11072
        %v11083 = vpack.c.b16 %v11075, %v11074
        %11092 = vmatprep.subr.bf16.mxu0 0
        %11093 = vmatpush1.bf16.msra.mxu0 %v11076
        %11094 = vmatprep.subr.bf16.mxu0 0
        %11095 = vmatpush1.bf16.msra.mxu0 %v11077
        %11096 = vmatprep.subr.bf16.mxu0 0
        %11097 = vmatpush1.bf16.msra.mxu0 %v11078
        %11098 = vmatprep.subr.bf16.mxu0 0
        %11099 = vmatpush1.bf16.msra.mxu0 %v11079
        %11100 = vmatprep.subr.bf16.mxu0 0
        %11101 = vmatpush1.bf16.msra.mxu0 %v11080
        %11102 = vmatprep.subr.bf16.mxu0 0
        %11103 = vmatpush1.bf16.msra.mxu0 %v11081
        %11104 = vmatprep.subr.bf16.mxu0 0
        %11105 = vmatpush1.bf16.msra.mxu0 %v11082
        %11106 = vmatprep.subr.bf16.mxu0 0
        %11107 = vmatpush1.bf16.msra.mxu0 %v11083
        %11108 = vmatprep.subr.bf16.mxu0 0
        %11109 = vmatpush1.bf16.msra.mxu0 0
        %11110 = vmatprep.subr.bf16.mxu0 0
        %11111 = vmatpush1.bf16.msra.mxu0 0
        %11112 = vmatprep.subr.bf16.mxu0 0
        %11113 = vmatpush1.bf16.msra.mxu0 0
        %11114 = vmatprep.subr.bf16.mxu0 0
        %11115 = vmatpush1.bf16.msra.mxu0 0
        %11116 = vmatprep.subr.bf16.mxu0 0
        %11117 = vmatpush1.bf16.msra.mxu0 0
        %11118 = vmatprep.subr.bf16.mxu0 0
        %11119 = vmatpush1.bf16.msra.mxu0 0
        %11120 = vmatprep.subr.bf16.mxu0 0
        %11121 = vmatpush1.bf16.msra.mxu0 0
        %11122 = vmatprep.subr.bf16.mxu0 0
        %11123 = vmatpush1.bf16.msra.mxu0 0
        %11124 = vmatprep.mubr.bf16.mxu0 0
        %11125 = vmatmul.mubr.bf16.gmra.mrb[0].mxu0 %v11012
        %v11126 = vpop.f32.mrb[0].mxu0
        %v11127 = vadd.f32 0.0, %v11126
        %v11128 = vpop.f32.mrb[0].mxu0
        %v11129 = vpop.f32.mrb[0].mxu0
        %v11130 = vadd.f32 0.0, %v11129
        %v11131 = vpop.f32.mrb[0].mxu0
        %11132 = vmatprep.mubr.bf16.mxu0 0
        %11133 = vmatmul.mubr.bf16.gmra.mrb[0].mxu0 %v11013
        %v11134 = vpop.f32.mrb[0].mxu0
        %v11135 = vadd.f32 0.0, %v11134
        %v11136 = vpop.f32.mrb[0].mxu0
        %v11137 = vpop.f32.mrb[0].mxu0
        %v11138 = vadd.f32 0.0, %v11137
        %v11139 = vpop.f32.mrb[0].mxu0
        %11140 = vmatprep.mubr.bf16.mxu0 0
        %11141 = vmatmul.mubr.bf16.gmra.mrb[0].mxu0 %v11014
        %v11142 = vpop.f32.mrb[0].mxu0
        %v11143 = vadd.f32 0.0, %v11142
        %v11144 = vpop.f32.mrb[0].mxu0
        %v11145 = vpop.f32.mrb[0].mxu0
        %v11146 = vadd.f32 0.0, %v11145
        %v11147 = vpop.f32.mrb[0].mxu0
        %11148 = vmatprep.mubr.bf16.mxu0 0
        %11149 = vmatmul.mubr.bf16.gmra.mrb[0].mxu0 %v11015
        %v11150 = vpop.f32.mrb[0].mxu0
        %v11151 = vadd.f32 0.0, %v11150
        %v11152 = vpop.f32.mrb[0].mxu0
        %v11153 = vpop.f32.mrb[0].mxu0
        %v11154 = vadd.f32 0.0, %v11153
        %v11155 = vpop.f32.mrb[0].mxu0
        %11156 = vmatprep.mubr.bf16.mxu0 0
        %11157 = vmatmul.mubr.bf16.gmra.mrb[0].mxu0 %v11016
        %v11158 = vpop.f32.mrb[0].mxu0
        %v11159 = vadd.f32 0.0, %v11158
        %v11160 = vpop.f32.mrb[0].mxu0
        %v11161 = vpop.f32.mrb[0].mxu0
        %v11162 = vadd.f32 0.0, %v11161
        %v11163 = vpop.f32.mrb[0].mxu0
        %11164 = vmatprep.mubr.bf16.mxu0 0
        %11165 = vmatmul.mubr.bf16.gmra.mrb[0].mxu0 %v11017
        %v11166 = vpop.f32.mrb[0].mxu0
        %v11167 = vadd.f32 0.0, %v11166
        %v11168 = vpop.f32.mrb[0].mxu0
        %v11169 = vpop.f32.mrb[0].mxu0
        %v11170 = vadd.f32 0.0, %v11169
        %v11171 = vpop.f32.mrb[0].mxu0
        %11172 = vmatprep.mubr.bf16.mxu0 0
        %11173 = vmatmul.mubr.bf16.gmra.mrb[0].mxu0 %v11018
        %v11174 = vpop.f32.mrb[0].mxu0
        %v11175 = vadd.f32 0.0, %v11174
        %v11176 = vpop.f32.mrb[0].mxu0
        %v11177 = vpop.f32.mrb[0].mxu0
        %v11178 = vadd.f32 0.0, %v11177
        %v11179 = vpop.f32.mrb[0].mxu0
        %11180 = vmatprep.mubr.bf16.mxu0 0
        %11181 = vmatmul.mubr.bf16.gmra.mrb[0].mxu0 %v11019
        %v11182 = vpop.f32.mrb[0].mxu0
        %v11183 = vadd.f32 0.0, %v11182
        %v11184 = vpop.f32.mrb[0].mxu0
        %v11185 = vpop.f32.mrb[0].mxu0
        %v11186 = vadd.f32 0.0, %v11185
        %v11187 = vpop.f32.mrb[0].mxu0
        %11188 = vmatprep.mubr.bf16.mxu0 0
        %11189 = vmatmul.mubr.bf16.gmra.mrb[0].mxu0 %v11020
        %v11190 = vpop.f32.mrb[0].mxu0
        %v11191 = vadd.f32 0.0, %v11190
        %v11192 = vpop.f32.mrb[0].mxu0
        %v11193 = vpop.f32.mrb[0].mxu0
        %v11194 = vadd.f32 0.0, %v11193
        %v11195 = vpop.f32.mrb[0].mxu0
        %11196 = vmatprep.mubr.bf16.mxu0 0
        %11197 = vmatmul.mubr.bf16.gmra.mrb[0].mxu0 %v11021
        %v11198 = vpop.f32.mrb[0].mxu0
        %v11199 = vadd.f32 0.0, %v11198
        %v11200 = vpop.f32.mrb[0].mxu0
        %v11201 = vpop.f32.mrb[0].mxu0
        %v11202 = vadd.f32 0.0, %v11201
        %v11203 = vpop.f32.mrb[0].mxu0
        %11204 = vmatprep.mubr.bf16.mxu0 0
        %11205 = vmatmul.mubr.bf16.gmra.mrb[0].mxu0 %v11022
        %v11206 = vpop.f32.mrb[0].mxu0
        %v11207 = vadd.f32 0.0, %v11206
        %v11208 = vpop.f32.mrb[0].mxu0
        %v11209 = vpop.f32.mrb[0].mxu0
        %v11210 = vadd.f32 0.0, %v11209
        %v11211 = vpop.f32.mrb[0].mxu0
        %11212 = vmatprep.mubr.bf16.mxu0 0
        %11213 = vmatmul.mubr.bf16.gmra.mrb[0].mxu0 %v11023
        %v11214 = vpop.f32.mrb[0].mxu0
        %v11215 = vadd.f32 0.0, %v11214
        %v11216 = vpop.f32.mrb[0].mxu0
        %v11217 = vpop.f32.mrb[0].mxu0
        %v11218 = vadd.f32 0.0, %v11217
        %v11219 = vpop.f32.mrb[0].mxu0
        %11220 = vmatprep.mubr.bf16.mxu0 0
        %11221 = vmatmul.mubr.bf16.gmra.mrb[0].mxu0 %v11024
        %v11222 = vpop.f32.mrb[0].mxu0
        %v11223 = vadd.f32 0.0, %v11222
        %v11224 = vpop.f32.mrb[0].mxu0
        %v11225 = vpop.f32.mrb[0].mxu0
        %v11226 = vadd.f32 0.0, %v11225
        %v11227 = vpop.f32.mrb[0].mxu0
        %11228 = vmatprep.mubr.bf16.mxu0 0
        %11229 = vmatmul.mubr.bf16.gmra.mrb[0].mxu0 %v11025
        %v11230 = vpop.f32.mrb[0].mxu0
        %v11231 = vadd.f32 0.0, %v11230
        %v11232 = vpop.f32.mrb[0].mxu0
        %v11233 = vpop.f32.mrb[0].mxu0
        %v11234 = vadd.f32 0.0, %v11233
        %v11235 = vpop.f32.mrb[0].mxu0
        %11236 = vmatprep.mubr.bf16.mxu0 0
        %11237 = vmatmul.mubr.bf16.gmra.mrb[0].mxu0 %v11026
        %v11238 = vpop.f32.mrb[0].mxu0
        %v11239 = vadd.f32 0.0, %v11238
        %v11240 = vpop.f32.mrb[0].mxu0
        %v11241 = vpop.f32.mrb[0].mxu0
        %v11242 = vadd.f32 0.0, %v11241
        %v11243 = vpop.f32.mrb[0].mxu0
        %11244 = vmatprep.mubr.bf16.mxu0 0
        %11245 = vmatmul.mubr.bf16.gmra.mrb[0].mxu0 %v11027
        %v11246 = vpop.f32.mrb[0].mxu0
        %v11247 = vadd.f32 0.0, %v11246
        %v11248 = vpop.f32.mrb[0].mxu0
        %v11249 = vpop.f32.mrb[0].mxu0
        %v11250 = vadd.f32 0.0, %v11249
        %v11251 = vpop.f32.mrb[0].mxu0
        %11252 = vdwg.mxu0
        %v11253 = vadd.f32 %v10755, %v11127
        %v11254 = vadd.f32 %v10756, %v11130
        %v11255 = vadd.f32 %v10757, %v11135
        %v11256 = vadd.f32 %v10758, %v11138
        %v11257 = vadd.f32 %v10759, %v11143
        %v11258 = vadd.f32 %v10760, %v11146
        %v11259 = vadd.f32 %v10761, %v11151
        %v11260 = vadd.f32 %v10762, %v11154
        %v11261 = vadd.f32 %v10763, %v11159
        %v11262 = vadd.f32 %v10764, %v11162
        %v11263 = vadd.f32 %v10765, %v11167
        %v11264 = vadd.f32 %v10766, %v11170
        %v11265 = vadd.f32 %v10767, %v11175
        %v11266 = vadd.f32 %v10768, %v11178
        %v11267 = vadd.f32 %v10769, %v11183
        %v11268 = vadd.f32 %v10770, %v11186
        %v11269 = vadd.f32 %v10771, %v11191
        %v11270 = vadd.f32 %v10772, %v11194
        %v11271 = vadd.f32 %v10773, %v11199
        %v11272 = vadd.f32 %v10774, %v11202
        %v11273 = vadd.f32 %v10775, %v11207
        %v11274 = vadd.f32 %v10776, %v11210
        %v11275 = vadd.f32 %v10777, %v11215
        %v11276 = vadd.f32 %v10778, %v11218
        %v11277 = vadd.f32 %v10779, %v11223
        %v11278 = vadd.f32 %v10780, %v11226
        %v11279 = vadd.f32 %v10781, %v11231
        %v11280 = vadd.f32 %v10782, %v11234
        %v11281 = vadd.f32 %v10783, %v11239
        %v11282 = vadd.f32 %v10784, %v11242
        %v11283 = vadd.f32 %v10785, %v11247
        %v11284 = vadd.f32 %v10786, %v11250
        %v11285 = vld [vmem:[%s4] sm:$0x1]
        %v11287 = vlaneseq
        %v11288 = vshrl.u32 %v11287, 7
        %v11289 = vsub.s32 0, %v11288
        %v11290 = vrot.slane %v11285, %v11289
        %v11292 = vadd.f32 %v11253, %v11290
        %v11293 = vadd.f32 %v11254, %v11290
        %v11294 = vadd.f32 %v11255, %v11290
        %v11295 = vadd.f32 %v11256, %v11290
        %v11296 = vadd.f32 %v11257, %v11290
        %v11297 = vadd.f32 %v11258, %v11290
        %v11298 = vadd.f32 %v11259, %v11290
        %v11299 = vadd.f32 %v11260, %v11290
        %v11300 = vadd.f32 %v11261, %v11290
        %v11301 = vadd.f32 %v11262, %v11290
        %v11302 = vadd.f32 %v11263, %v11290
        %v11303 = vadd.f32 %v11264, %v11290
        %v11304 = vadd.f32 %v11265, %v11290
        %v11305 = vadd.f32 %v11266, %v11290
        %v11306 = vadd.f32 %v11267, %v11290
        %v11307 = vadd.f32 %v11268, %v11290
        %v11308 = vadd.f32 %v11269, %v11290
        %v11309 = vadd.f32 %v11270, %v11290
        %v11310 = vadd.f32 %v11271, %v11290
        %v11311 = vadd.f32 %v11272, %v11290
        %v11312 = vadd.f32 %v11273, %v11290
        %v11313 = vadd.f32 %v11274, %v11290
        %v11314 = vadd.f32 %v11275, %v11290
        %v11315 = vadd.f32 %v11276, %v11290
        %v11316 = vadd.f32 %v11277, %v11290
        %v11317 = vadd.f32 %v11278, %v11290
        %v11318 = vadd.f32 %v11279, %v11290
        %v11319 = vadd.f32 %v11280, %v11290
        %v11320 = vadd.f32 %v11281, %v11290
        %v11321 = vadd.f32 %v11282, %v11290
        %v11322 = vadd.f32 %v11283, %v11290
        %v11323 = vadd.f32 %v11284, %v11290
        %v11324 = vadd.f32 %v11292, %v476
        %v11325 = vadd.f32 %v11293, %v477
        %v11326 = vadd.f32 %v11294, %v478
        %v11327 = vadd.f32 %v11295, %v479
        %v11328 = vadd.f32 %v11296, %v480
        %v11329 = vadd.f32 %v11297, %v481
        %v11330 = vadd.f32 %v11298, %v482
        %v11331 = vadd.f32 %v11299, %v483
        %v11332 = vadd.f32 %v11300, %v484
        %v11333 = vadd.f32 %v11301, %v485
        %v11334 = vadd.f32 %v11302, %v486
        %v11335 = vadd.f32 %v11303, %v487
        %v11336 = vadd.f32 %v11304, %v488
        %v11337 = vadd.f32 %v11305, %v489
        %v11338 = vadd.f32 %v11306, %v490
        %v11339 = vadd.f32 %v11307, %v491
        %v11340 = vadd.f32 %v11308, %v492
        %v11341 = vadd.f32 %v11309, %v493
        %v11342 = vadd.f32 %v11310, %v494
        %v11343 = vadd.f32 %v11311, %v495
        %v11344 = vadd.f32 %v11312, %v496
        %v11345 = vadd.f32 %v11313, %v497
        %v11346 = vadd.f32 %v11314, %v498
        %v11347 = vadd.f32 %v11315, %v499
        %v11348 = vadd.f32 %v11316, %v500
        %v11349 = vadd.f32 %v11317, %v501
        %v11350 = vadd.f32 %v11318, %v502
        %v11351 = vadd.f32 %v11319, %v503
        %v11352 = vadd.f32 %v11320, %v504
        %v11353 = vadd.f32 %v11321, %v505
        %v11354 = vadd.f32 %v11322, %v506
        %v11355 = vadd.f32 %v11323, %v507
        %v11356 = vmax.f32 %v11324, 0.0
        %v11357 = vmax.f32 %v11325, 0.0
        %v11358 = vmax.f32 %v11326, 0.0
        %v11359 = vmax.f32 %v11327, 0.0
        %v11360 = vmax.f32 %v11328, 0.0
        %v11361 = vmax.f32 %v11329, 0.0
        %v11362 = vmax.f32 %v11330, 0.0
        %v11363 = vmax.f32 %v11331, 0.0
        %v11364 = vmax.f32 %v11332, 0.0
        %v11365 = vmax.f32 %v11333, 0.0
        %v11366 = vmax.f32 %v11334, 0.0
        %v11367 = vmax.f32 %v11335, 0.0
        %v11368 = vmax.f32 %v11336, 0.0
        %v11369 = vmax.f32 %v11337, 0.0
        %v11370 = vmax.f32 %v11338, 0.0
        %v11371 = vmax.f32 %v11339, 0.0
        %v11372 = vmax.f32 %v11340, 0.0
        %v11373 = vmax.f32 %v11341, 0.0
        %v11374 = vmax.f32 %v11342, 0.0
        %v11375 = vmax.f32 %v11343, 0.0
        %v11376 = vmax.f32 %v11344, 0.0
        %v11377 = vmax.f32 %v11345, 0.0
        %v11378 = vmax.f32 %v11346, 0.0
        %v11379 = vmax.f32 %v11347, 0.0
        %v11380 = vmax.f32 %v11348, 0.0
        %v11381 = vmax.f32 %v11349, 0.0
        %v11382 = vmax.f32 %v11350, 0.0
        %v11383 = vmax.f32 %v11351, 0.0
        %v11384 = vmax.f32 %v11352, 0.0
        %v11385 = vmax.f32 %v11353, 0.0
        %v11386 = vmax.f32 %v11354, 0.0
        %v11387 = vmax.f32 %v11355, 0.0
        %11388 = vst.msk [vmem:[%s239] sm:$0xff] %vm524, %v11356
        %11389 = vst.msk [vmem:[%s239 + $0x8] sm:$0xff] %vm524, %v11357
        %11390 = vst.msk [vmem:[%s239 + $0x10] sm:$0xff] %vm524, %v11358
        %11391 = vst.msk [vmem:[%s239 + $0x18] sm:$0xff] %vm524, %v11359
        %11392 = vst.msk [vmem:[%s239 + $0x20] sm:$0xff] %vm524, %v11360
        %11393 = vst.msk [vmem:[%s239 + $0x28] sm:$0xff] %vm524, %v11361
        %11394 = vst.msk [vmem:[%s239 + $0x30] sm:$0xff] %vm524, %v11362
        %11395 = vst.msk [vmem:[%s239 + $0x38] sm:$0xff] %vm524, %v11363
        %11396 = vst.msk [vmem:[%s239 + $0x40] sm:$0xff] %vm524, %v11364
        %11397 = vst.msk [vmem:[%s239 + $0x48] sm:$0xff] %vm524, %v11365
        %11398 = vst.msk [vmem:[%s239 + $0x50] sm:$0xff] %vm524, %v11366
        %11399 = vst.msk [vmem:[%s239 + $0x58] sm:$0xff] %vm524, %v11367
        %11400 = vst.msk [vmem:[%s239 + $0x60] sm:$0xff] %vm524, %v11368
        %11401 = vst.msk [vmem:[%s239 + $0x68] sm:$0xff] %vm524, %v11369
        %11402 = vst.msk [vmem:[%s239 + $0x70] sm:$0xff] %vm524, %v11370
        %11403 = vst.msk [vmem:[%s239 + $0x78] sm:$0xff] %vm524, %v11371
        %11404 = vst.msk [vmem:[%s239 + $0x80] sm:$0xff] %vm524, %v11372
        %11405 = vst.msk [vmem:[%s239 + $0x88] sm:$0xff] %vm524, %v11373
        %11406 = vst.msk [vmem:[%s239 + $0x90] sm:$0xff] %vm524, %v11374
        %11407 = vst.msk [vmem:[%s239 + $0x98] sm:$0xff] %vm524, %v11375
        %11408 = vst.msk [vmem:[%s239 + $0xa0] sm:$0xff] %vm524, %v11376
        %11409 = vst.msk [vmem:[%s239 + $0xa8] sm:$0xff] %vm524, %v11377
        %11410 = vst.msk [vmem:[%s239 + $0xb0] sm:$0xff] %vm524, %v11378
        %11411 = vst.msk [vmem:[%s239 + $0xb8] sm:$0xff] %vm524, %v11379
        %11412 = vst.msk [vmem:[%s239 + $0xc0] sm:$0xff] %vm524, %v11380
        %11413 = vst.msk [vmem:[%s239 + $0xc8] sm:$0xff] %vm524, %v11381
        %11414 = vst.msk [vmem:[%s239 + $0xd0] sm:$0xff] %vm524, %v11382
        %11415 = vst.msk [vmem:[%s239 + $0xd8] sm:$0xff] %vm524, %v11383
        %11416 = vst.msk [vmem:[%s239 + $0xe0] sm:$0xff] %vm524, %v11384
        %11417 = vst.msk [vmem:[%s239 + $0xe8] sm:$0xff] %vm524, %v11385
        %11418 = vst.msk [vmem:[%s239 + $0xf0] sm:$0xff] %vm524, %v11386
        %11419 = vst.msk [vmem:[%s239 + $0xf8] sm:$0xff] %vm524, %v11387
        %p11420 = scmp.lt.s32.totalorder %s17, 1
        %s11421 = scalar_select %p11420, %s17, 1
        %s11422 = smul.addr %s11421, 32
        %s11423 = smul.addr %s11422, 8
        %s11424 = scalar_lea.vmem %s5, %s11423
        // Predicated region
        $region45: #{tpu_custom_call.1} parent=39 // pred_check
          %p11425 = pneg %p145
        $region46: #{tpu_custom_call.1} parent=39 // pred_check_branch
          %11427 = sbr.rel (%p11425) target = $region48
        $region47: #{tpu_custom_call.1} parent=39 // pred_region
          _
        $region48: #{tpu_custom_call.1} parent=39 // pred_fallthru
          _
      $region40: #{tpu_custom_call.1} parent=5 // pred_fallthru
        _
      %p11428 = scmp.le.s32.totalorder 2, %s12
      // Predicated region
      $region49: #{tpu_custom_call.1} parent=5 // pred_check
        %p11429 = pneg %p11428
      $region50: #{tpu_custom_call.1} parent=5 // pred_check_branch
        %11431 = sbr.rel (%p11429) target = $region52
      $region51: #{tpu_custom_call.1} parent=5 // pred_region
        %s11432 = ssub.s32 %s12, 2
        // Predicated region
        $region53: #{tpu_custom_call.1} parent=51 // pred_check
          %p11433 = pneg %p151
        $region54: #{tpu_custom_call.1} parent=51 // pred_check_branch
          %11435 = sbr.rel (%p11433) target = $region56
        $region55: #{tpu_custom_call.1} parent=51 // pred_region
          %p11436 = scmp.lt.s32.totalorder %s18, 1
          %s11437 = scalar_select %p11436, %s18, 1
          %s11438 = smul.addr %s11437, 32
          %s11439 = smul.addr %s11438, 8
          %s11440 = scalar_lea.vmem %s5, %s11439
        $region56: #{tpu_custom_call.1} parent=51 // pred_fallthru
          _
      $region52: #{tpu_custom_call.1} parent=5 // pred_fallthru
        _
    $region6: #{tpu_custom_call.1} parent=1 // loop_footer
      %s16 = sadd.s32 1, %s12
    $region7: #{tpu_custom_call.1} parent=1 // loop_footer_branch
      %11 = sbr.rel target = $region3
    $region8: #{tpu_custom_call.1} parent=1 // loop_exit
      _
    %11441 = vsyncpa [#allocation5], 1
    %s11442 = scalar_lea.sflag [#allocation5], 1
    %11443 = vsyncpa %s11442, 1

</llo_original>
